<compile_context>
chip_gen: v7x
topology: tpu7x:2x2x1
jax: 0.10.0
libtpu: 0.0.40
codegen_flags: <defaults>
</compile_context>

<pallas_src>
import jax
import jax.numpy as jnp
from jax.experimental import pallas as pl
from jax.experimental.pallas import tpu as pltpu

# ---------------- static configuration (small, TPU-friendly) ----------------
EMBED_DIMS  = 64
NUM_HEADS   = 2
HEAD_DIM    = EMBED_DIMS // NUM_HEADS
MLP_RATIO   = 4.0
HIDDEN      = int(EMBED_DIMS * MLP_RATIO)
INPUT_SHAPE = (8, 16)                           # (H, W)
SEQ_LEN     = INPUT_SHAPE[0] * INPUT_SHAPE[1]   # L = 128
BATCH       = 4                                 # total batch
B_BLK       = BATCH                             # grid=(1,) -> single TC (v5e/v6e);
                                                # set BATCH//2 + core-parallel on v7x
LN_EPS      = 1e-6
SCALE       = HEAD_DIM ** -0.5
INV_SQRT2   = 0.7071067811865476
ROWS        = B_BLK * SEQ_LEN                   # rows per grid step


# ------------------------------ kernel helpers -------------------------------
def _layer_norm(x, gamma, beta):
    mu = jnp.mean(x, axis=-1, keepdims=True)
    xc = x - mu
    var = jnp.mean(xc * xc, axis=-1, keepdims=True)
    return xc * jax.lax.rsqrt(var + LN_EPS) * gamma + beta


def _gelu(x):
    # Exact (erf-based) GELU, matching PyTorch nn.GELU default.
    # erf via Abramowitz & Stegun 7.1.26 (|err| <= 1.5e-7): exp + mul/add only.
    # The divide is moved to the EUP via approx reciprocal (VALU is the binding
    # slot in this phase; ~2^-12 extra relative error is negligible here).
    z = x * INV_SQRT2
    a = jnp.abs(z)
    t = pl.reciprocal(1.0 + 0.3275911 * a, approx=True)
    poly = t * (0.254829592 + t * (-0.284496736 + t * (1.421413741
             + t * (-1.453152027 + t * 1.061405429))))
    erf_abs = 1.0 - poly * jnp.exp(-a * a)
    erf_z = jnp.where(z < 0, -erf_abs, erf_abs)
    return 0.5 * x * (1.0 + erf_z)


# --------------------------------- kernel ------------------------------------
def mixing_block_kernel(x_ref, wqkv_ref, wproj_ref, bproj_ref,
                        g1_ref, be1_ref, g2_ref, be2_ref,
                        w1_ref, b1_ref, w2_ref, b2_ref, o_ref):
    x = x_ref[...]                               # (R, C) f32, R = B_BLK * L
    x_bf = x.astype(jnp.bfloat16)

    # ---- AttnMixer: Global multi-head self-attention, qkv_bias=False ----
    # Fused QKV projection: single wide matmul (attention scale pre-folded
    # into the Q columns of the weight at pack time).
    qkv = jnp.dot(x_bf, wqkv_ref[...], preferred_element_type=jnp.float32)
    qkv_bf = qkv.astype(jnp.bfloat16)            # (R, 3C)

    mixed = None
    for h in range(NUM_HEADS):                   # static unroll (NUM_HEADS = 2)
        qo = h * HEAD_DIM
        ko = EMBED_DIMS + h * HEAD_DIM
        vo = 2 * EMBED_DIMS + h * HEAD_DIM
        qh = qkv_bf[:, qo:qo + HEAD_DIM].reshape(B_BLK, SEQ_LEN, HEAD_DIM)
        kh = qkv_bf[:, ko:ko + HEAD_DIM].reshape(B_BLK, SEQ_LEN, HEAD_DIM)
        vh = qkv_bf[:, vo:vo + HEAD_DIM].reshape(B_BLK, SEQ_LEN, HEAD_DIM)

        # Batched attention over B_BLK (q @ k^T expressed without materializing
        # a transpose); softmax normalization deferred past the PV matmul.
        logits = jnp.einsum('bld,bmd->blm', qh, kh,
                            preferred_element_type=jnp.float32)
        logits = logits - jnp.max(logits, axis=-1, keepdims=True)
        p = jnp.exp(logits)                      # unnormalized, <= 1, bf16-safe
        inv = pl.reciprocal(jnp.sum(p, axis=-1, keepdims=True), approx=True)
        ob = jnp.einsum('blm,bmd->bld', p.astype(jnp.bfloat16), vh,
                        preferred_element_type=jnp.float32) * inv
        ob2 = ob.reshape(B_BLK * SEQ_LEN, HEAD_DIM)          # (R, HEAD_DIM)

        # Per-head partial output projection, accumulated (no lane concat).
        part = jnp.dot(ob2.astype(jnp.bfloat16), wproj_ref[h],
                       preferred_element_type=jnp.float32)   # (R, C)
        mixed = part if mixed is None else mixed + part
    mixed = mixed + bproj_ref[...]               # (R, C)

    # prenorm=True:  x = norm1(x + mixer(x))
    x1 = _layer_norm(x + mixed, g1_ref[...], be1_ref[...])

    # ---- MLP: fc1 -> GELU (exact erf) -> fc2 ----
    h1 = jnp.dot(x1.astype(jnp.bfloat16), w1_ref[...],
                 preferred_element_type=jnp.float32) + b1_ref[...]
    h1 = _gelu(h1)
    mlp = jnp.dot(h1.astype(jnp.bfloat16), w2_ref[...],
                  preferred_element_type=jnp.float32) + b2_ref[...]

    # prenorm=True:  x = norm2(x + mlp(x))
    x2 = _layer_norm(x1 + mlp, g2_ref[...], be2_ref[...])
    o_ref[...] = x2.astype(o_ref.dtype)


# -------------------------------- wrapper -------------------------------------
def _full_spec(shape):
    zeros = (0,) * len(shape)
    return pl.BlockSpec(shape, lambda i, _z=zeros: _z)


def _pack_params(params):
    """Pre-fuse / split weights into the kernel layout; MXU weights -> bf16."""
    C, NH, HD = EMBED_DIMS, NUM_HEADS, HEAD_DIM
    # Fused QKV weight (C, 3C); attention scale folded into the Q columns.
    w_qkv = jnp.concatenate(
        [params["wq"] * SCALE, params["wk"], params["wv"]], axis=1)
    return [
        w_qkv.astype(jnp.bfloat16),
        params["wproj"].reshape(NH, HD, C).astype(jnp.bfloat16),
        params["bproj"],                          # biases / LN params stay f32
        params["g1"], params["be1"], params["g2"], params["be2"],
        params["w1"].astype(jnp.bfloat16), params["b1"],
        params["w2"].astype(jnp.bfloat16), params["b2"],
    ]


def mixing_block(x, params):
    n, l, c = x.shape
    assert l == SEQ_LEN and c == EMBED_DIMS and n % B_BLK == 0
    rows = B_BLK * l
    x2d = x.reshape(n * l, c)                    # 2-D slab, rows = batch*seq
    plist = _pack_params(params)

    in_specs = [pl.BlockSpec((rows, c), lambda i: (i, 0))]
    in_specs += [_full_spec(p.shape) for p in plist]

    out = pl.pallas_call(
        mixing_block_kernel,
        out_shape=jax.ShapeDtypeStruct((n * l, c), x.dtype),
        grid_spec=pltpu.PrefetchScalarGridSpec(
            num_scalar_prefetch=0,
            grid=(n // B_BLK,),                   # (1,) with B_BLK = BATCH
            in_specs=in_specs,
            out_specs=pl.BlockSpec((rows, c), lambda i: (i, 0)),
        ),
        compiler_params=pltpu.CompilerParams(
            dimension_semantics=("parallel",)),
    )(x2d, *plist)
    return out.reshape(n, l, c)


# --------------------------- parameter construction ---------------------------
def init_params(key):
    ks = jax.random.split(key, 8)
    s = 0.05
    f32 = jnp.float32
    return {
        # AttnMixer: qkv (no bias) split into q/k/v, proj (+bias); all stored
        # pre-transposed to (in_features, out_features).
        "wq":    jax.random.normal(ks[0], (EMBED_DIMS, EMBED_DIMS), f32) * s,
        "wk":    jax.random.normal(ks[1], (EMBED_DIMS, EMBED_DIMS), f32) * s,
        "wv":    jax.random.normal(ks[2], (EMBED_DIMS, EMBED_DIMS), f32) * s,
        "wproj": jax.random.normal(ks[3], (EMBED_DIMS, EMBED_DIMS), f32) * s,
        "bproj": jax.random.normal(ks[4], (1, EMBED_DIMS), f32) * 0.01,
        # LayerNorm 1 / 2 (default init: gamma=1, beta=0)
        "g1":  jnp.ones((1, EMBED_DIMS), f32),
        "be1": jnp.zeros((1, EMBED_DIMS), f32),
        "g2":  jnp.ones((1, EMBED_DIMS), f32),
        "be2": jnp.zeros((1, EMBED_DIMS), f32),
        # MLP: fc1 (+bias), fc2 (+bias)
        "w1": jax.random.normal(ks[5], (EMBED_DIMS, HIDDEN), f32) * s,
        "b1": jax.random.normal(ks[6], (1, HIDDEN), f32) * 0.01,
        "w2": jax.random.normal(ks[7], (HIDDEN, EMBED_DIMS), f32) * s,
        "b2": jnp.zeros((1, EMBED_DIMS), f32),
    }


# ------------------------------ pure-JAX reference -----------------------------
def reference(x, p):
    def ln(t, g, b):
        mu = t.mean(-1, keepdims=True)
        tc = t - mu
        var = (tc * tc).mean(-1, keepdims=True)
        return tc / jnp.sqrt(var + LN_EPS) * g + b

    q = x @ p["wq"]
    k = x @ p["wk"]
    v = x @ p["wv"]
    outs = []
    for h in range(NUM_HEADS):
        s = h * HEAD_DIM
        qh = q[..., s:s + HEAD_DIM]
        kh = k[..., s:s + HEAD_DIM]
        vh = v[..., s:s + HEAD_DIM]
        logits = jnp.einsum("nld,nmd->nlm", qh, kh) * SCALE
        pr = jax.nn.softmax(logits, axis=-1)
        outs.append(jnp.einsum("nlm,nmd->nld", pr, vh))
    mixed = jnp.concatenate(outs, axis=-1) @ p["wproj"] + p["bproj"]
    x = ln(x + mixed, p["g1"], p["be1"])
    h1 = jax.nn.gelu(x @ p["w1"] + p["b1"], approximate=False)  # exact erf GELU
    mlp = h1 @ p["w2"] + p["b2"]
    return ln(x + mlp, p["g2"], p["be2"])


# ----------------------------------- main --------------------------------------
if __name__ == "__main__":
    key = jax.random.PRNGKey(0)
    kx, kp = jax.random.split(key)
    x = jax.random.normal(kx, (BATCH, SEQ_LEN, EMBED_DIMS), jnp.float32)
    params = init_params(kp)

    out = jax.block_until_ready(mixing_block(x, params))

    ref = reference(x, params)
    assert out.shape == (BATCH, SEQ_LEN, EMBED_DIMS)
    assert bool(jnp.all(jnp.isfinite(out)))
    max_err = float(jnp.max(jnp.abs(out - ref)))
    assert max_err < 5e-2, f"mismatch vs reference: {max_err}"

    print("KERNEL_OK")
</pallas_src>

<mosaic_0001>
module attributes {stable_mosaic.version = 11 : i64} {
  func.func @mixing_block_kernel(%arg0: i32, %arg1: memref<512x64xf32, #tpu.memory_space<vmem>>, %arg2: memref<64x192xbf16, #tpu.memory_space<vmem>>, %arg3: memref<2x32x64xbf16, #tpu.memory_space<vmem>>, %arg4: memref<1x64xf32, #tpu.memory_space<vmem>>, %arg5: memref<1x64xf32, #tpu.memory_space<vmem>>, %arg6: memref<1x64xf32, #tpu.memory_space<vmem>>, %arg7: memref<1x64xf32, #tpu.memory_space<vmem>>, %arg8: memref<1x64xf32, #tpu.memory_space<vmem>>, %arg9: memref<64x256xbf16, #tpu.memory_space<vmem>>, %arg10: memref<1x256xf32, #tpu.memory_space<vmem>>, %arg11: memref<256x64xbf16, #tpu.memory_space<vmem>>, %arg12: memref<1x64xf32, #tpu.memory_space<vmem>>, %arg13: memref<512x64xf32, #tpu.memory_space<vmem>>) attributes {dimension_semantics = [#tpu.dimension_semantics<parallel>], iteration_bounds = array<i64: 1>, scalar_prefetch = 0 : i64, scratch_operands = 0 : i64, tpu.core_type = #tpu.core_type<tc>, window_params = [{transform_indices = @transform_0, window_bounds = array<i64: 512, 64>}, {pipeline_mode = #tpu.pipeline_mode<synchronous>, transform_indices = @transform_1, window_bounds = array<i64: 64, 192>}, {pipeline_mode = #tpu.pipeline_mode<synchronous>, transform_indices = @transform_2, window_bounds = array<i64: 2, 32, 64>}, {pipeline_mode = #tpu.pipeline_mode<synchronous>, transform_indices = @transform_3, window_bounds = array<i64: 1, 64>}, {pipeline_mode = #tpu.pipeline_mode<synchronous>, transform_indices = @transform_4, window_bounds = array<i64: 1, 64>}, {pipeline_mode = #tpu.pipeline_mode<synchronous>, transform_indices = @transform_5, window_bounds = array<i64: 1, 64>}, {pipeline_mode = #tpu.pipeline_mode<synchronous>, transform_indices = @transform_6, window_bounds = array<i64: 1, 64>}, {pipeline_mode = #tpu.pipeline_mode<synchronous>, transform_indices = @transform_7, window_bounds = array<i64: 1, 64>}, {pipeline_mode = #tpu.pipeline_mode<synchronous>, transform_indices = @transform_8, window_bounds = array<i64: 64, 256>}, {pipeline_mode = #tpu.pipeline_mode<synchronous>, transform_indices = @transform_9, window_bounds = array<i64: 1, 256>}, {pipeline_mode = #tpu.pipeline_mode<synchronous>, transform_indices = @transform_10, window_bounds = array<i64: 256, 64>}, {pipeline_mode = #tpu.pipeline_mode<synchronous>, transform_indices = @transform_11, window_bounds = array<i64: 1, 64>}, {transform_indices = @transform_12, window_bounds = array<i64: 512, 64>}]} {
    %c0 = arith.constant 0 : index
    %c0_0 = arith.constant 0 : index
    %0 = vector.load %arg1[%c0, %c0_0] : memref<512x64xf32, #tpu.memory_space<vmem>>, vector<512x64xf32>
    %1 = arith.truncf %0 : vector<512x64xf32> to vector<512x64xbf16>
    %c0_1 = arith.constant 0 : index
    %c0_2 = arith.constant 0 : index
    %2 = vector.load %arg2[%c0_1, %c0_2] : memref<64x192xbf16, #tpu.memory_space<vmem>>, vector<64x192xbf16>
    %cst = arith.constant dense<0.000000e+00> : vector<512x192xf32>
    %3 = tpu.matmul %1, %2, %cst {dimension_numbers = #tpu.dot_dimension_numbers<[1], [0], [0], [1], [0, 0, 1, 1], [], []>} : vector<512x64xbf16>, vector<64x192xbf16>, vector<512x192xf32> -> vector<512x192xf32>
    %4 = arith.truncf %3 : vector<512x192xf32> to vector<512x192xbf16>
    %5 = vector.extract_strided_slice %4 {offsets = [0, 0], sizes = [512, 32], strides = [1, 1]} : vector<512x192xbf16> to vector<512x32xbf16>
    %6 = vector.shape_cast %5 : vector<512x32xbf16> to vector<4x128x32xbf16>
    %7 = vector.extract_strided_slice %4 {offsets = [0, 64], sizes = [512, 32], strides = [1, 1]} : vector<512x192xbf16> to vector<512x32xbf16>
    %8 = vector.shape_cast %7 : vector<512x32xbf16> to vector<4x128x32xbf16>
    %9 = vector.extract_strided_slice %4 {offsets = [0, 128], sizes = [512, 32], strides = [1, 1]} : vector<512x192xbf16> to vector<512x32xbf16>
    %10 = vector.shape_cast %9 : vector<512x32xbf16> to vector<4x128x32xbf16>
    "tpu.trace_start"() <{level = 10 : i32, message = "bld,bmd->blm"}> : () -> ()
    %cst_3 = arith.constant dense<0.000000e+00> : vector<4x128x128xf32>
    %11 = tpu.matmul %6, %8, %cst_3 {dimension_numbers = #tpu.dot_dimension_numbers<[2], [2], [1], [1], [0, 0, 0, 1, 1, 1], [0], [0]>} : vector<4x128x32xbf16>, vector<4x128x32xbf16>, vector<4x128x128xf32> -> vector<4x128x128xf32>
    "tpu.trace_stop"() : () -> ()
    %cst_4 = arith.constant dense<0xFF800000> : vector<4x128xf32>
    %12 = vector.multi_reduction <maximumf>, %11, %cst_4 [2] : vector<4x128x128xf32> to vector<4x128xf32>
    %13 = vector.shape_cast %12 : vector<4x128xf32> to vector<4x128x1xf32>
    %14 = vector.broadcast %13 : vector<4x128x1xf32> to vector<4x128x128xf32>
    %15 = arith.subf %11, %14 : vector<4x128x128xf32>
    %16 = math.exp %15 : vector<4x128x128xf32>
    %cst_5 = arith.constant dense<0.000000e+00> : vector<4x128xf32>
    %17 = vector.multi_reduction <add>, %16, %cst_5 [2] : vector<4x128x128xf32> to vector<4x128xf32>
    %18 = vector.shape_cast %17 : vector<4x128xf32> to vector<4x128x1xf32>
    %19 = tpu.reciprocal %18 {approx = true} : vector<4x128x1xf32> -> vector<4x128x1xf32>
    %20 = arith.truncf %16 : vector<4x128x128xf32> to vector<4x128x128xbf16>
    "tpu.trace_start"() <{level = 10 : i32, message = "blm,bmd->bld"}> : () -> ()
    %cst_6 = arith.constant dense<0.000000e+00> : vector<4x128x32xf32>
    %21 = tpu.matmul %20, %10, %cst_6 {dimension_numbers = #tpu.dot_dimension_numbers<[2], [1], [1], [2], [0, 0, 0, 1, 1, 2], [0], [0]>} : vector<4x128x128xbf16>, vector<4x128x32xbf16>, vector<4x128x32xf32> -> vector<4x128x32xf32>
    "tpu.trace_stop"() : () -> ()
    %22 = vector.broadcast %19 : vector<4x128x1xf32> to vector<4x128x32xf32>
    %23 = arith.mulf %21, %22 : vector<4x128x32xf32>
    %24 = vector.shape_cast %23 : vector<4x128x32xf32> to vector<512x32xf32>
    %25 = arith.truncf %24 : vector<512x32xf32> to vector<512x32xbf16>
    %c0_7 = arith.constant 0 : index
    %c0_8 = arith.constant 0 : index
    %c0_9 = arith.constant 0 : index
    %26 = vector.load %arg3[%c0_7, %c0_8, %c0_9] : memref<2x32x64xbf16, #tpu.memory_space<vmem>>, vector<1x32x64xbf16>
    %27 = vector.shape_cast %26 : vector<1x32x64xbf16> to vector<32x64xbf16>
    %cst_10 = arith.constant dense<0.000000e+00> : vector<512x64xf32>
    %28 = tpu.matmul %25, %27, %cst_10 {dimension_numbers = #tpu.dot_dimension_numbers<[1], [0], [0], [1], [0, 0, 1, 1], [], []>} : vector<512x32xbf16>, vector<32x64xbf16>, vector<512x64xf32> -> vector<512x64xf32>
    %29 = vector.extract_strided_slice %4 {offsets = [0, 32], sizes = [512, 32], strides = [1, 1]} : vector<512x192xbf16> to vector<512x32xbf16>
    %30 = vector.shape_cast %29 : vector<512x32xbf16> to vector<4x128x32xbf16>
    %31 = vector.extract_strided_slice %4 {offsets = [0, 96], sizes = [512, 32], strides = [1, 1]} : vector<512x192xbf16> to vector<512x32xbf16>
    %32 = vector.shape_cast %31 : vector<512x32xbf16> to vector<4x128x32xbf16>
    %33 = vector.extract_strided_slice %4 {offsets = [0, 160], sizes = [512, 32], strides = [1, 1]} : vector<512x192xbf16> to vector<512x32xbf16>
    %34 = vector.shape_cast %33 : vector<512x32xbf16> to vector<4x128x32xbf16>
    "tpu.trace_start"() <{level = 10 : i32, message = "bld,bmd->blm"}> : () -> ()
    %cst_11 = arith.constant dense<0.000000e+00> : vector<4x128x128xf32>
    %35 = tpu.matmul %30, %32, %cst_11 {dimension_numbers = #tpu.dot_dimension_numbers<[2], [2], [1], [1], [0, 0, 0, 1, 1, 1], [0], [0]>} : vector<4x128x32xbf16>, vector<4x128x32xbf16>, vector<4x128x128xf32> -> vector<4x128x128xf32>
    "tpu.trace_stop"() : () -> ()
    %cst_12 = arith.constant dense<0xFF800000> : vector<4x128xf32>
    %36 = vector.multi_reduction <maximumf>, %35, %cst_12 [2] : vector<4x128x128xf32> to vector<4x128xf32>
    %37 = vector.shape_cast %36 : vector<4x128xf32> to vector<4x128x1xf32>
    %38 = vector.broadcast %37 : vector<4x128x1xf32> to vector<4x128x128xf32>
    %39 = arith.subf %35, %38 : vector<4x128x128xf32>
    %40 = math.exp %39 : vector<4x128x128xf32>
    %cst_13 = arith.constant dense<0.000000e+00> : vector<4x128xf32>
    %41 = vector.multi_reduction <add>, %40, %cst_13 [2] : vector<4x128x128xf32> to vector<4x128xf32>
    %42 = vector.shape_cast %41 : vector<4x128xf32> to vector<4x128x1xf32>
    %43 = tpu.reciprocal %42 {approx = true} : vector<4x128x1xf32> -> vector<4x128x1xf32>
    %44 = arith.truncf %40 : vector<4x128x128xf32> to vector<4x128x128xbf16>
    "tpu.trace_start"() <{level = 10 : i32, message = "blm,bmd->bld"}> : () -> ()
    %cst_14 = arith.constant dense<0.000000e+00> : vector<4x128x32xf32>
    %45 = tpu.matmul %44, %34, %cst_14 {dimension_numbers = #tpu.dot_dimension_numbers<[2], [1], [1], [2], [0, 0, 0, 1, 1, 2], [0], [0]>} : vector<4x128x128xbf16>, vector<4x128x32xbf16>, vector<4x128x32xf32> -> vector<4x128x32xf32>
    "tpu.trace_stop"() : () -> ()
    %46 = vector.broadcast %43 : vector<4x128x1xf32> to vector<4x128x32xf32>
    %47 = arith.mulf %45, %46 : vector<4x128x32xf32>
    %48 = vector.shape_cast %47 : vector<4x128x32xf32> to vector<512x32xf32>
    %49 = arith.truncf %48 : vector<512x32xf32> to vector<512x32xbf16>
    %c1 = arith.constant 1 : index
    %c0_15 = arith.constant 0 : index
    %c0_16 = arith.constant 0 : index
    %50 = vector.load %arg3[%c1, %c0_15, %c0_16] : memref<2x32x64xbf16, #tpu.memory_space<vmem>>, vector<1x32x64xbf16>
    %51 = vector.shape_cast %50 : vector<1x32x64xbf16> to vector<32x64xbf16>
    %cst_17 = arith.constant dense<0.000000e+00> : vector<512x64xf32>
    %52 = tpu.matmul %49, %51, %cst_17 {dimension_numbers = #tpu.dot_dimension_numbers<[1], [0], [0], [1], [0, 0, 1, 1], [], []>} : vector<512x32xbf16>, vector<32x64xbf16>, vector<512x64xf32> -> vector<512x64xf32>
    %53 = arith.addf %28, %52 : vector<512x64xf32>
    %c0_18 = arith.constant 0 : index
    %c0_19 = arith.constant 0 : index
    %54 = vector.load %arg4[%c0_18, %c0_19] : memref<1x64xf32, #tpu.memory_space<vmem>>, vector<1x64xf32>
    %55 = vector.broadcast %54 : vector<1x64xf32> to vector<512x64xf32>
    %56 = arith.addf %53, %55 : vector<512x64xf32>
    %57 = arith.addf %0, %56 : vector<512x64xf32>
    %c0_20 = arith.constant 0 : index
    %c0_21 = arith.constant 0 : index
    %58 = vector.load %arg5[%c0_20, %c0_21] : memref<1x64xf32, #tpu.memory_space<vmem>>, vector<1x64xf32>
    %c0_22 = arith.constant 0 : index
    %c0_23 = arith.constant 0 : index
    %59 = vector.load %arg6[%c0_22, %c0_23] : memref<1x64xf32, #tpu.memory_space<vmem>>, vector<1x64xf32>
    %cst_24 = arith.constant dense<0.000000e+00> : vector<512xf32>
    %60 = vector.multi_reduction <add>, %57, %cst_24 [1] : vector<512x64xf32> to vector<512xf32>
    %61 = vector.shape_cast %60 : vector<512xf32> to vector<512x1xf32>
    %cst_25 = arith.constant 6.400000e+01 : f32
    %62 = vector.broadcast %cst_25 : f32 to vector<512x1xf32>
    %63 = arith.divf %61, %62 : vector<512x1xf32>
    %64 = vector.broadcast %63 : vector<512x1xf32> to vector<512x64xf32>
    %65 = arith.subf %57, %64 : vector<512x64xf32>
    %66 = arith.mulf %65, %65 : vector<512x64xf32>
    %cst_26 = arith.constant dense<0.000000e+00> : vector<512xf32>
    %67 = vector.multi_reduction <add>, %66, %cst_26 [1] : vector<512x64xf32> to vector<512xf32>
    %68 = vector.shape_cast %67 : vector<512xf32> to vector<512x1xf32>
    %cst_27 = arith.constant 6.400000e+01 : f32
    %69 = vector.broadcast %cst_27 : f32 to vector<512x1xf32>
    %70 = arith.divf %68, %69 : vector<512x1xf32>
    %cst_28 = arith.constant 9.99999997E-7 : f32
    %71 = vector.broadcast %cst_28 : f32 to vector<512x1xf32>
    %72 = arith.addf %70, %71 : vector<512x1xf32>
    %73 = math.rsqrt %72 : vector<512x1xf32>
    %74 = vector.broadcast %73 : vector<512x1xf32> to vector<512x64xf32>
    %75 = arith.mulf %65, %74 : vector<512x64xf32>
    %76 = vector.broadcast %58 : vector<1x64xf32> to vector<512x64xf32>
    %77 = arith.mulf %75, %76 : vector<512x64xf32>
    %78 = vector.broadcast %59 : vector<1x64xf32> to vector<512x64xf32>
    %79 = arith.addf %77, %78 : vector<512x64xf32>
    %80 = arith.truncf %79 : vector<512x64xf32> to vector<512x64xbf16>
    %c0_29 = arith.constant 0 : index
    %c0_30 = arith.constant 0 : index
    %81 = vector.load %arg9[%c0_29, %c0_30] : memref<64x256xbf16, #tpu.memory_space<vmem>>, vector<64x256xbf16>
    %cst_31 = arith.constant dense<0.000000e+00> : vector<512x256xf32>
    %82 = tpu.matmul %80, %81, %cst_31 {dimension_numbers = #tpu.dot_dimension_numbers<[1], [0], [0], [1], [0, 0, 1, 1], [], []>} : vector<512x64xbf16>, vector<64x256xbf16>, vector<512x256xf32> -> vector<512x256xf32>
    %c0_32 = arith.constant 0 : index
    %c0_33 = arith.constant 0 : index
    %83 = vector.load %arg10[%c0_32, %c0_33] : memref<1x256xf32, #tpu.memory_space<vmem>>, vector<1x256xf32>
    %84 = vector.broadcast %83 : vector<1x256xf32> to vector<512x256xf32>
    %85 = arith.addf %82, %84 : vector<512x256xf32>
    %cst_34 = arith.constant 0.707106769 : f32
    %86 = vector.broadcast %cst_34 : f32 to vector<512x256xf32>
    %87 = arith.mulf %85, %86 : vector<512x256xf32>
    %88 = math.absf %87 : vector<512x256xf32>
    %cst_35 = arith.constant 0.327591091 : f32
    %89 = vector.broadcast %cst_35 : f32 to vector<512x256xf32>
    %90 = arith.mulf %89, %88 : vector<512x256xf32>
    %cst_36 = arith.constant 1.000000e+00 : f32
    %91 = vector.broadcast %cst_36 : f32 to vector<512x256xf32>
    %92 = arith.addf %91, %90 : vector<512x256xf32>
    %93 = tpu.reciprocal %92 {approx = true} : vector<512x256xf32> -> vector<512x256xf32>
    %cst_37 = arith.constant 1.06140542 : f32
    %94 = vector.broadcast %cst_37 : f32 to vector<512x256xf32>
    %95 = arith.mulf %93, %94 : vector<512x256xf32>
    %cst_38 = arith.constant -1.45315206 : f32
    %96 = vector.broadcast %cst_38 : f32 to vector<512x256xf32>
    %97 = arith.addf %96, %95 : vector<512x256xf32>
    %98 = arith.mulf %93, %97 : vector<512x256xf32>
    %cst_39 = arith.constant 1.42141378 : f32
    %99 = vector.broadcast %cst_39 : f32 to vector<512x256xf32>
    %100 = arith.addf %99, %98 : vector<512x256xf32>
    %101 = arith.mulf %93, %100 : vector<512x256xf32>
    %cst_40 = arith.constant -0.284496725 : f32
    %102 = vector.broadcast %cst_40 : f32 to vector<512x256xf32>
    %103 = arith.addf %102, %101 : vector<512x256xf32>
    %104 = arith.mulf %93, %103 : vector<512x256xf32>
    %cst_41 = arith.constant 0.254829586 : f32
    %105 = vector.broadcast %cst_41 : f32 to vector<512x256xf32>
    %106 = arith.addf %105, %104 : vector<512x256xf32>
    %107 = arith.mulf %93, %106 : vector<512x256xf32>
    %cst_42 = arith.constant 0.000000e+00 : f32
    %108 = vector.broadcast %cst_42 : f32 to vector<512x256xf32>
    %109 = arith.subf %108, %88 : vector<512x256xf32>
    %110 = arith.mulf %109, %88 : vector<512x256xf32>
    %111 = math.exp %110 : vector<512x256xf32>
    %112 = arith.mulf %107, %111 : vector<512x256xf32>
    %cst_43 = arith.constant 1.000000e+00 : f32
    %113 = vector.broadcast %cst_43 : f32 to vector<512x256xf32>
    %114 = arith.subf %113, %112 : vector<512x256xf32>
    %cst_44 = arith.constant 0.000000e+00 : f32
    %115 = vector.broadcast %cst_44 : f32 to vector<512x256xf32>
    %116 = arith.cmpf olt, %87, %115 : vector<512x256xf32>
    %cst_45 = arith.constant 0.000000e+00 : f32
    %117 = vector.broadcast %cst_45 : f32 to vector<512x256xf32>
    %118 = arith.subf %117, %114 : vector<512x256xf32>
    %119 = arith.select %116, %118, %114 : vector<512x256xi1>, vector<512x256xf32>
    %cst_46 = arith.constant 5.000000e-01 : f32
    %120 = vector.broadcast %cst_46 : f32 to vector<512x256xf32>
    %121 = arith.mulf %120, %85 : vector<512x256xf32>
    %cst_47 = arith.constant 1.000000e+00 : f32
    %122 = vector.broadcast %cst_47 : f32 to vector<512x256xf32>
    %123 = arith.addf %122, %119 : vector<512x256xf32>
    %124 = arith.mulf %121, %123 : vector<512x256xf32>
    %125 = arith.truncf %124 : vector<512x256xf32> to vector<512x256xbf16>
    %c0_48 = arith.constant 0 : index
    %c0_49 = arith.constant 0 : index
    %126 = vector.load %arg11[%c0_48, %c0_49] : memref<256x64xbf16, #tpu.memory_space<vmem>>, vector<256x64xbf16>
    %cst_50 = arith.constant dense<0.000000e+00> : vector<512x64xf32>
    %127 = tpu.matmul %125, %126, %cst_50 {dimension_numbers = #tpu.dot_dimension_numbers<[1], [0], [0], [1], [0, 0, 1, 1], [], []>} : vector<512x256xbf16>, vector<256x64xbf16>, vector<512x64xf32> -> vector<512x64xf32>
    %c0_51 = arith.constant 0 : index
    %c0_52 = arith.constant 0 : index
    %128 = vector.load %arg12[%c0_51, %c0_52] : memref<1x64xf32, #tpu.memory_space<vmem>>, vector<1x64xf32>
    %129 = vector.broadcast %128 : vector<1x64xf32> to vector<512x64xf32>
    %130 = arith.addf %127, %129 : vector<512x64xf32>
    %131 = arith.addf %79, %130 : vector<512x64xf32>
    %c0_53 = arith.constant 0 : index
    %c0_54 = arith.constant 0 : index
    %132 = vector.load %arg7[%c0_53, %c0_54] : memref<1x64xf32, #tpu.memory_space<vmem>>, vector<1x64xf32>
    %c0_55 = arith.constant 0 : index
    %c0_56 = arith.constant 0 : index
    %133 = vector.load %arg8[%c0_55, %c0_56] : memref<1x64xf32, #tpu.memory_space<vmem>>, vector<1x64xf32>
    %cst_57 = arith.constant dense<0.000000e+00> : vector<512xf32>
    %134 = vector.multi_reduction <add>, %131, %cst_57 [1] : vector<512x64xf32> to vector<512xf32>
    %135 = vector.shape_cast %134 : vector<512xf32> to vector<512x1xf32>
    %cst_58 = arith.constant 6.400000e+01 : f32
    %136 = vector.broadcast %cst_58 : f32 to vector<512x1xf32>
    %137 = arith.divf %135, %136 : vector<512x1xf32>
    %138 = vector.broadcast %137 : vector<512x1xf32> to vector<512x64xf32>
    %139 = arith.subf %131, %138 : vector<512x64xf32>
    %140 = arith.mulf %139, %139 : vector<512x64xf32>
    %cst_59 = arith.constant dense<0.000000e+00> : vector<512xf32>
    %141 = vector.multi_reduction <add>, %140, %cst_59 [1] : vector<512x64xf32> to vector<512xf32>
    %142 = vector.shape_cast %141 : vector<512xf32> to vector<512x1xf32>
    %cst_60 = arith.constant 6.400000e+01 : f32
    %143 = vector.broadcast %cst_60 : f32 to vector<512x1xf32>
    %144 = arith.divf %142, %143 : vector<512x1xf32>
    %cst_61 = arith.constant 9.99999997E-7 : f32
    %145 = vector.broadcast %cst_61 : f32 to vector<512x1xf32>
    %146 = arith.addf %144, %145 : vector<512x1xf32>
    %147 = math.rsqrt %146 : vector<512x1xf32>
    %148 = vector.broadcast %147 : vector<512x1xf32> to vector<512x64xf32>
    %149 = arith.mulf %139, %148 : vector<512x64xf32>
    %150 = vector.broadcast %132 : vector<1x64xf32> to vector<512x64xf32>
    %151 = arith.mulf %149, %150 : vector<512x64xf32>
    %152 = vector.broadcast %133 : vector<1x64xf32> to vector<512x64xf32>
    %153 = arith.addf %151, %152 : vector<512x64xf32>
    %c0_62 = arith.constant 0 : index
    %c0_63 = arith.constant 0 : index
    %154 = vector.load %arg13[%c0_62, %c0_63] : memref<512x64xf32, #tpu.memory_space<vmem>>, vector<512x64xf32>
    tpu.vector_store %arg13[%c0_62, %c0_63], %153 {strides = array<i32>} : memref<512x64xf32, #tpu.memory_space<vmem>>, vector<512x64xf32>,
    return
  }
  func.func @transform_0(%arg0: i32) -> (i32, i32) {
    %c0_i32 = arith.constant 0 : i32
    %c0_i32_0 = arith.constant 0 : i32
    return %arg0, %c0_i32 : i32, i32
  }
  func.func @transform_1(%arg0: i32) -> (i32, i32) {
    %c0_i32 = arith.constant 0 : i32
    %c0_i32_0 = arith.constant 0 : i32
    %c0_i32_1 = arith.constant 0 : i32
    return %c0_i32, %c0_i32_0 : i32, i32
  }
  func.func @transform_2(%arg0: i32) -> (i32, i32, i32) {
    %c0_i32 = arith.constant 0 : i32
    %c0_i32_0 = arith.constant 0 : i32
    %c0_i32_1 = arith.constant 0 : i32
    %c0_i32_2 = arith.constant 0 : i32
    return %c0_i32, %c0_i32_0, %c0_i32_1 : i32, i32, i32
  }
  func.func @transform_3(%arg0: i32) -> (i32, i32) {
    %c0_i32 = arith.constant 0 : i32
    %c0_i32_0 = arith.constant 0 : i32
    %c0_i32_1 = arith.constant 0 : i32
    return %c0_i32, %c0_i32_0 : i32, i32
  }
  func.func @transform_4(%arg0: i32) -> (i32, i32) {
    %c0_i32 = arith.constant 0 : i32
    %c0_i32_0 = arith.constant 0 : i32
    %c0_i32_1 = arith.constant 0 : i32
    return %c0_i32, %c0_i32_0 : i32, i32
  }
  func.func @transform_5(%arg0: i32) -> (i32, i32) {
    %c0_i32 = arith.constant 0 : i32
    %c0_i32_0 = arith.constant 0 : i32
    %c0_i32_1 = arith.constant 0 : i32
    return %c0_i32, %c0_i32_0 : i32, i32
  }
  func.func @transform_6(%arg0: i32) -> (i32, i32) {
    %c0_i32 = arith.constant 0 : i32
    %c0_i32_0 = arith.constant 0 : i32
    %c0_i32_1 = arith.constant 0 : i32
    return %c0_i32, %c0_i32_0 : i32, i32
  }
  func.func @transform_7(%arg0: i32) -> (i32, i32) {
    %c0_i32 = arith.constant 0 : i32
    %c0_i32_0 = arith.constant 0 : i32
    %c0_i32_1 = arith.constant 0 : i32
    return %c0_i32, %c0_i32_0 : i32, i32
  }
  func.func @transform_8(%arg0: i32) -> (i32, i32) {
    %c0_i32 = arith.constant 0 : i32
    %c0_i32_0 = arith.constant 0 : i32
    %c0_i32_1 = arith.constant 0 : i32
    return %c0_i32, %c0_i32_0 : i32, i32
  }
  func.func @transform_9(%arg0: i32) -> (i32, i32) {
    %c0_i32 = arith.constant 0 : i32
    %c0_i32_0 = arith.constant 0 : i32
    %c0_i32_1 = arith.constant 0 : i32
    return %c0_i32, %c0_i32_0 : i32, i32
  }
  func.func @transform_10(%arg0: i32) -> (i32, i32) {
    %c0_i32 = arith.constant 0 : i32
    %c0_i32_0 = arith.constant 0 : i32
    %c0_i32_1 = arith.constant 0 : i32
    return %c0_i32, %c0_i32_0 : i32, i32
  }
  func.func @transform_11(%arg0: i32) -> (i32, i32) {
    %c0_i32 = arith.constant 0 : i32
    %c0_i32_0 = arith.constant 0 : i32
    %c0_i32_1 = arith.constant 0 : i32
    return %c0_i32, %c0_i32_0 : i32, i32
  }
  func.func @transform_12(%arg0: i32) -> (i32, i32) {
    %c0_i32 = arith.constant 0 : i32
    %c0_i32_0 = arith.constant 0 : i32
    return %arg0, %c0_i32 : i32, i32
  }
}

</mosaic_0001>

<llo_original>
// kernel: tpu_custom_call.1
$region0: #{tpu_custom_call.1}
  #allocation0 [shape = 'u32[]', space=smem, size = 0x4, offset = 0x4, fixed_abs, tag = 'smem constant byte address 0x4 - core index']
  #allocation1 [shape = 'u32[144,128]{1,0:T(1,128)}', space=vmem, size = 0x12000, scoped, tag = 'internal scratch']
  %s0 = inlined_call_operand.vmem [shape: f32[512,64], index: 0, kind: input, shape index: {}]
  %s1 = inlined_call_operand.vmem [shape: bf16[64,192], index: 1, kind: input, shape index: {}]
  %s2 = inlined_call_operand.vmem [shape: bf16[2,32,64], index: 2, kind: input, shape index: {}]
  %s3 = inlined_call_operand.vmem [shape: f32[1,64], index: 3, kind: input, shape index: {}]
  %s4 = inlined_call_operand.vmem [shape: f32[1,64], index: 4, kind: input, shape index: {}]
  %s5 = inlined_call_operand.vmem [shape: f32[1,64], index: 5, kind: input, shape index: {}]
  %s6 = inlined_call_operand.vmem [shape: f32[1,64], index: 6, kind: input, shape index: {}]
  %s7 = inlined_call_operand.vmem [shape: f32[1,64], index: 7, kind: input, shape index: {}]
  %s8 = inlined_call_operand.vmem [shape: bf16[64,256], index: 8, kind: input, shape index: {}]
  %s9 = inlined_call_operand.vmem [shape: f32[1,256], index: 9, kind: input, shape index: {}]
  %s10 = inlined_call_operand.vmem [shape: bf16[256,64], index: 10, kind: input, shape index: {}]
  %s11 = inlined_call_operand.vmem [shape: f32[1,64], index: 11, kind: input, shape index: {}]
  %s12 = inlined_call_operand.vmem [shape: f32[512,64], index: 12, kind: output, shape index: {}]
  %s13 = sld [smem:[#allocation0]]
  $region58: #{tpu_custom_call.1} parent=0
    _
  %s15 = ssub.s32 1, %s13
  %s16 = scalar_select 0, %s15, %s13
  // Predicated region
  $region2: #{tpu_custom_call.1} parent=0 // pred_check
    _
  $region3: #{tpu_custom_call.1} parent=0 // pred_check_branch
    %18 = sbr.rel (0) target = $region5
  $region4: #{tpu_custom_call.1} parent=0 // pred_region
    _
  $region5: #{tpu_custom_call.1} parent=0 // pred_fallthru
    _
  // Predicated region
  $region6: #{tpu_custom_call.1} parent=0 // pred_check
    _
  $region7: #{tpu_custom_call.1} parent=0 // pred_check_branch
    %20 = sbr.rel (0) target = $region9
  $region8: #{tpu_custom_call.1} parent=0 // pred_region
    _
  $region9: #{tpu_custom_call.1} parent=0 // pred_fallthru
    _
  // Predicated region
  $region10: #{tpu_custom_call.1} parent=0 // pred_check
    _
  $region11: #{tpu_custom_call.1} parent=0 // pred_check_branch
    %22 = sbr.rel (0) target = $region13
  $region12: #{tpu_custom_call.1} parent=0 // pred_region
    _
  $region13: #{tpu_custom_call.1} parent=0 // pred_fallthru
    _
  // Predicated region
  $region14: #{tpu_custom_call.1} parent=0 // pred_check
    _
  $region15: #{tpu_custom_call.1} parent=0 // pred_check_branch
    %24 = sbr.rel (0) target = $region17
  $region16: #{tpu_custom_call.1} parent=0 // pred_region
    _
  $region17: #{tpu_custom_call.1} parent=0 // pred_fallthru
    _
  // Predicated region
  $region18: #{tpu_custom_call.1} parent=0 // pred_check
    _
  $region19: #{tpu_custom_call.1} parent=0 // pred_check_branch
    %26 = sbr.rel (0) target = $region21
  $region20: #{tpu_custom_call.1} parent=0 // pred_region
    _
  $region21: #{tpu_custom_call.1} parent=0 // pred_fallthru
    _
  // Predicated region
  $region22: #{tpu_custom_call.1} parent=0 // pred_check
    _
  $region23: #{tpu_custom_call.1} parent=0 // pred_check_branch
    %28 = sbr.rel (0) target = $region25
  $region24: #{tpu_custom_call.1} parent=0 // pred_region
    _
  $region25: #{tpu_custom_call.1} parent=0 // pred_fallthru
    _
  // Predicated region
  $region26: #{tpu_custom_call.1} parent=0 // pred_check
    _
  $region27: #{tpu_custom_call.1} parent=0 // pred_check_branch
    %30 = sbr.rel (0) target = $region29
  $region28: #{tpu_custom_call.1} parent=0 // pred_region
    _
  $region29: #{tpu_custom_call.1} parent=0 // pred_fallthru
    _
  // Predicated region
  $region30: #{tpu_custom_call.1} parent=0 // pred_check
    _
  $region31: #{tpu_custom_call.1} parent=0 // pred_check_branch
    %32 = sbr.rel (0) target = $region33
  $region32: #{tpu_custom_call.1} parent=0 // pred_region
    _
  $region33: #{tpu_custom_call.1} parent=0 // pred_fallthru
    _
  // Predicated region
  $region34: #{tpu_custom_call.1} parent=0 // pred_check
    _
  $region35: #{tpu_custom_call.1} parent=0 // pred_check_branch
    %34 = sbr.rel (0) target = $region37
  $region36: #{tpu_custom_call.1} parent=0 // pred_region
    _
  $region37: #{tpu_custom_call.1} parent=0 // pred_fallthru
    _
  // Predicated region
  $region38: #{tpu_custom_call.1} parent=0 // pred_check
    _
  $region39: #{tpu_custom_call.1} parent=0 // pred_check_branch
    %36 = sbr.rel (0) target = $region41
  $region40: #{tpu_custom_call.1} parent=0 // pred_region
    _
  $region41: #{tpu_custom_call.1} parent=0 // pred_fallthru
    _
  // Predicated region
  $region42: #{tpu_custom_call.1} parent=0 // pred_check
    _
  $region43: #{tpu_custom_call.1} parent=0 // pred_check_branch
    %38 = sbr.rel (0) target = $region45
  $region44: #{tpu_custom_call.1} parent=0 // pred_region
    _
  $region45: #{tpu_custom_call.1} parent=0 // pred_fallthru
    _
  // Predicated region
  $region46: #{tpu_custom_call.1} parent=0 // pred_check
    _
  $region47: #{tpu_custom_call.1} parent=0 // pred_check_branch
    %40 = sbr.rel (0) target = $region49
  $region48: #{tpu_custom_call.1} parent=0 // pred_region
    _
  $region49: #{tpu_custom_call.1} parent=0 // pred_fallthru
    _
  %v42 = vld [vmem:[%s0] sm:$0xff]
  %v43 = vld [vmem:[%s0 + $0x8] sm:$0xff]
  %v44 = vld [vmem:[%s0 + $0x10] sm:$0xff]
  %v45 = vld [vmem:[%s0 + $0x18] sm:$0xff]
  %v46 = vld [vmem:[%s0 + $0x20] sm:$0xff]
  %v47 = vld [vmem:[%s0 + $0x28] sm:$0xff]
  %v48 = vld [vmem:[%s0 + $0x30] sm:$0xff]
  %v49 = vld [vmem:[%s0 + $0x38] sm:$0xff]
  %v50 = vld [vmem:[%s0 + $0x40] sm:$0xff]
  %v51 = vld [vmem:[%s0 + $0x48] sm:$0xff]
  %v52 = vld [vmem:[%s0 + $0x50] sm:$0xff]
  %v53 = vld [vmem:[%s0 + $0x58] sm:$0xff]
  %v54 = vld [vmem:[%s0 + $0x60] sm:$0xff]
  %v55 = vld [vmem:[%s0 + $0x68] sm:$0xff]
  %v56 = vld [vmem:[%s0 + $0x70] sm:$0xff]
  %v57 = vld [vmem:[%s0 + $0x78] sm:$0xff]
  %v58 = vld [vmem:[%s0 + $0x80] sm:$0xff]
  %v59 = vld [vmem:[%s0 + $0x88] sm:$0xff]
  %v60 = vld [vmem:[%s0 + $0x90] sm:$0xff]
  %v61 = vld [vmem:[%s0 + $0x98] sm:$0xff]
  %v62 = vld [vmem:[%s0 + $0xa0] sm:$0xff]
  %v63 = vld [vmem:[%s0 + $0xa8] sm:$0xff]
  %v64 = vld [vmem:[%s0 + $0xb0] sm:$0xff]
  %v65 = vld [vmem:[%s0 + $0xb8] sm:$0xff]
  %v66 = vld [vmem:[%s0 + $0xc0] sm:$0xff]
  %v67 = vld [vmem:[%s0 + $0xc8] sm:$0xff]
  %v68 = vld [vmem:[%s0 + $0xd0] sm:$0xff]
  %v69 = vld [vmem:[%s0 + $0xd8] sm:$0xff]
  %v70 = vld [vmem:[%s0 + $0xe0] sm:$0xff]
  %v71 = vld [vmem:[%s0 + $0xe8] sm:$0xff]
  %v72 = vld [vmem:[%s0 + $0xf0] sm:$0xff]
  %v73 = vld [vmem:[%s0 + $0xf8] sm:$0xff]
  %v74 = vld [vmem:[%s0 + $0x100] sm:$0xff]
  %v75 = vld [vmem:[%s0 + $0x108] sm:$0xff]
  %v76 = vld [vmem:[%s0 + $0x110] sm:$0xff]
  %v77 = vld [vmem:[%s0 + $0x118] sm:$0xff]
  %v78 = vld [vmem:[%s0 + $0x120] sm:$0xff]
  %v79 = vld [vmem:[%s0 + $0x128] sm:$0xff]
  %v80 = vld [vmem:[%s0 + $0x130] sm:$0xff]
  %v81 = vld [vmem:[%s0 + $0x138] sm:$0xff]
  %v82 = vld [vmem:[%s0 + $0x140] sm:$0xff]
  %v83 = vld [vmem:[%s0 + $0x148] sm:$0xff]
  %v84 = vld [vmem:[%s0 + $0x150] sm:$0xff]
  %v85 = vld [vmem:[%s0 + $0x158] sm:$0xff]
  %v86 = vld [vmem:[%s0 + $0x160] sm:$0xff]
  %v87 = vld [vmem:[%s0 + $0x168] sm:$0xff]
  %v88 = vld [vmem:[%s0 + $0x170] sm:$0xff]
  %v89 = vld [vmem:[%s0 + $0x178] sm:$0xff]
  %v90 = vld [vmem:[%s0 + $0x180] sm:$0xff]
  %v91 = vld [vmem:[%s0 + $0x188] sm:$0xff]
  %v92 = vld [vmem:[%s0 + $0x190] sm:$0xff]
  %v93 = vld [vmem:[%s0 + $0x198] sm:$0xff]
  %v94 = vld [vmem:[%s0 + $0x1a0] sm:$0xff]
  %v95 = vld [vmem:[%s0 + $0x1a8] sm:$0xff]
  %v96 = vld [vmem:[%s0 + $0x1b0] sm:$0xff]
  %v97 = vld [vmem:[%s0 + $0x1b8] sm:$0xff]
  %v98 = vld [vmem:[%s0 + $0x1c0] sm:$0xff]
  %v99 = vld [vmem:[%s0 + $0x1c8] sm:$0xff]
  %v100 = vld [vmem:[%s0 + $0x1d0] sm:$0xff]
  %v101 = vld [vmem:[%s0 + $0x1d8] sm:$0xff]
  %v102 = vld [vmem:[%s0 + $0x1e0] sm:$0xff]
  %v103 = vld [vmem:[%s0 + $0x1e8] sm:$0xff]
  %v104 = vld [vmem:[%s0 + $0x1f0] sm:$0xff]
  %v105 = vld [vmem:[%s0 + $0x1f8] sm:$0xff]
  %v106 = vpack.c.bf16 %v43, %v42
  %v107 = vpack.c.bf16 %v45, %v44
  %v108 = vpack.c.bf16 %v47, %v46
  %v109 = vpack.c.bf16 %v49, %v48
  %v110 = vpack.c.bf16 %v51, %v50
  %v111 = vpack.c.bf16 %v53, %v52
  %v112 = vpack.c.bf16 %v55, %v54
  %v113 = vpack.c.bf16 %v57, %v56
  %v114 = vpack.c.bf16 %v59, %v58
  %v115 = vpack.c.bf16 %v61, %v60
  %v116 = vpack.c.bf16 %v63, %v62
  %v117 = vpack.c.bf16 %v65, %v64
  %v118 = vpack.c.bf16 %v67, %v66
  %v119 = vpack.c.bf16 %v69, %v68
  %v120 = vpack.c.bf16 %v71, %v70
  %v121 = vpack.c.bf16 %v73, %v72
  %v122 = vpack.c.bf16 %v75, %v74
  %v123 = vpack.c.bf16 %v77, %v76
  %v124 = vpack.c.bf16 %v79, %v78
  %v125 = vpack.c.bf16 %v81, %v80
  %v126 = vpack.c.bf16 %v83, %v82
  %v127 = vpack.c.bf16 %v85, %v84
  %v128 = vpack.c.bf16 %v87, %v86
  %v129 = vpack.c.bf16 %v89, %v88
  %v130 = vpack.c.bf16 %v91, %v90
  %v131 = vpack.c.bf16 %v93, %v92
  %v132 = vpack.c.bf16 %v95, %v94
  %v133 = vpack.c.bf16 %v97, %v96
  %v134 = vpack.c.bf16 %v99, %v98
  %v135 = vpack.c.bf16 %v101, %v100
  %v136 = vpack.c.bf16 %v103, %v102
  %v137 = vpack.c.bf16 %v105, %v104
  %v138 = vld [vmem:[%s1] sm:$0xff]
  %v139 = vld [vmem:[%s1 + $0x8] sm:$0xff]
  %v140 = vld [vmem:[%s1 + $0x10] sm:$0xff]
  %v141 = vld [vmem:[%s1 + $0x18] sm:$0xff]
  %v142 = vld [vmem:[%s1 + $0x20] sm:$0xff]
  %v143 = vld [vmem:[%s1 + $0x28] sm:$0xff]
  %v144 = vld [vmem:[%s1 + $0x30] sm:$0xff]
  %v145 = vld [vmem:[%s1 + $0x38] sm:$0xff]
  %v154 = vunpack.c.l.b16 %v138
  %v155 = vunpack.c.h.b16 %v138
  %v156 = vunpack.c.l.b16 %v139
  %v157 = vunpack.c.h.b16 %v139
  %v158 = vunpack.c.l.b16 %v140
  %v159 = vunpack.c.h.b16 %v140
  %v160 = vunpack.c.l.b16 %v141
  %v161 = vunpack.c.h.b16 %v141
  %v162 = vunpack.c.l.b16 %v142
  %v163 = vunpack.c.h.b16 %v142
  %v164 = vunpack.c.l.b16 %v143
  %v165 = vunpack.c.h.b16 %v143
  %v166 = vunpack.c.l.b16 %v144
  %v167 = vunpack.c.h.b16 %v144
  %v168 = vunpack.c.l.b16 %v145
  %v169 = vunpack.c.h.b16 %v145
  %v170 = vpack.c.b16 %v156, %v154
  %v171 = vpack.c.b16 %v157, %v155
  %v172 = vpack.c.b16 %v160, %v158
  %v173 = vpack.c.b16 %v161, %v159
  %v174 = vpack.c.b16 %v164, %v162
  %v175 = vpack.c.b16 %v165, %v163
  %v176 = vpack.c.b16 %v168, %v166
  %v177 = vpack.c.b16 %v169, %v167
  %vm186 = vcmask 523264
  %v188 = vsel %vm186, %v106, 0
  %v191 = vsel %vm186, %v107, 0
  %v194 = vsel %vm186, %v108, 0
  %v197 = vsel %vm186, %v109, 0
  %v200 = vsel %vm186, %v110, 0
  %v203 = vsel %vm186, %v111, 0
  %v206 = vsel %vm186, %v112, 0
  %v209 = vsel %vm186, %v113, 0
  %v212 = vsel %vm186, %v114, 0
  %v215 = vsel %vm186, %v115, 0
  %v218 = vsel %vm186, %v116, 0
  %v221 = vsel %vm186, %v117, 0
  %v224 = vsel %vm186, %v118, 0
  %v227 = vsel %vm186, %v119, 0
  %v230 = vsel %vm186, %v120, 0
  %v233 = vsel %vm186, %v121, 0
  %v236 = vsel %vm186, %v122, 0
  %v239 = vsel %vm186, %v123, 0
  %v242 = vsel %vm186, %v124, 0
  %v245 = vsel %vm186, %v125, 0
  %v248 = vsel %vm186, %v126, 0
  %v251 = vsel %vm186, %v127, 0
  %v254 = vsel %vm186, %v128, 0
  %v257 = vsel %vm186, %v129, 0
  %v260 = vsel %vm186, %v130, 0
  %v263 = vsel %vm186, %v131, 0
  %v266 = vsel %vm186, %v132, 0
  %v269 = vsel %vm186, %v133, 0
  %v272 = vsel %vm186, %v134, 0
  %v275 = vsel %vm186, %v135, 0
  %v278 = vsel %vm186, %v136, 0
  %v281 = vsel %vm186, %v137, 0
  %283 = vmatprep.subr.bf16.mxu0 %v171
  %284 = vmatpush1.bf16.msra.mxu0 %v170
  %285 = vmatprep.subr.bf16.mxu0 %v173
  %286 = vmatpush1.bf16.msra.mxu0 %v172
  %287 = vmatprep.subr.bf16.mxu0 %v175
  %288 = vmatpush1.bf16.msra.mxu0 %v174
  %289 = vmatprep.subr.bf16.mxu0 %v177
  %290 = vmatpush1.bf16.msra.mxu0 %v176
  %291 = vmatprep.subr.bf16.mxu0 0
  %292 = vmatpush1.bf16.msra.mxu0 0
  %293 = vmatprep.subr.bf16.mxu0 0
  %294 = vmatpush1.bf16.msra.mxu0 0
  %295 = vmatprep.subr.bf16.mxu0 0
  %296 = vmatpush1.bf16.msra.mxu0 0
  %297 = vmatprep.subr.bf16.mxu0 0
  %298 = vmatpush1.bf16.msra.mxu0 0
  %299 = vmatprep.subr.bf16.mxu0 0
  %300 = vmatpush1.bf16.msra.mxu0 0
  %301 = vmatprep.subr.bf16.mxu0 0
  %302 = vmatpush1.bf16.msra.mxu0 0
  %303 = vmatprep.subr.bf16.mxu0 0
  %304 = vmatpush1.bf16.msra.mxu0 0
  %305 = vmatprep.subr.bf16.mxu0 0
  %306 = vmatpush1.bf16.msra.mxu0 0
  %307 = vmatprep.subr.bf16.mxu0 0
  %308 = vmatpush1.bf16.msra.mxu0 0
  %309 = vmatprep.subr.bf16.mxu0 0
  %310 = vmatpush1.bf16.msra.mxu0 0
  %311 = vmatprep.subr.bf16.mxu0 0
  %312 = vmatpush1.bf16.msra.mxu0 0
  %313 = vmatprep.subr.bf16.mxu0 0
  %314 = vmatpush1.bf16.msra.mxu0 0
  %315 = vmatprep.mubr.bf16.mxu0 0
  %316 = vmatmul.mubr.bf16.gmra.mrb[0].mxu0 %v188
  %v317 = vpop.f32.mrb[0].mxu0
  %v318 = vadd.f32 0.0, %v317
  %v319 = vpop.f32.mrb[0].mxu0
  %v320 = vadd.f32 0.0, %v319
  %v321 = vpop.f32.mrb[0].mxu0
  %v322 = vadd.f32 0.0, %v321
  %v323 = vpop.f32.mrb[0].mxu0
  %v324 = vadd.f32 0.0, %v323
  %325 = vmatprep.mubr.bf16.mxu0 0
  %326 = vmatmul.mubr.bf16.gmra.mrb[0].mxu0 %v191
  %v327 = vpop.f32.mrb[0].mxu0
  %v328 = vadd.f32 0.0, %v327
  %v329 = vpop.f32.mrb[0].mxu0
  %v330 = vadd.f32 0.0, %v329
  %v331 = vpop.f32.mrb[0].mxu0
  %v332 = vadd.f32 0.0, %v331
  %v333 = vpop.f32.mrb[0].mxu0
  %v334 = vadd.f32 0.0, %v333
  %335 = vmatprep.mubr.bf16.mxu0 0
  %336 = vmatmul.mubr.bf16.gmra.mrb[0].mxu0 %v194
  %v337 = vpop.f32.mrb[0].mxu0
  %v338 = vadd.f32 0.0, %v337
  %v339 = vpop.f32.mrb[0].mxu0
  %v340 = vadd.f32 0.0, %v339
  %v341 = vpop.f32.mrb[0].mxu0
  %v342 = vadd.f32 0.0, %v341
  %v343 = vpop.f32.mrb[0].mxu0
  %v344 = vadd.f32 0.0, %v343
  %345 = vmatprep.mubr.bf16.mxu0 0
  %346 = vmatmul.mubr.bf16.gmra.mrb[0].mxu0 %v197
  %v347 = vpop.f32.mrb[0].mxu0
  %v348 = vadd.f32 0.0, %v347
  %v349 = vpop.f32.mrb[0].mxu0
  %v350 = vadd.f32 0.0, %v349
  %v351 = vpop.f32.mrb[0].mxu0
  %v352 = vadd.f32 0.0, %v351
  %v353 = vpop.f32.mrb[0].mxu0
  %v354 = vadd.f32 0.0, %v353
  %355 = vmatprep.mubr.bf16.mxu0 0
  %356 = vmatmul.mubr.bf16.gmra.mrb[0].mxu0 %v200
  %v357 = vpop.f32.mrb[0].mxu0
  %v358 = vadd.f32 0.0, %v357
  %v359 = vpop.f32.mrb[0].mxu0
  %v360 = vadd.f32 0.0, %v359
  %v361 = vpop.f32.mrb[0].mxu0
  %v362 = vadd.f32 0.0, %v361
  %v363 = vpop.f32.mrb[0].mxu0
  %v364 = vadd.f32 0.0, %v363
  %365 = vmatprep.mubr.bf16.mxu0 0
  %366 = vmatmul.mubr.bf16.gmra.mrb[0].mxu0 %v203
  %v367 = vpop.f32.mrb[0].mxu0
  %v368 = vadd.f32 0.0, %v367
  %v369 = vpop.f32.mrb[0].mxu0
  %v370 = vadd.f32 0.0, %v369
  %v371 = vpop.f32.mrb[0].mxu0
  %v372 = vadd.f32 0.0, %v371
  %v373 = vpop.f32.mrb[0].mxu0
  %v374 = vadd.f32 0.0, %v373
  %375 = vmatprep.mubr.bf16.mxu0 0
  %376 = vmatmul.mubr.bf16.gmra.mrb[0].mxu0 %v206
  %v377 = vpop.f32.mrb[0].mxu0
  %v378 = vadd.f32 0.0, %v377
  %v379 = vpop.f32.mrb[0].mxu0
  %v380 = vadd.f32 0.0, %v379
  %v381 = vpop.f32.mrb[0].mxu0
  %v382 = vadd.f32 0.0, %v381
  %v383 = vpop.f32.mrb[0].mxu0
  %v384 = vadd.f32 0.0, %v383
  %385 = vmatprep.mubr.bf16.mxu0 0
  %386 = vmatmul.mubr.bf16.gmra.mrb[0].mxu0 %v209
  %v387 = vpop.f32.mrb[0].mxu0
  %v388 = vadd.f32 0.0, %v387
  %v389 = vpop.f32.mrb[0].mxu0
  %v390 = vadd.f32 0.0, %v389
  %v391 = vpop.f32.mrb[0].mxu0
  %v392 = vadd.f32 0.0, %v391
  %v393 = vpop.f32.mrb[0].mxu0
  %v394 = vadd.f32 0.0, %v393
  %395 = vmatprep.mubr.bf16.mxu0 0
  %396 = vmatmul.mubr.bf16.gmra.mrb[0].mxu0 %v212
  %v397 = vpop.f32.mrb[0].mxu0
  %v398 = vadd.f32 0.0, %v397
  %v399 = vpop.f32.mrb[0].mxu0
  %v400 = vadd.f32 0.0, %v399
  %v401 = vpop.f32.mrb[0].mxu0
  %v402 = vadd.f32 0.0, %v401
  %v403 = vpop.f32.mrb[0].mxu0
  %v404 = vadd.f32 0.0, %v403
  %405 = vmatprep.mubr.bf16.mxu0 0
  %406 = vmatmul.mubr.bf16.gmra.mrb[0].mxu0 %v215
  %v407 = vpop.f32.mrb[0].mxu0
  %v408 = vadd.f32 0.0, %v407
  %v409 = vpop.f32.mrb[0].mxu0
  %v410 = vadd.f32 0.0, %v409
  %v411 = vpop.f32.mrb[0].mxu0
  %v412 = vadd.f32 0.0, %v411
  %v413 = vpop.f32.mrb[0].mxu0
  %v414 = vadd.f32 0.0, %v413
  %415 = vmatprep.mubr.bf16.mxu0 0
  %416 = vmatmul.mubr.bf16.gmra.mrb[0].mxu0 %v218
  %v417 = vpop.f32.mrb[0].mxu0
  %v418 = vadd.f32 0.0, %v417
  %v419 = vpop.f32.mrb[0].mxu0
  %v420 = vadd.f32 0.0, %v419
  %v421 = vpop.f32.mrb[0].mxu0
  %v422 = vadd.f32 0.0, %v421
  %v423 = vpop.f32.mrb[0].mxu0
  %v424 = vadd.f32 0.0, %v423
  %425 = vmatprep.mubr.bf16.mxu0 0
  %426 = vmatmul.mubr.bf16.gmra.mrb[0].mxu0 %v221
  %v427 = vpop.f32.mrb[0].mxu0
  %v428 = vadd.f32 0.0, %v427
  %v429 = vpop.f32.mrb[0].mxu0
  %v430 = vadd.f32 0.0, %v429
  %v431 = vpop.f32.mrb[0].mxu0
  %v432 = vadd.f32 0.0, %v431
  %v433 = vpop.f32.mrb[0].mxu0
  %v434 = vadd.f32 0.0, %v433
  %435 = vmatprep.mubr.bf16.mxu0 0
  %436 = vmatmul.mubr.bf16.gmra.mrb[0].mxu0 %v224
  %v437 = vpop.f32.mrb[0].mxu0
  %v438 = vadd.f32 0.0, %v437
  %v439 = vpop.f32.mrb[0].mxu0
  %v440 = vadd.f32 0.0, %v439
  %v441 = vpop.f32.mrb[0].mxu0
  %v442 = vadd.f32 0.0, %v441
  %v443 = vpop.f32.mrb[0].mxu0
  %v444 = vadd.f32 0.0, %v443
  %445 = vmatprep.mubr.bf16.mxu0 0
  %446 = vmatmul.mubr.bf16.gmra.mrb[0].mxu0 %v227
  %v447 = vpop.f32.mrb[0].mxu0
  %v448 = vadd.f32 0.0, %v447
  %v449 = vpop.f32.mrb[0].mxu0
  %v450 = vadd.f32 0.0, %v449
  %v451 = vpop.f32.mrb[0].mxu0
  %v452 = vadd.f32 0.0, %v451
  %v453 = vpop.f32.mrb[0].mxu0
  %v454 = vadd.f32 0.0, %v453
  %455 = vmatprep.mubr.bf16.mxu0 0
  %456 = vmatmul.mubr.bf16.gmra.mrb[0].mxu0 %v230
  %v457 = vpop.f32.mrb[0].mxu0
  %v458 = vadd.f32 0.0, %v457
  %v459 = vpop.f32.mrb[0].mxu0
  %v460 = vadd.f32 0.0, %v459
  %v461 = vpop.f32.mrb[0].mxu0
  %v462 = vadd.f32 0.0, %v461
  %v463 = vpop.f32.mrb[0].mxu0
  %v464 = vadd.f32 0.0, %v463
  %465 = vmatprep.mubr.bf16.mxu0 0
  %466 = vmatmul.mubr.bf16.gmra.mrb[0].mxu0 %v233
  %v467 = vpop.f32.mrb[0].mxu0
  %v468 = vadd.f32 0.0, %v467
  %v469 = vpop.f32.mrb[0].mxu0
  %v470 = vadd.f32 0.0, %v469
  %v471 = vpop.f32.mrb[0].mxu0
  %v472 = vadd.f32 0.0, %v471
  %v473 = vpop.f32.mrb[0].mxu0
  %v474 = vadd.f32 0.0, %v473
  %475 = vmatprep.mubr.bf16.mxu0 0
  %476 = vmatmul.mubr.bf16.gmra.mrb[0].mxu0 %v236
  %v477 = vpop.f32.mrb[0].mxu0
  %v478 = vadd.f32 0.0, %v477
  %v479 = vpop.f32.mrb[0].mxu0
  %v480 = vadd.f32 0.0, %v479
  %v481 = vpop.f32.mrb[0].mxu0
  %v482 = vadd.f32 0.0, %v481
  %v483 = vpop.f32.mrb[0].mxu0
  %v484 = vadd.f32 0.0, %v483
  %485 = vmatprep.mubr.bf16.mxu0 0
  %486 = vmatmul.mubr.bf16.gmra.mrb[0].mxu0 %v239
  %v487 = vpop.f32.mrb[0].mxu0
  %v488 = vadd.f32 0.0, %v487
  %v489 = vpop.f32.mrb[0].mxu0
  %v490 = vadd.f32 0.0, %v489
  %v491 = vpop.f32.mrb[0].mxu0
  %v492 = vadd.f32 0.0, %v491
  %v493 = vpop.f32.mrb[0].mxu0
  %v494 = vadd.f32 0.0, %v493
  %495 = vmatprep.mubr.bf16.mxu0 0
  %496 = vmatmul.mubr.bf16.gmra.mrb[0].mxu0 %v242
  %v497 = vpop.f32.mrb[0].mxu0
  %v498 = vadd.f32 0.0, %v497
  %v499 = vpop.f32.mrb[0].mxu0
  %v500 = vadd.f32 0.0, %v499
  %v501 = vpop.f32.mrb[0].mxu0
  %v502 = vadd.f32 0.0, %v501
  %v503 = vpop.f32.mrb[0].mxu0
  %v504 = vadd.f32 0.0, %v503
  %505 = vmatprep.mubr.bf16.mxu0 0
  %506 = vmatmul.mubr.bf16.gmra.mrb[0].mxu0 %v245
  %v507 = vpop.f32.mrb[0].mxu0
  %v508 = vadd.f32 0.0, %v507
  %v509 = vpop.f32.mrb[0].mxu0
  %v510 = vadd.f32 0.0, %v509
  %v511 = vpop.f32.mrb[0].mxu0
  %v512 = vadd.f32 0.0, %v511
  %v513 = vpop.f32.mrb[0].mxu0
  %v514 = vadd.f32 0.0, %v513
  %515 = vmatprep.mubr.bf16.mxu0 0
  %516 = vmatmul.mubr.bf16.gmra.mrb[0].mxu0 %v248
  %v517 = vpop.f32.mrb[0].mxu0
  %v518 = vadd.f32 0.0, %v517
  %v519 = vpop.f32.mrb[0].mxu0
  %v520 = vadd.f32 0.0, %v519
  %v521 = vpop.f32.mrb[0].mxu0
  %v522 = vadd.f32 0.0, %v521
  %v523 = vpop.f32.mrb[0].mxu0
  %v524 = vadd.f32 0.0, %v523
  %525 = vmatprep.mubr.bf16.mxu0 0
  %526 = vmatmul.mubr.bf16.gmra.mrb[0].mxu0 %v251
  %v527 = vpop.f32.mrb[0].mxu0
  %v528 = vadd.f32 0.0, %v527
  %v529 = vpop.f32.mrb[0].mxu0
  %v530 = vadd.f32 0.0, %v529
  %v531 = vpop.f32.mrb[0].mxu0
  %v532 = vadd.f32 0.0, %v531
  %v533 = vpop.f32.mrb[0].mxu0
  %v534 = vadd.f32 0.0, %v533
  %535 = vmatprep.mubr.bf16.mxu0 0
  %536 = vmatmul.mubr.bf16.gmra.mrb[0].mxu0 %v254
  %v537 = vpop.f32.mrb[0].mxu0
  %v538 = vadd.f32 0.0, %v537
  %v539 = vpop.f32.mrb[0].mxu0
  %v540 = vadd.f32 0.0, %v539
  %v541 = vpop.f32.mrb[0].mxu0
  %v542 = vadd.f32 0.0, %v541
  %v543 = vpop.f32.mrb[0].mxu0
  %v544 = vadd.f32 0.0, %v543
  %545 = vmatprep.mubr.bf16.mxu0 0
  %546 = vmatmul.mubr.bf16.gmra.mrb[0].mxu0 %v257
  %v547 = vpop.f32.mrb[0].mxu0
  %v548 = vadd.f32 0.0, %v547
  %v549 = vpop.f32.mrb[0].mxu0
  %v550 = vadd.f32 0.0, %v549
  %v551 = vpop.f32.mrb[0].mxu0
  %v552 = vadd.f32 0.0, %v551
  %v553 = vpop.f32.mrb[0].mxu0
  %v554 = vadd.f32 0.0, %v553
  %555 = vmatprep.mubr.bf16.mxu0 0
  %556 = vmatmul.mubr.bf16.gmra.mrb[0].mxu0 %v260
  %v557 = vpop.f32.mrb[0].mxu0
  %v558 = vadd.f32 0.0, %v557
  %v559 = vpop.f32.mrb[0].mxu0
  %v560 = vadd.f32 0.0, %v559
  %v561 = vpop.f32.mrb[0].mxu0
  %v562 = vadd.f32 0.0, %v561
  %v563 = vpop.f32.mrb[0].mxu0
  %v564 = vadd.f32 0.0, %v563
  %565 = vmatprep.mubr.bf16.mxu0 0
  %566 = vmatmul.mubr.bf16.gmra.mrb[0].mxu0 %v263
  %v567 = vpop.f32.mrb[0].mxu0
  %v568 = vadd.f32 0.0, %v567
  %v569 = vpop.f32.mrb[0].mxu0
  %v570 = vadd.f32 0.0, %v569
  %v571 = vpop.f32.mrb[0].mxu0
  %v572 = vadd.f32 0.0, %v571
  %v573 = vpop.f32.mrb[0].mxu0
  %v574 = vadd.f32 0.0, %v573
  %575 = vmatprep.mubr.bf16.mxu0 0
  %576 = vmatmul.mubr.bf16.gmra.mrb[0].mxu0 %v266
  %v577 = vpop.f32.mrb[0].mxu0
  %v578 = vadd.f32 0.0, %v577
  %v579 = vpop.f32.mrb[0].mxu0
  %v580 = vadd.f32 0.0, %v579
  %v581 = vpop.f32.mrb[0].mxu0
  %v582 = vadd.f32 0.0, %v581
  %v583 = vpop.f32.mrb[0].mxu0
  %v584 = vadd.f32 0.0, %v583
  %585 = vmatprep.mubr.bf16.mxu0 0
  %586 = vmatmul.mubr.bf16.gmra.mrb[0].mxu0 %v269
  %v587 = vpop.f32.mrb[0].mxu0
  %v588 = vadd.f32 0.0, %v587
  %v589 = vpop.f32.mrb[0].mxu0
  %v590 = vadd.f32 0.0, %v589
  %v591 = vpop.f32.mrb[0].mxu0
  %v592 = vadd.f32 0.0, %v591
  %v593 = vpop.f32.mrb[0].mxu0
  %v594 = vadd.f32 0.0, %v593
  %595 = vmatprep.mubr.bf16.mxu0 0
  %596 = vmatmul.mubr.bf16.gmra.mrb[0].mxu0 %v272
  %v597 = vpop.f32.mrb[0].mxu0
  %v598 = vadd.f32 0.0, %v597
  %v599 = vpop.f32.mrb[0].mxu0
  %v600 = vadd.f32 0.0, %v599
  %v601 = vpop.f32.mrb[0].mxu0
  %v602 = vadd.f32 0.0, %v601
  %v603 = vpop.f32.mrb[0].mxu0
  %v604 = vadd.f32 0.0, %v603
  %605 = vmatprep.mubr.bf16.mxu0 0
  %606 = vmatmul.mubr.bf16.gmra.mrb[0].mxu0 %v275
  %v607 = vpop.f32.mrb[0].mxu0
  %v608 = vadd.f32 0.0, %v607
  %v609 = vpop.f32.mrb[0].mxu0
  %v610 = vadd.f32 0.0, %v609
  %v611 = vpop.f32.mrb[0].mxu0
  %v612 = vadd.f32 0.0, %v611
  %v613 = vpop.f32.mrb[0].mxu0
  %v614 = vadd.f32 0.0, %v613
  %615 = vmatprep.mubr.bf16.mxu0 0
  %616 = vmatmul.mubr.bf16.gmra.mrb[0].mxu0 %v278
  %v617 = vpop.f32.mrb[0].mxu0
  %v618 = vadd.f32 0.0, %v617
  %v619 = vpop.f32.mrb[0].mxu0
  %v620 = vadd.f32 0.0, %v619
  %v621 = vpop.f32.mrb[0].mxu0
  %v622 = vadd.f32 0.0, %v621
  %v623 = vpop.f32.mrb[0].mxu0
  %v624 = vadd.f32 0.0, %v623
  %625 = vmatprep.mubr.bf16.mxu0 0
  %626 = vmatmul.mubr.bf16.gmra.mrb[0].mxu0 %v281
  %v627 = vpop.f32.mrb[0].mxu0
  %v628 = vadd.f32 0.0, %v627
  %v629 = vpop.f32.mrb[0].mxu0
  %v630 = vadd.f32 0.0, %v629
  %v631 = vpop.f32.mrb[0].mxu0
  %v632 = vadd.f32 0.0, %v631
  %v633 = vpop.f32.mrb[0].mxu0
  %v634 = vadd.f32 0.0, %v633
  %635 = vdwg.mxu0
  %v636 = vpack.c.bf16 %v322, %v318
  %v637 = vpack.c.bf16 %v324, %v320
  %v638 = vpack.c.bf16 %v332, %v328
  %v639 = vpack.c.bf16 %v334, %v330
  %v640 = vpack.c.bf16 %v342, %v338
  %v641 = vpack.c.bf16 %v344, %v340
  %v642 = vpack.c.bf16 %v352, %v348
  %v643 = vpack.c.bf16 %v354, %v350
  %v644 = vpack.c.bf16 %v362, %v358
  %v645 = vpack.c.bf16 %v364, %v360
  %v646 = vpack.c.bf16 %v372, %v368
  %v647 = vpack.c.bf16 %v374, %v370
  %v648 = vpack.c.bf16 %v382, %v378
  %v649 = vpack.c.bf16 %v384, %v380
  %v650 = vpack.c.bf16 %v392, %v388
  %v651 = vpack.c.bf16 %v394, %v390
  %v652 = vpack.c.bf16 %v402, %v398
  %v653 = vpack.c.bf16 %v404, %v400
  %v654 = vpack.c.bf16 %v412, %v408
  %v655 = vpack.c.bf16 %v414, %v410
  %v656 = vpack.c.bf16 %v422, %v418
  %v657 = vpack.c.bf16 %v424, %v420
  %v658 = vpack.c.bf16 %v432, %v428
  %v659 = vpack.c.bf16 %v434, %v430
  %v660 = vpack.c.bf16 %v442, %v438
  %v661 = vpack.c.bf16 %v444, %v440
  %v662 = vpack.c.bf16 %v452, %v448
  %v663 = vpack.c.bf16 %v454, %v450
  %v664 = vpack.c.bf16 %v462, %v458
  %v665 = vpack.c.bf16 %v464, %v460
  %v666 = vpack.c.bf16 %v472, %v468
  %v667 = vpack.c.bf16 %v474, %v470
  %v668 = vpack.c.bf16 %v482, %v478
  %v669 = vpack.c.bf16 %v484, %v480
  %v670 = vpack.c.bf16 %v492, %v488
  %v671 = vpack.c.bf16 %v494, %v490
  %v672 = vpack.c.bf16 %v502, %v498
  %v673 = vpack.c.bf16 %v504, %v500
  %v674 = vpack.c.bf16 %v512, %v508
  %v675 = vpack.c.bf16 %v514, %v510
  %v676 = vpack.c.bf16 %v522, %v518
  %v677 = vpack.c.bf16 %v524, %v520
  %v678 = vpack.c.bf16 %v532, %v528
  %v679 = vpack.c.bf16 %v534, %v530
  %v680 = vpack.c.bf16 %v542, %v538
  %v681 = vpack.c.bf16 %v544, %v540
  %v682 = vpack.c.bf16 %v552, %v548
  %v683 = vpack.c.bf16 %v554, %v550
  %v684 = vpack.c.bf16 %v562, %v558
  %v685 = vpack.c.bf16 %v564, %v560
  %v686 = vpack.c.bf16 %v572, %v568
  %v687 = vpack.c.bf16 %v574, %v570
  %v688 = vpack.c.bf16 %v582, %v578
  %v689 = vpack.c.bf16 %v584, %v580
  %v690 = vpack.c.bf16 %v592, %v588
  %v691 = vpack.c.bf16 %v594, %v590
  %v692 = vpack.c.bf16 %v602, %v598
  %v693 = vpack.c.bf16 %v604, %v600
  %v694 = vpack.c.bf16 %v612, %v608
  %v695 = vpack.c.bf16 %v614, %v610
  %v696 = vpack.c.bf16 %v622, %v618
  %v697 = vpack.c.bf16 %v624, %v620
  %v698 = vpack.c.bf16 %v632, %v628
  %v699 = vpack.c.bf16 %v634, %v630
  %708 = vrot.lane.b32.xlu0 %v636, 64
  %v709 = vpop.permute.xlu0 %708
  %710 = vrot.lane.b32.xlu0 %v638, 64
  %v711 = vpop.permute.xlu0 %710
  %712 = vrot.lane.b32.xlu0 %v640, 64
  %v713 = vpop.permute.xlu0 %712
  %714 = vrot.lane.b32.xlu0 %v642, 64
  %v715 = vpop.permute.xlu0 %714
  %716 = vrot.lane.b32.xlu0 %v644, 64
  %v717 = vpop.permute.xlu0 %716
  %718 = vrot.lane.b32.xlu0 %v646, 64
  %v719 = vpop.permute.xlu0 %718
  %720 = vrot.lane.b32.xlu0 %v648, 64
  %v721 = vpop.permute.xlu0 %720
  %722 = vrot.lane.b32.xlu0 %v650, 64
  %v723 = vpop.permute.xlu0 %722
  %vm724 = vcmask 261120
  %v726 = vsel %vm724, %v636, 0
  %v729 = vsel %vm724, %v638, 0
  %v732 = vsel %vm724, %v640, 0
  %v735 = vsel %vm724, %v642, 0
  %v738 = vsel %vm724, %v644, 0
  %v741 = vsel %vm724, %v646, 0
  %v744 = vsel %vm724, %v648, 0
  %v747 = vsel %vm724, %v650, 0
  %v750 = vsel %vm724, %v709, 0
  %v753 = vsel %vm724, %v711, 0
  %v756 = vsel %vm724, %v713, 0
  %v759 = vsel %vm724, %v715, 0
  %v762 = vsel %vm724, %v717, 0
  %v765 = vsel %vm724, %v719, 0
  %v768 = vsel %vm724, %v721, 0
  %v771 = vsel %vm724, %v723, 0
  %773 = vmatprep.subr.bf16.mxu0 0
  %774 = vmatpush1.bf16.xpose.msra.mxu0 %v750
  %775 = vmatprep.subr.bf16.mxu0 0
  %776 = vmatpush1.bf16.xpose.msra.mxu0 %v753
  %777 = vmatprep.subr.bf16.mxu0 0
  %778 = vmatpush1.bf16.xpose.msra.mxu0 %v756
  %779 = vmatprep.subr.bf16.mxu0 0
  %780 = vmatpush1.bf16.xpose.msra.mxu0 %v759
  %781 = vmatprep.subr.bf16.mxu0 0
  %782 = vmatpush1.bf16.xpose.msra.mxu0 %v762
  %783 = vmatprep.subr.bf16.mxu0 0
  %784 = vmatpush1.bf16.xpose.msra.mxu0 %v765
  %785 = vmatprep.subr.bf16.mxu0 0
  %786 = vmatpush1.bf16.xpose.msra.mxu0 %v768
  %787 = vmatprep.subr.bf16.mxu0 0
  %788 = vmatpush1.bf16.xpose.msra.mxu0 %v771
  %789 = vmatprep.subr.bf16.mxu0 0
  %790 = vmatpush1.bf16.xpose.msra.mxu0 0
  %791 = vmatprep.subr.bf16.mxu0 0
  %792 = vmatpush1.bf16.xpose.msra.mxu0 0
  %793 = vmatprep.subr.bf16.mxu0 0
  %794 = vmatpush1.bf16.xpose.msra.mxu0 0
  %795 = vmatprep.subr.bf16.mxu0 0
  %796 = vmatpush1.bf16.xpose.msra.mxu0 0
  %797 = vmatprep.subr.bf16.mxu0 0
  %798 = vmatpush1.bf16.xpose.msra.mxu0 0
  %799 = vmatprep.subr.bf16.mxu0 0
  %800 = vmatpush1.bf16.xpose.msra.mxu0 0
  %801 = vmatprep.subr.bf16.mxu0 0
  %802 = vmatpush1.bf16.xpose.msra.mxu0 0
  %803 = vmatprep.subr.bf16.mxu0 0
  %804 = vmatpush1.bf16.xpose.msra.mxu0 0
  %805 = vmatprep.mubr.bf16.mxu0 0
  %806 = vmatmul.mubr.bf16.gmra.mrb[0].mxu0 %v726
  %v807 = vpop.f32.mrb[0].mxu0
  %v808 = vadd.f32 0.0, %v807
  %v809 = vpop.f32.mrb[0].mxu0
  %v810 = vpop.f32.mrb[0].mxu0
  %v811 = vadd.f32 0.0, %v810
  %v812 = vpop.f32.mrb[0].mxu0
  %813 = vmatprep.mubr.bf16.mxu0 0
  %814 = vmatmul.mubr.bf16.gmra.mrb[0].mxu0 %v729
  %v815 = vpop.f32.mrb[0].mxu0
  %v816 = vadd.f32 0.0, %v815
  %v817 = vpop.f32.mrb[0].mxu0
  %v818 = vpop.f32.mrb[0].mxu0
  %v819 = vadd.f32 0.0, %v818
  %v820 = vpop.f32.mrb[0].mxu0
  %821 = vmatprep.mubr.bf16.mxu0 0
  %822 = vmatmul.mubr.bf16.gmra.mrb[0].mxu0 %v732
  %v823 = vpop.f32.mrb[0].mxu0
  %v824 = vadd.f32 0.0, %v823
  %v825 = vpop.f32.mrb[0].mxu0
  %v826 = vpop.f32.mrb[0].mxu0
  %v827 = vadd.f32 0.0, %v826
  %v828 = vpop.f32.mrb[0].mxu0
  %829 = vmatprep.mubr.bf16.mxu0 0
  %830 = vmatmul.mubr.bf16.gmra.mrb[0].mxu0 %v735
  %v831 = vpop.f32.mrb[0].mxu0
  %v832 = vadd.f32 0.0, %v831
  %v833 = vpop.f32.mrb[0].mxu0
  %v834 = vpop.f32.mrb[0].mxu0
  %v835 = vadd.f32 0.0, %v834
  %v836 = vpop.f32.mrb[0].mxu0
  %837 = vmatprep.mubr.bf16.mxu0 0
  %838 = vmatmul.mubr.bf16.gmra.mrb[0].mxu0 %v738
  %v839 = vpop.f32.mrb[0].mxu0
  %v840 = vadd.f32 0.0, %v839
  %v841 = vpop.f32.mrb[0].mxu0
  %v842 = vpop.f32.mrb[0].mxu0
  %v843 = vadd.f32 0.0, %v842
  %v844 = vpop.f32.mrb[0].mxu0
  %845 = vmatprep.mubr.bf16.mxu0 0
  %846 = vmatmul.mubr.bf16.gmra.mrb[0].mxu0 %v741
  %v847 = vpop.f32.mrb[0].mxu0
  %v848 = vadd.f32 0.0, %v847
  %v849 = vpop.f32.mrb[0].mxu0
  %v850 = vpop.f32.mrb[0].mxu0
  %v851 = vadd.f32 0.0, %v850
  %v852 = vpop.f32.mrb[0].mxu0
  %853 = vmatprep.mubr.bf16.mxu0 0
  %854 = vmatmul.mubr.bf16.gmra.mrb[0].mxu0 %v744
  %v855 = vpop.f32.mrb[0].mxu0
  %v856 = vadd.f32 0.0, %v855
  %v857 = vpop.f32.mrb[0].mxu0
  %v858 = vpop.f32.mrb[0].mxu0
  %v859 = vadd.f32 0.0, %v858
  %v860 = vpop.f32.mrb[0].mxu0
  %861 = vmatprep.mubr.bf16.mxu0 0
  %862 = vmatmul.mubr.bf16.gmra.mrb[0].mxu0 %v747
  %v863 = vpop.f32.mrb[0].mxu0
  %v864 = vadd.f32 0.0, %v863
  %v865 = vpop.f32.mrb[0].mxu0
  %v866 = vpop.f32.mrb[0].mxu0
  %v867 = vadd.f32 0.0, %v866
  %v868 = vpop.f32.mrb[0].mxu0
  %869 = vdwg.mxu0
  %878 = vrot.lane.b32.xlu0 %v652, 64
  %v879 = vpop.permute.xlu0 %878
  %880 = vrot.lane.b32.xlu0 %v654, 64
  %v881 = vpop.permute.xlu0 %880
  %882 = vrot.lane.b32.xlu0 %v656, 64
  %v883 = vpop.permute.xlu0 %882
  %884 = vrot.lane.b32.xlu0 %v658, 64
  %v885 = vpop.permute.xlu0 %884
  %886 = vrot.lane.b32.xlu0 %v660, 64
  %v887 = vpop.permute.xlu0 %886
  %888 = vrot.lane.b32.xlu0 %v662, 64
  %v889 = vpop.permute.xlu0 %888
  %890 = vrot.lane.b32.xlu0 %v664, 64
  %v891 = vpop.permute.xlu0 %890
  %892 = vrot.lane.b32.xlu0 %v666, 64
  %v893 = vpop.permute.xlu0 %892
  %v895 = vsel %vm724, %v652, 0
  %v898 = vsel %vm724, %v654, 0
  %v901 = vsel %vm724, %v656, 0
  %v904 = vsel %vm724, %v658, 0
  %v907 = vsel %vm724, %v660, 0
  %v910 = vsel %vm724, %v662, 0
  %v913 = vsel %vm724, %v664, 0
  %v916 = vsel %vm724, %v666, 0
  %v919 = vsel %vm724, %v879, 0
  %v922 = vsel %vm724, %v881, 0
  %v925 = vsel %vm724, %v883, 0
  %v928 = vsel %vm724, %v885, 0
  %v931 = vsel %vm724, %v887, 0
  %v934 = vsel %vm724, %v889, 0
  %v937 = vsel %vm724, %v891, 0
  %v940 = vsel %vm724, %v893, 0
  %942 = vmatprep.subr.bf16.mxu0 0
  %943 = vmatpush1.bf16.xpose.msra.mxu0 %v919
  %944 = vmatprep.subr.bf16.mxu0 0
  %945 = vmatpush1.bf16.xpose.msra.mxu0 %v922
  %946 = vmatprep.subr.bf16.mxu0 0
  %947 = vmatpush1.bf16.xpose.msra.mxu0 %v925
  %948 = vmatprep.subr.bf16.mxu0 0
  %949 = vmatpush1.bf16.xpose.msra.mxu0 %v928
  %950 = vmatprep.subr.bf16.mxu0 0
  %951 = vmatpush1.bf16.xpose.msra.mxu0 %v931
  %952 = vmatprep.subr.bf16.mxu0 0
  %953 = vmatpush1.bf16.xpose.msra.mxu0 %v934
  %954 = vmatprep.subr.bf16.mxu0 0
  %955 = vmatpush1.bf16.xpose.msra.mxu0 %v937
  %956 = vmatprep.subr.bf16.mxu0 0
  %957 = vmatpush1.bf16.xpose.msra.mxu0 %v940
  %958 = vmatprep.subr.bf16.mxu0 0
  %959 = vmatpush1.bf16.xpose.msra.mxu0 0
  %960 = vmatprep.subr.bf16.mxu0 0
  %961 = vmatpush1.bf16.xpose.msra.mxu0 0
  %962 = vmatprep.subr.bf16.mxu0 0
  %963 = vmatpush1.bf16.xpose.msra.mxu0 0
  %964 = vmatprep.subr.bf16.mxu0 0
  %965 = vmatpush1.bf16.xpose.msra.mxu0 0
  %966 = vmatprep.subr.bf16.mxu0 0
  %967 = vmatpush1.bf16.xpose.msra.mxu0 0
  %968 = vmatprep.subr.bf16.mxu0 0
  %969 = vmatpush1.bf16.xpose.msra.mxu0 0
  %970 = vmatprep.subr.bf16.mxu0 0
  %971 = vmatpush1.bf16.xpose.msra.mxu0 0
  %972 = vmatprep.subr.bf16.mxu0 0
  %973 = vmatpush1.bf16.xpose.msra.mxu0 0
  %974 = vmatprep.mubr.bf16.mxu0 0
  %975 = vmatmul.mubr.bf16.gmra.mrb[0].mxu0 %v895
  %v976 = vpop.f32.mrb[0].mxu0
  %v977 = vadd.f32 0.0, %v976
  %v978 = vpop.f32.mrb[0].mxu0
  %v979 = vpop.f32.mrb[0].mxu0
  %v980 = vadd.f32 0.0, %v979
  %v981 = vpop.f32.mrb[0].mxu0
  %982 = vmatprep.mubr.bf16.mxu0 0
  %983 = vmatmul.mubr.bf16.gmra.mrb[0].mxu0 %v898
  %v984 = vpop.f32.mrb[0].mxu0
  %v985 = vadd.f32 0.0, %v984
  %v986 = vpop.f32.mrb[0].mxu0
  %v987 = vpop.f32.mrb[0].mxu0
  %v988 = vadd.f32 0.0, %v987
  %v989 = vpop.f32.mrb[0].mxu0
  %990 = vmatprep.mubr.bf16.mxu0 0
  %991 = vmatmul.mubr.bf16.gmra.mrb[0].mxu0 %v901
  %v992 = vpop.f32.mrb[0].mxu0
  %v993 = vadd.f32 0.0, %v992
  %v994 = vpop.f32.mrb[0].mxu0
  %v995 = vpop.f32.mrb[0].mxu0
  %v996 = vadd.f32 0.0, %v995
  %v997 = vpop.f32.mrb[0].mxu0
  %998 = vmatprep.mubr.bf16.mxu0 0
  %999 = vmatmul.mubr.bf16.gmra.mrb[0].mxu0 %v904
  %v1000 = vpop.f32.mrb[0].mxu0
  %v1001 = vadd.f32 0.0, %v1000
  %v1002 = vpop.f32.mrb[0].mxu0
  %v1003 = vpop.f32.mrb[0].mxu0
  %v1004 = vadd.f32 0.0, %v1003
  %v1005 = vpop.f32.mrb[0].mxu0
  %1006 = vmatprep.mubr.bf16.mxu0 0
  %1007 = vmatmul.mubr.bf16.gmra.mrb[0].mxu0 %v907
  %v1008 = vpop.f32.mrb[0].mxu0
  %v1009 = vadd.f32 0.0, %v1008
  %v1010 = vpop.f32.mrb[0].mxu0
  %v1011 = vpop.f32.mrb[0].mxu0
  %v1012 = vadd.f32 0.0, %v1011
  %v1013 = vpop.f32.mrb[0].mxu0
  %1014 = vmatprep.mubr.bf16.mxu0 0
  %1015 = vmatmul.mubr.bf16.gmra.mrb[0].mxu0 %v910
  %v1016 = vpop.f32.mrb[0].mxu0
  %v1017 = vadd.f32 0.0, %v1016
  %v1018 = vpop.f32.mrb[0].mxu0
  %v1019 = vpop.f32.mrb[0].mxu0
  %v1020 = vadd.f32 0.0, %v1019
  %v1021 = vpop.f32.mrb[0].mxu0
  %1022 = vmatprep.mubr.bf16.mxu0 0
  %1023 = vmatmul.mubr.bf16.gmra.mrb[0].mxu0 %v913
  %v1024 = vpop.f32.mrb[0].mxu0
  %v1025 = vadd.f32 0.0, %v1024
  %v1026 = vpop.f32.mrb[0].mxu0
  %v1027 = vpop.f32.mrb[0].mxu0
  %v1028 = vadd.f32 0.0, %v1027
  %v1029 = vpop.f32.mrb[0].mxu0
  %1030 = vmatprep.mubr.bf16.mxu0 0
  %1031 = vmatmul.mubr.bf16.gmra.mrb[0].mxu0 %v916
  %v1032 = vpop.f32.mrb[0].mxu0
  %v1033 = vadd.f32 0.0, %v1032
  %v1034 = vpop.f32.mrb[0].mxu0
  %v1035 = vpop.f32.mrb[0].mxu0
  %v1036 = vadd.f32 0.0, %v1035
  %v1037 = vpop.f32.mrb[0].mxu0
  %1038 = vdwg.mxu0
  %1047 = vrot.lane.b32.xlu0 %v668, 64
  %v1048 = vpop.permute.xlu0 %1047
  %1049 = vrot.lane.b32.xlu0 %v670, 64
  %v1050 = vpop.permute.xlu0 %1049
  %1051 = vrot.lane.b32.xlu0 %v672, 64
  %v1052 = vpop.permute.xlu0 %1051
  %1053 = vrot.lane.b32.xlu0 %v674, 64
  %v1054 = vpop.permute.xlu0 %1053
  %1055 = vrot.lane.b32.xlu0 %v676, 64
  %v1056 = vpop.permute.xlu0 %1055
  %1057 = vrot.lane.b32.xlu0 %v678, 64
  %v1058 = vpop.permute.xlu0 %1057
  %1059 = vrot.lane.b32.xlu0 %v680, 64
  %v1060 = vpop.permute.xlu0 %1059
  %1061 = vrot.lane.b32.xlu0 %v682, 64
  %v1062 = vpop.permute.xlu0 %1061
  %v1064 = vsel %vm724, %v668, 0
  %v1067 = vsel %vm724, %v670, 0
  %v1070 = vsel %vm724, %v672, 0
  %v1073 = vsel %vm724, %v674, 0
  %v1076 = vsel %vm724, %v676, 0
  %v1079 = vsel %vm724, %v678, 0
  %v1082 = vsel %vm724, %v680, 0
  %v1085 = vsel %vm724, %v682, 0
  %v1088 = vsel %vm724, %v1048, 0
  %v1091 = vsel %vm724, %v1050, 0
  %v1094 = vsel %vm724, %v1052, 0
  %v1097 = vsel %vm724, %v1054, 0
  %v1100 = vsel %vm724, %v1056, 0
  %v1103 = vsel %vm724, %v1058, 0
  %v1106 = vsel %vm724, %v1060, 0
  %v1109 = vsel %vm724, %v1062, 0
  %1111 = vmatprep.subr.bf16.mxu0 0
  %1112 = vmatpush1.bf16.xpose.msra.mxu0 %v1088
  %1113 = vmatprep.subr.bf16.mxu0 0
  %1114 = vmatpush1.bf16.xpose.msra.mxu0 %v1091
  %1115 = vmatprep.subr.bf16.mxu0 0
  %1116 = vmatpush1.bf16.xpose.msra.mxu0 %v1094
  %1117 = vmatprep.subr.bf16.mxu0 0
  %1118 = vmatpush1.bf16.xpose.msra.mxu0 %v1097
  %1119 = vmatprep.subr.bf16.mxu0 0
  %1120 = vmatpush1.bf16.xpose.msra.mxu0 %v1100
  %1121 = vmatprep.subr.bf16.mxu0 0
  %1122 = vmatpush1.bf16.xpose.msra.mxu0 %v1103
  %1123 = vmatprep.subr.bf16.mxu0 0
  %1124 = vmatpush1.bf16.xpose.msra.mxu0 %v1106
  %1125 = vmatprep.subr.bf16.mxu0 0
  %1126 = vmatpush1.bf16.xpose.msra.mxu0 %v1109
  %1127 = vmatprep.subr.bf16.mxu0 0
  %1128 = vmatpush1.bf16.xpose.msra.mxu0 0
  %1129 = vmatprep.subr.bf16.mxu0 0
  %1130 = vmatpush1.bf16.xpose.msra.mxu0 0
  %1131 = vmatprep.subr.bf16.mxu0 0
  %1132 = vmatpush1.bf16.xpose.msra.mxu0 0
  %1133 = vmatprep.subr.bf16.mxu0 0
  %1134 = vmatpush1.bf16.xpose.msra.mxu0 0
  %1135 = vmatprep.subr.bf16.mxu0 0
  %1136 = vmatpush1.bf16.xpose.msra.mxu0 0
  %1137 = vmatprep.subr.bf16.mxu0 0
  %1138 = vmatpush1.bf16.xpose.msra.mxu0 0
  %1139 = vmatprep.subr.bf16.mxu0 0
  %1140 = vmatpush1.bf16.xpose.msra.mxu0 0
  %1141 = vmatprep.subr.bf16.mxu0 0
  %1142 = vmatpush1.bf16.xpose.msra.mxu0 0
  %1143 = vmatprep.mubr.bf16.mxu0 0
  %1144 = vmatmul.mubr.bf16.gmra.mrb[0].mxu0 %v1064
  %v1145 = vpop.f32.mrb[0].mxu0
  %v1146 = vadd.f32 0.0, %v1145
  %v1147 = vpop.f32.mrb[0].mxu0
  %v1148 = vpop.f32.mrb[0].mxu0
  %v1149 = vadd.f32 0.0, %v1148
  %v1150 = vpop.f32.mrb[0].mxu0
  %1151 = vmatprep.mubr.bf16.mxu0 0
  %1152 = vmatmul.mubr.bf16.gmra.mrb[0].mxu0 %v1067
  %v1153 = vpop.f32.mrb[0].mxu0
  %v1154 = vadd.f32 0.0, %v1153
  %v1155 = vpop.f32.mrb[0].mxu0
  %v1156 = vpop.f32.mrb[0].mxu0
  %v1157 = vadd.f32 0.0, %v1156
  %v1158 = vpop.f32.mrb[0].mxu0
  %1159 = vmatprep.mubr.bf16.mxu0 0
  %1160 = vmatmul.mubr.bf16.gmra.mrb[0].mxu0 %v1070
  %v1161 = vpop.f32.mrb[0].mxu0
  %v1162 = vadd.f32 0.0, %v1161
  %v1163 = vpop.f32.mrb[0].mxu0
  %v1164 = vpop.f32.mrb[0].mxu0
  %v1165 = vadd.f32 0.0, %v1164
  %v1166 = vpop.f32.mrb[0].mxu0
  %1167 = vmatprep.mubr.bf16.mxu0 0
  %1168 = vmatmul.mubr.bf16.gmra.mrb[0].mxu0 %v1073
  %v1169 = vpop.f32.mrb[0].mxu0
  %v1170 = vadd.f32 0.0, %v1169
  %v1171 = vpop.f32.mrb[0].mxu0
  %v1172 = vpop.f32.mrb[0].mxu0
  %v1173 = vadd.f32 0.0, %v1172
  %v1174 = vpop.f32.mrb[0].mxu0
  %1175 = vmatprep.mubr.bf16.mxu0 0
  %1176 = vmatmul.mubr.bf16.gmra.mrb[0].mxu0 %v1076
  %v1177 = vpop.f32.mrb[0].mxu0
  %v1178 = vadd.f32 0.0, %v1177
  %v1179 = vpop.f32.mrb[0].mxu0
  %v1180 = vpop.f32.mrb[0].mxu0
  %v1181 = vadd.f32 0.0, %v1180
  %v1182 = vpop.f32.mrb[0].mxu0
  %1183 = vmatprep.mubr.bf16.mxu0 0
  %1184 = vmatmul.mubr.bf16.gmra.mrb[0].mxu0 %v1079
  %v1185 = vpop.f32.mrb[0].mxu0
  %v1186 = vadd.f32 0.0, %v1185
  %v1187 = vpop.f32.mrb[0].mxu0
  %v1188 = vpop.f32.mrb[0].mxu0
  %v1189 = vadd.f32 0.0, %v1188
  %v1190 = vpop.f32.mrb[0].mxu0
  %1191 = vmatprep.mubr.bf16.mxu0 0
  %1192 = vmatmul.mubr.bf16.gmra.mrb[0].mxu0 %v1082
  %v1193 = vpop.f32.mrb[0].mxu0
  %v1194 = vadd.f32 0.0, %v1193
  %v1195 = vpop.f32.mrb[0].mxu0
  %v1196 = vpop.f32.mrb[0].mxu0
  %v1197 = vadd.f32 0.0, %v1196
  %v1198 = vpop.f32.mrb[0].mxu0
  %1199 = vmatprep.mubr.bf16.mxu0 0
  %1200 = vmatmul.mubr.bf16.gmra.mrb[0].mxu0 %v1085
  %v1201 = vpop.f32.mrb[0].mxu0
  %v1202 = vadd.f32 0.0, %v1201
  %v1203 = vpop.f32.mrb[0].mxu0
  %v1204 = vpop.f32.mrb[0].mxu0
  %v1205 = vadd.f32 0.0, %v1204
  %v1206 = vpop.f32.mrb[0].mxu0
  %1207 = vdwg.mxu0
  %1216 = vrot.lane.b32.xlu0 %v684, 64
  %v1217 = vpop.permute.xlu0 %1216
  %1218 = vrot.lane.b32.xlu0 %v686, 64
  %v1219 = vpop.permute.xlu0 %1218
  %1220 = vrot.lane.b32.xlu0 %v688, 64
  %v1221 = vpop.permute.xlu0 %1220
  %1222 = vrot.lane.b32.xlu0 %v690, 64
  %v1223 = vpop.permute.xlu0 %1222
  %1224 = vrot.lane.b32.xlu0 %v692, 64
  %v1225 = vpop.permute.xlu0 %1224
  %1226 = vrot.lane.b32.xlu0 %v694, 64
  %v1227 = vpop.permute.xlu0 %1226
  %1228 = vrot.lane.b32.xlu0 %v696, 64
  %v1229 = vpop.permute.xlu0 %1228
  %1230 = vrot.lane.b32.xlu0 %v698, 64
  %v1231 = vpop.permute.xlu0 %1230
  %v1233 = vsel %vm724, %v684, 0
  %v1236 = vsel %vm724, %v686, 0
  %v1239 = vsel %vm724, %v688, 0
  %v1242 = vsel %vm724, %v690, 0
  %v1245 = vsel %vm724, %v692, 0
  %v1248 = vsel %vm724, %v694, 0
  %v1251 = vsel %vm724, %v696, 0
  %v1254 = vsel %vm724, %v698, 0
  %v1257 = vsel %vm724, %v1217, 0
  %v1260 = vsel %vm724, %v1219, 0
  %v1263 = vsel %vm724, %v1221, 0
  %v1266 = vsel %vm724, %v1223, 0
  %v1269 = vsel %vm724, %v1225, 0
  %v1272 = vsel %vm724, %v1227, 0
  %v1275 = vsel %vm724, %v1229, 0
  %v1278 = vsel %vm724, %v1231, 0
  %1280 = vmatprep.subr.bf16.mxu0 0
  %1281 = vmatpush1.bf16.xpose.msra.mxu0 %v1257
  %1282 = vmatprep.subr.bf16.mxu0 0
  %1283 = vmatpush1.bf16.xpose.msra.mxu0 %v1260
  %1284 = vmatprep.subr.bf16.mxu0 0
  %1285 = vmatpush1.bf16.xpose.msra.mxu0 %v1263
  %1286 = vmatprep.subr.bf16.mxu0 0
  %1287 = vmatpush1.bf16.xpose.msra.mxu0 %v1266
  %1288 = vmatprep.subr.bf16.mxu0 0
  %1289 = vmatpush1.bf16.xpose.msra.mxu0 %v1269
  %1290 = vmatprep.subr.bf16.mxu0 0
  %1291 = vmatpush1.bf16.xpose.msra.mxu0 %v1272
  %1292 = vmatprep.subr.bf16.mxu0 0
  %1293 = vmatpush1.bf16.xpose.msra.mxu0 %v1275
  %1294 = vmatprep.subr.bf16.mxu0 0
  %1295 = vmatpush1.bf16.xpose.msra.mxu0 %v1278
  %1296 = vmatprep.subr.bf16.mxu0 0
  %1297 = vmatpush1.bf16.xpose.msra.mxu0 0
  %1298 = vmatprep.subr.bf16.mxu0 0
  %1299 = vmatpush1.bf16.xpose.msra.mxu0 0
  %1300 = vmatprep.subr.bf16.mxu0 0
  %1301 = vmatpush1.bf16.xpose.msra.mxu0 0
  %1302 = vmatprep.subr.bf16.mxu0 0
  %1303 = vmatpush1.bf16.xpose.msra.mxu0 0
  %1304 = vmatprep.subr.bf16.mxu0 0
  %1305 = vmatpush1.bf16.xpose.msra.mxu0 0
  %1306 = vmatprep.subr.bf16.mxu0 0
  %1307 = vmatpush1.bf16.xpose.msra.mxu0 0
  %1308 = vmatprep.subr.bf16.mxu0 0
  %1309 = vmatpush1.bf16.xpose.msra.mxu0 0
  %1310 = vmatprep.subr.bf16.mxu0 0
  %1311 = vmatpush1.bf16.xpose.msra.mxu0 0
  %1312 = vmatprep.mubr.bf16.mxu0 0
  %1313 = vmatmul.mubr.bf16.gmra.mrb[0].mxu0 %v1233
  %v1314 = vpop.f32.mrb[0].mxu0
  %v1315 = vadd.f32 0.0, %v1314
  %v1316 = vpop.f32.mrb[0].mxu0
  %v1317 = vpop.f32.mrb[0].mxu0
  %v1318 = vadd.f32 0.0, %v1317
  %v1319 = vpop.f32.mrb[0].mxu0
  %1320 = vmatprep.mubr.bf16.mxu0 0
  %1321 = vmatmul.mubr.bf16.gmra.mrb[0].mxu0 %v1236
  %v1322 = vpop.f32.mrb[0].mxu0
  %v1323 = vadd.f32 0.0, %v1322
  %v1324 = vpop.f32.mrb[0].mxu0
  %v1325 = vpop.f32.mrb[0].mxu0
  %v1326 = vadd.f32 0.0, %v1325
  %v1327 = vpop.f32.mrb[0].mxu0
  %1328 = vmatprep.mubr.bf16.mxu0 0
  %1329 = vmatmul.mubr.bf16.gmra.mrb[0].mxu0 %v1239
  %v1330 = vpop.f32.mrb[0].mxu0
  %v1331 = vadd.f32 0.0, %v1330
  %v1332 = vpop.f32.mrb[0].mxu0
  %v1333 = vpop.f32.mrb[0].mxu0
  %v1334 = vadd.f32 0.0, %v1333
  %v1335 = vpop.f32.mrb[0].mxu0
  %1336 = vmatprep.mubr.bf16.mxu0 0
  %1337 = vmatmul.mubr.bf16.gmra.mrb[0].mxu0 %v1242
  %v1338 = vpop.f32.mrb[0].mxu0
  %v1339 = vadd.f32 0.0, %v1338
  %v1340 = vpop.f32.mrb[0].mxu0
  %v1341 = vpop.f32.mrb[0].mxu0
  %v1342 = vadd.f32 0.0, %v1341
  %v1343 = vpop.f32.mrb[0].mxu0
  %1344 = vmatprep.mubr.bf16.mxu0 0
  %1345 = vmatmul.mubr.bf16.gmra.mrb[0].mxu0 %v1245
  %v1346 = vpop.f32.mrb[0].mxu0
  %v1347 = vadd.f32 0.0, %v1346
  %v1348 = vpop.f32.mrb[0].mxu0
  %v1349 = vpop.f32.mrb[0].mxu0
  %v1350 = vadd.f32 0.0, %v1349
  %v1351 = vpop.f32.mrb[0].mxu0
  %1352 = vmatprep.mubr.bf16.mxu0 0
  %1353 = vmatmul.mubr.bf16.gmra.mrb[0].mxu0 %v1248
  %v1354 = vpop.f32.mrb[0].mxu0
  %v1355 = vadd.f32 0.0, %v1354
  %v1356 = vpop.f32.mrb[0].mxu0
  %v1357 = vpop.f32.mrb[0].mxu0
  %v1358 = vadd.f32 0.0, %v1357
  %v1359 = vpop.f32.mrb[0].mxu0
  %1360 = vmatprep.mubr.bf16.mxu0 0
  %1361 = vmatmul.mubr.bf16.gmra.mrb[0].mxu0 %v1251
  %v1362 = vpop.f32.mrb[0].mxu0
  %v1363 = vadd.f32 0.0, %v1362
  %v1364 = vpop.f32.mrb[0].mxu0
  %v1365 = vpop.f32.mrb[0].mxu0
  %v1366 = vadd.f32 0.0, %v1365
  %v1367 = vpop.f32.mrb[0].mxu0
  %1368 = vmatprep.mubr.bf16.mxu0 0
  %1369 = vmatmul.mubr.bf16.gmra.mrb[0].mxu0 %v1254
  %v1370 = vpop.f32.mrb[0].mxu0
  %v1371 = vadd.f32 0.0, %v1370
  %v1372 = vpop.f32.mrb[0].mxu0
  %v1373 = vpop.f32.mrb[0].mxu0
  %v1374 = vadd.f32 0.0, %v1373
  %v1375 = vpop.f32.mrb[0].mxu0
  %1376 = vdwg.mxu0
  %1377 = vmax.xlane.f32.xlu0 %v808
  %v1378 = vpop.xlane.xlu0 %1377
  %1379 = vmax.xlane.f32.xlu0 %v811
  %v1380 = vpop.xlane.xlu0 %1379
  %1381 = vmax.xlane.f32.xlu0 %v816
  %v1382 = vpop.xlane.xlu0 %1381
  %1383 = vmax.xlane.f32.xlu0 %v819
  %v1384 = vpop.xlane.xlu0 %1383
  %1385 = vmax.xlane.f32.xlu0 %v824
  %v1386 = vpop.xlane.xlu0 %1385
  %1387 = vmax.xlane.f32.xlu0 %v827
  %v1388 = vpop.xlane.xlu0 %1387
  %1389 = vmax.xlane.f32.xlu0 %v832
  %v1390 = vpop.xlane.xlu0 %1389
  %1391 = vmax.xlane.f32.xlu0 %v835
  %v1392 = vpop.xlane.xlu0 %1391
  %1393 = vmax.xlane.f32.xlu0 %v840
  %v1394 = vpop.xlane.xlu0 %1393
  %1395 = vmax.xlane.f32.xlu0 %v843
  %v1396 = vpop.xlane.xlu0 %1395
  %1397 = vmax.xlane.f32.xlu0 %v848
  %v1398 = vpop.xlane.xlu0 %1397
  %1399 = vmax.xlane.f32.xlu0 %v851
  %v1400 = vpop.xlane.xlu0 %1399
  %1401 = vmax.xlane.f32.xlu0 %v856
  %v1402 = vpop.xlane.xlu0 %1401
  %1403 = vmax.xlane.f32.xlu0 %v859
  %v1404 = vpop.xlane.xlu0 %1403
  %1405 = vmax.xlane.f32.xlu0 %v864
  %v1406 = vpop.xlane.xlu0 %1405
  %1407 = vmax.xlane.f32.xlu0 %v867
  %v1408 = vpop.xlane.xlu0 %1407
  %1409 = vmax.xlane.f32.xlu0 %v977
  %v1410 = vpop.xlane.xlu0 %1409
  %1411 = vmax.xlane.f32.xlu0 %v980
  %v1412 = vpop.xlane.xlu0 %1411
  %1413 = vmax.xlane.f32.xlu0 %v985
  %v1414 = vpop.xlane.xlu0 %1413
  %1415 = vmax.xlane.f32.xlu0 %v988
  %v1416 = vpop.xlane.xlu0 %1415
  %1417 = vmax.xlane.f32.xlu0 %v993
  %v1418 = vpop.xlane.xlu0 %1417
  %1419 = vmax.xlane.f32.xlu0 %v996
  %v1420 = vpop.xlane.xlu0 %1419
  %1421 = vmax.xlane.f32.xlu0 %v1001
  %v1422 = vpop.xlane.xlu0 %1421
  %1423 = vmax.xlane.f32.xlu0 %v1004
  %v1424 = vpop.xlane.xlu0 %1423
  %1425 = vmax.xlane.f32.xlu0 %v1009
  %v1426 = vpop.xlane.xlu0 %1425
  %1427 = vmax.xlane.f32.xlu0 %v1012
  %v1428 = vpop.xlane.xlu0 %1427
  %1429 = vmax.xlane.f32.xlu0 %v1017
  %v1430 = vpop.xlane.xlu0 %1429
  %1431 = vmax.xlane.f32.xlu0 %v1020
  %v1432 = vpop.xlane.xlu0 %1431
  %1433 = vmax.xlane.f32.xlu0 %v1025
  %v1434 = vpop.xlane.xlu0 %1433
  %1435 = vmax.xlane.f32.xlu0 %v1028
  %v1436 = vpop.xlane.xlu0 %1435
  %1437 = vmax.xlane.f32.xlu0 %v1033
  %v1438 = vpop.xlane.xlu0 %1437
  %1439 = vmax.xlane.f32.xlu0 %v1036
  %v1440 = vpop.xlane.xlu0 %1439
  %1441 = vmax.xlane.f32.xlu0 %v1146
  %v1442 = vpop.xlane.xlu0 %1441
  %1443 = vmax.xlane.f32.xlu0 %v1149
  %v1444 = vpop.xlane.xlu0 %1443
  %1445 = vmax.xlane.f32.xlu0 %v1154
  %v1446 = vpop.xlane.xlu0 %1445
  %1447 = vmax.xlane.f32.xlu0 %v1157
  %v1448 = vpop.xlane.xlu0 %1447
  %1449 = vmax.xlane.f32.xlu0 %v1162
  %v1450 = vpop.xlane.xlu0 %1449
  %1451 = vmax.xlane.f32.xlu0 %v1165
  %v1452 = vpop.xlane.xlu0 %1451
  %1453 = vmax.xlane.f32.xlu0 %v1170
  %v1454 = vpop.xlane.xlu0 %1453
  %1455 = vmax.xlane.f32.xlu0 %v1173
  %v1456 = vpop.xlane.xlu0 %1455
  %1457 = vmax.xlane.f32.xlu0 %v1178
  %v1458 = vpop.xlane.xlu0 %1457
  %1459 = vmax.xlane.f32.xlu0 %v1181
  %v1460 = vpop.xlane.xlu0 %1459
  %1461 = vmax.xlane.f32.xlu0 %v1186
  %v1462 = vpop.xlane.xlu0 %1461
  %1463 = vmax.xlane.f32.xlu0 %v1189
  %v1464 = vpop.xlane.xlu0 %1463
  %1465 = vmax.xlane.f32.xlu0 %v1194
  %v1466 = vpop.xlane.xlu0 %1465
  %1467 = vmax.xlane.f32.xlu0 %v1197
  %v1468 = vpop.xlane.xlu0 %1467
  %1469 = vmax.xlane.f32.xlu0 %v1202
  %v1470 = vpop.xlane.xlu0 %1469
  %1471 = vmax.xlane.f32.xlu0 %v1205
  %v1472 = vpop.xlane.xlu0 %1471
  %1473 = vmax.xlane.f32.xlu0 %v1315
  %v1474 = vpop.xlane.xlu0 %1473
  %1475 = vmax.xlane.f32.xlu0 %v1318
  %v1476 = vpop.xlane.xlu0 %1475
  %1477 = vmax.xlane.f32.xlu0 %v1323
  %v1478 = vpop.xlane.xlu0 %1477
  %1479 = vmax.xlane.f32.xlu0 %v1326
  %v1480 = vpop.xlane.xlu0 %1479
  %1481 = vmax.xlane.f32.xlu0 %v1331
  %v1482 = vpop.xlane.xlu0 %1481
  %1483 = vmax.xlane.f32.xlu0 %v1334
  %v1484 = vpop.xlane.xlu0 %1483
  %1485 = vmax.xlane.f32.xlu0 %v1339
  %v1486 = vpop.xlane.xlu0 %1485
  %1487 = vmax.xlane.f32.xlu0 %v1342
  %v1488 = vpop.xlane.xlu0 %1487
  %1489 = vmax.xlane.f32.xlu0 %v1347
  %v1490 = vpop.xlane.xlu0 %1489
  %1491 = vmax.xlane.f32.xlu0 %v1350
  %v1492 = vpop.xlane.xlu0 %1491
  %1493 = vmax.xlane.f32.xlu0 %v1355
  %v1494 = vpop.xlane.xlu0 %1493
  %1495 = vmax.xlane.f32.xlu0 %v1358
  %v1496 = vpop.xlane.xlu0 %1495
  %1497 = vmax.xlane.f32.xlu0 %v1363
  %v1498 = vpop.xlane.xlu0 %1497
  %1499 = vmax.xlane.f32.xlu0 %v1366
  %v1500 = vpop.xlane.xlu0 %1499
  %1501 = vmax.xlane.f32.xlu0 %v1371
  %v1502 = vpop.xlane.xlu0 %1501
  %1503 = vmax.xlane.f32.xlu0 %v1374
  %v1504 = vpop.xlane.xlu0 %1503
  %v1505 = vsub.f32 %v808, %v1378
  %v1506 = vsub.f32 %v811, %v1380
  %v1507 = vsub.f32 %v816, %v1382
  %v1508 = vsub.f32 %v819, %v1384
  %v1509 = vsub.f32 %v824, %v1386
  %v1510 = vsub.f32 %v827, %v1388
  %v1511 = vsub.f32 %v832, %v1390
  %v1512 = vsub.f32 %v835, %v1392
  %v1513 = vsub.f32 %v840, %v1394
  %v1514 = vsub.f32 %v843, %v1396
  %v1515 = vsub.f32 %v848, %v1398
  %v1516 = vsub.f32 %v851, %v1400
  %v1517 = vsub.f32 %v856, %v1402
  %v1518 = vsub.f32 %v859, %v1404
  %v1519 = vsub.f32 %v864, %v1406
  %v1520 = vsub.f32 %v867, %v1408
  %v1521 = vsub.f32 %v977, %v1410
  %v1522 = vsub.f32 %v980, %v1412
  %v1523 = vsub.f32 %v985, %v1414
  %v1524 = vsub.f32 %v988, %v1416
  %v1525 = vsub.f32 %v993, %v1418
  %v1526 = vsub.f32 %v996, %v1420
  %v1527 = vsub.f32 %v1001, %v1422
  %v1528 = vsub.f32 %v1004, %v1424
  %v1529 = vsub.f32 %v1009, %v1426
  %v1530 = vsub.f32 %v1012, %v1428
  %v1531 = vsub.f32 %v1017, %v1430
  %v1532 = vsub.f32 %v1020, %v1432
  %v1533 = vsub.f32 %v1025, %v1434
  %v1534 = vsub.f32 %v1028, %v1436
  %v1535 = vsub.f32 %v1033, %v1438
  %v1536 = vsub.f32 %v1036, %v1440
  %v1537 = vsub.f32 %v1146, %v1442
  %v1538 = vsub.f32 %v1149, %v1444
  %v1539 = vsub.f32 %v1154, %v1446
  %v1540 = vsub.f32 %v1157, %v1448
  %v1541 = vsub.f32 %v1162, %v1450
  %v1542 = vsub.f32 %v1165, %v1452
  %v1543 = vsub.f32 %v1170, %v1454
  %v1544 = vsub.f32 %v1173, %v1456
  %v1545 = vsub.f32 %v1178, %v1458
  %v1546 = vsub.f32 %v1181, %v1460
  %v1547 = vsub.f32 %v1186, %v1462
  %v1548 = vsub.f32 %v1189, %v1464
  %v1549 = vsub.f32 %v1194, %v1466
  %v1550 = vsub.f32 %v1197, %v1468
  %v1551 = vsub.f32 %v1202, %v1470
  %v1552 = vsub.f32 %v1205, %v1472
  %v1553 = vsub.f32 %v1315, %v1474
  %v1554 = vsub.f32 %v1318, %v1476
  %v1555 = vsub.f32 %v1323, %v1478
  %v1556 = vsub.f32 %v1326, %v1480
  %v1557 = vsub.f32 %v1331, %v1482
  %v1558 = vsub.f32 %v1334, %v1484
  %v1559 = vsub.f32 %v1339, %v1486
  %v1560 = vsub.f32 %v1342, %v1488
  %v1561 = vsub.f32 %v1347, %v1490
  %v1562 = vsub.f32 %v1350, %v1492
  %v1563 = vsub.f32 %v1355, %v1494
  %v1564 = vsub.f32 %v1358, %v1496
  %v1565 = vsub.f32 %v1363, %v1498
  %v1566 = vsub.f32 %v1366, %v1500
  %v1567 = vsub.f32 %v1371, %v1502
  %v1568 = vsub.f32 %v1374, %v1504
  %v1569 = vmul.f32 %v1505, 1.442695
  %v1570 = vpow.pop %v1569
  %v1571 = vmul.f32 %v1506, 1.442695
  %v1572 = vpow.pop %v1571
  %v1573 = vmul.f32 %v1507, 1.442695
  %v1574 = vpow.pop %v1573
  %v1575 = vmul.f32 %v1508, 1.442695
  %v1576 = vpow.pop %v1575
  %v1577 = vmul.f32 %v1509, 1.442695
  %v1578 = vpow.pop %v1577
  %v1579 = vmul.f32 %v1510, 1.442695
  %v1580 = vpow.pop %v1579
  %v1581 = vmul.f32 %v1511, 1.442695
  %v1582 = vpow.pop %v1581
  %v1583 = vmul.f32 %v1512, 1.442695
  %v1584 = vpow.pop %v1583
  %v1585 = vmul.f32 %v1513, 1.442695
  %v1586 = vpow.pop %v1585
  %v1587 = vmul.f32 %v1514, 1.442695
  %v1588 = vpow.pop %v1587
  %v1589 = vmul.f32 %v1515, 1.442695
  %v1590 = vpow.pop %v1589
  %v1591 = vmul.f32 %v1516, 1.442695
  %v1592 = vpow.pop %v1591
  %v1593 = vmul.f32 %v1517, 1.442695
  %v1594 = vpow.pop %v1593
  %v1595 = vmul.f32 %v1518, 1.442695
  %v1596 = vpow.pop %v1595
  %v1597 = vmul.f32 %v1519, 1.442695
  %v1598 = vpow.pop %v1597
  %v1599 = vmul.f32 %v1520, 1.442695
  %v1600 = vpow.pop %v1599
  %v1601 = vmul.f32 %v1521, 1.442695
  %v1602 = vpow.pop %v1601
  %v1603 = vmul.f32 %v1522, 1.442695
  %v1604 = vpow.pop %v1603
  %v1605 = vmul.f32 %v1523, 1.442695
  %v1606 = vpow.pop %v1605
  %v1607 = vmul.f32 %v1524, 1.442695
  %v1608 = vpow.pop %v1607
  %v1609 = vmul.f32 %v1525, 1.442695
  %v1610 = vpow.pop %v1609
  %v1611 = vmul.f32 %v1526, 1.442695
  %v1612 = vpow.pop %v1611
  %v1613 = vmul.f32 %v1527, 1.442695
  %v1614 = vpow.pop %v1613
  %v1615 = vmul.f32 %v1528, 1.442695
  %v1616 = vpow.pop %v1615
  %v1617 = vmul.f32 %v1529, 1.442695
  %v1618 = vpow.pop %v1617
  %v1619 = vmul.f32 %v1530, 1.442695
  %v1620 = vpow.pop %v1619
  %v1621 = vmul.f32 %v1531, 1.442695
  %v1622 = vpow.pop %v1621
  %v1623 = vmul.f32 %v1532, 1.442695
  %v1624 = vpow.pop %v1623
  %v1625 = vmul.f32 %v1533, 1.442695
  %v1626 = vpow.pop %v1625
  %v1627 = vmul.f32 %v1534, 1.442695
  %v1628 = vpow.pop %v1627
  %v1629 = vmul.f32 %v1535, 1.442695
  %v1630 = vpow.pop %v1629
  %v1631 = vmul.f32 %v1536, 1.442695
  %v1632 = vpow.pop %v1631
  %v1633 = vmul.f32 %v1537, 1.442695
  %v1634 = vpow.pop %v1633
  %v1635 = vmul.f32 %v1538, 1.442695
  %v1636 = vpow.pop %v1635
  %v1637 = vmul.f32 %v1539, 1.442695
  %v1638 = vpow.pop %v1637
  %v1639 = vmul.f32 %v1540, 1.442695
  %v1640 = vpow.pop %v1639
  %v1641 = vmul.f32 %v1541, 1.442695
  %v1642 = vpow.pop %v1641
  %v1643 = vmul.f32 %v1542, 1.442695
  %v1644 = vpow.pop %v1643
  %v1645 = vmul.f32 %v1543, 1.442695
  %v1646 = vpow.pop %v1645
  %v1647 = vmul.f32 %v1544, 1.442695
  %v1648 = vpow.pop %v1647
  %v1649 = vmul.f32 %v1545, 1.442695
  %v1650 = vpow.pop %v1649
  %v1651 = vmul.f32 %v1546, 1.442695
  %v1652 = vpow.pop %v1651
  %v1653 = vmul.f32 %v1547, 1.442695
  %v1654 = vpow.pop %v1653
  %v1655 = vmul.f32 %v1548, 1.442695
  %v1656 = vpow.pop %v1655
  %v1657 = vmul.f32 %v1549, 1.442695
  %v1658 = vpow.pop %v1657
  %v1659 = vmul.f32 %v1550, 1.442695
  %v1660 = vpow.pop %v1659
  %v1661 = vmul.f32 %v1551, 1.442695
  %v1662 = vpow.pop %v1661
  %v1663 = vmul.f32 %v1552, 1.442695
  %v1664 = vpow.pop %v1663
  %v1665 = vmul.f32 %v1553, 1.442695
  %v1666 = vpow.pop %v1665
  %v1667 = vmul.f32 %v1554, 1.442695
  %v1668 = vpow.pop %v1667
  %v1669 = vmul.f32 %v1555, 1.442695
  %v1670 = vpow.pop %v1669
  %v1671 = vmul.f32 %v1556, 1.442695
  %v1672 = vpow.pop %v1671
  %v1673 = vmul.f32 %v1557, 1.442695
  %v1674 = vpow.pop %v1673
  %v1675 = vmul.f32 %v1558, 1.442695
  %v1676 = vpow.pop %v1675
  %v1677 = vmul.f32 %v1559, 1.442695
  %v1678 = vpow.pop %v1677
  %v1679 = vmul.f32 %v1560, 1.442695
  %v1680 = vpow.pop %v1679
  %v1681 = vmul.f32 %v1561, 1.442695
  %v1682 = vpow.pop %v1681
  %v1683 = vmul.f32 %v1562, 1.442695
  %v1684 = vpow.pop %v1683
  %v1685 = vmul.f32 %v1563, 1.442695
  %v1686 = vpow.pop %v1685
  %v1687 = vmul.f32 %v1564, 1.442695
  %v1688 = vpow.pop %v1687
  %v1689 = vmul.f32 %v1565, 1.442695
  %v1690 = vpow.pop %v1689
  %v1691 = vmul.f32 %v1566, 1.442695
  %v1692 = vpow.pop %v1691
  %v1693 = vmul.f32 %v1567, 1.442695
  %v1694 = vpow.pop %v1693
  %v1695 = vmul.f32 %v1568, 1.442695
  %v1696 = vpow.pop %v1695
  %1697 = vadd.xlane.f32.xlu0 %v1570
  %v1698 = vpop.xlane.xlu0 %1697
  %1699 = vadd.xlane.f32.xlu0 %v1572
  %v1700 = vpop.xlane.xlu0 %1699
  %1701 = vadd.xlane.f32.xlu0 %v1574
  %v1702 = vpop.xlane.xlu0 %1701
  %1703 = vadd.xlane.f32.xlu0 %v1576
  %v1704 = vpop.xlane.xlu0 %1703
  %1705 = vadd.xlane.f32.xlu0 %v1578
  %v1706 = vpop.xlane.xlu0 %1705
  %1707 = vadd.xlane.f32.xlu0 %v1580
  %v1708 = vpop.xlane.xlu0 %1707
  %1709 = vadd.xlane.f32.xlu0 %v1582
  %v1710 = vpop.xlane.xlu0 %1709
  %1711 = vadd.xlane.f32.xlu0 %v1584
  %v1712 = vpop.xlane.xlu0 %1711
  %1713 = vadd.xlane.f32.xlu0 %v1586
  %v1714 = vpop.xlane.xlu0 %1713
  %1715 = vadd.xlane.f32.xlu0 %v1588
  %v1716 = vpop.xlane.xlu0 %1715
  %1717 = vadd.xlane.f32.xlu0 %v1590
  %v1718 = vpop.xlane.xlu0 %1717
  %1719 = vadd.xlane.f32.xlu0 %v1592
  %v1720 = vpop.xlane.xlu0 %1719
  %1721 = vadd.xlane.f32.xlu0 %v1594
  %v1722 = vpop.xlane.xlu0 %1721
  %1723 = vadd.xlane.f32.xlu0 %v1596
  %v1724 = vpop.xlane.xlu0 %1723
  %1725 = vadd.xlane.f32.xlu0 %v1598
  %v1726 = vpop.xlane.xlu0 %1725
  %1727 = vadd.xlane.f32.xlu0 %v1600
  %v1728 = vpop.xlane.xlu0 %1727
  %1729 = vadd.xlane.f32.xlu0 %v1602
  %v1730 = vpop.xlane.xlu0 %1729
  %1731 = vadd.xlane.f32.xlu0 %v1604
  %v1732 = vpop.xlane.xlu0 %1731
  %1733 = vadd.xlane.f32.xlu0 %v1606
  %v1734 = vpop.xlane.xlu0 %1733
  %1735 = vadd.xlane.f32.xlu0 %v1608
  %v1736 = vpop.xlane.xlu0 %1735
  %1737 = vadd.xlane.f32.xlu0 %v1610
  %v1738 = vpop.xlane.xlu0 %1737
  %1739 = vadd.xlane.f32.xlu0 %v1612
  %v1740 = vpop.xlane.xlu0 %1739
  %1741 = vadd.xlane.f32.xlu0 %v1614
  %v1742 = vpop.xlane.xlu0 %1741
  %1743 = vadd.xlane.f32.xlu0 %v1616
  %v1744 = vpop.xlane.xlu0 %1743
  %1745 = vadd.xlane.f32.xlu0 %v1618
  %v1746 = vpop.xlane.xlu0 %1745
  %1747 = vadd.xlane.f32.xlu0 %v1620
  %v1748 = vpop.xlane.xlu0 %1747
  %1749 = vadd.xlane.f32.xlu0 %v1622
  %v1750 = vpop.xlane.xlu0 %1749
  %1751 = vadd.xlane.f32.xlu0 %v1624
  %v1752 = vpop.xlane.xlu0 %1751
  %1753 = vadd.xlane.f32.xlu0 %v1626
  %v1754 = vpop.xlane.xlu0 %1753
  %1755 = vadd.xlane.f32.xlu0 %v1628
  %v1756 = vpop.xlane.xlu0 %1755
  %1757 = vadd.xlane.f32.xlu0 %v1630
  %v1758 = vpop.xlane.xlu0 %1757
  %1759 = vadd.xlane.f32.xlu0 %v1632
  %v1760 = vpop.xlane.xlu0 %1759
  %1761 = vadd.xlane.f32.xlu0 %v1634
  %v1762 = vpop.xlane.xlu0 %1761
  %1763 = vadd.xlane.f32.xlu0 %v1636
  %v1764 = vpop.xlane.xlu0 %1763
  %1765 = vadd.xlane.f32.xlu0 %v1638
  %v1766 = vpop.xlane.xlu0 %1765
  %1767 = vadd.xlane.f32.xlu0 %v1640
  %v1768 = vpop.xlane.xlu0 %1767
  %1769 = vadd.xlane.f32.xlu0 %v1642
  %v1770 = vpop.xlane.xlu0 %1769
  %1771 = vadd.xlane.f32.xlu0 %v1644
  %v1772 = vpop.xlane.xlu0 %1771
  %1773 = vadd.xlane.f32.xlu0 %v1646
  %v1774 = vpop.xlane.xlu0 %1773
  %1775 = vadd.xlane.f32.xlu0 %v1648
  %v1776 = vpop.xlane.xlu0 %1775
  %1777 = vadd.xlane.f32.xlu0 %v1650
  %v1778 = vpop.xlane.xlu0 %1777
  %1779 = vadd.xlane.f32.xlu0 %v1652
  %v1780 = vpop.xlane.xlu0 %1779
  %1781 = vadd.xlane.f32.xlu0 %v1654
  %v1782 = vpop.xlane.xlu0 %1781
  %1783 = vadd.xlane.f32.xlu0 %v1656
  %v1784 = vpop.xlane.xlu0 %1783
  %1785 = vadd.xlane.f32.xlu0 %v1658
  %v1786 = vpop.xlane.xlu0 %1785
  %1787 = vadd.xlane.f32.xlu0 %v1660
  %v1788 = vpop.xlane.xlu0 %1787
  %1789 = vadd.xlane.f32.xlu0 %v1662
  %v1790 = vpop.xlane.xlu0 %1789
  %1791 = vadd.xlane.f32.xlu0 %v1664
  %v1792 = vpop.xlane.xlu0 %1791
  %1793 = vadd.xlane.f32.xlu0 %v1666
  %v1794 = vpop.xlane.xlu0 %1793
  %1795 = vadd.xlane.f32.xlu0 %v1668
  %v1796 = vpop.xlane.xlu0 %1795
  %1797 = vadd.xlane.f32.xlu0 %v1670
  %v1798 = vpop.xlane.xlu0 %1797
  %1799 = vadd.xlane.f32.xlu0 %v1672
  %v1800 = vpop.xlane.xlu0 %1799
  %1801 = vadd.xlane.f32.xlu0 %v1674
  %v1802 = vpop.xlane.xlu0 %1801
  %1803 = vadd.xlane.f32.xlu0 %v1676
  %v1804 = vpop.xlane.xlu0 %1803
  %1805 = vadd.xlane.f32.xlu0 %v1678
  %v1806 = vpop.xlane.xlu0 %1805
  %1807 = vadd.xlane.f32.xlu0 %v1680
  %v1808 = vpop.xlane.xlu0 %1807
  %1809 = vadd.xlane.f32.xlu0 %v1682
  %v1810 = vpop.xlane.xlu0 %1809
  %1811 = vadd.xlane.f32.xlu0 %v1684
  %v1812 = vpop.xlane.xlu0 %1811
  %1813 = vadd.xlane.f32.xlu0 %v1686
  %v1814 = vpop.xlane.xlu0 %1813
  %1815 = vadd.xlane.f32.xlu0 %v1688
  %v1816 = vpop.xlane.xlu0 %1815
  %1817 = vadd.xlane.f32.xlu0 %v1690
  %v1818 = vpop.xlane.xlu0 %1817
  %1819 = vadd.xlane.f32.xlu0 %v1692
  %v1820 = vpop.xlane.xlu0 %1819
  %1821 = vadd.xlane.f32.xlu0 %v1694
  %v1822 = vpop.xlane.xlu0 %1821
  %1823 = vadd.xlane.f32.xlu0 %v1696
  %v1824 = vpop.xlane.xlu0 %1823
  %v1825 = vrcp.pop %v1698
  %v1826 = vrcp.pop %v1700
  %v1827 = vrcp.pop %v1702
  %v1828 = vrcp.pop %v1704
  %v1829 = vrcp.pop %v1706
  %v1830 = vrcp.pop %v1708
  %v1831 = vrcp.pop %v1710
  %v1832 = vrcp.pop %v1712
  %v1833 = vrcp.pop %v1714
  %v1834 = vrcp.pop %v1716
  %v1835 = vrcp.pop %v1718
  %v1836 = vrcp.pop %v1720
  %v1837 = vrcp.pop %v1722
  %v1838 = vrcp.pop %v1724
  %v1839 = vrcp.pop %v1726
  %v1840 = vrcp.pop %v1728
  %v1841 = vrcp.pop %v1730
  %v1842 = vrcp.pop %v1732
  %v1843 = vrcp.pop %v1734
  %v1844 = vrcp.pop %v1736
  %v1845 = vrcp.pop %v1738
  %v1846 = vrcp.pop %v1740
  %v1847 = vrcp.pop %v1742
  %v1848 = vrcp.pop %v1744
  %v1849 = vrcp.pop %v1746
  %v1850 = vrcp.pop %v1748
  %v1851 = vrcp.pop %v1750
  %v1852 = vrcp.pop %v1752
  %v1853 = vrcp.pop %v1754
  %v1854 = vrcp.pop %v1756
  %v1855 = vrcp.pop %v1758
  %v1856 = vrcp.pop %v1760
  %v1857 = vrcp.pop %v1762
  %v1858 = vrcp.pop %v1764
  %v1859 = vrcp.pop %v1766
  %v1860 = vrcp.pop %v1768
  %v1861 = vrcp.pop %v1770
  %v1862 = vrcp.pop %v1772
  %v1863 = vrcp.pop %v1774
  %v1864 = vrcp.pop %v1776
  %v1865 = vrcp.pop %v1778
  %v1866 = vrcp.pop %v1780
  %v1867 = vrcp.pop %v1782
  %v1868 = vrcp.pop %v1784
  %v1869 = vrcp.pop %v1786
  %v1870 = vrcp.pop %v1788
  %v1871 = vrcp.pop %v1790
  %v1872 = vrcp.pop %v1792
  %v1873 = vrcp.pop %v1794
  %v1874 = vrcp.pop %v1796
  %v1875 = vrcp.pop %v1798
  %v1876 = vrcp.pop %v1800
  %v1877 = vrcp.pop %v1802
  %v1878 = vrcp.pop %v1804
  %v1879 = vrcp.pop %v1806
  %v1880 = vrcp.pop %v1808
  %v1881 = vrcp.pop %v1810
  %v1882 = vrcp.pop %v1812
  %v1883 = vrcp.pop %v1814
  %v1884 = vrcp.pop %v1816
  %v1885 = vrcp.pop %v1818
  %v1886 = vrcp.pop %v1820
  %v1887 = vrcp.pop %v1822
  %v1888 = vrcp.pop %v1824
  %v1889 = vpack.c.bf16 %v1572, %v1570
  %v1890 = vpack.c.bf16 %v1576, %v1574
  %v1891 = vpack.c.bf16 %v1580, %v1578
  %v1892 = vpack.c.bf16 %v1584, %v1582
  %v1893 = vpack.c.bf16 %v1588, %v1586
  %v1894 = vpack.c.bf16 %v1592, %v1590
  %v1895 = vpack.c.bf16 %v1596, %v1594
  %v1896 = vpack.c.bf16 %v1600, %v1598
  %v1897 = vpack.c.bf16 %v1604, %v1602
  %v1898 = vpack.c.bf16 %v1608, %v1606
  %v1899 = vpack.c.bf16 %v1612, %v1610
  %v1900 = vpack.c.bf16 %v1616, %v1614
  %v1901 = vpack.c.bf16 %v1620, %v1618
  %v1902 = vpack.c.bf16 %v1624, %v1622
  %v1903 = vpack.c.bf16 %v1628, %v1626
  %v1904 = vpack.c.bf16 %v1632, %v1630
  %v1905 = vpack.c.bf16 %v1636, %v1634
  %v1906 = vpack.c.bf16 %v1640, %v1638
  %v1907 = vpack.c.bf16 %v1644, %v1642
  %v1908 = vpack.c.bf16 %v1648, %v1646
  %v1909 = vpack.c.bf16 %v1652, %v1650
  %v1910 = vpack.c.bf16 %v1656, %v1654
  %v1911 = vpack.c.bf16 %v1660, %v1658
  %v1912 = vpack.c.bf16 %v1664, %v1662
  %v1913 = vpack.c.bf16 %v1668, %v1666
  %v1914 = vpack.c.bf16 %v1672, %v1670
  %v1915 = vpack.c.bf16 %v1676, %v1674
  %v1916 = vpack.c.bf16 %v1680, %v1678
  %v1917 = vpack.c.bf16 %v1684, %v1682
  %v1918 = vpack.c.bf16 %v1688, %v1686
  %v1919 = vpack.c.bf16 %v1692, %v1690
  %v1920 = vpack.c.bf16 %v1696, %v1694
  %1921 = vmatprep.subr.bf16.mxu0 0
  %1922 = vmatpush1.bf16.msra.mxu0 %v637
  %1923 = vmatprep.subr.bf16.mxu0 0
  %1924 = vmatpush1.bf16.msra.mxu0 %v639
  %1925 = vmatprep.subr.bf16.mxu0 0
  %1926 = vmatpush1.bf16.msra.mxu0 %v641
  %1927 = vmatprep.subr.bf16.mxu0 0
  %1928 = vmatpush1.bf16.msra.mxu0 %v643
  %1929 = vmatprep.subr.bf16.mxu0 0
  %1930 = vmatpush1.bf16.msra.mxu0 %v645
  %1931 = vmatprep.subr.bf16.mxu0 0
  %1932 = vmatpush1.bf16.msra.mxu0 %v647
  %1933 = vmatprep.subr.bf16.mxu0 0
  %1934 = vmatpush1.bf16.msra.mxu0 %v649
  %1935 = vmatprep.subr.bf16.mxu0 0
  %1936 = vmatpush1.bf16.msra.mxu0 %v651
  %1937 = vmatprep.subr.bf16.mxu0 0
  %1938 = vmatpush1.bf16.msra.mxu0 0
  %1939 = vmatprep.subr.bf16.mxu0 0
  %1940 = vmatpush1.bf16.msra.mxu0 0
  %1941 = vmatprep.subr.bf16.mxu0 0
  %1942 = vmatpush1.bf16.msra.mxu0 0
  %1943 = vmatprep.subr.bf16.mxu0 0
  %1944 = vmatpush1.bf16.msra.mxu0 0
  %1945 = vmatprep.subr.bf16.mxu0 0
  %1946 = vmatpush1.bf16.msra.mxu0 0
  %1947 = vmatprep.subr.bf16.mxu0 0
  %1948 = vmatpush1.bf16.msra.mxu0 0
  %1949 = vmatprep.subr.bf16.mxu0 0
  %1950 = vmatpush1.bf16.msra.mxu0 0
  %1951 = vmatprep.subr.bf16.mxu0 0
  %1952 = vmatpush1.bf16.msra.mxu0 0
  %1953 = vmatprep.mubr.bf16.mxu0 0
  %1954 = vmatmul.mubr.bf16.gmra.mrb[0].mxu0 %v1889
  %v1955 = vpop.f32.mrb[0].mxu0
  %v1956 = vadd.f32 0.0, %v1955
  %v1957 = vpop.f32.mrb[0].mxu0
  %v1958 = vpop.f32.mrb[0].mxu0
  %v1959 = vadd.f32 0.0, %v1958
  %v1960 = vpop.f32.mrb[0].mxu0
  %1961 = vmatprep.mubr.bf16.mxu0 0
  %1962 = vmatmul.mubr.bf16.gmra.mrb[0].mxu0 %v1890
  %v1963 = vpop.f32.mrb[0].mxu0
  %v1964 = vadd.f32 0.0, %v1963
  %v1965 = vpop.f32.mrb[0].mxu0
  %v1966 = vpop.f32.mrb[0].mxu0
  %v1967 = vadd.f32 0.0, %v1966
  %v1968 = vpop.f32.mrb[0].mxu0
  %1969 = vmatprep.mubr.bf16.mxu0 0
  %1970 = vmatmul.mubr.bf16.gmra.mrb[0].mxu0 %v1891
  %v1971 = vpop.f32.mrb[0].mxu0
  %v1972 = vadd.f32 0.0, %v1971
  %v1973 = vpop.f32.mrb[0].mxu0
  %v1974 = vpop.f32.mrb[0].mxu0
  %v1975 = vadd.f32 0.0, %v1974
  %v1976 = vpop.f32.mrb[0].mxu0
  %1977 = vmatprep.mubr.bf16.mxu0 0
  %1978 = vmatmul.mubr.bf16.gmra.mrb[0].mxu0 %v1892
  %v1979 = vpop.f32.mrb[0].mxu0
  %v1980 = vadd.f32 0.0, %v1979
  %v1981 = vpop.f32.mrb[0].mxu0
  %v1982 = vpop.f32.mrb[0].mxu0
  %v1983 = vadd.f32 0.0, %v1982
  %v1984 = vpop.f32.mrb[0].mxu0
  %1985 = vmatprep.mubr.bf16.mxu0 0
  %1986 = vmatmul.mubr.bf16.gmra.mrb[0].mxu0 %v1893
  %v1987 = vpop.f32.mrb[0].mxu0
  %v1988 = vadd.f32 0.0, %v1987
  %v1989 = vpop.f32.mrb[0].mxu0
  %v1990 = vpop.f32.mrb[0].mxu0
  %v1991 = vadd.f32 0.0, %v1990
  %v1992 = vpop.f32.mrb[0].mxu0
  %1993 = vmatprep.mubr.bf16.mxu0 0
  %1994 = vmatmul.mubr.bf16.gmra.mrb[0].mxu0 %v1894
  %v1995 = vpop.f32.mrb[0].mxu0
  %v1996 = vadd.f32 0.0, %v1995
  %v1997 = vpop.f32.mrb[0].mxu0
  %v1998 = vpop.f32.mrb[0].mxu0
  %v1999 = vadd.f32 0.0, %v1998
  %v2000 = vpop.f32.mrb[0].mxu0
  %2001 = vmatprep.mubr.bf16.mxu0 0
  %2002 = vmatmul.mubr.bf16.gmra.mrb[0].mxu0 %v1895
  %v2003 = vpop.f32.mrb[0].mxu0
  %v2004 = vadd.f32 0.0, %v2003
  %v2005 = vpop.f32.mrb[0].mxu0
  %v2006 = vpop.f32.mrb[0].mxu0
  %v2007 = vadd.f32 0.0, %v2006
  %v2008 = vpop.f32.mrb[0].mxu0
  %2009 = vmatprep.mubr.bf16.mxu0 0
  %2010 = vmatmul.mubr.bf16.gmra.mrb[0].mxu0 %v1896
  %v2011 = vpop.f32.mrb[0].mxu0
  %v2012 = vadd.f32 0.0, %v2011
  %v2013 = vpop.f32.mrb[0].mxu0
  %v2014 = vpop.f32.mrb[0].mxu0
  %v2015 = vadd.f32 0.0, %v2014
  %v2016 = vpop.f32.mrb[0].mxu0
  %2017 = vdwg.mxu0
  %2018 = vmatprep.subr.bf16.mxu0 0
  %2019 = vmatpush1.bf16.msra.mxu0 %v653
  %2020 = vmatprep.subr.bf16.mxu0 0
  %2021 = vmatpush1.bf16.msra.mxu0 %v655
  %2022 = vmatprep.subr.bf16.mxu0 0
  %2023 = vmatpush1.bf16.msra.mxu0 %v657
  %2024 = vmatprep.subr.bf16.mxu0 0
  %2025 = vmatpush1.bf16.msra.mxu0 %v659
  %2026 = vmatprep.subr.bf16.mxu0 0
  %2027 = vmatpush1.bf16.msra.mxu0 %v661
  %2028 = vmatprep.subr.bf16.mxu0 0
  %2029 = vmatpush1.bf16.msra.mxu0 %v663
  %2030 = vmatprep.subr.bf16.mxu0 0
  %2031 = vmatpush1.bf16.msra.mxu0 %v665
  %2032 = vmatprep.subr.bf16.mxu0 0
  %2033 = vmatpush1.bf16.msra.mxu0 %v667
  %2034 = vmatprep.subr.bf16.mxu0 0
  %2035 = vmatpush1.bf16.msra.mxu0 0
  %2036 = vmatprep.subr.bf16.mxu0 0
  %2037 = vmatpush1.bf16.msra.mxu0 0
  %2038 = vmatprep.subr.bf16.mxu0 0
  %2039 = vmatpush1.bf16.msra.mxu0 0
  %2040 = vmatprep.subr.bf16.mxu0 0
  %2041 = vmatpush1.bf16.msra.mxu0 0
  %2042 = vmatprep.subr.bf16.mxu0 0
  %2043 = vmatpush1.bf16.msra.mxu0 0
  %2044 = vmatprep.subr.bf16.mxu0 0
  %2045 = vmatpush1.bf16.msra.mxu0 0
  %2046 = vmatprep.subr.bf16.mxu0 0
  %2047 = vmatpush1.bf16.msra.mxu0 0
  %2048 = vmatprep.subr.bf16.mxu0 0
  %2049 = vmatpush1.bf16.msra.mxu0 0
  %2050 = vmatprep.mubr.bf16.mxu0 0
  %2051 = vmatmul.mubr.bf16.gmra.mrb[0].mxu0 %v1897
  %v2052 = vpop.f32.mrb[0].mxu0
  %v2053 = vadd.f32 0.0, %v2052
  %v2054 = vpop.f32.mrb[0].mxu0
  %v2055 = vpop.f32.mrb[0].mxu0
  %v2056 = vadd.f32 0.0, %v2055
  %v2057 = vpop.f32.mrb[0].mxu0
  %2058 = vmatprep.mubr.bf16.mxu0 0
  %2059 = vmatmul.mubr.bf16.gmra.mrb[0].mxu0 %v1898
  %v2060 = vpop.f32.mrb[0].mxu0
  %v2061 = vadd.f32 0.0, %v2060
  %v2062 = vpop.f32.mrb[0].mxu0
  %v2063 = vpop.f32.mrb[0].mxu0
  %v2064 = vadd.f32 0.0, %v2063
  %v2065 = vpop.f32.mrb[0].mxu0
  %2066 = vmatprep.mubr.bf16.mxu0 0
  %2067 = vmatmul.mubr.bf16.gmra.mrb[0].mxu0 %v1899
  %v2068 = vpop.f32.mrb[0].mxu0
  %v2069 = vadd.f32 0.0, %v2068
  %v2070 = vpop.f32.mrb[0].mxu0
  %v2071 = vpop.f32.mrb[0].mxu0
  %v2072 = vadd.f32 0.0, %v2071
  %v2073 = vpop.f32.mrb[0].mxu0
  %2074 = vmatprep.mubr.bf16.mxu0 0
  %2075 = vmatmul.mubr.bf16.gmra.mrb[0].mxu0 %v1900
  %v2076 = vpop.f32.mrb[0].mxu0
  %v2077 = vadd.f32 0.0, %v2076
  %v2078 = vpop.f32.mrb[0].mxu0
  %v2079 = vpop.f32.mrb[0].mxu0
  %v2080 = vadd.f32 0.0, %v2079
  %v2081 = vpop.f32.mrb[0].mxu0
  %2082 = vmatprep.mubr.bf16.mxu0 0
  %2083 = vmatmul.mubr.bf16.gmra.mrb[0].mxu0 %v1901
  %v2084 = vpop.f32.mrb[0].mxu0
  %v2085 = vadd.f32 0.0, %v2084
  %v2086 = vpop.f32.mrb[0].mxu0
  %v2087 = vpop.f32.mrb[0].mxu0
  %v2088 = vadd.f32 0.0, %v2087
  %v2089 = vpop.f32.mrb[0].mxu0
  %2090 = vmatprep.mubr.bf16.mxu0 0
  %2091 = vmatmul.mubr.bf16.gmra.mrb[0].mxu0 %v1902
  %v2092 = vpop.f32.mrb[0].mxu0
  %v2093 = vadd.f32 0.0, %v2092
  %v2094 = vpop.f32.mrb[0].mxu0
  %v2095 = vpop.f32.mrb[0].mxu0
  %v2096 = vadd.f32 0.0, %v2095
  %v2097 = vpop.f32.mrb[0].mxu0
  %2098 = vmatprep.mubr.bf16.mxu0 0
  %2099 = vmatmul.mubr.bf16.gmra.mrb[0].mxu0 %v1903
  %v2100 = vpop.f32.mrb[0].mxu0
  %v2101 = vadd.f32 0.0, %v2100
  %v2102 = vpop.f32.mrb[0].mxu0
  %v2103 = vpop.f32.mrb[0].mxu0
  %v2104 = vadd.f32 0.0, %v2103
  %v2105 = vpop.f32.mrb[0].mxu0
  %2106 = vmatprep.mubr.bf16.mxu0 0
  %2107 = vmatmul.mubr.bf16.gmra.mrb[0].mxu0 %v1904
  %v2108 = vpop.f32.mrb[0].mxu0
  %v2109 = vadd.f32 0.0, %v2108
  %v2110 = vpop.f32.mrb[0].mxu0
  %v2111 = vpop.f32.mrb[0].mxu0
  %v2112 = vadd.f32 0.0, %v2111
  %v2113 = vpop.f32.mrb[0].mxu0
  %2114 = vdwg.mxu0
  %2115 = vmatprep.subr.bf16.mxu0 0
  %2116 = vmatpush1.bf16.msra.mxu0 %v669
  %2117 = vmatprep.subr.bf16.mxu0 0
  %2118 = vmatpush1.bf16.msra.mxu0 %v671
  %2119 = vmatprep.subr.bf16.mxu0 0
  %2120 = vmatpush1.bf16.msra.mxu0 %v673
  %2121 = vmatprep.subr.bf16.mxu0 0
  %2122 = vmatpush1.bf16.msra.mxu0 %v675
  %2123 = vmatprep.subr.bf16.mxu0 0
  %2124 = vmatpush1.bf16.msra.mxu0 %v677
  %2125 = vmatprep.subr.bf16.mxu0 0
  %2126 = vmatpush1.bf16.msra.mxu0 %v679
  %2127 = vmatprep.subr.bf16.mxu0 0
  %2128 = vmatpush1.bf16.msra.mxu0 %v681
  %2129 = vmatprep.subr.bf16.mxu0 0
  %2130 = vmatpush1.bf16.msra.mxu0 %v683
  %2131 = vmatprep.subr.bf16.mxu0 0
  %2132 = vmatpush1.bf16.msra.mxu0 0
  %2133 = vmatprep.subr.bf16.mxu0 0
  %2134 = vmatpush1.bf16.msra.mxu0 0
  %2135 = vmatprep.subr.bf16.mxu0 0
  %2136 = vmatpush1.bf16.msra.mxu0 0
  %2137 = vmatprep.subr.bf16.mxu0 0
  %2138 = vmatpush1.bf16.msra.mxu0 0
  %2139 = vmatprep.subr.bf16.mxu0 0
  %2140 = vmatpush1.bf16.msra.mxu0 0
  %2141 = vmatprep.subr.bf16.mxu0 0
  %2142 = vmatpush1.bf16.msra.mxu0 0
  %2143 = vmatprep.subr.bf16.mxu0 0
  %2144 = vmatpush1.bf16.msra.mxu0 0
  %2145 = vmatprep.subr.bf16.mxu0 0
  %2146 = vmatpush1.bf16.msra.mxu0 0
  %2147 = vmatprep.mubr.bf16.mxu0 0
  %2148 = vmatmul.mubr.bf16.gmra.mrb[0].mxu0 %v1905
  %v2149 = vpop.f32.mrb[0].mxu0
  %v2150 = vadd.f32 0.0, %v2149
  %v2151 = vpop.f32.mrb[0].mxu0
  %v2152 = vpop.f32.mrb[0].mxu0
  %v2153 = vadd.f32 0.0, %v2152
  %v2154 = vpop.f32.mrb[0].mxu0
  %2155 = vmatprep.mubr.bf16.mxu0 0
  %2156 = vmatmul.mubr.bf16.gmra.mrb[0].mxu0 %v1906
  %v2157 = vpop.f32.mrb[0].mxu0
  %v2158 = vadd.f32 0.0, %v2157
  %v2159 = vpop.f32.mrb[0].mxu0
  %v2160 = vpop.f32.mrb[0].mxu0
  %v2161 = vadd.f32 0.0, %v2160
  %v2162 = vpop.f32.mrb[0].mxu0
  %2163 = vmatprep.mubr.bf16.mxu0 0
  %2164 = vmatmul.mubr.bf16.gmra.mrb[0].mxu0 %v1907
  %v2165 = vpop.f32.mrb[0].mxu0
  %v2166 = vadd.f32 0.0, %v2165
  %v2167 = vpop.f32.mrb[0].mxu0
  %v2168 = vpop.f32.mrb[0].mxu0
  %v2169 = vadd.f32 0.0, %v2168
  %v2170 = vpop.f32.mrb[0].mxu0
  %2171 = vmatprep.mubr.bf16.mxu0 0
  %2172 = vmatmul.mubr.bf16.gmra.mrb[0].mxu0 %v1908
  %v2173 = vpop.f32.mrb[0].mxu0
  %v2174 = vadd.f32 0.0, %v2173
  %v2175 = vpop.f32.mrb[0].mxu0
  %v2176 = vpop.f32.mrb[0].mxu0
  %v2177 = vadd.f32 0.0, %v2176
  %v2178 = vpop.f32.mrb[0].mxu0
  %2179 = vmatprep.mubr.bf16.mxu0 0
  %2180 = vmatmul.mubr.bf16.gmra.mrb[0].mxu0 %v1909
  %v2181 = vpop.f32.mrb[0].mxu0
  %v2182 = vadd.f32 0.0, %v2181
  %v2183 = vpop.f32.mrb[0].mxu0
  %v2184 = vpop.f32.mrb[0].mxu0
  %v2185 = vadd.f32 0.0, %v2184
  %v2186 = vpop.f32.mrb[0].mxu0
  %2187 = vmatprep.mubr.bf16.mxu0 0
  %2188 = vmatmul.mubr.bf16.gmra.mrb[0].mxu0 %v1910
  %v2189 = vpop.f32.mrb[0].mxu0
  %v2190 = vadd.f32 0.0, %v2189
  %v2191 = vpop.f32.mrb[0].mxu0
  %v2192 = vpop.f32.mrb[0].mxu0
  %v2193 = vadd.f32 0.0, %v2192
  %v2194 = vpop.f32.mrb[0].mxu0
  %2195 = vmatprep.mubr.bf16.mxu0 0
  %2196 = vmatmul.mubr.bf16.gmra.mrb[0].mxu0 %v1911
  %v2197 = vpop.f32.mrb[0].mxu0
  %v2198 = vadd.f32 0.0, %v2197
  %v2199 = vpop.f32.mrb[0].mxu0
  %v2200 = vpop.f32.mrb[0].mxu0
  %v2201 = vadd.f32 0.0, %v2200
  %v2202 = vpop.f32.mrb[0].mxu0
  %2203 = vmatprep.mubr.bf16.mxu0 0
  %2204 = vmatmul.mubr.bf16.gmra.mrb[0].mxu0 %v1912
  %v2205 = vpop.f32.mrb[0].mxu0
  %v2206 = vadd.f32 0.0, %v2205
  %v2207 = vpop.f32.mrb[0].mxu0
  %v2208 = vpop.f32.mrb[0].mxu0
  %v2209 = vadd.f32 0.0, %v2208
  %v2210 = vpop.f32.mrb[0].mxu0
  %2211 = vdwg.mxu0
  %2212 = vmatprep.subr.bf16.mxu0 0
  %2213 = vmatpush1.bf16.msra.mxu0 %v685
  %2214 = vmatprep.subr.bf16.mxu0 0
  %2215 = vmatpush1.bf16.msra.mxu0 %v687
  %2216 = vmatprep.subr.bf16.mxu0 0
  %2217 = vmatpush1.bf16.msra.mxu0 %v689
  %2218 = vmatprep.subr.bf16.mxu0 0
  %2219 = vmatpush1.bf16.msra.mxu0 %v691
  %2220 = vmatprep.subr.bf16.mxu0 0
  %2221 = vmatpush1.bf16.msra.mxu0 %v693
  %2222 = vmatprep.subr.bf16.mxu0 0
  %2223 = vmatpush1.bf16.msra.mxu0 %v695
  %2224 = vmatprep.subr.bf16.mxu0 0
  %2225 = vmatpush1.bf16.msra.mxu0 %v697
  %2226 = vmatprep.subr.bf16.mxu0 0
  %2227 = vmatpush1.bf16.msra.mxu0 %v699
  %2228 = vmatprep.subr.bf16.mxu0 0
  %2229 = vmatpush1.bf16.msra.mxu0 0
  %2230 = vmatprep.subr.bf16.mxu0 0
  %2231 = vmatpush1.bf16.msra.mxu0 0
  %2232 = vmatprep.subr.bf16.mxu0 0
  %2233 = vmatpush1.bf16.msra.mxu0 0
  %2234 = vmatprep.subr.bf16.mxu0 0
  %2235 = vmatpush1.bf16.msra.mxu0 0
  %2236 = vmatprep.subr.bf16.mxu0 0
  %2237 = vmatpush1.bf16.msra.mxu0 0
  %2238 = vmatprep.subr.bf16.mxu0 0
  %2239 = vmatpush1.bf16.msra.mxu0 0
  %2240 = vmatprep.subr.bf16.mxu0 0
  %2241 = vmatpush1.bf16.msra.mxu0 0
  %2242 = vmatprep.subr.bf16.mxu0 0
  %2243 = vmatpush1.bf16.msra.mxu0 0
  %2244 = vmatprep.mubr.bf16.mxu0 0
  %2245 = vmatmul.mubr.bf16.gmra.mrb[0].mxu0 %v1913
  %v2246 = vpop.f32.mrb[0].mxu0
  %v2247 = vadd.f32 0.0, %v2246
  %v2248 = vpop.f32.mrb[0].mxu0
  %v2249 = vpop.f32.mrb[0].mxu0
  %v2250 = vadd.f32 0.0, %v2249
  %v2251 = vpop.f32.mrb[0].mxu0
  %2252 = vmatprep.mubr.bf16.mxu0 0
  %2253 = vmatmul.mubr.bf16.gmra.mrb[0].mxu0 %v1914
  %v2254 = vpop.f32.mrb[0].mxu0
  %v2255 = vadd.f32 0.0, %v2254
  %v2256 = vpop.f32.mrb[0].mxu0
  %v2257 = vpop.f32.mrb[0].mxu0
  %v2258 = vadd.f32 0.0, %v2257
  %v2259 = vpop.f32.mrb[0].mxu0
  %2260 = vmatprep.mubr.bf16.mxu0 0
  %2261 = vmatmul.mubr.bf16.gmra.mrb[0].mxu0 %v1915
  %v2262 = vpop.f32.mrb[0].mxu0
  %v2263 = vadd.f32 0.0, %v2262
  %v2264 = vpop.f32.mrb[0].mxu0
  %v2265 = vpop.f32.mrb[0].mxu0
  %v2266 = vadd.f32 0.0, %v2265
  %v2267 = vpop.f32.mrb[0].mxu0
  %2268 = vmatprep.mubr.bf16.mxu0 0
  %2269 = vmatmul.mubr.bf16.gmra.mrb[0].mxu0 %v1916
  %v2270 = vpop.f32.mrb[0].mxu0
  %v2271 = vadd.f32 0.0, %v2270
  %v2272 = vpop.f32.mrb[0].mxu0
  %v2273 = vpop.f32.mrb[0].mxu0
  %v2274 = vadd.f32 0.0, %v2273
  %v2275 = vpop.f32.mrb[0].mxu0
  %2276 = vmatprep.mubr.bf16.mxu0 0
  %2277 = vmatmul.mubr.bf16.gmra.mrb[0].mxu0 %v1917
  %v2278 = vpop.f32.mrb[0].mxu0
  %v2279 = vadd.f32 0.0, %v2278
  %v2280 = vpop.f32.mrb[0].mxu0
  %v2281 = vpop.f32.mrb[0].mxu0
  %v2282 = vadd.f32 0.0, %v2281
  %v2283 = vpop.f32.mrb[0].mxu0
  %2284 = vmatprep.mubr.bf16.mxu0 0
  %2285 = vmatmul.mubr.bf16.gmra.mrb[0].mxu0 %v1918
  %v2286 = vpop.f32.mrb[0].mxu0
  %v2287 = vadd.f32 0.0, %v2286
  %v2288 = vpop.f32.mrb[0].mxu0
  %v2289 = vpop.f32.mrb[0].mxu0
  %v2290 = vadd.f32 0.0, %v2289
  %v2291 = vpop.f32.mrb[0].mxu0
  %2292 = vmatprep.mubr.bf16.mxu0 0
  %2293 = vmatmul.mubr.bf16.gmra.mrb[0].mxu0 %v1919
  %v2294 = vpop.f32.mrb[0].mxu0
  %v2295 = vadd.f32 0.0, %v2294
  %v2296 = vpop.f32.mrb[0].mxu0
  %v2297 = vpop.f32.mrb[0].mxu0
  %v2298 = vadd.f32 0.0, %v2297
  %v2299 = vpop.f32.mrb[0].mxu0
  %2300 = vmatprep.mubr.bf16.mxu0 0
  %2301 = vmatmul.mubr.bf16.gmra.mrb[0].mxu0 %v1920
  %v2302 = vpop.f32.mrb[0].mxu0
  %v2303 = vadd.f32 0.0, %v2302
  %v2304 = vpop.f32.mrb[0].mxu0
  %v2305 = vpop.f32.mrb[0].mxu0
  %v2306 = vadd.f32 0.0, %v2305
  %v2307 = vpop.f32.mrb[0].mxu0
  %2308 = vdwg.mxu0
  %v2309 = vmul.f32 %v1956, %v1825
  %v2310 = vmul.f32 %v1959, %v1826
  %v2311 = vmul.f32 %v1964, %v1827
  %v2312 = vmul.f32 %v1967, %v1828
  %v2313 = vmul.f32 %v1972, %v1829
  %v2314 = vmul.f32 %v1975, %v1830
  %v2315 = vmul.f32 %v1980, %v1831
  %v2316 = vmul.f32 %v1983, %v1832
  %v2317 = vmul.f32 %v1988, %v1833
  %v2318 = vmul.f32 %v1991, %v1834
  %v2319 = vmul.f32 %v1996, %v1835
  %v2320 = vmul.f32 %v1999, %v1836
  %v2321 = vmul.f32 %v2004, %v1837
  %v2322 = vmul.f32 %v2007, %v1838
  %v2323 = vmul.f32 %v2012, %v1839
  %v2324 = vmul.f32 %v2015, %v1840
  %v2325 = vmul.f32 %v2053, %v1841
  %v2326 = vmul.f32 %v2056, %v1842
  %v2327 = vmul.f32 %v2061, %v1843
  %v2328 = vmul.f32 %v2064, %v1844
  %v2329 = vmul.f32 %v2069, %v1845
  %v2330 = vmul.f32 %v2072, %v1846
  %v2331 = vmul.f32 %v2077, %v1847
  %v2332 = vmul.f32 %v2080, %v1848
  %v2333 = vmul.f32 %v2085, %v1849
  %v2334 = vmul.f32 %v2088, %v1850
  %v2335 = vmul.f32 %v2093, %v1851
  %v2336 = vmul.f32 %v2096, %v1852
  %v2337 = vmul.f32 %v2101, %v1853
  %v2338 = vmul.f32 %v2104, %v1854
  %v2339 = vmul.f32 %v2109, %v1855
  %v2340 = vmul.f32 %v2112, %v1856
  %v2341 = vmul.f32 %v2150, %v1857
  %v2342 = vmul.f32 %v2153, %v1858
  %v2343 = vmul.f32 %v2158, %v1859
  %v2344 = vmul.f32 %v2161, %v1860
  %v2345 = vmul.f32 %v2166, %v1861
  %v2346 = vmul.f32 %v2169, %v1862
  %v2347 = vmul.f32 %v2174, %v1863
  %v2348 = vmul.f32 %v2177, %v1864
  %v2349 = vmul.f32 %v2182, %v1865
  %v2350 = vmul.f32 %v2185, %v1866
  %v2351 = vmul.f32 %v2190, %v1867
  %v2352 = vmul.f32 %v2193, %v1868
  %v2353 = vmul.f32 %v2198, %v1869
  %v2354 = vmul.f32 %v2201, %v1870
  %v2355 = vmul.f32 %v2206, %v1871
  %v2356 = vmul.f32 %v2209, %v1872
  %v2357 = vmul.f32 %v2247, %v1873
  %v2358 = vmul.f32 %v2250, %v1874
  %v2359 = vmul.f32 %v2255, %v1875
  %v2360 = vmul.f32 %v2258, %v1876
  %v2361 = vmul.f32 %v2263, %v1877
  %v2362 = vmul.f32 %v2266, %v1878
  %v2363 = vmul.f32 %v2271, %v1879
  %v2364 = vmul.f32 %v2274, %v1880
  %v2365 = vmul.f32 %v2279, %v1881
  %v2366 = vmul.f32 %v2282, %v1882
  %v2367 = vmul.f32 %v2287, %v1883
  %v2368 = vmul.f32 %v2290, %v1884
  %v2369 = vmul.f32 %v2295, %v1885
  %v2370 = vmul.f32 %v2298, %v1886
  %v2371 = vmul.f32 %v2303, %v1887
  %v2372 = vmul.f32 %v2306, %v1888
  %v2373 = vpack.c.bf16 %v2310, %v2309
  %v2374 = vpack.c.bf16 %v2312, %v2311
  %v2375 = vpack.c.bf16 %v2314, %v2313
  %v2376 = vpack.c.bf16 %v2316, %v2315
  %v2377 = vpack.c.bf16 %v2318, %v2317
  %v2378 = vpack.c.bf16 %v2320, %v2319
  %v2379 = vpack.c.bf16 %v2322, %v2321
  %v2380 = vpack.c.bf16 %v2324, %v2323
  %v2381 = vpack.c.bf16 %v2326, %v2325
  %v2382 = vpack.c.bf16 %v2328, %v2327
  %v2383 = vpack.c.bf16 %v2330, %v2329
  %v2384 = vpack.c.bf16 %v2332, %v2331
  %v2385 = vpack.c.bf16 %v2334, %v2333
  %v2386 = vpack.c.bf16 %v2336, %v2335
  %v2387 = vpack.c.bf16 %v2338, %v2337
  %v2388 = vpack.c.bf16 %v2340, %v2339
  %v2389 = vpack.c.bf16 %v2342, %v2341
  %v2390 = vpack.c.bf16 %v2344, %v2343
  %v2391 = vpack.c.bf16 %v2346, %v2345
  %v2392 = vpack.c.bf16 %v2348, %v2347
  %v2393 = vpack.c.bf16 %v2350, %v2349
  %v2394 = vpack.c.bf16 %v2352, %v2351
  %v2395 = vpack.c.bf16 %v2354, %v2353
  %v2396 = vpack.c.bf16 %v2356, %v2355
  %v2397 = vpack.c.bf16 %v2358, %v2357
  %v2398 = vpack.c.bf16 %v2360, %v2359
  %v2399 = vpack.c.bf16 %v2362, %v2361
  %v2400 = vpack.c.bf16 %v2364, %v2363
  %v2401 = vpack.c.bf16 %v2366, %v2365
  %v2402 = vpack.c.bf16 %v2368, %v2367
  %v2403 = vpack.c.bf16 %v2370, %v2369
  %v2404 = vpack.c.bf16 %v2372, %v2371
  %v2405 = vld [vmem:[%s2] sm:$0xf]
  %v2406 = vld [vmem:[%s2 + $0x4] sm:$0xf]
  %v2407 = vld [vmem:[%s2 + $0x8] sm:$0xf]
  %v2408 = vld [vmem:[%s2 + $0xc] sm:$0xf]
  %2409 = vrot.lane.b32.xlu0 %v636, 96
  %v2410 = vpop.permute.xlu0 %2409
  %2411 = vrot.lane.b32.xlu0 %v638, 96
  %v2412 = vpop.permute.xlu0 %2411
  %2413 = vrot.lane.b32.xlu0 %v640, 96
  %v2414 = vpop.permute.xlu0 %2413
  %2415 = vrot.lane.b32.xlu0 %v642, 96
  %v2416 = vpop.permute.xlu0 %2415
  %2417 = vrot.lane.b32.xlu0 %v644, 96
  %v2418 = vpop.permute.xlu0 %2417
  %2419 = vrot.lane.b32.xlu0 %v646, 96
  %v2420 = vpop.permute.xlu0 %2419
  %2421 = vrot.lane.b32.xlu0 %v648, 96
  %v2422 = vpop.permute.xlu0 %2421
  %2423 = vrot.lane.b32.xlu0 %v650, 96
  %v2424 = vpop.permute.xlu0 %2423
  %2425 = vrot.lane.b32.xlu0 %v636, 32
  %v2426 = vpop.permute.xlu0 %2425
  %2427 = vrot.lane.b32.xlu0 %v638, 32
  %v2428 = vpop.permute.xlu0 %2427
  %2429 = vrot.lane.b32.xlu0 %v640, 32
  %v2430 = vpop.permute.xlu0 %2429
  %2431 = vrot.lane.b32.xlu0 %v642, 32
  %v2432 = vpop.permute.xlu0 %2431
  %2433 = vrot.lane.b32.xlu0 %v644, 32
  %v2434 = vpop.permute.xlu0 %2433
  %2435 = vrot.lane.b32.xlu0 %v646, 32
  %v2436 = vpop.permute.xlu0 %2435
  %2437 = vrot.lane.b32.xlu0 %v648, 32
  %v2438 = vpop.permute.xlu0 %2437
  %2439 = vrot.lane.b32.xlu0 %v650, 32
  %v2440 = vpop.permute.xlu0 %2439
  %v2442 = vsel %vm724, %v2410, 0
  %v2445 = vsel %vm724, %v2412, 0
  %v2448 = vsel %vm724, %v2414, 0
  %v2451 = vsel %vm724, %v2416, 0
  %v2454 = vsel %vm724, %v2418, 0
  %v2457 = vsel %vm724, %v2420, 0
  %v2460 = vsel %vm724, %v2422, 0
  %v2463 = vsel %vm724, %v2424, 0
  %v2466 = vsel %vm724, %v2426, 0
  %v2469 = vsel %vm724, %v2428, 0
  %v2472 = vsel %vm724, %v2430, 0
  %v2475 = vsel %vm724, %v2432, 0
  %v2478 = vsel %vm724, %v2434, 0
  %v2481 = vsel %vm724, %v2436, 0
  %v2484 = vsel %vm724, %v2438, 0
  %v2487 = vsel %vm724, %v2440, 0
  %2489 = vmatprep.subr.bf16.mxu0 0
  %2490 = vmatpush1.bf16.xpose.msra.mxu0 %v2466
  %2491 = vmatprep.subr.bf16.mxu0 0
  %2492 = vmatpush1.bf16.xpose.msra.mxu0 %v2469
  %2493 = vmatprep.subr.bf16.mxu0 0
  %2494 = vmatpush1.bf16.xpose.msra.mxu0 %v2472
  %2495 = vmatprep.subr.bf16.mxu0 0
  %2496 = vmatpush1.bf16.xpose.msra.mxu0 %v2475
  %2497 = vmatprep.subr.bf16.mxu0 0
  %2498 = vmatpush1.bf16.xpose.msra.mxu0 %v2478
  %2499 = vmatprep.subr.bf16.mxu0 0
  %2500 = vmatpush1.bf16.xpose.msra.mxu0 %v2481
  %2501 = vmatprep.subr.bf16.mxu0 0
  %2502 = vmatpush1.bf16.xpose.msra.mxu0 %v2484
  %2503 = vmatprep.subr.bf16.mxu0 0
  %2504 = vmatpush1.bf16.xpose.msra.mxu0 %v2487
  %2505 = vmatprep.subr.bf16.mxu0 0
  %2506 = vmatpush1.bf16.xpose.msra.mxu0 0
  %2507 = vmatprep.subr.bf16.mxu0 0
  %2508 = vmatpush1.bf16.xpose.msra.mxu0 0
  %2509 = vmatprep.subr.bf16.mxu0 0
  %2510 = vmatpush1.bf16.xpose.msra.mxu0 0
  %2511 = vmatprep.subr.bf16.mxu0 0
  %2512 = vmatpush1.bf16.xpose.msra.mxu0 0
  %2513 = vmatprep.subr.bf16.mxu0 0
  %2514 = vmatpush1.bf16.xpose.msra.mxu0 0
  %2515 = vmatprep.subr.bf16.mxu0 0
  %2516 = vmatpush1.bf16.xpose.msra.mxu0 0
  %2517 = vmatprep.subr.bf16.mxu0 0
  %2518 = vmatpush1.bf16.xpose.msra.mxu0 0
  %2519 = vmatprep.subr.bf16.mxu0 0
  %2520 = vmatpush1.bf16.xpose.msra.mxu0 0
  %2521 = vmatprep.mubr.bf16.mxu0 0
  %2522 = vmatmul.mubr.bf16.gmra.mrb[0].mxu0 %v2442
  %v2523 = vpop.f32.mrb[0].mxu0
  %v2524 = vadd.f32 0.0, %v2523
  %v2525 = vpop.f32.mrb[0].mxu0
  %v2526 = vpop.f32.mrb[0].mxu0
  %v2527 = vadd.f32 0.0, %v2526
  %v2528 = vpop.f32.mrb[0].mxu0
  %2529 = vmatprep.mubr.bf16.mxu0 0
  %2530 = vmatmul.mubr.bf16.gmra.mrb[0].mxu0 %v2445
  %v2531 = vpop.f32.mrb[0].mxu0
  %v2532 = vadd.f32 0.0, %v2531
  %v2533 = vpop.f32.mrb[0].mxu0
  %v2534 = vpop.f32.mrb[0].mxu0
  %v2535 = vadd.f32 0.0, %v2534
  %v2536 = vpop.f32.mrb[0].mxu0
  %2537 = vmatprep.mubr.bf16.mxu0 0
  %2538 = vmatmul.mubr.bf16.gmra.mrb[0].mxu0 %v2448
  %v2539 = vpop.f32.mrb[0].mxu0
  %v2540 = vadd.f32 0.0, %v2539
  %v2541 = vpop.f32.mrb[0].mxu0
  %v2542 = vpop.f32.mrb[0].mxu0
  %v2543 = vadd.f32 0.0, %v2542
  %v2544 = vpop.f32.mrb[0].mxu0
  %2545 = vmatprep.mubr.bf16.mxu0 0
  %2546 = vmatmul.mubr.bf16.gmra.mrb[0].mxu0 %v2451
  %v2547 = vpop.f32.mrb[0].mxu0
  %v2548 = vadd.f32 0.0, %v2547
  %v2549 = vpop.f32.mrb[0].mxu0
  %v2550 = vpop.f32.mrb[0].mxu0
  %v2551 = vadd.f32 0.0, %v2550
  %v2552 = vpop.f32.mrb[0].mxu0
  %2553 = vmatprep.mubr.bf16.mxu0 0
  %2554 = vmatmul.mubr.bf16.gmra.mrb[0].mxu0 %v2454
  %v2555 = vpop.f32.mrb[0].mxu0
  %v2556 = vadd.f32 0.0, %v2555
  %v2557 = vpop.f32.mrb[0].mxu0
  %v2558 = vpop.f32.mrb[0].mxu0
  %v2559 = vadd.f32 0.0, %v2558
  %v2560 = vpop.f32.mrb[0].mxu0
  %2561 = vmatprep.mubr.bf16.mxu0 0
  %2562 = vmatmul.mubr.bf16.gmra.mrb[0].mxu0 %v2457
  %v2563 = vpop.f32.mrb[0].mxu0
  %v2564 = vadd.f32 0.0, %v2563
  %v2565 = vpop.f32.mrb[0].mxu0
  %v2566 = vpop.f32.mrb[0].mxu0
  %v2567 = vadd.f32 0.0, %v2566
  %v2568 = vpop.f32.mrb[0].mxu0
  %2569 = vmatprep.mubr.bf16.mxu0 0
  %2570 = vmatmul.mubr.bf16.gmra.mrb[0].mxu0 %v2460
  %v2571 = vpop.f32.mrb[0].mxu0
  %v2572 = vadd.f32 0.0, %v2571
  %v2573 = vpop.f32.mrb[0].mxu0
  %v2574 = vpop.f32.mrb[0].mxu0
  %v2575 = vadd.f32 0.0, %v2574
  %v2576 = vpop.f32.mrb[0].mxu0
  %2577 = vmatprep.mubr.bf16.mxu0 0
  %2578 = vmatmul.mubr.bf16.gmra.mrb[0].mxu0 %v2463
  %v2579 = vpop.f32.mrb[0].mxu0
  %v2580 = vadd.f32 0.0, %v2579
  %v2581 = vpop.f32.mrb[0].mxu0
  %v2582 = vpop.f32.mrb[0].mxu0
  %v2583 = vadd.f32 0.0, %v2582
  %v2584 = vpop.f32.mrb[0].mxu0
  %2585 = vdwg.mxu0
  %2586 = vrot.lane.b32.xlu0 %v652, 96
  %v2587 = vpop.permute.xlu0 %2586
  %2588 = vrot.lane.b32.xlu0 %v654, 96
  %v2589 = vpop.permute.xlu0 %2588
  %2590 = vrot.lane.b32.xlu0 %v656, 96
  %v2591 = vpop.permute.xlu0 %2590
  %2592 = vrot.lane.b32.xlu0 %v658, 96
  %v2593 = vpop.permute.xlu0 %2592
  %2594 = vrot.lane.b32.xlu0 %v660, 96
  %v2595 = vpop.permute.xlu0 %2594
  %2596 = vrot.lane.b32.xlu0 %v662, 96
  %v2597 = vpop.permute.xlu0 %2596
  %2598 = vrot.lane.b32.xlu0 %v664, 96
  %v2599 = vpop.permute.xlu0 %2598
  %2600 = vrot.lane.b32.xlu0 %v666, 96
  %v2601 = vpop.permute.xlu0 %2600
  %2602 = vrot.lane.b32.xlu0 %v652, 32
  %v2603 = vpop.permute.xlu0 %2602
  %2604 = vrot.lane.b32.xlu0 %v654, 32
  %v2605 = vpop.permute.xlu0 %2604
  %2606 = vrot.lane.b32.xlu0 %v656, 32
  %v2607 = vpop.permute.xlu0 %2606
  %2608 = vrot.lane.b32.xlu0 %v658, 32
  %v2609 = vpop.permute.xlu0 %2608
  %2610 = vrot.lane.b32.xlu0 %v660, 32
  %v2611 = vpop.permute.xlu0 %2610
  %2612 = vrot.lane.b32.xlu0 %v662, 32
  %v2613 = vpop.permute.xlu0 %2612
  %2614 = vrot.lane.b32.xlu0 %v664, 32
  %v2615 = vpop.permute.xlu0 %2614
  %2616 = vrot.lane.b32.xlu0 %v666, 32
  %v2617 = vpop.permute.xlu0 %2616
  %v2619 = vsel %vm724, %v2587, 0
  %v2622 = vsel %vm724, %v2589, 0
  %v2625 = vsel %vm724, %v2591, 0
  %v2628 = vsel %vm724, %v2593, 0
  %v2631 = vsel %vm724, %v2595, 0
  %v2634 = vsel %vm724, %v2597, 0
  %v2637 = vsel %vm724, %v2599, 0
  %v2640 = vsel %vm724, %v2601, 0
  %v2643 = vsel %vm724, %v2603, 0
  %v2646 = vsel %vm724, %v2605, 0
  %v2649 = vsel %vm724, %v2607, 0
  %v2652 = vsel %vm724, %v2609, 0
  %v2655 = vsel %vm724, %v2611, 0
  %v2658 = vsel %vm724, %v2613, 0
  %v2661 = vsel %vm724, %v2615, 0
  %v2664 = vsel %vm724, %v2617, 0
  %2666 = vmatprep.subr.bf16.mxu0 0
  %2667 = vmatpush1.bf16.xpose.msra.mxu0 %v2643
  %2668 = vmatprep.subr.bf16.mxu0 0
  %2669 = vmatpush1.bf16.xpose.msra.mxu0 %v2646
  %2670 = vmatprep.subr.bf16.mxu0 0
  %2671 = vmatpush1.bf16.xpose.msra.mxu0 %v2649
  %2672 = vmatprep.subr.bf16.mxu0 0
  %2673 = vmatpush1.bf16.xpose.msra.mxu0 %v2652
  %2674 = vmatprep.subr.bf16.mxu0 0
  %2675 = vmatpush1.bf16.xpose.msra.mxu0 %v2655
  %2676 = vmatprep.subr.bf16.mxu0 0
  %2677 = vmatpush1.bf16.xpose.msra.mxu0 %v2658
  %2678 = vmatprep.subr.bf16.mxu0 0
  %2679 = vmatpush1.bf16.xpose.msra.mxu0 %v2661
  %2680 = vmatprep.subr.bf16.mxu0 0
  %2681 = vmatpush1.bf16.xpose.msra.mxu0 %v2664
  %2682 = vmatprep.subr.bf16.mxu0 0
  %2683 = vmatpush1.bf16.xpose.msra.mxu0 0
  %2684 = vmatprep.subr.bf16.mxu0 0
  %2685 = vmatpush1.bf16.xpose.msra.mxu0 0
  %2686 = vmatprep.subr.bf16.mxu0 0
  %2687 = vmatpush1.bf16.xpose.msra.mxu0 0
  %2688 = vmatprep.subr.bf16.mxu0 0
  %2689 = vmatpush1.bf16.xpose.msra.mxu0 0
  %2690 = vmatprep.subr.bf16.mxu0 0
  %2691 = vmatpush1.bf16.xpose.msra.mxu0 0
  %2692 = vmatprep.subr.bf16.mxu0 0
  %2693 = vmatpush1.bf16.xpose.msra.mxu0 0
  %2694 = vmatprep.subr.bf16.mxu0 0
  %2695 = vmatpush1.bf16.xpose.msra.mxu0 0
  %2696 = vmatprep.subr.bf16.mxu0 0
  %2697 = vmatpush1.bf16.xpose.msra.mxu0 0
  %2698 = vmatprep.mubr.bf16.mxu0 0
  %2699 = vmatmul.mubr.bf16.gmra.mrb[0].mxu0 %v2619
  %v2700 = vpop.f32.mrb[0].mxu0
  %v2701 = vadd.f32 0.0, %v2700
  %v2702 = vpop.f32.mrb[0].mxu0
  %v2703 = vpop.f32.mrb[0].mxu0
  %v2704 = vadd.f32 0.0, %v2703
  %v2705 = vpop.f32.mrb[0].mxu0
  %2706 = vmatprep.mubr.bf16.mxu0 0
  %2707 = vmatmul.mubr.bf16.gmra.mrb[0].mxu0 %v2622
  %v2708 = vpop.f32.mrb[0].mxu0
  %v2709 = vadd.f32 0.0, %v2708
  %v2710 = vpop.f32.mrb[0].mxu0
  %v2711 = vpop.f32.mrb[0].mxu0
  %v2712 = vadd.f32 0.0, %v2711
  %v2713 = vpop.f32.mrb[0].mxu0
  %2714 = vmatprep.mubr.bf16.mxu0 0
  %2715 = vmatmul.mubr.bf16.gmra.mrb[0].mxu0 %v2625
  %v2716 = vpop.f32.mrb[0].mxu0
  %v2717 = vadd.f32 0.0, %v2716
  %v2718 = vpop.f32.mrb[0].mxu0
  %v2719 = vpop.f32.mrb[0].mxu0
  %v2720 = vadd.f32 0.0, %v2719
  %v2721 = vpop.f32.mrb[0].mxu0
  %2722 = vmatprep.mubr.bf16.mxu0 0
  %2723 = vmatmul.mubr.bf16.gmra.mrb[0].mxu0 %v2628
  %v2724 = vpop.f32.mrb[0].mxu0
  %v2725 = vadd.f32 0.0, %v2724
  %v2726 = vpop.f32.mrb[0].mxu0
  %v2727 = vpop.f32.mrb[0].mxu0
  %v2728 = vadd.f32 0.0, %v2727
  %v2729 = vpop.f32.mrb[0].mxu0
  %2730 = vmatprep.mubr.bf16.mxu0 0
  %2731 = vmatmul.mubr.bf16.gmra.mrb[0].mxu0 %v2631
  %v2732 = vpop.f32.mrb[0].mxu0
  %v2733 = vadd.f32 0.0, %v2732
  %v2734 = vpop.f32.mrb[0].mxu0
  %v2735 = vpop.f32.mrb[0].mxu0
  %v2736 = vadd.f32 0.0, %v2735
  %v2737 = vpop.f32.mrb[0].mxu0
  %2738 = vmatprep.mubr.bf16.mxu0 0
  %2739 = vmatmul.mubr.bf16.gmra.mrb[0].mxu0 %v2634
  %v2740 = vpop.f32.mrb[0].mxu0
  %v2741 = vadd.f32 0.0, %v2740
  %v2742 = vpop.f32.mrb[0].mxu0
  %v2743 = vpop.f32.mrb[0].mxu0
  %v2744 = vadd.f32 0.0, %v2743
  %v2745 = vpop.f32.mrb[0].mxu0
  %2746 = vmatprep.mubr.bf16.mxu0 0
  %2747 = vmatmul.mubr.bf16.gmra.mrb[0].mxu0 %v2637
  %v2748 = vpop.f32.mrb[0].mxu0
  %v2749 = vadd.f32 0.0, %v2748
  %v2750 = vpop.f32.mrb[0].mxu0
  %v2751 = vpop.f32.mrb[0].mxu0
  %v2752 = vadd.f32 0.0, %v2751
  %v2753 = vpop.f32.mrb[0].mxu0
  %2754 = vmatprep.mubr.bf16.mxu0 0
  %2755 = vmatmul.mubr.bf16.gmra.mrb[0].mxu0 %v2640
  %v2756 = vpop.f32.mrb[0].mxu0
  %v2757 = vadd.f32 0.0, %v2756
  %v2758 = vpop.f32.mrb[0].mxu0
  %v2759 = vpop.f32.mrb[0].mxu0
  %v2760 = vadd.f32 0.0, %v2759
  %v2761 = vpop.f32.mrb[0].mxu0
  %2762 = vdwg.mxu0
  %2763 = vrot.lane.b32.xlu0 %v668, 96
  %v2764 = vpop.permute.xlu0 %2763
  %2765 = vrot.lane.b32.xlu0 %v670, 96
  %v2766 = vpop.permute.xlu0 %2765
  %2767 = vrot.lane.b32.xlu0 %v672, 96
  %v2768 = vpop.permute.xlu0 %2767
  %2769 = vrot.lane.b32.xlu0 %v674, 96
  %v2770 = vpop.permute.xlu0 %2769
  %2771 = vrot.lane.b32.xlu0 %v676, 96
  %v2772 = vpop.permute.xlu0 %2771
  %2773 = vrot.lane.b32.xlu0 %v678, 96
  %v2774 = vpop.permute.xlu0 %2773
  %2775 = vrot.lane.b32.xlu0 %v680, 96
  %v2776 = vpop.permute.xlu0 %2775
  %2777 = vrot.lane.b32.xlu0 %v682, 96
  %v2778 = vpop.permute.xlu0 %2777
  %2779 = vrot.lane.b32.xlu0 %v668, 32
  %v2780 = vpop.permute.xlu0 %2779
  %2781 = vrot.lane.b32.xlu0 %v670, 32
  %v2782 = vpop.permute.xlu0 %2781
  %2783 = vrot.lane.b32.xlu0 %v672, 32
  %v2784 = vpop.permute.xlu0 %2783
  %2785 = vrot.lane.b32.xlu0 %v674, 32
  %v2786 = vpop.permute.xlu0 %2785
  %2787 = vrot.lane.b32.xlu0 %v676, 32
  %v2788 = vpop.permute.xlu0 %2787
  %2789 = vrot.lane.b32.xlu0 %v678, 32
  %v2790 = vpop.permute.xlu0 %2789
  %2791 = vrot.lane.b32.xlu0 %v680, 32
  %v2792 = vpop.permute.xlu0 %2791
  %2793 = vrot.lane.b32.xlu0 %v682, 32
  %v2794 = vpop.permute.xlu0 %2793
  %v2796 = vsel %vm724, %v2764, 0
  %v2799 = vsel %vm724, %v2766, 0
  %v2802 = vsel %vm724, %v2768, 0
  %v2805 = vsel %vm724, %v2770, 0
  %v2808 = vsel %vm724, %v2772, 0
  %v2811 = vsel %vm724, %v2774, 0
  %v2814 = vsel %vm724, %v2776, 0
  %v2817 = vsel %vm724, %v2778, 0
  %v2820 = vsel %vm724, %v2780, 0
  %v2823 = vsel %vm724, %v2782, 0
  %v2826 = vsel %vm724, %v2784, 0
  %v2829 = vsel %vm724, %v2786, 0
  %v2832 = vsel %vm724, %v2788, 0
  %v2835 = vsel %vm724, %v2790, 0
  %v2838 = vsel %vm724, %v2792, 0
  %v2841 = vsel %vm724, %v2794, 0
  %2843 = vmatprep.subr.bf16.mxu0 0
  %2844 = vmatpush1.bf16.xpose.msra.mxu0 %v2820
  %2845 = vmatprep.subr.bf16.mxu0 0
  %2846 = vmatpush1.bf16.xpose.msra.mxu0 %v2823
  %2847 = vmatprep.subr.bf16.mxu0 0
  %2848 = vmatpush1.bf16.xpose.msra.mxu0 %v2826
  %2849 = vmatprep.subr.bf16.mxu0 0
  %2850 = vmatpush1.bf16.xpose.msra.mxu0 %v2829
  %2851 = vmatprep.subr.bf16.mxu0 0
  %2852 = vmatpush1.bf16.xpose.msra.mxu0 %v2832
  %2853 = vmatprep.subr.bf16.mxu0 0
  %2854 = vmatpush1.bf16.xpose.msra.mxu0 %v2835
  %2855 = vmatprep.subr.bf16.mxu0 0
  %2856 = vmatpush1.bf16.xpose.msra.mxu0 %v2838
  %2857 = vmatprep.subr.bf16.mxu0 0
  %2858 = vmatpush1.bf16.xpose.msra.mxu0 %v2841
  %2859 = vmatprep.subr.bf16.mxu0 0
  %2860 = vmatpush1.bf16.xpose.msra.mxu0 0
  %2861 = vmatprep.subr.bf16.mxu0 0
  %2862 = vmatpush1.bf16.xpose.msra.mxu0 0
  %2863 = vmatprep.subr.bf16.mxu0 0
  %2864 = vmatpush1.bf16.xpose.msra.mxu0 0
  %2865 = vmatprep.subr.bf16.mxu0 0
  %2866 = vmatpush1.bf16.xpose.msra.mxu0 0
  %2867 = vmatprep.subr.bf16.mxu0 0
  %2868 = vmatpush1.bf16.xpose.msra.mxu0 0
  %2869 = vmatprep.subr.bf16.mxu0 0
  %2870 = vmatpush1.bf16.xpose.msra.mxu0 0
  %2871 = vmatprep.subr.bf16.mxu0 0
  %2872 = vmatpush1.bf16.xpose.msra.mxu0 0
  %2873 = vmatprep.subr.bf16.mxu0 0
  %2874 = vmatpush1.bf16.xpose.msra.mxu0 0
  %2875 = vmatprep.mubr.bf16.mxu0 0
  %2876 = vmatmul.mubr.bf16.gmra.mrb[0].mxu0 %v2796
  %v2877 = vpop.f32.mrb[0].mxu0
  %v2878 = vadd.f32 0.0, %v2877
  %v2879 = vpop.f32.mrb[0].mxu0
  %v2880 = vpop.f32.mrb[0].mxu0
  %v2881 = vadd.f32 0.0, %v2880
  %v2882 = vpop.f32.mrb[0].mxu0
  %2883 = vmatprep.mubr.bf16.mxu0 0
  %2884 = vmatmul.mubr.bf16.gmra.mrb[0].mxu0 %v2799
  %v2885 = vpop.f32.mrb[0].mxu0
  %v2886 = vadd.f32 0.0, %v2885
  %v2887 = vpop.f32.mrb[0].mxu0
  %v2888 = vpop.f32.mrb[0].mxu0
  %v2889 = vadd.f32 0.0, %v2888
  %v2890 = vpop.f32.mrb[0].mxu0
  %2891 = vmatprep.mubr.bf16.mxu0 0
  %2892 = vmatmul.mubr.bf16.gmra.mrb[0].mxu0 %v2802
  %v2893 = vpop.f32.mrb[0].mxu0
  %v2894 = vadd.f32 0.0, %v2893
  %v2895 = vpop.f32.mrb[0].mxu0
  %v2896 = vpop.f32.mrb[0].mxu0
  %v2897 = vadd.f32 0.0, %v2896
  %v2898 = vpop.f32.mrb[0].mxu0
  %2899 = vmatprep.mubr.bf16.mxu0 0
  %2900 = vmatmul.mubr.bf16.gmra.mrb[0].mxu0 %v2805
  %v2901 = vpop.f32.mrb[0].mxu0
  %v2902 = vadd.f32 0.0, %v2901
  %v2903 = vpop.f32.mrb[0].mxu0
  %v2904 = vpop.f32.mrb[0].mxu0
  %v2905 = vadd.f32 0.0, %v2904
  %v2906 = vpop.f32.mrb[0].mxu0
  %2907 = vmatprep.mubr.bf16.mxu0 0
  %2908 = vmatmul.mubr.bf16.gmra.mrb[0].mxu0 %v2808
  %v2909 = vpop.f32.mrb[0].mxu0
  %v2910 = vadd.f32 0.0, %v2909
  %v2911 = vpop.f32.mrb[0].mxu0
  %v2912 = vpop.f32.mrb[0].mxu0
  %v2913 = vadd.f32 0.0, %v2912
  %v2914 = vpop.f32.mrb[0].mxu0
  %2915 = vmatprep.mubr.bf16.mxu0 0
  %2916 = vmatmul.mubr.bf16.gmra.mrb[0].mxu0 %v2811
  %v2917 = vpop.f32.mrb[0].mxu0
  %v2918 = vadd.f32 0.0, %v2917
  %v2919 = vpop.f32.mrb[0].mxu0
  %v2920 = vpop.f32.mrb[0].mxu0
  %v2921 = vadd.f32 0.0, %v2920
  %v2922 = vpop.f32.mrb[0].mxu0
  %2923 = vmatprep.mubr.bf16.mxu0 0
  %2924 = vmatmul.mubr.bf16.gmra.mrb[0].mxu0 %v2814
  %v2925 = vpop.f32.mrb[0].mxu0
  %v2926 = vadd.f32 0.0, %v2925
  %v2927 = vpop.f32.mrb[0].mxu0
  %v2928 = vpop.f32.mrb[0].mxu0
  %v2929 = vadd.f32 0.0, %v2928
  %v2930 = vpop.f32.mrb[0].mxu0
  %2931 = vmatprep.mubr.bf16.mxu0 0
  %2932 = vmatmul.mubr.bf16.gmra.mrb[0].mxu0 %v2817
  %v2933 = vpop.f32.mrb[0].mxu0
  %v2934 = vadd.f32 0.0, %v2933
  %v2935 = vpop.f32.mrb[0].mxu0
  %v2936 = vpop.f32.mrb[0].mxu0
  %v2937 = vadd.f32 0.0, %v2936
  %v2938 = vpop.f32.mrb[0].mxu0
  %2939 = vdwg.mxu0
  %2940 = vrot.lane.b32.xlu0 %v684, 96
  %v2941 = vpop.permute.xlu0 %2940
  %2942 = vrot.lane.b32.xlu0 %v686, 96
  %v2943 = vpop.permute.xlu0 %2942
  %2944 = vrot.lane.b32.xlu0 %v688, 96
  %v2945 = vpop.permute.xlu0 %2944
  %2946 = vrot.lane.b32.xlu0 %v690, 96
  %v2947 = vpop.permute.xlu0 %2946
  %2948 = vrot.lane.b32.xlu0 %v692, 96
  %v2949 = vpop.permute.xlu0 %2948
  %2950 = vrot.lane.b32.xlu0 %v694, 96
  %v2951 = vpop.permute.xlu0 %2950
  %2952 = vrot.lane.b32.xlu0 %v696, 96
  %v2953 = vpop.permute.xlu0 %2952
  %2954 = vrot.lane.b32.xlu0 %v698, 96
  %v2955 = vpop.permute.xlu0 %2954
  %2956 = vrot.lane.b32.xlu0 %v684, 32
  %v2957 = vpop.permute.xlu0 %2956
  %2958 = vrot.lane.b32.xlu0 %v686, 32
  %v2959 = vpop.permute.xlu0 %2958
  %2960 = vrot.lane.b32.xlu0 %v688, 32
  %v2961 = vpop.permute.xlu0 %2960
  %2962 = vrot.lane.b32.xlu0 %v690, 32
  %v2963 = vpop.permute.xlu0 %2962
  %2964 = vrot.lane.b32.xlu0 %v692, 32
  %v2965 = vpop.permute.xlu0 %2964
  %2966 = vrot.lane.b32.xlu0 %v694, 32
  %v2967 = vpop.permute.xlu0 %2966
  %2968 = vrot.lane.b32.xlu0 %v696, 32
  %v2969 = vpop.permute.xlu0 %2968
  %2970 = vrot.lane.b32.xlu0 %v698, 32
  %v2971 = vpop.permute.xlu0 %2970
  %v2973 = vsel %vm724, %v2941, 0
  %v2976 = vsel %vm724, %v2943, 0
  %v2979 = vsel %vm724, %v2945, 0
  %v2982 = vsel %vm724, %v2947, 0
  %v2985 = vsel %vm724, %v2949, 0
  %v2988 = vsel %vm724, %v2951, 0
  %v2991 = vsel %vm724, %v2953, 0
  %v2994 = vsel %vm724, %v2955, 0
  %v2997 = vsel %vm724, %v2957, 0
  %v3000 = vsel %vm724, %v2959, 0
  %v3003 = vsel %vm724, %v2961, 0
  %v3006 = vsel %vm724, %v2963, 0
  %v3009 = vsel %vm724, %v2965, 0
  %v3012 = vsel %vm724, %v2967, 0
  %v3015 = vsel %vm724, %v2969, 0
  %v3018 = vsel %vm724, %v2971, 0
  %3020 = vmatprep.subr.bf16.mxu0 0
  %3021 = vmatpush1.bf16.xpose.msra.mxu0 %v2997
  %3022 = vmatprep.subr.bf16.mxu0 0
  %3023 = vmatpush1.bf16.xpose.msra.mxu0 %v3000
  %3024 = vmatprep.subr.bf16.mxu0 0
  %3025 = vmatpush1.bf16.xpose.msra.mxu0 %v3003
  %3026 = vmatprep.subr.bf16.mxu0 0
  %3027 = vmatpush1.bf16.xpose.msra.mxu0 %v3006
  %3028 = vmatprep.subr.bf16.mxu0 0
  %3029 = vmatpush1.bf16.xpose.msra.mxu0 %v3009
  %3030 = vmatprep.subr.bf16.mxu0 0
  %3031 = vmatpush1.bf16.xpose.msra.mxu0 %v3012
  %3032 = vmatprep.subr.bf16.mxu0 0
  %3033 = vmatpush1.bf16.xpose.msra.mxu0 %v3015
  %3034 = vmatprep.subr.bf16.mxu0 0
  %3035 = vmatpush1.bf16.xpose.msra.mxu0 %v3018
  %3036 = vmatprep.subr.bf16.mxu0 0
  %3037 = vmatpush1.bf16.xpose.msra.mxu0 0
  %3038 = vmatprep.subr.bf16.mxu0 0
  %3039 = vmatpush1.bf16.xpose.msra.mxu0 0
  %3040 = vmatprep.subr.bf16.mxu0 0
  %3041 = vmatpush1.bf16.xpose.msra.mxu0 0
  %3042 = vmatprep.subr.bf16.mxu0 0
  %3043 = vmatpush1.bf16.xpose.msra.mxu0 0
  %3044 = vmatprep.subr.bf16.mxu0 0
  %3045 = vmatpush1.bf16.xpose.msra.mxu0 0
  %3046 = vmatprep.subr.bf16.mxu0 0
  %3047 = vmatpush1.bf16.xpose.msra.mxu0 0
  %3048 = vmatprep.subr.bf16.mxu0 0
  %3049 = vmatpush1.bf16.xpose.msra.mxu0 0
  %3050 = vmatprep.subr.bf16.mxu0 0
  %3051 = vmatpush1.bf16.xpose.msra.mxu0 0
  %3052 = vmatprep.mubr.bf16.mxu0 0
  %3053 = vmatmul.mubr.bf16.gmra.mrb[0].mxu0 %v2973
  %v3054 = vpop.f32.mrb[0].mxu0
  %v3055 = vadd.f32 0.0, %v3054
  %v3056 = vpop.f32.mrb[0].mxu0
  %v3057 = vpop.f32.mrb[0].mxu0
  %v3058 = vadd.f32 0.0, %v3057
  %v3059 = vpop.f32.mrb[0].mxu0
  %3060 = vmatprep.mubr.bf16.mxu0 0
  %3061 = vmatmul.mubr.bf16.gmra.mrb[0].mxu0 %v2976
  %v3062 = vpop.f32.mrb[0].mxu0
  %v3063 = vadd.f32 0.0, %v3062
  %v3064 = vpop.f32.mrb[0].mxu0
  %v3065 = vpop.f32.mrb[0].mxu0
  %v3066 = vadd.f32 0.0, %v3065
  %v3067 = vpop.f32.mrb[0].mxu0
  %3068 = vmatprep.mubr.bf16.mxu0 0
  %3069 = vmatmul.mubr.bf16.gmra.mrb[0].mxu0 %v2979
  %v3070 = vpop.f32.mrb[0].mxu0
  %v3071 = vadd.f32 0.0, %v3070
  %v3072 = vpop.f32.mrb[0].mxu0
  %v3073 = vpop.f32.mrb[0].mxu0
  %v3074 = vadd.f32 0.0, %v3073
  %v3075 = vpop.f32.mrb[0].mxu0
  %3076 = vmatprep.mubr.bf16.mxu0 0
  %3077 = vmatmul.mubr.bf16.gmra.mrb[0].mxu0 %v2982
  %v3078 = vpop.f32.mrb[0].mxu0
  %v3079 = vadd.f32 0.0, %v3078
  %v3080 = vpop.f32.mrb[0].mxu0
  %v3081 = vpop.f32.mrb[0].mxu0
  %v3082 = vadd.f32 0.0, %v3081
  %v3083 = vpop.f32.mrb[0].mxu0
  %3084 = vmatprep.mubr.bf16.mxu0 0
  %3085 = vmatmul.mubr.bf16.gmra.mrb[0].mxu0 %v2985
  %v3086 = vpop.f32.mrb[0].mxu0
  %v3087 = vadd.f32 0.0, %v3086
  %v3088 = vpop.f32.mrb[0].mxu0
  %v3089 = vpop.f32.mrb[0].mxu0
  %v3090 = vadd.f32 0.0, %v3089
  %v3091 = vpop.f32.mrb[0].mxu0
  %3092 = vmatprep.mubr.bf16.mxu0 0
  %3093 = vmatmul.mubr.bf16.gmra.mrb[0].mxu0 %v2988
  %v3094 = vpop.f32.mrb[0].mxu0
  %v3095 = vadd.f32 0.0, %v3094
  %v3096 = vpop.f32.mrb[0].mxu0
  %v3097 = vpop.f32.mrb[0].mxu0
  %v3098 = vadd.f32 0.0, %v3097
  %v3099 = vpop.f32.mrb[0].mxu0
  %3100 = vmatprep.mubr.bf16.mxu0 0
  %3101 = vmatmul.mubr.bf16.gmra.mrb[0].mxu0 %v2991
  %v3102 = vpop.f32.mrb[0].mxu0
  %v3103 = vadd.f32 0.0, %v3102
  %v3104 = vpop.f32.mrb[0].mxu0
  %v3105 = vpop.f32.mrb[0].mxu0
  %v3106 = vadd.f32 0.0, %v3105
  %v3107 = vpop.f32.mrb[0].mxu0
  %3108 = vmatprep.mubr.bf16.mxu0 0
  %3109 = vmatmul.mubr.bf16.gmra.mrb[0].mxu0 %v2994
  %v3110 = vpop.f32.mrb[0].mxu0
  %v3111 = vadd.f32 0.0, %v3110
  %v3112 = vpop.f32.mrb[0].mxu0
  %v3113 = vpop.f32.mrb[0].mxu0
  %v3114 = vadd.f32 0.0, %v3113
  %v3115 = vpop.f32.mrb[0].mxu0
  %3116 = vdwg.mxu0
  %3117 = vmax.xlane.f32.xlu0 %v2524
  %v3118 = vpop.xlane.xlu0 %3117
  %3119 = vmax.xlane.f32.xlu0 %v2527
  %v3120 = vpop.xlane.xlu0 %3119
  %3121 = vmax.xlane.f32.xlu0 %v2532
  %v3122 = vpop.xlane.xlu0 %3121
  %3123 = vmax.xlane.f32.xlu0 %v2535
  %v3124 = vpop.xlane.xlu0 %3123
  %3125 = vmax.xlane.f32.xlu0 %v2540
  %v3126 = vpop.xlane.xlu0 %3125
  %3127 = vmax.xlane.f32.xlu0 %v2543
  %v3128 = vpop.xlane.xlu0 %3127
  %3129 = vmax.xlane.f32.xlu0 %v2548
  %v3130 = vpop.xlane.xlu0 %3129
  %3131 = vmax.xlane.f32.xlu0 %v2551
  %v3132 = vpop.xlane.xlu0 %3131
  %3133 = vmax.xlane.f32.xlu0 %v2556
  %v3134 = vpop.xlane.xlu0 %3133
  %3135 = vmax.xlane.f32.xlu0 %v2559
  %v3136 = vpop.xlane.xlu0 %3135
  %3137 = vmax.xlane.f32.xlu0 %v2564
  %v3138 = vpop.xlane.xlu0 %3137
  %3139 = vmax.xlane.f32.xlu0 %v2567
  %v3140 = vpop.xlane.xlu0 %3139
  %3141 = vmax.xlane.f32.xlu0 %v2572
  %v3142 = vpop.xlane.xlu0 %3141
  %3143 = vmax.xlane.f32.xlu0 %v2575
  %v3144 = vpop.xlane.xlu0 %3143
  %3145 = vmax.xlane.f32.xlu0 %v2580
  %v3146 = vpop.xlane.xlu0 %3145
  %3147 = vmax.xlane.f32.xlu0 %v2583
  %v3148 = vpop.xlane.xlu0 %3147
  %3149 = vmax.xlane.f32.xlu0 %v2701
  %v3150 = vpop.xlane.xlu0 %3149
  %3151 = vmax.xlane.f32.xlu0 %v2704
  %v3152 = vpop.xlane.xlu0 %3151
  %3153 = vmax.xlane.f32.xlu0 %v2709
  %v3154 = vpop.xlane.xlu0 %3153
  %3155 = vmax.xlane.f32.xlu0 %v2712
  %v3156 = vpop.xlane.xlu0 %3155
  %3157 = vmax.xlane.f32.xlu0 %v2717
  %v3158 = vpop.xlane.xlu0 %3157
  %3159 = vmax.xlane.f32.xlu0 %v2720
  %v3160 = vpop.xlane.xlu0 %3159
  %3161 = vmax.xlane.f32.xlu0 %v2725
  %v3162 = vpop.xlane.xlu0 %3161
  %3163 = vmax.xlane.f32.xlu0 %v2728
  %v3164 = vpop.xlane.xlu0 %3163
  %3165 = vmax.xlane.f32.xlu0 %v2733
  %v3166 = vpop.xlane.xlu0 %3165
  %3167 = vmax.xlane.f32.xlu0 %v2736
  %v3168 = vpop.xlane.xlu0 %3167
  %3169 = vmax.xlane.f32.xlu0 %v2741
  %v3170 = vpop.xlane.xlu0 %3169
  %3171 = vmax.xlane.f32.xlu0 %v2744
  %v3172 = vpop.xlane.xlu0 %3171
  %3173 = vmax.xlane.f32.xlu0 %v2749
  %v3174 = vpop.xlane.xlu0 %3173
  %3175 = vmax.xlane.f32.xlu0 %v2752
  %v3176 = vpop.xlane.xlu0 %3175
  %3177 = vmax.xlane.f32.xlu0 %v2757
  %v3178 = vpop.xlane.xlu0 %3177
  %3179 = vmax.xlane.f32.xlu0 %v2760
  %v3180 = vpop.xlane.xlu0 %3179
  %3181 = vmax.xlane.f32.xlu0 %v2878
  %v3182 = vpop.xlane.xlu0 %3181
  %3183 = vmax.xlane.f32.xlu0 %v2881
  %v3184 = vpop.xlane.xlu0 %3183
  %3185 = vmax.xlane.f32.xlu0 %v2886
  %v3186 = vpop.xlane.xlu0 %3185
  %3187 = vmax.xlane.f32.xlu0 %v2889
  %v3188 = vpop.xlane.xlu0 %3187
  %3189 = vmax.xlane.f32.xlu0 %v2894
  %v3190 = vpop.xlane.xlu0 %3189
  %3191 = vmax.xlane.f32.xlu0 %v2897
  %v3192 = vpop.xlane.xlu0 %3191
  %3193 = vmax.xlane.f32.xlu0 %v2902
  %v3194 = vpop.xlane.xlu0 %3193
  %3195 = vmax.xlane.f32.xlu0 %v2905
  %v3196 = vpop.xlane.xlu0 %3195
  %3197 = vmax.xlane.f32.xlu0 %v2910
  %v3198 = vpop.xlane.xlu0 %3197
  %3199 = vmax.xlane.f32.xlu0 %v2913
  %v3200 = vpop.xlane.xlu0 %3199
  %3201 = vmax.xlane.f32.xlu0 %v2918
  %v3202 = vpop.xlane.xlu0 %3201
  %3203 = vmax.xlane.f32.xlu0 %v2921
  %v3204 = vpop.xlane.xlu0 %3203
  %3205 = vmax.xlane.f32.xlu0 %v2926
  %v3206 = vpop.xlane.xlu0 %3205
  %3207 = vmax.xlane.f32.xlu0 %v2929
  %v3208 = vpop.xlane.xlu0 %3207
  %3209 = vmax.xlane.f32.xlu0 %v2934
  %v3210 = vpop.xlane.xlu0 %3209
  %3211 = vmax.xlane.f32.xlu0 %v2937
  %v3212 = vpop.xlane.xlu0 %3211
  %3213 = vmax.xlane.f32.xlu0 %v3055
  %v3214 = vpop.xlane.xlu0 %3213
  %3215 = vmax.xlane.f32.xlu0 %v3058
  %v3216 = vpop.xlane.xlu0 %3215
  %3217 = vmax.xlane.f32.xlu0 %v3063
  %v3218 = vpop.xlane.xlu0 %3217
  %3219 = vmax.xlane.f32.xlu0 %v3066
  %v3220 = vpop.xlane.xlu0 %3219
  %3221 = vmax.xlane.f32.xlu0 %v3071
  %v3222 = vpop.xlane.xlu0 %3221
  %3223 = vmax.xlane.f32.xlu0 %v3074
  %v3224 = vpop.xlane.xlu0 %3223
  %3225 = vmax.xlane.f32.xlu0 %v3079
  %v3226 = vpop.xlane.xlu0 %3225
  %3227 = vmax.xlane.f32.xlu0 %v3082
  %v3228 = vpop.xlane.xlu0 %3227
  %3229 = vmax.xlane.f32.xlu0 %v3087
  %v3230 = vpop.xlane.xlu0 %3229
  %3231 = vmax.xlane.f32.xlu0 %v3090
  %v3232 = vpop.xlane.xlu0 %3231
  %3233 = vmax.xlane.f32.xlu0 %v3095
  %v3234 = vpop.xlane.xlu0 %3233
  %3235 = vmax.xlane.f32.xlu0 %v3098
  %v3236 = vpop.xlane.xlu0 %3235
  %3237 = vmax.xlane.f32.xlu0 %v3103
  %v3238 = vpop.xlane.xlu0 %3237
  %3239 = vmax.xlane.f32.xlu0 %v3106
  %v3240 = vpop.xlane.xlu0 %3239
  %3241 = vmax.xlane.f32.xlu0 %v3111
  %v3242 = vpop.xlane.xlu0 %3241
  %3243 = vmax.xlane.f32.xlu0 %v3114
  %v3244 = vpop.xlane.xlu0 %3243
  %v3245 = vsub.f32 %v2524, %v3118
  %v3246 = vsub.f32 %v2527, %v3120
  %v3247 = vsub.f32 %v2532, %v3122
  %v3248 = vsub.f32 %v2535, %v3124
  %v3249 = vsub.f32 %v2540, %v3126
  %v3250 = vsub.f32 %v2543, %v3128
  %v3251 = vsub.f32 %v2548, %v3130
  %v3252 = vsub.f32 %v2551, %v3132
  %v3253 = vsub.f32 %v2556, %v3134
  %v3254 = vsub.f32 %v2559, %v3136
  %v3255 = vsub.f32 %v2564, %v3138
  %v3256 = vsub.f32 %v2567, %v3140
  %v3257 = vsub.f32 %v2572, %v3142
  %v3258 = vsub.f32 %v2575, %v3144
  %v3259 = vsub.f32 %v2580, %v3146
  %v3260 = vsub.f32 %v2583, %v3148
  %v3261 = vsub.f32 %v2701, %v3150
  %v3262 = vsub.f32 %v2704, %v3152
  %v3263 = vsub.f32 %v2709, %v3154
  %v3264 = vsub.f32 %v2712, %v3156
  %v3265 = vsub.f32 %v2717, %v3158
  %v3266 = vsub.f32 %v2720, %v3160
  %v3267 = vsub.f32 %v2725, %v3162
  %v3268 = vsub.f32 %v2728, %v3164
  %v3269 = vsub.f32 %v2733, %v3166
  %v3270 = vsub.f32 %v2736, %v3168
  %v3271 = vsub.f32 %v2741, %v3170
  %v3272 = vsub.f32 %v2744, %v3172
  %v3273 = vsub.f32 %v2749, %v3174
  %v3274 = vsub.f32 %v2752, %v3176
  %v3275 = vsub.f32 %v2757, %v3178
  %v3276 = vsub.f32 %v2760, %v3180
  %v3277 = vsub.f32 %v2878, %v3182
  %v3278 = vsub.f32 %v2881, %v3184
  %v3279 = vsub.f32 %v2886, %v3186
  %v3280 = vsub.f32 %v2889, %v3188
  %v3281 = vsub.f32 %v2894, %v3190
  %v3282 = vsub.f32 %v2897, %v3192
  %v3283 = vsub.f32 %v2902, %v3194
  %v3284 = vsub.f32 %v2905, %v3196
  %v3285 = vsub.f32 %v2910, %v3198
  %v3286 = vsub.f32 %v2913, %v3200
  %v3287 = vsub.f32 %v2918, %v3202
  %v3288 = vsub.f32 %v2921, %v3204
  %v3289 = vsub.f32 %v2926, %v3206
  %v3290 = vsub.f32 %v2929, %v3208
  %v3291 = vsub.f32 %v2934, %v3210
  %v3292 = vsub.f32 %v2937, %v3212
  %v3293 = vsub.f32 %v3055, %v3214
  %v3294 = vsub.f32 %v3058, %v3216
  %v3295 = vsub.f32 %v3063, %v3218
  %v3296 = vsub.f32 %v3066, %v3220
  %v3297 = vsub.f32 %v3071, %v3222
  %v3298 = vsub.f32 %v3074, %v3224
  %v3299 = vsub.f32 %v3079, %v3226
  %v3300 = vsub.f32 %v3082, %v3228
  %v3301 = vsub.f32 %v3087, %v3230
  %v3302 = vsub.f32 %v3090, %v3232
  %v3303 = vsub.f32 %v3095, %v3234
  %v3304 = vsub.f32 %v3098, %v3236
  %v3305 = vsub.f32 %v3103, %v3238
  %v3306 = vsub.f32 %v3106, %v3240
  %v3307 = vsub.f32 %v3111, %v3242
  %v3308 = vsub.f32 %v3114, %v3244
  %v3309 = vmul.f32 %v3245, 1.442695
  %v3310 = vpow.pop %v3309
  %v3311 = vmul.f32 %v3246, 1.442695
  %v3312 = vpow.pop %v3311
  %v3313 = vmul.f32 %v3247, 1.442695
  %v3314 = vpow.pop %v3313
  %v3315 = vmul.f32 %v3248, 1.442695
  %v3316 = vpow.pop %v3315
  %v3317 = vmul.f32 %v3249, 1.442695
  %v3318 = vpow.pop %v3317
  %v3319 = vmul.f32 %v3250, 1.442695
  %v3320 = vpow.pop %v3319
  %v3321 = vmul.f32 %v3251, 1.442695
  %v3322 = vpow.pop %v3321
  %v3323 = vmul.f32 %v3252, 1.442695
  %v3324 = vpow.pop %v3323
  %v3325 = vmul.f32 %v3253, 1.442695
  %v3326 = vpow.pop %v3325
  %v3327 = vmul.f32 %v3254, 1.442695
  %v3328 = vpow.pop %v3327
  %v3329 = vmul.f32 %v3255, 1.442695
  %v3330 = vpow.pop %v3329
  %v3331 = vmul.f32 %v3256, 1.442695
  %v3332 = vpow.pop %v3331
  %v3333 = vmul.f32 %v3257, 1.442695
  %v3334 = vpow.pop %v3333
  %v3335 = vmul.f32 %v3258, 1.442695
  %v3336 = vpow.pop %v3335
  %v3337 = vmul.f32 %v3259, 1.442695
  %v3338 = vpow.pop %v3337
  %v3339 = vmul.f32 %v3260, 1.442695
  %v3340 = vpow.pop %v3339
  %v3341 = vmul.f32 %v3261, 1.442695
  %v3342 = vpow.pop %v3341
  %v3343 = vmul.f32 %v3262, 1.442695
  %v3344 = vpow.pop %v3343
  %v3345 = vmul.f32 %v3263, 1.442695
  %v3346 = vpow.pop %v3345
  %v3347 = vmul.f32 %v3264, 1.442695
  %v3348 = vpow.pop %v3347
  %v3349 = vmul.f32 %v3265, 1.442695
  %v3350 = vpow.pop %v3349
  %v3351 = vmul.f32 %v3266, 1.442695
  %v3352 = vpow.pop %v3351
  %v3353 = vmul.f32 %v3267, 1.442695
  %v3354 = vpow.pop %v3353
  %v3355 = vmul.f32 %v3268, 1.442695
  %v3356 = vpow.pop %v3355
  %v3357 = vmul.f32 %v3269, 1.442695
  %v3358 = vpow.pop %v3357
  %v3359 = vmul.f32 %v3270, 1.442695
  %v3360 = vpow.pop %v3359
  %v3361 = vmul.f32 %v3271, 1.442695
  %v3362 = vpow.pop %v3361
  %v3363 = vmul.f32 %v3272, 1.442695
  %v3364 = vpow.pop %v3363
  %v3365 = vmul.f32 %v3273, 1.442695
  %v3366 = vpow.pop %v3365
  %v3367 = vmul.f32 %v3274, 1.442695
  %v3368 = vpow.pop %v3367
  %v3369 = vmul.f32 %v3275, 1.442695
  %v3370 = vpow.pop %v3369
  %v3371 = vmul.f32 %v3276, 1.442695
  %v3372 = vpow.pop %v3371
  %v3373 = vmul.f32 %v3277, 1.442695
  %v3374 = vpow.pop %v3373
  %v3375 = vmul.f32 %v3278, 1.442695
  %v3376 = vpow.pop %v3375
  %v3377 = vmul.f32 %v3279, 1.442695
  %v3378 = vpow.pop %v3377
  %v3379 = vmul.f32 %v3280, 1.442695
  %v3380 = vpow.pop %v3379
  %v3381 = vmul.f32 %v3281, 1.442695
  %v3382 = vpow.pop %v3381
  %v3383 = vmul.f32 %v3282, 1.442695
  %v3384 = vpow.pop %v3383
  %v3385 = vmul.f32 %v3283, 1.442695
  %v3386 = vpow.pop %v3385
  %v3387 = vmul.f32 %v3284, 1.442695
  %v3388 = vpow.pop %v3387
  %v3389 = vmul.f32 %v3285, 1.442695
  %v3390 = vpow.pop %v3389
  %v3391 = vmul.f32 %v3286, 1.442695
  %v3392 = vpow.pop %v3391
  %v3393 = vmul.f32 %v3287, 1.442695
  %v3394 = vpow.pop %v3393
  %v3395 = vmul.f32 %v3288, 1.442695
  %v3396 = vpow.pop %v3395
  %v3397 = vmul.f32 %v3289, 1.442695
  %v3398 = vpow.pop %v3397
  %v3399 = vmul.f32 %v3290, 1.442695
  %v3400 = vpow.pop %v3399
  %v3401 = vmul.f32 %v3291, 1.442695
  %v3402 = vpow.pop %v3401
  %v3403 = vmul.f32 %v3292, 1.442695
  %v3404 = vpow.pop %v3403
  %v3405 = vmul.f32 %v3293, 1.442695
  %v3406 = vpow.pop %v3405
  %v3407 = vmul.f32 %v3294, 1.442695
  %v3408 = vpow.pop %v3407
  %v3409 = vmul.f32 %v3295, 1.442695
  %v3410 = vpow.pop %v3409
  %v3411 = vmul.f32 %v3296, 1.442695
  %v3412 = vpow.pop %v3411
  %v3413 = vmul.f32 %v3297, 1.442695
  %v3414 = vpow.pop %v3413
  %v3415 = vmul.f32 %v3298, 1.442695
  %v3416 = vpow.pop %v3415
  %v3417 = vmul.f32 %v3299, 1.442695
  %v3418 = vpow.pop %v3417
  %v3419 = vmul.f32 %v3300, 1.442695
  %v3420 = vpow.pop %v3419
  %v3421 = vmul.f32 %v3301, 1.442695
  %v3422 = vpow.pop %v3421
  %v3423 = vmul.f32 %v3302, 1.442695
  %v3424 = vpow.pop %v3423
  %v3425 = vmul.f32 %v3303, 1.442695
  %v3426 = vpow.pop %v3425
  %v3427 = vmul.f32 %v3304, 1.442695
  %v3428 = vpow.pop %v3427
  %v3429 = vmul.f32 %v3305, 1.442695
  %v3430 = vpow.pop %v3429
  %v3431 = vmul.f32 %v3306, 1.442695
  %v3432 = vpow.pop %v3431
  %v3433 = vmul.f32 %v3307, 1.442695
  %v3434 = vpow.pop %v3433
  %v3435 = vmul.f32 %v3308, 1.442695
  %v3436 = vpow.pop %v3435
  %3437 = vadd.xlane.f32.xlu0 %v3310
  %v3438 = vpop.xlane.xlu0 %3437
  %3439 = vadd.xlane.f32.xlu0 %v3312
  %v3440 = vpop.xlane.xlu0 %3439
  %3441 = vadd.xlane.f32.xlu0 %v3314
  %v3442 = vpop.xlane.xlu0 %3441
  %3443 = vadd.xlane.f32.xlu0 %v3316
  %v3444 = vpop.xlane.xlu0 %3443
  %3445 = vadd.xlane.f32.xlu0 %v3318
  %v3446 = vpop.xlane.xlu0 %3445
  %3447 = vadd.xlane.f32.xlu0 %v3320
  %v3448 = vpop.xlane.xlu0 %3447
  %3449 = vadd.xlane.f32.xlu0 %v3322
  %v3450 = vpop.xlane.xlu0 %3449
  %3451 = vadd.xlane.f32.xlu0 %v3324
  %v3452 = vpop.xlane.xlu0 %3451
  %3453 = vadd.xlane.f32.xlu0 %v3326
  %v3454 = vpop.xlane.xlu0 %3453
  %3455 = vadd.xlane.f32.xlu0 %v3328
  %v3456 = vpop.xlane.xlu0 %3455
  %3457 = vadd.xlane.f32.xlu0 %v3330
  %v3458 = vpop.xlane.xlu0 %3457
  %3459 = vadd.xlane.f32.xlu0 %v3332
  %v3460 = vpop.xlane.xlu0 %3459
  %3461 = vadd.xlane.f32.xlu0 %v3334
  %v3462 = vpop.xlane.xlu0 %3461
  %3463 = vadd.xlane.f32.xlu0 %v3336
  %v3464 = vpop.xlane.xlu0 %3463
  %3465 = vadd.xlane.f32.xlu0 %v3338
  %v3466 = vpop.xlane.xlu0 %3465
  %3467 = vadd.xlane.f32.xlu0 %v3340
  %v3468 = vpop.xlane.xlu0 %3467
  %3469 = vadd.xlane.f32.xlu0 %v3342
  %v3470 = vpop.xlane.xlu0 %3469
  %3471 = vadd.xlane.f32.xlu0 %v3344
  %v3472 = vpop.xlane.xlu0 %3471
  %3473 = vadd.xlane.f32.xlu0 %v3346
  %v3474 = vpop.xlane.xlu0 %3473
  %3475 = vadd.xlane.f32.xlu0 %v3348
  %v3476 = vpop.xlane.xlu0 %3475
  %3477 = vadd.xlane.f32.xlu0 %v3350
  %v3478 = vpop.xlane.xlu0 %3477
  %3479 = vadd.xlane.f32.xlu0 %v3352
  %v3480 = vpop.xlane.xlu0 %3479
  %3481 = vadd.xlane.f32.xlu0 %v3354
  %v3482 = vpop.xlane.xlu0 %3481
  %3483 = vadd.xlane.f32.xlu0 %v3356
  %v3484 = vpop.xlane.xlu0 %3483
  %3485 = vadd.xlane.f32.xlu0 %v3358
  %v3486 = vpop.xlane.xlu0 %3485
  %3487 = vadd.xlane.f32.xlu0 %v3360
  %v3488 = vpop.xlane.xlu0 %3487
  %3489 = vadd.xlane.f32.xlu0 %v3362
  %v3490 = vpop.xlane.xlu0 %3489
  %3491 = vadd.xlane.f32.xlu0 %v3364
  %v3492 = vpop.xlane.xlu0 %3491
  %3493 = vadd.xlane.f32.xlu0 %v3366
  %v3494 = vpop.xlane.xlu0 %3493
  %3495 = vadd.xlane.f32.xlu0 %v3368
  %v3496 = vpop.xlane.xlu0 %3495
  %3497 = vadd.xlane.f32.xlu0 %v3370
  %v3498 = vpop.xlane.xlu0 %3497
  %3499 = vadd.xlane.f32.xlu0 %v3372
  %v3500 = vpop.xlane.xlu0 %3499
  %3501 = vadd.xlane.f32.xlu0 %v3374
  %v3502 = vpop.xlane.xlu0 %3501
  %3503 = vadd.xlane.f32.xlu0 %v3376
  %v3504 = vpop.xlane.xlu0 %3503
  %3505 = vadd.xlane.f32.xlu0 %v3378
  %v3506 = vpop.xlane.xlu0 %3505
  %3507 = vadd.xlane.f32.xlu0 %v3380
  %v3508 = vpop.xlane.xlu0 %3507
  %3509 = vadd.xlane.f32.xlu0 %v3382
  %v3510 = vpop.xlane.xlu0 %3509
  %3511 = vadd.xlane.f32.xlu0 %v3384
  %v3512 = vpop.xlane.xlu0 %3511
  %3513 = vadd.xlane.f32.xlu0 %v3386
  %v3514 = vpop.xlane.xlu0 %3513
  %3515 = vadd.xlane.f32.xlu0 %v3388
  %v3516 = vpop.xlane.xlu0 %3515
  %3517 = vadd.xlane.f32.xlu0 %v3390
  %v3518 = vpop.xlane.xlu0 %3517
  %3519 = vadd.xlane.f32.xlu0 %v3392
  %v3520 = vpop.xlane.xlu0 %3519
  %3521 = vadd.xlane.f32.xlu0 %v3394
  %v3522 = vpop.xlane.xlu0 %3521
  %3523 = vadd.xlane.f32.xlu0 %v3396
  %v3524 = vpop.xlane.xlu0 %3523
  %3525 = vadd.xlane.f32.xlu0 %v3398
  %v3526 = vpop.xlane.xlu0 %3525
  %3527 = vadd.xlane.f32.xlu0 %v3400
  %v3528 = vpop.xlane.xlu0 %3527
  %3529 = vadd.xlane.f32.xlu0 %v3402
  %v3530 = vpop.xlane.xlu0 %3529
  %3531 = vadd.xlane.f32.xlu0 %v3404
  %v3532 = vpop.xlane.xlu0 %3531
  %3533 = vadd.xlane.f32.xlu0 %v3406
  %v3534 = vpop.xlane.xlu0 %3533
  %3535 = vadd.xlane.f32.xlu0 %v3408
  %v3536 = vpop.xlane.xlu0 %3535
  %3537 = vadd.xlane.f32.xlu0 %v3410
  %v3538 = vpop.xlane.xlu0 %3537
  %3539 = vadd.xlane.f32.xlu0 %v3412
  %v3540 = vpop.xlane.xlu0 %3539
  %3541 = vadd.xlane.f32.xlu0 %v3414
  %v3542 = vpop.xlane.xlu0 %3541
  %3543 = vadd.xlane.f32.xlu0 %v3416
  %v3544 = vpop.xlane.xlu0 %3543
  %3545 = vadd.xlane.f32.xlu0 %v3418
  %v3546 = vpop.xlane.xlu0 %3545
  %3547 = vadd.xlane.f32.xlu0 %v3420
  %v3548 = vpop.xlane.xlu0 %3547
  %3549 = vadd.xlane.f32.xlu0 %v3422
  %v3550 = vpop.xlane.xlu0 %3549
  %3551 = vadd.xlane.f32.xlu0 %v3424
  %v3552 = vpop.xlane.xlu0 %3551
  %3553 = vadd.xlane.f32.xlu0 %v3426
  %v3554 = vpop.xlane.xlu0 %3553
  %3555 = vadd.xlane.f32.xlu0 %v3428
  %v3556 = vpop.xlane.xlu0 %3555
  %3557 = vadd.xlane.f32.xlu0 %v3430
  %v3558 = vpop.xlane.xlu0 %3557
  %3559 = vadd.xlane.f32.xlu0 %v3432
  %v3560 = vpop.xlane.xlu0 %3559
  %3561 = vadd.xlane.f32.xlu0 %v3434
  %v3562 = vpop.xlane.xlu0 %3561
  %3563 = vadd.xlane.f32.xlu0 %v3436
  %v3564 = vpop.xlane.xlu0 %3563
  %v3565 = vrcp.pop %v3438
  %v3566 = vrcp.pop %v3440
  %v3567 = vrcp.pop %v3442
  %v3568 = vrcp.pop %v3444
  %v3569 = vrcp.pop %v3446
  %v3570 = vrcp.pop %v3448
  %v3571 = vrcp.pop %v3450
  %v3572 = vrcp.pop %v3452
  %v3573 = vrcp.pop %v3454
  %v3574 = vrcp.pop %v3456
  %v3575 = vrcp.pop %v3458
  %v3576 = vrcp.pop %v3460
  %v3577 = vrcp.pop %v3462
  %v3578 = vrcp.pop %v3464
  %v3579 = vrcp.pop %v3466
  %v3580 = vrcp.pop %v3468
  %v3581 = vrcp.pop %v3470
  %v3582 = vrcp.pop %v3472
  %v3583 = vrcp.pop %v3474
  %v3584 = vrcp.pop %v3476
  %v3585 = vrcp.pop %v3478
  %v3586 = vrcp.pop %v3480
  %v3587 = vrcp.pop %v3482
  %v3588 = vrcp.pop %v3484
  %v3589 = vrcp.pop %v3486
  %v3590 = vrcp.pop %v3488
  %v3591 = vrcp.pop %v3490
  %v3592 = vrcp.pop %v3492
  %v3593 = vrcp.pop %v3494
  %v3594 = vrcp.pop %v3496
  %v3595 = vrcp.pop %v3498
  %v3596 = vrcp.pop %v3500
  %v3597 = vrcp.pop %v3502
  %v3598 = vrcp.pop %v3504
  %v3599 = vrcp.pop %v3506
  %v3600 = vrcp.pop %v3508
  %v3601 = vrcp.pop %v3510
  %v3602 = vrcp.pop %v3512
  %v3603 = vrcp.pop %v3514
  %v3604 = vrcp.pop %v3516
  %v3605 = vrcp.pop %v3518
  %v3606 = vrcp.pop %v3520
  %v3607 = vrcp.pop %v3522
  %v3608 = vrcp.pop %v3524
  %v3609 = vrcp.pop %v3526
  %v3610 = vrcp.pop %v3528
  %v3611 = vrcp.pop %v3530
  %v3612 = vrcp.pop %v3532
  %v3613 = vrcp.pop %v3534
  %v3614 = vrcp.pop %v3536
  %v3615 = vrcp.pop %v3538
  %v3616 = vrcp.pop %v3540
  %v3617 = vrcp.pop %v3542
  %v3618 = vrcp.pop %v3544
  %v3619 = vrcp.pop %v3546
  %v3620 = vrcp.pop %v3548
  %v3621 = vrcp.pop %v3550
  %v3622 = vrcp.pop %v3552
  %v3623 = vrcp.pop %v3554
  %v3624 = vrcp.pop %v3556
  %v3625 = vrcp.pop %v3558
  %v3626 = vrcp.pop %v3560
  %v3627 = vrcp.pop %v3562
  %v3628 = vrcp.pop %v3564
  %v3629 = vpack.c.bf16 %v3312, %v3310
  %v3630 = vpack.c.bf16 %v3316, %v3314
  %v3631 = vpack.c.bf16 %v3320, %v3318
  %v3632 = vpack.c.bf16 %v3324, %v3322
  %v3633 = vpack.c.bf16 %v3328, %v3326
  %v3634 = vpack.c.bf16 %v3332, %v3330
  %v3635 = vpack.c.bf16 %v3336, %v3334
  %v3636 = vpack.c.bf16 %v3340, %v3338
  %v3637 = vpack.c.bf16 %v3344, %v3342
  %v3638 = vpack.c.bf16 %v3348, %v3346
  %v3639 = vpack.c.bf16 %v3352, %v3350
  %v3640 = vpack.c.bf16 %v3356, %v3354
  %v3641 = vpack.c.bf16 %v3360, %v3358
  %v3642 = vpack.c.bf16 %v3364, %v3362
  %v3643 = vpack.c.bf16 %v3368, %v3366
  %v3644 = vpack.c.bf16 %v3372, %v3370
  %v3645 = vpack.c.bf16 %v3376, %v3374
  %v3646 = vpack.c.bf16 %v3380, %v3378
  %v3647 = vpack.c.bf16 %v3384, %v3382
  %v3648 = vpack.c.bf16 %v3388, %v3386
  %v3649 = vpack.c.bf16 %v3392, %v3390
  %v3650 = vpack.c.bf16 %v3396, %v3394
  %v3651 = vpack.c.bf16 %v3400, %v3398
  %v3652 = vpack.c.bf16 %v3404, %v3402
  %v3653 = vpack.c.bf16 %v3408, %v3406
  %v3654 = vpack.c.bf16 %v3412, %v3410
  %v3655 = vpack.c.bf16 %v3416, %v3414
  %v3656 = vpack.c.bf16 %v3420, %v3418
  %v3657 = vpack.c.bf16 %v3424, %v3422
  %v3658 = vpack.c.bf16 %v3428, %v3426
  %v3659 = vpack.c.bf16 %v3432, %v3430
  %v3660 = vpack.c.bf16 %v3436, %v3434
  %3669 = vrot.lane.b32.xlu0 %v637, 96
  %v3670 = vpop.permute.xlu0 %3669
  %3671 = vrot.lane.b32.xlu0 %v639, 96
  %v3672 = vpop.permute.xlu0 %3671
  %3673 = vrot.lane.b32.xlu0 %v641, 96
  %v3674 = vpop.permute.xlu0 %3673
  %3675 = vrot.lane.b32.xlu0 %v643, 96
  %v3676 = vpop.permute.xlu0 %3675
  %3677 = vrot.lane.b32.xlu0 %v645, 96
  %v3678 = vpop.permute.xlu0 %3677
  %3679 = vrot.lane.b32.xlu0 %v647, 96
  %v3680 = vpop.permute.xlu0 %3679
  %3681 = vrot.lane.b32.xlu0 %v649, 96
  %v3682 = vpop.permute.xlu0 %3681
  %3683 = vrot.lane.b32.xlu0 %v651, 96
  %v3684 = vpop.permute.xlu0 %3683
  %3693 = vmatprep.subr.bf16.mxu0 0
  %3694 = vmatpush1.bf16.msra.mxu0 %v3670
  %3695 = vmatprep.subr.bf16.mxu0 0
  %3696 = vmatpush1.bf16.msra.mxu0 %v3672
  %3697 = vmatprep.subr.bf16.mxu0 0
  %3698 = vmatpush1.bf16.msra.mxu0 %v3674
  %3699 = vmatprep.subr.bf16.mxu0 0
  %3700 = vmatpush1.bf16.msra.mxu0 %v3676
  %3701 = vmatprep.subr.bf16.mxu0 0
  %3702 = vmatpush1.bf16.msra.mxu0 %v3678
  %3703 = vmatprep.subr.bf16.mxu0 0
  %3704 = vmatpush1.bf16.msra.mxu0 %v3680
  %3705 = vmatprep.subr.bf16.mxu0 0
  %3706 = vmatpush1.bf16.msra.mxu0 %v3682
  %3707 = vmatprep.subr.bf16.mxu0 0
  %3708 = vmatpush1.bf16.msra.mxu0 %v3684
  %3709 = vmatprep.subr.bf16.mxu0 0
  %3710 = vmatpush1.bf16.msra.mxu0 0
  %3711 = vmatprep.subr.bf16.mxu0 0
  %3712 = vmatpush1.bf16.msra.mxu0 0
  %3713 = vmatprep.subr.bf16.mxu0 0
  %3714 = vmatpush1.bf16.msra.mxu0 0
  %3715 = vmatprep.subr.bf16.mxu0 0
  %3716 = vmatpush1.bf16.msra.mxu0 0
  %3717 = vmatprep.subr.bf16.mxu0 0
  %3718 = vmatpush1.bf16.msra.mxu0 0
  %3719 = vmatprep.subr.bf16.mxu0 0
  %3720 = vmatpush1.bf16.msra.mxu0 0
  %3721 = vmatprep.subr.bf16.mxu0 0
  %3722 = vmatpush1.bf16.msra.mxu0 0
  %3723 = vmatprep.subr.bf16.mxu0 0
  %3724 = vmatpush1.bf16.msra.mxu0 0
  %3725 = vmatprep.mubr.bf16.mxu0 0
  %3726 = vmatmul.mubr.bf16.gmra.mrb[0].mxu0 %v3629
  %v3727 = vpop.f32.mrb[0].mxu0
  %v3728 = vadd.f32 0.0, %v3727
  %v3729 = vpop.f32.mrb[0].mxu0
  %v3730 = vpop.f32.mrb[0].mxu0
  %v3731 = vadd.f32 0.0, %v3730
  %v3732 = vpop.f32.mrb[0].mxu0
  %3733 = vmatprep.mubr.bf16.mxu0 0
  %3734 = vmatmul.mubr.bf16.gmra.mrb[0].mxu0 %v3630
  %v3735 = vpop.f32.mrb[0].mxu0
  %v3736 = vadd.f32 0.0, %v3735
  %v3737 = vpop.f32.mrb[0].mxu0
  %v3738 = vpop.f32.mrb[0].mxu0
  %v3739 = vadd.f32 0.0, %v3738
  %v3740 = vpop.f32.mrb[0].mxu0
  %3741 = vmatprep.mubr.bf16.mxu0 0
  %3742 = vmatmul.mubr.bf16.gmra.mrb[0].mxu0 %v3631
  %v3743 = vpop.f32.mrb[0].mxu0
  %v3744 = vadd.f32 0.0, %v3743
  %v3745 = vpop.f32.mrb[0].mxu0
  %v3746 = vpop.f32.mrb[0].mxu0
  %v3747 = vadd.f32 0.0, %v3746
  %v3748 = vpop.f32.mrb[0].mxu0
  %3749 = vmatprep.mubr.bf16.mxu0 0
  %3750 = vmatmul.mubr.bf16.gmra.mrb[0].mxu0 %v3632
  %v3751 = vpop.f32.mrb[0].mxu0
  %v3752 = vadd.f32 0.0, %v3751
  %v3753 = vpop.f32.mrb[0].mxu0
  %v3754 = vpop.f32.mrb[0].mxu0
  %v3755 = vadd.f32 0.0, %v3754
  %v3756 = vpop.f32.mrb[0].mxu0
  %3757 = vmatprep.mubr.bf16.mxu0 0
  %3758 = vmatmul.mubr.bf16.gmra.mrb[0].mxu0 %v3633
  %v3759 = vpop.f32.mrb[0].mxu0
  %v3760 = vadd.f32 0.0, %v3759
  %v3761 = vpop.f32.mrb[0].mxu0
  %v3762 = vpop.f32.mrb[0].mxu0
  %v3763 = vadd.f32 0.0, %v3762
  %v3764 = vpop.f32.mrb[0].mxu0
  %3765 = vmatprep.mubr.bf16.mxu0 0
  %3766 = vmatmul.mubr.bf16.gmra.mrb[0].mxu0 %v3634
  %v3767 = vpop.f32.mrb[0].mxu0
  %v3768 = vadd.f32 0.0, %v3767
  %v3769 = vpop.f32.mrb[0].mxu0
  %v3770 = vpop.f32.mrb[0].mxu0
  %v3771 = vadd.f32 0.0, %v3770
  %v3772 = vpop.f32.mrb[0].mxu0
  %3773 = vmatprep.mubr.bf16.mxu0 0
  %3774 = vmatmul.mubr.bf16.gmra.mrb[0].mxu0 %v3635
  %v3775 = vpop.f32.mrb[0].mxu0
  %v3776 = vadd.f32 0.0, %v3775
  %v3777 = vpop.f32.mrb[0].mxu0
  %v3778 = vpop.f32.mrb[0].mxu0
  %v3779 = vadd.f32 0.0, %v3778
  %v3780 = vpop.f32.mrb[0].mxu0
  %3781 = vmatprep.mubr.bf16.mxu0 0
  %3782 = vmatmul.mubr.bf16.gmra.mrb[0].mxu0 %v3636
  %v3783 = vpop.f32.mrb[0].mxu0
  %v3784 = vadd.f32 0.0, %v3783
  %v3785 = vpop.f32.mrb[0].mxu0
  %v3786 = vpop.f32.mrb[0].mxu0
  %v3787 = vadd.f32 0.0, %v3786
  %v3788 = vpop.f32.mrb[0].mxu0
  %3789 = vdwg.mxu0
  %3798 = vrot.lane.b32.xlu0 %v653, 96
  %v3799 = vpop.permute.xlu0 %3798
  %3800 = vrot.lane.b32.xlu0 %v655, 96
  %v3801 = vpop.permute.xlu0 %3800
  %3802 = vrot.lane.b32.xlu0 %v657, 96
  %v3803 = vpop.permute.xlu0 %3802
  %3804 = vrot.lane.b32.xlu0 %v659, 96
  %v3805 = vpop.permute.xlu0 %3804
  %3806 = vrot.lane.b32.xlu0 %v661, 96
  %v3807 = vpop.permute.xlu0 %3806
  %3808 = vrot.lane.b32.xlu0 %v663, 96
  %v3809 = vpop.permute.xlu0 %3808
  %3810 = vrot.lane.b32.xlu0 %v665, 96
  %v3811 = vpop.permute.xlu0 %3810
  %3812 = vrot.lane.b32.xlu0 %v667, 96
  %v3813 = vpop.permute.xlu0 %3812
  %3822 = vmatprep.subr.bf16.mxu0 0
  %3823 = vmatpush1.bf16.msra.mxu0 %v3799
  %3824 = vmatprep.subr.bf16.mxu0 0
  %3825 = vmatpush1.bf16.msra.mxu0 %v3801
  %3826 = vmatprep.subr.bf16.mxu0 0
  %3827 = vmatpush1.bf16.msra.mxu0 %v3803
  %3828 = vmatprep.subr.bf16.mxu0 0
  %3829 = vmatpush1.bf16.msra.mxu0 %v3805
  %3830 = vmatprep.subr.bf16.mxu0 0
  %3831 = vmatpush1.bf16.msra.mxu0 %v3807
  %3832 = vmatprep.subr.bf16.mxu0 0
  %3833 = vmatpush1.bf16.msra.mxu0 %v3809
  %3834 = vmatprep.subr.bf16.mxu0 0
  %3835 = vmatpush1.bf16.msra.mxu0 %v3811
  %3836 = vmatprep.subr.bf16.mxu0 0
  %3837 = vmatpush1.bf16.msra.mxu0 %v3813
  %3838 = vmatprep.subr.bf16.mxu0 0
  %3839 = vmatpush1.bf16.msra.mxu0 0
  %3840 = vmatprep.subr.bf16.mxu0 0
  %3841 = vmatpush1.bf16.msra.mxu0 0
  %3842 = vmatprep.subr.bf16.mxu0 0
  %3843 = vmatpush1.bf16.msra.mxu0 0
  %3844 = vmatprep.subr.bf16.mxu0 0
  %3845 = vmatpush1.bf16.msra.mxu0 0
  %3846 = vmatprep.subr.bf16.mxu0 0
  %3847 = vmatpush1.bf16.msra.mxu0 0
  %3848 = vmatprep.subr.bf16.mxu0 0
  %3849 = vmatpush1.bf16.msra.mxu0 0
  %3850 = vmatprep.subr.bf16.mxu0 0
  %3851 = vmatpush1.bf16.msra.mxu0 0
  %3852 = vmatprep.subr.bf16.mxu0 0
  %3853 = vmatpush1.bf16.msra.mxu0 0
  %3854 = vmatprep.mubr.bf16.mxu0 0
  %3855 = vmatmul.mubr.bf16.gmra.mrb[0].mxu0 %v3637
  %v3856 = vpop.f32.mrb[0].mxu0
  %v3857 = vadd.f32 0.0, %v3856
  %v3858 = vpop.f32.mrb[0].mxu0
  %v3859 = vpop.f32.mrb[0].mxu0
  %v3860 = vadd.f32 0.0, %v3859
  %v3861 = vpop.f32.mrb[0].mxu0
  %3862 = vmatprep.mubr.bf16.mxu0 0
  %3863 = vmatmul.mubr.bf16.gmra.mrb[0].mxu0 %v3638
  %v3864 = vpop.f32.mrb[0].mxu0
  %v3865 = vadd.f32 0.0, %v3864
  %v3866 = vpop.f32.mrb[0].mxu0
  %v3867 = vpop.f32.mrb[0].mxu0
  %v3868 = vadd.f32 0.0, %v3867
  %v3869 = vpop.f32.mrb[0].mxu0
  %3870 = vmatprep.mubr.bf16.mxu0 0
  %3871 = vmatmul.mubr.bf16.gmra.mrb[0].mxu0 %v3639
  %v3872 = vpop.f32.mrb[0].mxu0
  %v3873 = vadd.f32 0.0, %v3872
  %v3874 = vpop.f32.mrb[0].mxu0
  %v3875 = vpop.f32.mrb[0].mxu0
  %v3876 = vadd.f32 0.0, %v3875
  %v3877 = vpop.f32.mrb[0].mxu0
  %3878 = vmatprep.mubr.bf16.mxu0 0
  %3879 = vmatmul.mubr.bf16.gmra.mrb[0].mxu0 %v3640
  %v3880 = vpop.f32.mrb[0].mxu0
  %v3881 = vadd.f32 0.0, %v3880
  %v3882 = vpop.f32.mrb[0].mxu0
  %v3883 = vpop.f32.mrb[0].mxu0
  %v3884 = vadd.f32 0.0, %v3883
  %v3885 = vpop.f32.mrb[0].mxu0
  %3886 = vmatprep.mubr.bf16.mxu0 0
  %3887 = vmatmul.mubr.bf16.gmra.mrb[0].mxu0 %v3641
  %v3888 = vpop.f32.mrb[0].mxu0
  %v3889 = vadd.f32 0.0, %v3888
  %v3890 = vpop.f32.mrb[0].mxu0
  %v3891 = vpop.f32.mrb[0].mxu0
  %v3892 = vadd.f32 0.0, %v3891
  %v3893 = vpop.f32.mrb[0].mxu0
  %3894 = vmatprep.mubr.bf16.mxu0 0
  %3895 = vmatmul.mubr.bf16.gmra.mrb[0].mxu0 %v3642
  %v3896 = vpop.f32.mrb[0].mxu0
  %v3897 = vadd.f32 0.0, %v3896
  %v3898 = vpop.f32.mrb[0].mxu0
  %v3899 = vpop.f32.mrb[0].mxu0
  %v3900 = vadd.f32 0.0, %v3899
  %v3901 = vpop.f32.mrb[0].mxu0
  %3902 = vmatprep.mubr.bf16.mxu0 0
  %3903 = vmatmul.mubr.bf16.gmra.mrb[0].mxu0 %v3643
  %v3904 = vpop.f32.mrb[0].mxu0
  %v3905 = vadd.f32 0.0, %v3904
  %v3906 = vpop.f32.mrb[0].mxu0
  %v3907 = vpop.f32.mrb[0].mxu0
  %v3908 = vadd.f32 0.0, %v3907
  %v3909 = vpop.f32.mrb[0].mxu0
  %3910 = vmatprep.mubr.bf16.mxu0 0
  %3911 = vmatmul.mubr.bf16.gmra.mrb[0].mxu0 %v3644
  %v3912 = vpop.f32.mrb[0].mxu0
  %v3913 = vadd.f32 0.0, %v3912
  %v3914 = vpop.f32.mrb[0].mxu0
  %v3915 = vpop.f32.mrb[0].mxu0
  %v3916 = vadd.f32 0.0, %v3915
  %v3917 = vpop.f32.mrb[0].mxu0
  %3918 = vdwg.mxu0
  %3927 = vrot.lane.b32.xlu0 %v669, 96
  %v3928 = vpop.permute.xlu0 %3927
  %3929 = vrot.lane.b32.xlu0 %v671, 96
  %v3930 = vpop.permute.xlu0 %3929
  %3931 = vrot.lane.b32.xlu0 %v673, 96
  %v3932 = vpop.permute.xlu0 %3931
  %3933 = vrot.lane.b32.xlu0 %v675, 96
  %v3934 = vpop.permute.xlu0 %3933
  %3935 = vrot.lane.b32.xlu0 %v677, 96
  %v3936 = vpop.permute.xlu0 %3935
  %3937 = vrot.lane.b32.xlu0 %v679, 96
  %v3938 = vpop.permute.xlu0 %3937
  %3939 = vrot.lane.b32.xlu0 %v681, 96
  %v3940 = vpop.permute.xlu0 %3939
  %3941 = vrot.lane.b32.xlu0 %v683, 96
  %v3942 = vpop.permute.xlu0 %3941
  %3951 = vmatprep.subr.bf16.mxu0 0
  %3952 = vmatpush1.bf16.msra.mxu0 %v3928
  %3953 = vmatprep.subr.bf16.mxu0 0
  %3954 = vmatpush1.bf16.msra.mxu0 %v3930
  %3955 = vmatprep.subr.bf16.mxu0 0
  %3956 = vmatpush1.bf16.msra.mxu0 %v3932
  %3957 = vmatprep.subr.bf16.mxu0 0
  %3958 = vmatpush1.bf16.msra.mxu0 %v3934
  %3959 = vmatprep.subr.bf16.mxu0 0
  %3960 = vmatpush1.bf16.msra.mxu0 %v3936
  %3961 = vmatprep.subr.bf16.mxu0 0
  %3962 = vmatpush1.bf16.msra.mxu0 %v3938
  %3963 = vmatprep.subr.bf16.mxu0 0
  %3964 = vmatpush1.bf16.msra.mxu0 %v3940
  %3965 = vmatprep.subr.bf16.mxu0 0
  %3966 = vmatpush1.bf16.msra.mxu0 %v3942
  %3967 = vmatprep.subr.bf16.mxu0 0
  %3968 = vmatpush1.bf16.msra.mxu0 0
  %3969 = vmatprep.subr.bf16.mxu0 0
  %3970 = vmatpush1.bf16.msra.mxu0 0
  %3971 = vmatprep.subr.bf16.mxu0 0
  %3972 = vmatpush1.bf16.msra.mxu0 0
  %3973 = vmatprep.subr.bf16.mxu0 0
  %3974 = vmatpush1.bf16.msra.mxu0 0
  %3975 = vmatprep.subr.bf16.mxu0 0
  %3976 = vmatpush1.bf16.msra.mxu0 0
  %3977 = vmatprep.subr.bf16.mxu0 0
  %3978 = vmatpush1.bf16.msra.mxu0 0
  %3979 = vmatprep.subr.bf16.mxu0 0
  %3980 = vmatpush1.bf16.msra.mxu0 0
  %3981 = vmatprep.subr.bf16.mxu0 0
  %3982 = vmatpush1.bf16.msra.mxu0 0
  %3983 = vmatprep.mubr.bf16.mxu0 0
  %3984 = vmatmul.mubr.bf16.gmra.mrb[0].mxu0 %v3645
  %v3985 = vpop.f32.mrb[0].mxu0
  %v3986 = vadd.f32 0.0, %v3985
  %v3987 = vpop.f32.mrb[0].mxu0
  %v3988 = vpop.f32.mrb[0].mxu0
  %v3989 = vadd.f32 0.0, %v3988
  %v3990 = vpop.f32.mrb[0].mxu0
  %3991 = vmatprep.mubr.bf16.mxu0 0
  %3992 = vmatmul.mubr.bf16.gmra.mrb[0].mxu0 %v3646
  %v3993 = vpop.f32.mrb[0].mxu0
  %v3994 = vadd.f32 0.0, %v3993
  %v3995 = vpop.f32.mrb[0].mxu0
  %v3996 = vpop.f32.mrb[0].mxu0
  %v3997 = vadd.f32 0.0, %v3996
  %v3998 = vpop.f32.mrb[0].mxu0
  %3999 = vmatprep.mubr.bf16.mxu0 0
  %4000 = vmatmul.mubr.bf16.gmra.mrb[0].mxu0 %v3647
  %v4001 = vpop.f32.mrb[0].mxu0
  %v4002 = vadd.f32 0.0, %v4001
  %v4003 = vpop.f32.mrb[0].mxu0
  %v4004 = vpop.f32.mrb[0].mxu0
  %v4005 = vadd.f32 0.0, %v4004
  %v4006 = vpop.f32.mrb[0].mxu0
  %4007 = vmatprep.mubr.bf16.mxu0 0
  %4008 = vmatmul.mubr.bf16.gmra.mrb[0].mxu0 %v3648
  %v4009 = vpop.f32.mrb[0].mxu0
  %v4010 = vadd.f32 0.0, %v4009
  %v4011 = vpop.f32.mrb[0].mxu0
  %v4012 = vpop.f32.mrb[0].mxu0
  %v4013 = vadd.f32 0.0, %v4012
  %v4014 = vpop.f32.mrb[0].mxu0
  %4015 = vmatprep.mubr.bf16.mxu0 0
  %4016 = vmatmul.mubr.bf16.gmra.mrb[0].mxu0 %v3649
  %v4017 = vpop.f32.mrb[0].mxu0
  %v4018 = vadd.f32 0.0, %v4017
  %v4019 = vpop.f32.mrb[0].mxu0
  %v4020 = vpop.f32.mrb[0].mxu0
  %v4021 = vadd.f32 0.0, %v4020
  %v4022 = vpop.f32.mrb[0].mxu0
  %4023 = vmatprep.mubr.bf16.mxu0 0
  %4024 = vmatmul.mubr.bf16.gmra.mrb[0].mxu0 %v3650
  %v4025 = vpop.f32.mrb[0].mxu0
  %v4026 = vadd.f32 0.0, %v4025
  %v4027 = vpop.f32.mrb[0].mxu0
  %v4028 = vpop.f32.mrb[0].mxu0
  %v4029 = vadd.f32 0.0, %v4028
  %v4030 = vpop.f32.mrb[0].mxu0
  %4031 = vmatprep.mubr.bf16.mxu0 0
  %4032 = vmatmul.mubr.bf16.gmra.mrb[0].mxu0 %v3651
  %v4033 = vpop.f32.mrb[0].mxu0
  %v4034 = vadd.f32 0.0, %v4033
  %v4035 = vpop.f32.mrb[0].mxu0
  %v4036 = vpop.f32.mrb[0].mxu0
  %v4037 = vadd.f32 0.0, %v4036
  %v4038 = vpop.f32.mrb[0].mxu0
  %4039 = vmatprep.mubr.bf16.mxu0 0
  %4040 = vmatmul.mubr.bf16.gmra.mrb[0].mxu0 %v3652
  %v4041 = vpop.f32.mrb[0].mxu0
  %v4042 = vadd.f32 0.0, %v4041
  %v4043 = vpop.f32.mrb[0].mxu0
  %v4044 = vpop.f32.mrb[0].mxu0
  %v4045 = vadd.f32 0.0, %v4044
  %v4046 = vpop.f32.mrb[0].mxu0
  %4047 = vdwg.mxu0
  %4056 = vrot.lane.b32.xlu0 %v685, 96
  %v4057 = vpop.permute.xlu0 %4056
  %4058 = vrot.lane.b32.xlu0 %v687, 96
  %v4059 = vpop.permute.xlu0 %4058
  %4060 = vrot.lane.b32.xlu0 %v689, 96
  %v4061 = vpop.permute.xlu0 %4060
  %4062 = vrot.lane.b32.xlu0 %v691, 96
  %v4063 = vpop.permute.xlu0 %4062
  %4064 = vrot.lane.b32.xlu0 %v693, 96
  %v4065 = vpop.permute.xlu0 %4064
  %4066 = vrot.lane.b32.xlu0 %v695, 96
  %v4067 = vpop.permute.xlu0 %4066
  %4068 = vrot.lane.b32.xlu0 %v697, 96
  %v4069 = vpop.permute.xlu0 %4068
  %4070 = vrot.lane.b32.xlu0 %v699, 96
  %v4071 = vpop.permute.xlu0 %4070
  %4080 = vmatprep.subr.bf16.mxu0 0
  %4081 = vmatpush1.bf16.msra.mxu0 %v4057
  %4082 = vmatprep.subr.bf16.mxu0 0
  %4083 = vmatpush1.bf16.msra.mxu0 %v4059
  %4084 = vmatprep.subr.bf16.mxu0 0
  %4085 = vmatpush1.bf16.msra.mxu0 %v4061
  %4086 = vmatprep.subr.bf16.mxu0 0
  %4087 = vmatpush1.bf16.msra.mxu0 %v4063
  %4088 = vmatprep.subr.bf16.mxu0 0
  %4089 = vmatpush1.bf16.msra.mxu0 %v4065
  %4090 = vmatprep.subr.bf16.mxu0 0
  %4091 = vmatpush1.bf16.msra.mxu0 %v4067
  %4092 = vmatprep.subr.bf16.mxu0 0
  %4093 = vmatpush1.bf16.msra.mxu0 %v4069
  %4094 = vmatprep.subr.bf16.mxu0 0
  %4095 = vmatpush1.bf16.msra.mxu0 %v4071
  %4096 = vmatprep.subr.bf16.mxu0 0
  %4097 = vmatpush1.bf16.msra.mxu0 0
  %4098 = vmatprep.subr.bf16.mxu0 0
  %4099 = vmatpush1.bf16.msra.mxu0 0
  %4100 = vmatprep.subr.bf16.mxu0 0
  %4101 = vmatpush1.bf16.msra.mxu0 0
  %4102 = vmatprep.subr.bf16.mxu0 0
  %4103 = vmatpush1.bf16.msra.mxu0 0
  %4104 = vmatprep.subr.bf16.mxu0 0
  %4105 = vmatpush1.bf16.msra.mxu0 0
  %4106 = vmatprep.subr.bf16.mxu0 0
  %4107 = vmatpush1.bf16.msra.mxu0 0
  %4108 = vmatprep.subr.bf16.mxu0 0
  %4109 = vmatpush1.bf16.msra.mxu0 0
  %4110 = vmatprep.subr.bf16.mxu0 0
  %4111 = vmatpush1.bf16.msra.mxu0 0
  %4112 = vmatprep.mubr.bf16.mxu0 0
  %4113 = vmatmul.mubr.bf16.gmra.mrb[0].mxu0 %v3653
  %v4114 = vpop.f32.mrb[0].mxu0
  %v4115 = vadd.f32 0.0, %v4114
  %v4116 = vpop.f32.mrb[0].mxu0
  %v4117 = vpop.f32.mrb[0].mxu0
  %v4118 = vadd.f32 0.0, %v4117
  %v4119 = vpop.f32.mrb[0].mxu0
  %4120 = vmatprep.mubr.bf16.mxu0 0
  %4121 = vmatmul.mubr.bf16.gmra.mrb[0].mxu0 %v3654
  %v4122 = vpop.f32.mrb[0].mxu0
  %v4123 = vadd.f32 0.0, %v4122
  %v4124 = vpop.f32.mrb[0].mxu0
  %v4125 = vpop.f32.mrb[0].mxu0
  %v4126 = vadd.f32 0.0, %v4125
  %v4127 = vpop.f32.mrb[0].mxu0
  %4128 = vmatprep.mubr.bf16.mxu0 0
  %4129 = vmatmul.mubr.bf16.gmra.mrb[0].mxu0 %v3655
  %v4130 = vpop.f32.mrb[0].mxu0
  %v4131 = vadd.f32 0.0, %v4130
  %v4132 = vpop.f32.mrb[0].mxu0
  %v4133 = vpop.f32.mrb[0].mxu0
  %v4134 = vadd.f32 0.0, %v4133
  %v4135 = vpop.f32.mrb[0].mxu0
  %4136 = vmatprep.mubr.bf16.mxu0 0
  %4137 = vmatmul.mubr.bf16.gmra.mrb[0].mxu0 %v3656
  %v4138 = vpop.f32.mrb[0].mxu0
  %v4139 = vadd.f32 0.0, %v4138
  %v4140 = vpop.f32.mrb[0].mxu0
  %v4141 = vpop.f32.mrb[0].mxu0
  %v4142 = vadd.f32 0.0, %v4141
  %v4143 = vpop.f32.mrb[0].mxu0
  %4144 = vmatprep.mubr.bf16.mxu0 0
  %4145 = vmatmul.mubr.bf16.gmra.mrb[0].mxu0 %v3657
  %v4146 = vpop.f32.mrb[0].mxu0
  %v4147 = vadd.f32 0.0, %v4146
  %v4148 = vpop.f32.mrb[0].mxu0
  %v4149 = vpop.f32.mrb[0].mxu0
  %v4150 = vadd.f32 0.0, %v4149
  %v4151 = vpop.f32.mrb[0].mxu0
  %4152 = vmatprep.mubr.bf16.mxu0 0
  %4153 = vmatmul.mubr.bf16.gmra.mrb[0].mxu0 %v3658
  %v4154 = vpop.f32.mrb[0].mxu0
  %v4155 = vadd.f32 0.0, %v4154
  %v4156 = vpop.f32.mrb[0].mxu0
  %v4157 = vpop.f32.mrb[0].mxu0
  %v4158 = vadd.f32 0.0, %v4157
  %v4159 = vpop.f32.mrb[0].mxu0
  %4160 = vmatprep.mubr.bf16.mxu0 0
  %4161 = vmatmul.mubr.bf16.gmra.mrb[0].mxu0 %v3659
  %v4162 = vpop.f32.mrb[0].mxu0
  %v4163 = vadd.f32 0.0, %v4162
  %v4164 = vpop.f32.mrb[0].mxu0
  %v4165 = vpop.f32.mrb[0].mxu0
  %v4166 = vadd.f32 0.0, %v4165
  %v4167 = vpop.f32.mrb[0].mxu0
  %4168 = vmatprep.mubr.bf16.mxu0 0
  %4169 = vmatmul.mubr.bf16.gmra.mrb[0].mxu0 %v3660
  %v4170 = vpop.f32.mrb[0].mxu0
  %v4171 = vadd.f32 0.0, %v4170
  %v4172 = vpop.f32.mrb[0].mxu0
  %v4173 = vpop.f32.mrb[0].mxu0
  %v4174 = vadd.f32 0.0, %v4173
  %v4175 = vpop.f32.mrb[0].mxu0
  %4176 = vdwg.mxu0
  %v4177 = vmul.f32 %v3728, %v3565
  %v4178 = vmul.f32 %v3731, %v3566
  %v4179 = vmul.f32 %v3736, %v3567
  %v4180 = vmul.f32 %v3739, %v3568
  %v4181 = vmul.f32 %v3744, %v3569
  %v4182 = vmul.f32 %v3747, %v3570
  %v4183 = vmul.f32 %v3752, %v3571
  %v4184 = vmul.f32 %v3755, %v3572
  %v4185 = vmul.f32 %v3760, %v3573
  %v4186 = vmul.f32 %v3763, %v3574
  %v4187 = vmul.f32 %v3768, %v3575
  %v4188 = vmul.f32 %v3771, %v3576
  %v4189 = vmul.f32 %v3776, %v3577
  %v4190 = vmul.f32 %v3779, %v3578
  %v4191 = vmul.f32 %v3784, %v3579
  %v4192 = vmul.f32 %v3787, %v3580
  %v4193 = vmul.f32 %v3857, %v3581
  %v4194 = vmul.f32 %v3860, %v3582
  %v4195 = vmul.f32 %v3865, %v3583
  %v4196 = vmul.f32 %v3868, %v3584
  %v4197 = vmul.f32 %v3873, %v3585
  %v4198 = vmul.f32 %v3876, %v3586
  %v4199 = vmul.f32 %v3881, %v3587
  %v4200 = vmul.f32 %v3884, %v3588
  %v4201 = vmul.f32 %v3889, %v3589
  %v4202 = vmul.f32 %v3892, %v3590
  %v4203 = vmul.f32 %v3897, %v3591
  %v4204 = vmul.f32 %v3900, %v3592
  %v4205 = vmul.f32 %v3905, %v3593
  %v4206 = vmul.f32 %v3908, %v3594
  %v4207 = vmul.f32 %v3913, %v3595
  %v4208 = vmul.f32 %v3916, %v3596
  %v4209 = vmul.f32 %v3986, %v3597
  %v4210 = vmul.f32 %v3989, %v3598
  %v4211 = vmul.f32 %v3994, %v3599
  %v4212 = vmul.f32 %v3997, %v3600
  %v4213 = vmul.f32 %v4002, %v3601
  %v4214 = vmul.f32 %v4005, %v3602
  %v4215 = vmul.f32 %v4010, %v3603
  %v4216 = vmul.f32 %v4013, %v3604
  %v4217 = vmul.f32 %v4018, %v3605
  %v4218 = vmul.f32 %v4021, %v3606
  %v4219 = vmul.f32 %v4026, %v3607
  %v4220 = vmul.f32 %v4029, %v3608
  %v4221 = vmul.f32 %v4034, %v3609
  %v4222 = vmul.f32 %v4037, %v3610
  %v4223 = vmul.f32 %v4042, %v3611
  %v4224 = vmul.f32 %v4045, %v3612
  %v4225 = vmul.f32 %v4115, %v3613
  %v4226 = vmul.f32 %v4118, %v3614
  %v4227 = vmul.f32 %v4123, %v3615
  %v4228 = vmul.f32 %v4126, %v3616
  %v4229 = vmul.f32 %v4131, %v3617
  %v4230 = vmul.f32 %v4134, %v3618
  %v4231 = vmul.f32 %v4139, %v3619
  %v4232 = vmul.f32 %v4142, %v3620
  %v4233 = vmul.f32 %v4147, %v3621
  %v4234 = vmul.f32 %v4150, %v3622
  %v4235 = vmul.f32 %v4155, %v3623
  %v4236 = vmul.f32 %v4158, %v3624
  %v4237 = vmul.f32 %v4163, %v3625
  %v4238 = vmul.f32 %v4166, %v3626
  %v4239 = vmul.f32 %v4171, %v3627
  %v4240 = vmul.f32 %v4174, %v3628
  %v4241 = vpack.c.bf16 %v4178, %v4177
  %v4242 = vpack.c.bf16 %v4180, %v4179
  %v4243 = vpack.c.bf16 %v4182, %v4181
  %v4244 = vpack.c.bf16 %v4184, %v4183
  %v4245 = vpack.c.bf16 %v4186, %v4185
  %v4246 = vpack.c.bf16 %v4188, %v4187
  %v4247 = vpack.c.bf16 %v4190, %v4189
  %v4248 = vpack.c.bf16 %v4192, %v4191
  %v4249 = vpack.c.bf16 %v4194, %v4193
  %v4250 = vpack.c.bf16 %v4196, %v4195
  %v4251 = vpack.c.bf16 %v4198, %v4197
  %v4252 = vpack.c.bf16 %v4200, %v4199
  %v4253 = vpack.c.bf16 %v4202, %v4201
  %v4254 = vpack.c.bf16 %v4204, %v4203
  %v4255 = vpack.c.bf16 %v4206, %v4205
  %v4256 = vpack.c.bf16 %v4208, %v4207
  %v4257 = vpack.c.bf16 %v4210, %v4209
  %v4258 = vpack.c.bf16 %v4212, %v4211
  %v4259 = vpack.c.bf16 %v4214, %v4213
  %v4260 = vpack.c.bf16 %v4216, %v4215
  %v4261 = vpack.c.bf16 %v4218, %v4217
  %v4262 = vpack.c.bf16 %v4220, %v4219
  %v4263 = vpack.c.bf16 %v4222, %v4221
  %v4264 = vpack.c.bf16 %v4224, %v4223
  %v4265 = vpack.c.bf16 %v4226, %v4225
  %v4266 = vpack.c.bf16 %v4228, %v4227
  %v4267 = vpack.c.bf16 %v4230, %v4229
  %v4268 = vpack.c.bf16 %v4232, %v4231
  %v4269 = vpack.c.bf16 %v4234, %v4233
  %v4270 = vpack.c.bf16 %v4236, %v4235
  %v4271 = vpack.c.bf16 %v4238, %v4237
  %v4272 = vpack.c.bf16 %v4240, %v4239
  %s4273 = scalar_lea.vmem %s2, 16
  %v4274 = vld [vmem:[%s4273] sm:$0xf]
  %v4275 = vld [vmem:[%s4273 + $0x4] sm:$0xf]
  %v4276 = vld [vmem:[%s4273 + $0x8] sm:$0xf]
  %v4277 = vld [vmem:[%s4273 + $0xc] sm:$0xf]
  %v4282 = vunpack.c.l.b16 %v4274
  %v4283 = vunpack.c.l.b16 %v4275
  %v4284 = vunpack.c.l.b16 %v4276
  %v4285 = vunpack.c.l.b16 %v4277
  %v4286 = vpack.c.b16 %v4283, %v4282
  %v4287 = vpack.c.b16 %v4285, %v4284
  %v4291 = vsel %vm724, %v4241, 0
  %v4294 = vsel %vm724, %v4242, 0
  %v4297 = vsel %vm724, %v4243, 0
  %v4300 = vsel %vm724, %v4244, 0
  %v4303 = vsel %vm724, %v4245, 0
  %v4306 = vsel %vm724, %v4246, 0
  %v4309 = vsel %vm724, %v4247, 0
  %v4312 = vsel %vm724, %v4248, 0
  %v4315 = vsel %vm724, %v4249, 0
  %v4318 = vsel %vm724, %v4250, 0
  %v4321 = vsel %vm724, %v4251, 0
  %v4324 = vsel %vm724, %v4252, 0
  %v4327 = vsel %vm724, %v4253, 0
  %v4330 = vsel %vm724, %v4254, 0
  %v4333 = vsel %vm724, %v4255, 0
  %v4336 = vsel %vm724, %v4256, 0
  %v4339 = vsel %vm724, %v4257, 0
  %v4342 = vsel %vm724, %v4258, 0
  %v4345 = vsel %vm724, %v4259, 0
  %v4348 = vsel %vm724, %v4260, 0
  %v4351 = vsel %vm724, %v4261, 0
  %v4354 = vsel %vm724, %v4262, 0
  %v4357 = vsel %vm724, %v4263, 0
  %v4360 = vsel %vm724, %v4264, 0
  %v4363 = vsel %vm724, %v4265, 0
  %v4366 = vsel %vm724, %v4266, 0
  %v4369 = vsel %vm724, %v4267, 0
  %v4372 = vsel %vm724, %v4268, 0
  %v4375 = vsel %vm724, %v4269, 0
  %v4378 = vsel %vm724, %v4270, 0
  %v4381 = vsel %vm724, %v4271, 0
  %v4384 = vsel %vm724, %v4272, 0
  %4386 = vmatprep.subr.bf16.mxu0 0
  %4387 = vmatpush1.bf16.msra.mxu0 %v4286
  %4388 = vmatprep.subr.bf16.mxu0 0
  %4389 = vmatpush1.bf16.msra.mxu0 %v4287
  %4390 = vmatprep.subr.bf16.mxu0 0
  %4391 = vmatpush1.bf16.msra.mxu0 0
  %4392 = vmatprep.subr.bf16.mxu0 0
  %4393 = vmatpush1.bf16.msra.mxu0 0
  %4394 = vmatprep.subr.bf16.mxu0 0
  %4395 = vmatpush1.bf16.msra.mxu0 0
  %4396 = vmatprep.subr.bf16.mxu0 0
  %4397 = vmatpush1.bf16.msra.mxu0 0
  %4398 = vmatprep.subr.bf16.mxu0 0
  %4399 = vmatpush1.bf16.msra.mxu0 0
  %4400 = vmatprep.subr.bf16.mxu0 0
  %4401 = vmatpush1.bf16.msra.mxu0 0
  %4402 = vmatprep.subr.bf16.mxu0 0
  %4403 = vmatpush1.bf16.msra.mxu0 0
  %4404 = vmatprep.subr.bf16.mxu0 0
  %4405 = vmatpush1.bf16.msra.mxu0 0
  %4406 = vmatprep.subr.bf16.mxu0 0
  %4407 = vmatpush1.bf16.msra.mxu0 0
  %4408 = vmatprep.subr.bf16.mxu0 0
  %4409 = vmatpush1.bf16.msra.mxu0 0
  %4410 = vmatprep.subr.bf16.mxu0 0
  %4411 = vmatpush1.bf16.msra.mxu0 0
  %4412 = vmatprep.subr.bf16.mxu0 0
  %4413 = vmatpush1.bf16.msra.mxu0 0
  %4414 = vmatprep.subr.bf16.mxu0 0
  %4415 = vmatpush1.bf16.msra.mxu0 0
  %4416 = vmatprep.subr.bf16.mxu0 0
  %4417 = vmatpush1.bf16.msra.mxu0 0
  %4418 = vmatprep.mubr.bf16.mxu0 0
  %4419 = vmatmul.mubr.bf16.gmra.mrb[0].mxu0 %v4291
  %v4420 = vpop.f32.mrb[0].mxu0
  %v4421 = vadd.f32 0.0, %v4420
  %v4422 = vpop.f32.mrb[0].mxu0
  %v4423 = vpop.f32.mrb[0].mxu0
  %v4424 = vadd.f32 0.0, %v4423
  %v4425 = vpop.f32.mrb[0].mxu0
  %4426 = vmatprep.mubr.bf16.mxu0 0
  %4427 = vmatmul.mubr.bf16.gmra.mrb[0].mxu0 %v4294
  %v4428 = vpop.f32.mrb[0].mxu0
  %v4429 = vadd.f32 0.0, %v4428
  %v4430 = vpop.f32.mrb[0].mxu0
  %v4431 = vpop.f32.mrb[0].mxu0
  %v4432 = vadd.f32 0.0, %v4431
  %v4433 = vpop.f32.mrb[0].mxu0
  %4434 = vmatprep.mubr.bf16.mxu0 0
  %4435 = vmatmul.mubr.bf16.gmra.mrb[0].mxu0 %v4297
  %v4436 = vpop.f32.mrb[0].mxu0
  %v4437 = vadd.f32 0.0, %v4436
  %v4438 = vpop.f32.mrb[0].mxu0
  %v4439 = vpop.f32.mrb[0].mxu0
  %v4440 = vadd.f32 0.0, %v4439
  %v4441 = vpop.f32.mrb[0].mxu0
  %4442 = vmatprep.mubr.bf16.mxu0 0
  %4443 = vmatmul.mubr.bf16.gmra.mrb[0].mxu0 %v4300
  %v4444 = vpop.f32.mrb[0].mxu0
  %v4445 = vadd.f32 0.0, %v4444
  %v4446 = vpop.f32.mrb[0].mxu0
  %v4447 = vpop.f32.mrb[0].mxu0
  %v4448 = vadd.f32 0.0, %v4447
  %v4449 = vpop.f32.mrb[0].mxu0
  %4450 = vmatprep.mubr.bf16.mxu0 0
  %4451 = vmatmul.mubr.bf16.gmra.mrb[0].mxu0 %v4303
  %v4452 = vpop.f32.mrb[0].mxu0
  %v4453 = vadd.f32 0.0, %v4452
  %v4454 = vpop.f32.mrb[0].mxu0
  %v4455 = vpop.f32.mrb[0].mxu0
  %v4456 = vadd.f32 0.0, %v4455
  %v4457 = vpop.f32.mrb[0].mxu0
  %4458 = vmatprep.mubr.bf16.mxu0 0
  %4459 = vmatmul.mubr.bf16.gmra.mrb[0].mxu0 %v4306
  %v4460 = vpop.f32.mrb[0].mxu0
  %v4461 = vadd.f32 0.0, %v4460
  %v4462 = vpop.f32.mrb[0].mxu0
  %v4463 = vpop.f32.mrb[0].mxu0
  %v4464 = vadd.f32 0.0, %v4463
  %v4465 = vpop.f32.mrb[0].mxu0
  %4466 = vmatprep.mubr.bf16.mxu0 0
  %4467 = vmatmul.mubr.bf16.gmra.mrb[0].mxu0 %v4309
  %v4468 = vpop.f32.mrb[0].mxu0
  %v4469 = vadd.f32 0.0, %v4468
  %v4470 = vpop.f32.mrb[0].mxu0
  %v4471 = vpop.f32.mrb[0].mxu0
  %v4472 = vadd.f32 0.0, %v4471
  %v4473 = vpop.f32.mrb[0].mxu0
  %4474 = vmatprep.mubr.bf16.mxu0 0
  %4475 = vmatmul.mubr.bf16.gmra.mrb[0].mxu0 %v4312
  %v4476 = vpop.f32.mrb[0].mxu0
  %v4477 = vadd.f32 0.0, %v4476
  %v4478 = vpop.f32.mrb[0].mxu0
  %v4479 = vpop.f32.mrb[0].mxu0
  %v4480 = vadd.f32 0.0, %v4479
  %v4481 = vpop.f32.mrb[0].mxu0
  %4482 = vmatprep.mubr.bf16.mxu0 0
  %4483 = vmatmul.mubr.bf16.gmra.mrb[0].mxu0 %v4315
  %v4484 = vpop.f32.mrb[0].mxu0
  %v4485 = vadd.f32 0.0, %v4484
  %v4486 = vpop.f32.mrb[0].mxu0
  %v4487 = vpop.f32.mrb[0].mxu0
  %v4488 = vadd.f32 0.0, %v4487
  %v4489 = vpop.f32.mrb[0].mxu0
  %4490 = vmatprep.mubr.bf16.mxu0 0
  %4491 = vmatmul.mubr.bf16.gmra.mrb[0].mxu0 %v4318
  %v4492 = vpop.f32.mrb[0].mxu0
  %v4493 = vadd.f32 0.0, %v4492
  %v4494 = vpop.f32.mrb[0].mxu0
  %v4495 = vpop.f32.mrb[0].mxu0
  %v4496 = vadd.f32 0.0, %v4495
  %v4497 = vpop.f32.mrb[0].mxu0
  %4498 = vmatprep.mubr.bf16.mxu0 0
  %4499 = vmatmul.mubr.bf16.gmra.mrb[0].mxu0 %v4321
  %v4500 = vpop.f32.mrb[0].mxu0
  %v4501 = vadd.f32 0.0, %v4500
  %v4502 = vpop.f32.mrb[0].mxu0
  %v4503 = vpop.f32.mrb[0].mxu0
  %v4504 = vadd.f32 0.0, %v4503
  %v4505 = vpop.f32.mrb[0].mxu0
  %4506 = vmatprep.mubr.bf16.mxu0 0
  %4507 = vmatmul.mubr.bf16.gmra.mrb[0].mxu0 %v4324
  %v4508 = vpop.f32.mrb[0].mxu0
  %v4509 = vadd.f32 0.0, %v4508
  %v4510 = vpop.f32.mrb[0].mxu0
  %v4511 = vpop.f32.mrb[0].mxu0
  %v4512 = vadd.f32 0.0, %v4511
  %v4513 = vpop.f32.mrb[0].mxu0
  %4514 = vmatprep.mubr.bf16.mxu0 0
  %4515 = vmatmul.mubr.bf16.gmra.mrb[0].mxu0 %v4327
  %v4516 = vpop.f32.mrb[0].mxu0
  %v4517 = vadd.f32 0.0, %v4516
  %v4518 = vpop.f32.mrb[0].mxu0
  %v4519 = vpop.f32.mrb[0].mxu0
  %v4520 = vadd.f32 0.0, %v4519
  %v4521 = vpop.f32.mrb[0].mxu0
  %4522 = vmatprep.mubr.bf16.mxu0 0
  %4523 = vmatmul.mubr.bf16.gmra.mrb[0].mxu0 %v4330
  %v4524 = vpop.f32.mrb[0].mxu0
  %v4525 = vadd.f32 0.0, %v4524
  %v4526 = vpop.f32.mrb[0].mxu0
  %v4527 = vpop.f32.mrb[0].mxu0
  %v4528 = vadd.f32 0.0, %v4527
  %v4529 = vpop.f32.mrb[0].mxu0
  %4530 = vmatprep.mubr.bf16.mxu0 0
  %4531 = vmatmul.mubr.bf16.gmra.mrb[0].mxu0 %v4333
  %v4532 = vpop.f32.mrb[0].mxu0
  %v4533 = vadd.f32 0.0, %v4532
  %v4534 = vpop.f32.mrb[0].mxu0
  %v4535 = vpop.f32.mrb[0].mxu0
  %v4536 = vadd.f32 0.0, %v4535
  %v4537 = vpop.f32.mrb[0].mxu0
  %4538 = vmatprep.mubr.bf16.mxu0 0
  %4539 = vmatmul.mubr.bf16.gmra.mrb[0].mxu0 %v4336
  %v4540 = vpop.f32.mrb[0].mxu0
  %v4541 = vadd.f32 0.0, %v4540
  %v4542 = vpop.f32.mrb[0].mxu0
  %v4543 = vpop.f32.mrb[0].mxu0
  %v4544 = vadd.f32 0.0, %v4543
  %v4545 = vpop.f32.mrb[0].mxu0
  %4546 = vmatprep.mubr.bf16.mxu0 0
  %4547 = vmatmul.mubr.bf16.gmra.mrb[0].mxu0 %v4339
  %v4548 = vpop.f32.mrb[0].mxu0
  %v4549 = vadd.f32 0.0, %v4548
  %v4550 = vpop.f32.mrb[0].mxu0
  %v4551 = vpop.f32.mrb[0].mxu0
  %v4552 = vadd.f32 0.0, %v4551
  %v4553 = vpop.f32.mrb[0].mxu0
  %4554 = vmatprep.mubr.bf16.mxu0 0
  %4555 = vmatmul.mubr.bf16.gmra.mrb[0].mxu0 %v4342
  %v4556 = vpop.f32.mrb[0].mxu0
  %v4557 = vadd.f32 0.0, %v4556
  %v4558 = vpop.f32.mrb[0].mxu0
  %v4559 = vpop.f32.mrb[0].mxu0
  %v4560 = vadd.f32 0.0, %v4559
  %v4561 = vpop.f32.mrb[0].mxu0
  %4562 = vmatprep.mubr.bf16.mxu0 0
  %4563 = vmatmul.mubr.bf16.gmra.mrb[0].mxu0 %v4345
  %v4564 = vpop.f32.mrb[0].mxu0
  %v4565 = vadd.f32 0.0, %v4564
  %v4566 = vpop.f32.mrb[0].mxu0
  %v4567 = vpop.f32.mrb[0].mxu0
  %v4568 = vadd.f32 0.0, %v4567
  %v4569 = vpop.f32.mrb[0].mxu0
  %4570 = vmatprep.mubr.bf16.mxu0 0
  %4571 = vmatmul.mubr.bf16.gmra.mrb[0].mxu0 %v4348
  %v4572 = vpop.f32.mrb[0].mxu0
  %v4573 = vadd.f32 0.0, %v4572
  %v4574 = vpop.f32.mrb[0].mxu0
  %v4575 = vpop.f32.mrb[0].mxu0
  %v4576 = vadd.f32 0.0, %v4575
  %v4577 = vpop.f32.mrb[0].mxu0
  %4578 = vmatprep.mubr.bf16.mxu0 0
  %4579 = vmatmul.mubr.bf16.gmra.mrb[0].mxu0 %v4351
  %v4580 = vpop.f32.mrb[0].mxu0
  %v4581 = vadd.f32 0.0, %v4580
  %v4582 = vpop.f32.mrb[0].mxu0
  %v4583 = vpop.f32.mrb[0].mxu0
  %v4584 = vadd.f32 0.0, %v4583
  %v4585 = vpop.f32.mrb[0].mxu0
  %4586 = vmatprep.mubr.bf16.mxu0 0
  %4587 = vmatmul.mubr.bf16.gmra.mrb[0].mxu0 %v4354
  %v4588 = vpop.f32.mrb[0].mxu0
  %v4589 = vadd.f32 0.0, %v4588
  %v4590 = vpop.f32.mrb[0].mxu0
  %v4591 = vpop.f32.mrb[0].mxu0
  %v4592 = vadd.f32 0.0, %v4591
  %v4593 = vpop.f32.mrb[0].mxu0
  %4594 = vmatprep.mubr.bf16.mxu0 0
  %4595 = vmatmul.mubr.bf16.gmra.mrb[0].mxu0 %v4357
  %v4596 = vpop.f32.mrb[0].mxu0
  %v4597 = vadd.f32 0.0, %v4596
  %v4598 = vpop.f32.mrb[0].mxu0
  %v4599 = vpop.f32.mrb[0].mxu0
  %v4600 = vadd.f32 0.0, %v4599
  %v4601 = vpop.f32.mrb[0].mxu0
  %4602 = vmatprep.mubr.bf16.mxu0 0
  %4603 = vmatmul.mubr.bf16.gmra.mrb[0].mxu0 %v4360
  %v4604 = vpop.f32.mrb[0].mxu0
  %v4605 = vadd.f32 0.0, %v4604
  %v4606 = vpop.f32.mrb[0].mxu0
  %v4607 = vpop.f32.mrb[0].mxu0
  %v4608 = vadd.f32 0.0, %v4607
  %v4609 = vpop.f32.mrb[0].mxu0
  %4610 = vmatprep.mubr.bf16.mxu0 0
  %4611 = vmatmul.mubr.bf16.gmra.mrb[0].mxu0 %v4363
  %v4612 = vpop.f32.mrb[0].mxu0
  %v4613 = vadd.f32 0.0, %v4612
  %v4614 = vpop.f32.mrb[0].mxu0
  %v4615 = vpop.f32.mrb[0].mxu0
  %v4616 = vadd.f32 0.0, %v4615
  %v4617 = vpop.f32.mrb[0].mxu0
  %4618 = vmatprep.mubr.bf16.mxu0 0
  %4619 = vmatmul.mubr.bf16.gmra.mrb[0].mxu0 %v4366
  %v4620 = vpop.f32.mrb[0].mxu0
  %v4621 = vadd.f32 0.0, %v4620
  %v4622 = vpop.f32.mrb[0].mxu0
  %v4623 = vpop.f32.mrb[0].mxu0
  %v4624 = vadd.f32 0.0, %v4623
  %v4625 = vpop.f32.mrb[0].mxu0
  %4626 = vmatprep.mubr.bf16.mxu0 0
  %4627 = vmatmul.mubr.bf16.gmra.mrb[0].mxu0 %v4369
  %v4628 = vpop.f32.mrb[0].mxu0
  %v4629 = vadd.f32 0.0, %v4628
  %v4630 = vpop.f32.mrb[0].mxu0
  %v4631 = vpop.f32.mrb[0].mxu0
  %v4632 = vadd.f32 0.0, %v4631
  %v4633 = vpop.f32.mrb[0].mxu0
  %4634 = vmatprep.mubr.bf16.mxu0 0
  %4635 = vmatmul.mubr.bf16.gmra.mrb[0].mxu0 %v4372
  %v4636 = vpop.f32.mrb[0].mxu0
  %v4637 = vadd.f32 0.0, %v4636
  %v4638 = vpop.f32.mrb[0].mxu0
  %v4639 = vpop.f32.mrb[0].mxu0
  %v4640 = vadd.f32 0.0, %v4639
  %v4641 = vpop.f32.mrb[0].mxu0
  %4642 = vmatprep.mubr.bf16.mxu0 0
  %4643 = vmatmul.mubr.bf16.gmra.mrb[0].mxu0 %v4375
  %v4644 = vpop.f32.mrb[0].mxu0
  %v4645 = vadd.f32 0.0, %v4644
  %v4646 = vpop.f32.mrb[0].mxu0
  %v4647 = vpop.f32.mrb[0].mxu0
  %v4648 = vadd.f32 0.0, %v4647
  %v4649 = vpop.f32.mrb[0].mxu0
  %4650 = vmatprep.mubr.bf16.mxu0 0
  %4651 = vmatmul.mubr.bf16.gmra.mrb[0].mxu0 %v4378
  %v4652 = vpop.f32.mrb[0].mxu0
  %v4653 = vadd.f32 0.0, %v4652
  %v4654 = vpop.f32.mrb[0].mxu0
  %v4655 = vpop.f32.mrb[0].mxu0
  %v4656 = vadd.f32 0.0, %v4655
  %v4657 = vpop.f32.mrb[0].mxu0
  %4658 = vmatprep.mubr.bf16.mxu0 0
  %4659 = vmatmul.mubr.bf16.gmra.mrb[0].mxu0 %v4381
  %v4660 = vpop.f32.mrb[0].mxu0
  %v4661 = vadd.f32 0.0, %v4660
  %v4662 = vpop.f32.mrb[0].mxu0
  %v4663 = vpop.f32.mrb[0].mxu0
  %v4664 = vadd.f32 0.0, %v4663
  %v4665 = vpop.f32.mrb[0].mxu0
  %4666 = vmatprep.mubr.bf16.mxu0 0
  %4667 = vmatmul.mubr.bf16.gmra.mrb[0].mxu0 %v4384
  %v4668 = vpop.f32.mrb[0].mxu0
  %v4669 = vadd.f32 0.0, %v4668
  %v4670 = vpop.f32.mrb[0].mxu0
  %v4671 = vpop.f32.mrb[0].mxu0
  %v4672 = vadd.f32 0.0, %v4671
  %v4673 = vpop.f32.mrb[0].mxu0
  %4674 = vdwg.mxu0
  %v4679 = vunpack.c.l.b16 %v2405
  %v4680 = vunpack.c.l.b16 %v2406
  %v4681 = vunpack.c.l.b16 %v2407
  %v4682 = vunpack.c.l.b16 %v2408
  %v4683 = vpack.c.b16 %v4680, %v4679
  %v4684 = vpack.c.b16 %v4682, %v4681
  %v4688 = vsel %vm724, %v2373, 0
  %v4691 = vsel %vm724, %v2374, 0
  %v4694 = vsel %vm724, %v2375, 0
  %v4697 = vsel %vm724, %v2376, 0
  %v4700 = vsel %vm724, %v2377, 0
  %v4703 = vsel %vm724, %v2378, 0
  %v4706 = vsel %vm724, %v2379, 0
  %v4709 = vsel %vm724, %v2380, 0
  %v4712 = vsel %vm724, %v2381, 0
  %v4715 = vsel %vm724, %v2382, 0
  %v4718 = vsel %vm724, %v2383, 0
  %v4721 = vsel %vm724, %v2384, 0
  %v4724 = vsel %vm724, %v2385, 0
  %v4727 = vsel %vm724, %v2386, 0
  %v4730 = vsel %vm724, %v2387, 0
  %v4733 = vsel %vm724, %v2388, 0
  %v4736 = vsel %vm724, %v2389, 0
  %v4739 = vsel %vm724, %v2390, 0
  %v4742 = vsel %vm724, %v2391, 0
  %v4745 = vsel %vm724, %v2392, 0
  %v4748 = vsel %vm724, %v2393, 0
  %v4751 = vsel %vm724, %v2394, 0
  %v4754 = vsel %vm724, %v2395, 0
  %v4757 = vsel %vm724, %v2396, 0
  %v4760 = vsel %vm724, %v2397, 0
  %v4763 = vsel %vm724, %v2398, 0
  %v4766 = vsel %vm724, %v2399, 0
  %v4769 = vsel %vm724, %v2400, 0
  %v4772 = vsel %vm724, %v2401, 0
  %v4775 = vsel %vm724, %v2402, 0
  %v4778 = vsel %vm724, %v2403, 0
  %v4781 = vsel %vm724, %v2404, 0
  %4783 = vmatprep.subr.bf16.mxu0 0
  %4784 = vmatpush1.bf16.msra.mxu0 %v4683
  %4785 = vmatprep.subr.bf16.mxu0 0
  %4786 = vmatpush1.bf16.msra.mxu0 %v4684
  %4787 = vmatprep.subr.bf16.mxu0 0
  %4788 = vmatpush1.bf16.msra.mxu0 0
  %4789 = vmatprep.subr.bf16.mxu0 0
  %4790 = vmatpush1.bf16.msra.mxu0 0
  %4791 = vmatprep.subr.bf16.mxu0 0
  %4792 = vmatpush1.bf16.msra.mxu0 0
  %4793 = vmatprep.subr.bf16.mxu0 0
  %4794 = vmatpush1.bf16.msra.mxu0 0
  %4795 = vmatprep.subr.bf16.mxu0 0
  %4796 = vmatpush1.bf16.msra.mxu0 0
  %4797 = vmatprep.subr.bf16.mxu0 0
  %4798 = vmatpush1.bf16.msra.mxu0 0
  %4799 = vmatprep.subr.bf16.mxu0 0
  %4800 = vmatpush1.bf16.msra.mxu0 0
  %4801 = vmatprep.subr.bf16.mxu0 0
  %4802 = vmatpush1.bf16.msra.mxu0 0
  %4803 = vmatprep.subr.bf16.mxu0 0
  %4804 = vmatpush1.bf16.msra.mxu0 0
  %4805 = vmatprep.subr.bf16.mxu0 0
  %4806 = vmatpush1.bf16.msra.mxu0 0
  %4807 = vmatprep.subr.bf16.mxu0 0
  %4808 = vmatpush1.bf16.msra.mxu0 0
  %4809 = vmatprep.subr.bf16.mxu0 0
  %4810 = vmatpush1.bf16.msra.mxu0 0
  %4811 = vmatprep.subr.bf16.mxu0 0
  %4812 = vmatpush1.bf16.msra.mxu0 0
  %4813 = vmatprep.subr.bf16.mxu0 0
  %4814 = vmatpush1.bf16.msra.mxu0 0
  %4815 = vmatprep.mubr.bf16.mxu0 0
  %4816 = vmatmul.mubr.bf16.gmra.mrb[0].mxu0 %v4688
  %v4817 = vpop.f32.mrb[0].mxu0
  %v4818 = vadd.f32 %v4421, %v4817
  %v4819 = vpop.f32.mrb[0].mxu0
  %v4820 = vpop.f32.mrb[0].mxu0
  %v4821 = vadd.f32 %v4424, %v4820
  %v4822 = vpop.f32.mrb[0].mxu0
  %4823 = vmatprep.mubr.bf16.mxu0 0
  %4824 = vmatmul.mubr.bf16.gmra.mrb[0].mxu0 %v4691
  %v4825 = vpop.f32.mrb[0].mxu0
  %v4826 = vadd.f32 %v4429, %v4825
  %v4827 = vpop.f32.mrb[0].mxu0
  %v4828 = vpop.f32.mrb[0].mxu0
  %v4829 = vadd.f32 %v4432, %v4828
  %v4830 = vpop.f32.mrb[0].mxu0
  %4831 = vmatprep.mubr.bf16.mxu0 0
  %4832 = vmatmul.mubr.bf16.gmra.mrb[0].mxu0 %v4694
  %v4833 = vpop.f32.mrb[0].mxu0
  %v4834 = vadd.f32 %v4437, %v4833
  %v4835 = vpop.f32.mrb[0].mxu0
  %v4836 = vpop.f32.mrb[0].mxu0
  %v4837 = vadd.f32 %v4440, %v4836
  %v4838 = vpop.f32.mrb[0].mxu0
  %4839 = vmatprep.mubr.bf16.mxu0 0
  %4840 = vmatmul.mubr.bf16.gmra.mrb[0].mxu0 %v4697
  %v4841 = vpop.f32.mrb[0].mxu0
  %v4842 = vadd.f32 %v4445, %v4841
  %v4843 = vpop.f32.mrb[0].mxu0
  %v4844 = vpop.f32.mrb[0].mxu0
  %v4845 = vadd.f32 %v4448, %v4844
  %v4846 = vpop.f32.mrb[0].mxu0
  %4847 = vmatprep.mubr.bf16.mxu0 0
  %4848 = vmatmul.mubr.bf16.gmra.mrb[0].mxu0 %v4700
  %v4849 = vpop.f32.mrb[0].mxu0
  %v4850 = vadd.f32 %v4453, %v4849
  %v4851 = vpop.f32.mrb[0].mxu0
  %v4852 = vpop.f32.mrb[0].mxu0
  %v4853 = vadd.f32 %v4456, %v4852
  %v4854 = vpop.f32.mrb[0].mxu0
  %4855 = vmatprep.mubr.bf16.mxu0 0
  %4856 = vmatmul.mubr.bf16.gmra.mrb[0].mxu0 %v4703
  %v4857 = vpop.f32.mrb[0].mxu0
  %v4858 = vadd.f32 %v4461, %v4857
  %v4859 = vpop.f32.mrb[0].mxu0
  %v4860 = vpop.f32.mrb[0].mxu0
  %v4861 = vadd.f32 %v4464, %v4860
  %v4862 = vpop.f32.mrb[0].mxu0
  %4863 = vmatprep.mubr.bf16.mxu0 0
  %4864 = vmatmul.mubr.bf16.gmra.mrb[0].mxu0 %v4706
  %v4865 = vpop.f32.mrb[0].mxu0
  %v4866 = vadd.f32 %v4469, %v4865
  %v4867 = vpop.f32.mrb[0].mxu0
  %v4868 = vpop.f32.mrb[0].mxu0
  %v4869 = vadd.f32 %v4472, %v4868
  %v4870 = vpop.f32.mrb[0].mxu0
  %4871 = vmatprep.mubr.bf16.mxu0 0
  %4872 = vmatmul.mubr.bf16.gmra.mrb[0].mxu0 %v4709
  %v4873 = vpop.f32.mrb[0].mxu0
  %v4874 = vadd.f32 %v4477, %v4873
  %v4875 = vpop.f32.mrb[0].mxu0
  %v4876 = vpop.f32.mrb[0].mxu0
  %v4877 = vadd.f32 %v4480, %v4876
  %v4878 = vpop.f32.mrb[0].mxu0
  %4879 = vmatprep.mubr.bf16.mxu0 0
  %4880 = vmatmul.mubr.bf16.gmra.mrb[0].mxu0 %v4712
  %v4881 = vpop.f32.mrb[0].mxu0
  %v4882 = vadd.f32 %v4485, %v4881
  %v4883 = vpop.f32.mrb[0].mxu0
  %v4884 = vpop.f32.mrb[0].mxu0
  %v4885 = vadd.f32 %v4488, %v4884
  %v4886 = vpop.f32.mrb[0].mxu0
  %4887 = vmatprep.mubr.bf16.mxu0 0
  %4888 = vmatmul.mubr.bf16.gmra.mrb[0].mxu0 %v4715
  %v4889 = vpop.f32.mrb[0].mxu0
  %v4890 = vadd.f32 %v4493, %v4889
  %v4891 = vpop.f32.mrb[0].mxu0
  %v4892 = vpop.f32.mrb[0].mxu0
  %v4893 = vadd.f32 %v4496, %v4892
  %v4894 = vpop.f32.mrb[0].mxu0
  %4895 = vmatprep.mubr.bf16.mxu0 0
  %4896 = vmatmul.mubr.bf16.gmra.mrb[0].mxu0 %v4718
  %v4897 = vpop.f32.mrb[0].mxu0
  %v4898 = vadd.f32 %v4501, %v4897
  %v4899 = vpop.f32.mrb[0].mxu0
  %v4900 = vpop.f32.mrb[0].mxu0
  %v4901 = vadd.f32 %v4504, %v4900
  %v4902 = vpop.f32.mrb[0].mxu0
  %4903 = vmatprep.mubr.bf16.mxu0 0
  %4904 = vmatmul.mubr.bf16.gmra.mrb[0].mxu0 %v4721
  %v4905 = vpop.f32.mrb[0].mxu0
  %v4906 = vadd.f32 %v4509, %v4905
  %v4907 = vpop.f32.mrb[0].mxu0
  %v4908 = vpop.f32.mrb[0].mxu0
  %v4909 = vadd.f32 %v4512, %v4908
  %v4910 = vpop.f32.mrb[0].mxu0
  %4911 = vmatprep.mubr.bf16.mxu0 0
  %4912 = vmatmul.mubr.bf16.gmra.mrb[0].mxu0 %v4724
  %v4913 = vpop.f32.mrb[0].mxu0
  %v4914 = vadd.f32 %v4517, %v4913
  %v4915 = vpop.f32.mrb[0].mxu0
  %v4916 = vpop.f32.mrb[0].mxu0
  %v4917 = vadd.f32 %v4520, %v4916
  %v4918 = vpop.f32.mrb[0].mxu0
  %4919 = vmatprep.mubr.bf16.mxu0 0
  %4920 = vmatmul.mubr.bf16.gmra.mrb[0].mxu0 %v4727
  %v4921 = vpop.f32.mrb[0].mxu0
  %v4922 = vadd.f32 %v4525, %v4921
  %v4923 = vpop.f32.mrb[0].mxu0
  %v4924 = vpop.f32.mrb[0].mxu0
  %v4925 = vadd.f32 %v4528, %v4924
  %v4926 = vpop.f32.mrb[0].mxu0
  %4927 = vmatprep.mubr.bf16.mxu0 0
  %4928 = vmatmul.mubr.bf16.gmra.mrb[0].mxu0 %v4730
  %v4929 = vpop.f32.mrb[0].mxu0
  %v4930 = vadd.f32 %v4533, %v4929
  %v4931 = vpop.f32.mrb[0].mxu0
  %v4932 = vpop.f32.mrb[0].mxu0
  %v4933 = vadd.f32 %v4536, %v4932
  %v4934 = vpop.f32.mrb[0].mxu0
  %4935 = vmatprep.mubr.bf16.mxu0 0
  %4936 = vmatmul.mubr.bf16.gmra.mrb[0].mxu0 %v4733
  %v4937 = vpop.f32.mrb[0].mxu0
  %v4938 = vadd.f32 %v4541, %v4937
  %v4939 = vpop.f32.mrb[0].mxu0
  %v4940 = vpop.f32.mrb[0].mxu0
  %v4941 = vadd.f32 %v4544, %v4940
  %v4942 = vpop.f32.mrb[0].mxu0
  %4943 = vmatprep.mubr.bf16.mxu0 0
  %4944 = vmatmul.mubr.bf16.gmra.mrb[0].mxu0 %v4736
  %v4945 = vpop.f32.mrb[0].mxu0
  %v4946 = vadd.f32 %v4549, %v4945
  %v4947 = vpop.f32.mrb[0].mxu0
  %v4948 = vpop.f32.mrb[0].mxu0
  %v4949 = vadd.f32 %v4552, %v4948
  %v4950 = vpop.f32.mrb[0].mxu0
  %4951 = vmatprep.mubr.bf16.mxu0 0
  %4952 = vmatmul.mubr.bf16.gmra.mrb[0].mxu0 %v4739
  %v4953 = vpop.f32.mrb[0].mxu0
  %v4954 = vadd.f32 %v4557, %v4953
  %v4955 = vpop.f32.mrb[0].mxu0
  %v4956 = vpop.f32.mrb[0].mxu0
  %v4957 = vadd.f32 %v4560, %v4956
  %v4958 = vpop.f32.mrb[0].mxu0
  %4959 = vmatprep.mubr.bf16.mxu0 0
  %4960 = vmatmul.mubr.bf16.gmra.mrb[0].mxu0 %v4742
  %v4961 = vpop.f32.mrb[0].mxu0
  %v4962 = vadd.f32 %v4565, %v4961
  %v4963 = vpop.f32.mrb[0].mxu0
  %v4964 = vpop.f32.mrb[0].mxu0
  %v4965 = vadd.f32 %v4568, %v4964
  %v4966 = vpop.f32.mrb[0].mxu0
  %4967 = vmatprep.mubr.bf16.mxu0 0
  %4968 = vmatmul.mubr.bf16.gmra.mrb[0].mxu0 %v4745
  %v4969 = vpop.f32.mrb[0].mxu0
  %v4970 = vadd.f32 %v4573, %v4969
  %v4971 = vpop.f32.mrb[0].mxu0
  %v4972 = vpop.f32.mrb[0].mxu0
  %v4973 = vadd.f32 %v4576, %v4972
  %v4974 = vpop.f32.mrb[0].mxu0
  %4975 = vmatprep.mubr.bf16.mxu0 0
  %4976 = vmatmul.mubr.bf16.gmra.mrb[0].mxu0 %v4748
  %v4977 = vpop.f32.mrb[0].mxu0
  %v4978 = vadd.f32 %v4581, %v4977
  %v4979 = vpop.f32.mrb[0].mxu0
  %v4980 = vpop.f32.mrb[0].mxu0
  %v4981 = vadd.f32 %v4584, %v4980
  %v4982 = vpop.f32.mrb[0].mxu0
  %4983 = vmatprep.mubr.bf16.mxu0 0
  %4984 = vmatmul.mubr.bf16.gmra.mrb[0].mxu0 %v4751
  %v4985 = vpop.f32.mrb[0].mxu0
  %v4986 = vadd.f32 %v4589, %v4985
  %v4987 = vpop.f32.mrb[0].mxu0
  %v4988 = vpop.f32.mrb[0].mxu0
  %v4989 = vadd.f32 %v4592, %v4988
  %v4990 = vpop.f32.mrb[0].mxu0
  %4991 = vmatprep.mubr.bf16.mxu0 0
  %4992 = vmatmul.mubr.bf16.gmra.mrb[0].mxu0 %v4754
  %v4993 = vpop.f32.mrb[0].mxu0
  %v4994 = vadd.f32 %v4597, %v4993
  %v4995 = vpop.f32.mrb[0].mxu0
  %v4996 = vpop.f32.mrb[0].mxu0
  %v4997 = vadd.f32 %v4600, %v4996
  %v4998 = vpop.f32.mrb[0].mxu0
  %4999 = vmatprep.mubr.bf16.mxu0 0
  %5000 = vmatmul.mubr.bf16.gmra.mrb[0].mxu0 %v4757
  %v5001 = vpop.f32.mrb[0].mxu0
  %v5002 = vadd.f32 %v4605, %v5001
  %v5003 = vpop.f32.mrb[0].mxu0
  %v5004 = vpop.f32.mrb[0].mxu0
  %v5005 = vadd.f32 %v4608, %v5004
  %v5006 = vpop.f32.mrb[0].mxu0
  %5007 = vmatprep.mubr.bf16.mxu0 0
  %5008 = vmatmul.mubr.bf16.gmra.mrb[0].mxu0 %v4760
  %v5009 = vpop.f32.mrb[0].mxu0
  %v5010 = vadd.f32 %v4613, %v5009
  %v5011 = vpop.f32.mrb[0].mxu0
  %v5012 = vpop.f32.mrb[0].mxu0
  %v5013 = vadd.f32 %v4616, %v5012
  %v5014 = vpop.f32.mrb[0].mxu0
  %5015 = vmatprep.mubr.bf16.mxu0 0
  %5016 = vmatmul.mubr.bf16.gmra.mrb[0].mxu0 %v4763
  %v5017 = vpop.f32.mrb[0].mxu0
  %v5018 = vadd.f32 %v4621, %v5017
  %v5019 = vpop.f32.mrb[0].mxu0
  %v5020 = vpop.f32.mrb[0].mxu0
  %v5021 = vadd.f32 %v4624, %v5020
  %v5022 = vpop.f32.mrb[0].mxu0
  %5023 = vmatprep.mubr.bf16.mxu0 0
  %5024 = vmatmul.mubr.bf16.gmra.mrb[0].mxu0 %v4766
  %v5025 = vpop.f32.mrb[0].mxu0
  %v5026 = vadd.f32 %v4629, %v5025
  %v5027 = vpop.f32.mrb[0].mxu0
  %v5028 = vpop.f32.mrb[0].mxu0
  %v5029 = vadd.f32 %v4632, %v5028
  %v5030 = vpop.f32.mrb[0].mxu0
  %5031 = vmatprep.mubr.bf16.mxu0 0
  %5032 = vmatmul.mubr.bf16.gmra.mrb[0].mxu0 %v4769
  %v5033 = vpop.f32.mrb[0].mxu0
  %v5034 = vadd.f32 %v4637, %v5033
  %v5035 = vpop.f32.mrb[0].mxu0
  %v5036 = vpop.f32.mrb[0].mxu0
  %v5037 = vadd.f32 %v4640, %v5036
  %v5038 = vpop.f32.mrb[0].mxu0
  %5039 = vmatprep.mubr.bf16.mxu0 0
  %5040 = vmatmul.mubr.bf16.gmra.mrb[0].mxu0 %v4772
  %v5041 = vpop.f32.mrb[0].mxu0
  %v5042 = vadd.f32 %v4645, %v5041
  %v5043 = vpop.f32.mrb[0].mxu0
  %v5044 = vpop.f32.mrb[0].mxu0
  %v5045 = vadd.f32 %v4648, %v5044
  %v5046 = vpop.f32.mrb[0].mxu0
  %5047 = vmatprep.mubr.bf16.mxu0 0
  %5048 = vmatmul.mubr.bf16.gmra.mrb[0].mxu0 %v4775
  %v5049 = vpop.f32.mrb[0].mxu0
  %v5050 = vadd.f32 %v4653, %v5049
  %v5051 = vpop.f32.mrb[0].mxu0
  %v5052 = vpop.f32.mrb[0].mxu0
  %v5053 = vadd.f32 %v4656, %v5052
  %v5054 = vpop.f32.mrb[0].mxu0
  %5055 = vmatprep.mubr.bf16.mxu0 0
  %5056 = vmatmul.mubr.bf16.gmra.mrb[0].mxu0 %v4778
  %v5057 = vpop.f32.mrb[0].mxu0
  %v5058 = vadd.f32 %v4661, %v5057
  %v5059 = vpop.f32.mrb[0].mxu0
  %v5060 = vpop.f32.mrb[0].mxu0
  %v5061 = vadd.f32 %v4664, %v5060
  %v5062 = vpop.f32.mrb[0].mxu0
  %5063 = vmatprep.mubr.bf16.mxu0 0
  %5064 = vmatmul.mubr.bf16.gmra.mrb[0].mxu0 %v4781
  %v5065 = vpop.f32.mrb[0].mxu0
  %v5066 = vadd.f32 %v4669, %v5065
  %v5067 = vpop.f32.mrb[0].mxu0
  %v5068 = vpop.f32.mrb[0].mxu0
  %v5069 = vadd.f32 %v4672, %v5068
  %v5070 = vpop.f32.mrb[0].mxu0
  %5071 = vdwg.mxu0
  %v5072 = vld [vmem:[%s3] sm:$0x1]
  %v5074 = vlaneseq
  %v5075 = vshrl.u32 %v5074, 7
  %v5076 = vsub.s32 0, %v5075
  %v5077 = vrot.slane %v5072, %v5076
  %v5079 = vadd.f32 %v4818, %v5077
  %v5080 = vadd.f32 %v4821, %v5077
  %v5081 = vadd.f32 %v4826, %v5077
  %v5082 = vadd.f32 %v4829, %v5077
  %v5083 = vadd.f32 %v4834, %v5077
  %v5084 = vadd.f32 %v4837, %v5077
  %v5085 = vadd.f32 %v4842, %v5077
  %v5086 = vadd.f32 %v4845, %v5077
  %v5087 = vadd.f32 %v4850, %v5077
  %v5088 = vadd.f32 %v4853, %v5077
  %v5089 = vadd.f32 %v4858, %v5077
  %v5090 = vadd.f32 %v4861, %v5077
  %v5091 = vadd.f32 %v4866, %v5077
  %v5092 = vadd.f32 %v4869, %v5077
  %v5093 = vadd.f32 %v4874, %v5077
  %v5094 = vadd.f32 %v4877, %v5077
  %v5095 = vadd.f32 %v4882, %v5077
  %v5096 = vadd.f32 %v4885, %v5077
  %v5097 = vadd.f32 %v4890, %v5077
  %v5098 = vadd.f32 %v4893, %v5077
  %v5099 = vadd.f32 %v4898, %v5077
  %v5100 = vadd.f32 %v4901, %v5077
  %v5101 = vadd.f32 %v4906, %v5077
  %v5102 = vadd.f32 %v4909, %v5077
  %v5103 = vadd.f32 %v4914, %v5077
  %v5104 = vadd.f32 %v4917, %v5077
  %v5105 = vadd.f32 %v4922, %v5077
  %v5106 = vadd.f32 %v4925, %v5077
  %v5107 = vadd.f32 %v4930, %v5077
  %v5108 = vadd.f32 %v4933, %v5077
  %v5109 = vadd.f32 %v4938, %v5077
  %v5110 = vadd.f32 %v4941, %v5077
  %v5111 = vadd.f32 %v4946, %v5077
  %v5112 = vadd.f32 %v4949, %v5077
  %v5113 = vadd.f32 %v4954, %v5077
  %v5114 = vadd.f32 %v4957, %v5077
  %v5115 = vadd.f32 %v4962, %v5077
  %v5116 = vadd.f32 %v4965, %v5077
  %v5117 = vadd.f32 %v4970, %v5077
  %v5118 = vadd.f32 %v4973, %v5077
  %v5119 = vadd.f32 %v4978, %v5077
  %v5120 = vadd.f32 %v4981, %v5077
  %v5121 = vadd.f32 %v4986, %v5077
  %v5122 = vadd.f32 %v4989, %v5077
  %v5123 = vadd.f32 %v4994, %v5077
  %v5124 = vadd.f32 %v4997, %v5077
  %v5125 = vadd.f32 %v5002, %v5077
  %v5126 = vadd.f32 %v5005, %v5077
  %v5127 = vadd.f32 %v5010, %v5077
  %v5128 = vadd.f32 %v5013, %v5077
  %v5129 = vadd.f32 %v5018, %v5077
  %v5130 = vadd.f32 %v5021, %v5077
  %v5131 = vadd.f32 %v5026, %v5077
  %v5132 = vadd.f32 %v5029, %v5077
  %v5133 = vadd.f32 %v5034, %v5077
  %v5134 = vadd.f32 %v5037, %v5077
  %v5135 = vadd.f32 %v5042, %v5077
  %v5136 = vadd.f32 %v5045, %v5077
  %v5137 = vadd.f32 %v5050, %v5077
  %v5138 = vadd.f32 %v5053, %v5077
  %v5139 = vadd.f32 %v5058, %v5077
  %v5140 = vadd.f32 %v5061, %v5077
  %v5141 = vadd.f32 %v5066, %v5077
  %v5142 = vadd.f32 %v5069, %v5077
  %v5143 = vadd.f32 %v42, %v5079
  %v5144 = vadd.f32 %v43, %v5080
  %v5145 = vadd.f32 %v44, %v5081
  %v5146 = vadd.f32 %v45, %v5082
  %v5147 = vadd.f32 %v46, %v5083
  %v5148 = vadd.f32 %v47, %v5084
  %v5149 = vadd.f32 %v48, %v5085
  %v5150 = vadd.f32 %v49, %v5086
  %v5151 = vadd.f32 %v50, %v5087
  %v5152 = vadd.f32 %v51, %v5088
  %v5153 = vadd.f32 %v52, %v5089
  %v5154 = vadd.f32 %v53, %v5090
  %v5155 = vadd.f32 %v54, %v5091
  %v5156 = vadd.f32 %v55, %v5092
  %v5157 = vadd.f32 %v56, %v5093
  %v5158 = vadd.f32 %v57, %v5094
  %v5159 = vadd.f32 %v58, %v5095
  %v5160 = vadd.f32 %v59, %v5096
  %v5161 = vadd.f32 %v60, %v5097
  %v5162 = vadd.f32 %v61, %v5098
  %v5163 = vadd.f32 %v62, %v5099
  %v5164 = vadd.f32 %v63, %v5100
  %v5165 = vadd.f32 %v64, %v5101
  %v5166 = vadd.f32 %v65, %v5102
  %v5167 = vadd.f32 %v66, %v5103
  %v5168 = vadd.f32 %v67, %v5104
  %v5169 = vadd.f32 %v68, %v5105
  %v5170 = vadd.f32 %v69, %v5106
  %v5171 = vadd.f32 %v70, %v5107
  %v5172 = vadd.f32 %v71, %v5108
  %v5173 = vadd.f32 %v72, %v5109
  %v5174 = vadd.f32 %v73, %v5110
  %v5175 = vadd.f32 %v74, %v5111
  %v5176 = vadd.f32 %v75, %v5112
  %v5177 = vadd.f32 %v76, %v5113
  %v5178 = vadd.f32 %v77, %v5114
  %v5179 = vadd.f32 %v78, %v5115
  %v5180 = vadd.f32 %v79, %v5116
  %v5181 = vadd.f32 %v80, %v5117
  %v5182 = vadd.f32 %v81, %v5118
  %v5183 = vadd.f32 %v82, %v5119
  %v5184 = vadd.f32 %v83, %v5120
  %v5185 = vadd.f32 %v84, %v5121
  %v5186 = vadd.f32 %v85, %v5122
  %v5187 = vadd.f32 %v86, %v5123
  %v5188 = vadd.f32 %v87, %v5124
  %v5189 = vadd.f32 %v88, %v5125
  %v5190 = vadd.f32 %v89, %v5126
  %v5191 = vadd.f32 %v90, %v5127
  %v5192 = vadd.f32 %v91, %v5128
  %v5193 = vadd.f32 %v92, %v5129
  %v5194 = vadd.f32 %v93, %v5130
  %v5195 = vadd.f32 %v94, %v5131
  %v5196 = vadd.f32 %v95, %v5132
  %v5197 = vadd.f32 %v96, %v5133
  %v5198 = vadd.f32 %v97, %v5134
  %v5199 = vadd.f32 %v98, %v5135
  %v5200 = vadd.f32 %v99, %v5136
  %v5201 = vadd.f32 %v100, %v5137
  %v5202 = vadd.f32 %v101, %v5138
  %v5203 = vadd.f32 %v102, %v5139
  %v5204 = vadd.f32 %v103, %v5140
  %v5205 = vadd.f32 %v104, %v5141
  %v5206 = vadd.f32 %v105, %v5142
  %v5207 = vld [vmem:[%s4] sm:$0x1]
  %v5208 = vld [vmem:[%s5] sm:$0x1]
  %v5209 = vsel %vm186, %v5143, 0.0
  %5210 = vadd.xlane.f32.xlu0 %v5209
  %v5211 = vpop.xlane.xlu0 %5210
  %v5212 = vsel %vm186, %v5144, 0.0
  %5213 = vadd.xlane.f32.xlu0 %v5212
  %v5214 = vpop.xlane.xlu0 %5213
  %v5215 = vsel %vm186, %v5145, 0.0
  %5216 = vadd.xlane.f32.xlu0 %v5215
  %v5217 = vpop.xlane.xlu0 %5216
  %v5218 = vsel %vm186, %v5146, 0.0
  %5219 = vadd.xlane.f32.xlu0 %v5218
  %v5220 = vpop.xlane.xlu0 %5219
  %v5221 = vsel %vm186, %v5147, 0.0
  %5222 = vadd.xlane.f32.xlu0 %v5221
  %v5223 = vpop.xlane.xlu0 %5222
  %v5224 = vsel %vm186, %v5148, 0.0
  %5225 = vadd.xlane.f32.xlu0 %v5224
  %v5226 = vpop.xlane.xlu0 %5225
  %v5227 = vsel %vm186, %v5149, 0.0
  %5228 = vadd.xlane.f32.xlu0 %v5227
  %v5229 = vpop.xlane.xlu0 %5228
  %v5230 = vsel %vm186, %v5150, 0.0
  %5231 = vadd.xlane.f32.xlu0 %v5230
  %v5232 = vpop.xlane.xlu0 %5231
  %v5233 = vsel %vm186, %v5151, 0.0
  %5234 = vadd.xlane.f32.xlu0 %v5233
  %v5235 = vpop.xlane.xlu0 %5234
  %v5236 = vsel %vm186, %v5152, 0.0
  %5237 = vadd.xlane.f32.xlu0 %v5236
  %v5238 = vpop.xlane.xlu0 %5237
  %v5239 = vsel %vm186, %v5153, 0.0
  %5240 = vadd.xlane.f32.xlu0 %v5239
  %v5241 = vpop.xlane.xlu0 %5240
  %v5242 = vsel %vm186, %v5154, 0.0
  %5243 = vadd.xlane.f32.xlu0 %v5242
  %v5244 = vpop.xlane.xlu0 %5243
  %v5245 = vsel %vm186, %v5155, 0.0
  %5246 = vadd.xlane.f32.xlu0 %v5245
  %v5247 = vpop.xlane.xlu0 %5246
  %v5248 = vsel %vm186, %v5156, 0.0
  %5249 = vadd.xlane.f32.xlu0 %v5248
  %v5250 = vpop.xlane.xlu0 %5249
  %v5251 = vsel %vm186, %v5157, 0.0
  %5252 = vadd.xlane.f32.xlu0 %v5251
  %v5253 = vpop.xlane.xlu0 %5252
  %v5254 = vsel %vm186, %v5158, 0.0
  %5255 = vadd.xlane.f32.xlu0 %v5254
  %v5256 = vpop.xlane.xlu0 %5255
  %v5257 = vsel %vm186, %v5159, 0.0
  %5258 = vadd.xlane.f32.xlu0 %v5257
  %v5259 = vpop.xlane.xlu0 %5258
  %v5260 = vsel %vm186, %v5160, 0.0
  %5261 = vadd.xlane.f32.xlu0 %v5260
  %v5262 = vpop.xlane.xlu0 %5261
  %v5263 = vsel %vm186, %v5161, 0.0
  %5264 = vadd.xlane.f32.xlu0 %v5263
  %v5265 = vpop.xlane.xlu0 %5264
  %v5266 = vsel %vm186, %v5162, 0.0
  %5267 = vadd.xlane.f32.xlu0 %v5266
  %v5268 = vpop.xlane.xlu0 %5267
  %v5269 = vsel %vm186, %v5163, 0.0
  %5270 = vadd.xlane.f32.xlu0 %v5269
  %v5271 = vpop.xlane.xlu0 %5270
  %v5272 = vsel %vm186, %v5164, 0.0
  %5273 = vadd.xlane.f32.xlu0 %v5272
  %v5274 = vpop.xlane.xlu0 %5273
  %v5275 = vsel %vm186, %v5165, 0.0
  %5276 = vadd.xlane.f32.xlu0 %v5275
  %v5277 = vpop.xlane.xlu0 %5276
  %v5278 = vsel %vm186, %v5166, 0.0
  %5279 = vadd.xlane.f32.xlu0 %v5278
  %v5280 = vpop.xlane.xlu0 %5279
  %v5281 = vsel %vm186, %v5167, 0.0
  %5282 = vadd.xlane.f32.xlu0 %v5281
  %v5283 = vpop.xlane.xlu0 %5282
  %v5284 = vsel %vm186, %v5168, 0.0
  %5285 = vadd.xlane.f32.xlu0 %v5284
  %v5286 = vpop.xlane.xlu0 %5285
  %v5287 = vsel %vm186, %v5169, 0.0
  %5288 = vadd.xlane.f32.xlu0 %v5287
  %v5289 = vpop.xlane.xlu0 %5288
  %v5290 = vsel %vm186, %v5170, 0.0
  %5291 = vadd.xlane.f32.xlu0 %v5290
  %v5292 = vpop.xlane.xlu0 %5291
  %v5293 = vsel %vm186, %v5171, 0.0
  %5294 = vadd.xlane.f32.xlu0 %v5293
  %v5295 = vpop.xlane.xlu0 %5294
  %v5296 = vsel %vm186, %v5172, 0.0
  %5297 = vadd.xlane.f32.xlu0 %v5296
  %v5298 = vpop.xlane.xlu0 %5297
  %v5299 = vsel %vm186, %v5173, 0.0
  %5300 = vadd.xlane.f32.xlu0 %v5299
  %v5301 = vpop.xlane.xlu0 %5300
  %v5302 = vsel %vm186, %v5174, 0.0
  %5303 = vadd.xlane.f32.xlu0 %v5302
  %v5304 = vpop.xlane.xlu0 %5303
  %v5305 = vsel %vm186, %v5175, 0.0
  %5306 = vadd.xlane.f32.xlu0 %v5305
  %v5307 = vpop.xlane.xlu0 %5306
  %v5308 = vsel %vm186, %v5176, 0.0
  %5309 = vadd.xlane.f32.xlu0 %v5308
  %v5310 = vpop.xlane.xlu0 %5309
  %v5311 = vsel %vm186, %v5177, 0.0
  %5312 = vadd.xlane.f32.xlu0 %v5311
  %v5313 = vpop.xlane.xlu0 %5312
  %v5314 = vsel %vm186, %v5178, 0.0
  %5315 = vadd.xlane.f32.xlu0 %v5314
  %v5316 = vpop.xlane.xlu0 %5315
  %v5317 = vsel %vm186, %v5179, 0.0
  %5318 = vadd.xlane.f32.xlu0 %v5317
  %v5319 = vpop.xlane.xlu0 %5318
  %v5320 = vsel %vm186, %v5180, 0.0
  %5321 = vadd.xlane.f32.xlu0 %v5320
  %v5322 = vpop.xlane.xlu0 %5321
  %v5323 = vsel %vm186, %v5181, 0.0
  %5324 = vadd.xlane.f32.xlu0 %v5323
  %v5325 = vpop.xlane.xlu0 %5324
  %v5326 = vsel %vm186, %v5182, 0.0
  %5327 = vadd.xlane.f32.xlu0 %v5326
  %v5328 = vpop.xlane.xlu0 %5327
  %v5329 = vsel %vm186, %v5183, 0.0
  %5330 = vadd.xlane.f32.xlu0 %v5329
  %v5331 = vpop.xlane.xlu0 %5330
  %v5332 = vsel %vm186, %v5184, 0.0
  %5333 = vadd.xlane.f32.xlu0 %v5332
  %v5334 = vpop.xlane.xlu0 %5333
  %v5335 = vsel %vm186, %v5185, 0.0
  %5336 = vadd.xlane.f32.xlu0 %v5335
  %v5337 = vpop.xlane.xlu0 %5336
  %v5338 = vsel %vm186, %v5186, 0.0
  %5339 = vadd.xlane.f32.xlu0 %v5338
  %v5340 = vpop.xlane.xlu0 %5339
  %v5341 = vsel %vm186, %v5187, 0.0
  %5342 = vadd.xlane.f32.xlu0 %v5341
  %v5343 = vpop.xlane.xlu0 %5342
  %v5344 = vsel %vm186, %v5188, 0.0
  %5345 = vadd.xlane.f32.xlu0 %v5344
  %v5346 = vpop.xlane.xlu0 %5345
  %v5347 = vsel %vm186, %v5189, 0.0
  %5348 = vadd.xlane.f32.xlu0 %v5347
  %v5349 = vpop.xlane.xlu0 %5348
  %v5350 = vsel %vm186, %v5190, 0.0
  %5351 = vadd.xlane.f32.xlu0 %v5350
  %v5352 = vpop.xlane.xlu0 %5351
  %v5353 = vsel %vm186, %v5191, 0.0
  %5354 = vadd.xlane.f32.xlu0 %v5353
  %v5355 = vpop.xlane.xlu0 %5354
  %v5356 = vsel %vm186, %v5192, 0.0
  %5357 = vadd.xlane.f32.xlu0 %v5356
  %v5358 = vpop.xlane.xlu0 %5357
  %v5359 = vsel %vm186, %v5193, 0.0
  %5360 = vadd.xlane.f32.xlu0 %v5359
  %v5361 = vpop.xlane.xlu0 %5360
  %v5362 = vsel %vm186, %v5194, 0.0
  %5363 = vadd.xlane.f32.xlu0 %v5362
  %v5364 = vpop.xlane.xlu0 %5363
  %v5365 = vsel %vm186, %v5195, 0.0
  %5366 = vadd.xlane.f32.xlu0 %v5365
  %v5367 = vpop.xlane.xlu0 %5366
  %v5368 = vsel %vm186, %v5196, 0.0
  %5369 = vadd.xlane.f32.xlu0 %v5368
  %v5370 = vpop.xlane.xlu0 %5369
  %v5371 = vsel %vm186, %v5197, 0.0
  %5372 = vadd.xlane.f32.xlu0 %v5371
  %v5373 = vpop.xlane.xlu0 %5372
  %v5374 = vsel %vm186, %v5198, 0.0
  %5375 = vadd.xlane.f32.xlu0 %v5374
  %v5376 = vpop.xlane.xlu0 %5375
  %v5377 = vsel %vm186, %v5199, 0.0
  %5378 = vadd.xlane.f32.xlu0 %v5377
  %v5379 = vpop.xlane.xlu0 %5378
  %v5380 = vsel %vm186, %v5200, 0.0
  %5381 = vadd.xlane.f32.xlu0 %v5380
  %v5382 = vpop.xlane.xlu0 %5381
  %v5383 = vsel %vm186, %v5201, 0.0
  %5384 = vadd.xlane.f32.xlu0 %v5383
  %v5385 = vpop.xlane.xlu0 %5384
  %v5386 = vsel %vm186, %v5202, 0.0
  %5387 = vadd.xlane.f32.xlu0 %v5386
  %v5388 = vpop.xlane.xlu0 %5387
  %v5389 = vsel %vm186, %v5203, 0.0
  %5390 = vadd.xlane.f32.xlu0 %v5389
  %v5391 = vpop.xlane.xlu0 %5390
  %v5392 = vsel %vm186, %v5204, 0.0
  %5393 = vadd.xlane.f32.xlu0 %v5392
  %v5394 = vpop.xlane.xlu0 %5393
  %v5395 = vsel %vm186, %v5205, 0.0
  %5396 = vadd.xlane.f32.xlu0 %v5395
  %v5397 = vpop.xlane.xlu0 %5396
  %v5398 = vsel %vm186, %v5206, 0.0
  %5399 = vadd.xlane.f32.xlu0 %v5398
  %v5400 = vpop.xlane.xlu0 %5399
  %v5401 = vrcp.pop 64.0
  %v5402 = vmul.f32 %v5211, %v5401
  %v5403 = vmul.f32 %v5214, %v5401
  %v5404 = vmul.f32 %v5217, %v5401
  %v5405 = vmul.f32 %v5220, %v5401
  %v5406 = vmul.f32 %v5223, %v5401
  %v5407 = vmul.f32 %v5226, %v5401
  %v5408 = vmul.f32 %v5229, %v5401
  %v5409 = vmul.f32 %v5232, %v5401
  %v5410 = vmul.f32 %v5235, %v5401
  %v5411 = vmul.f32 %v5238, %v5401
  %v5412 = vmul.f32 %v5241, %v5401
  %v5413 = vmul.f32 %v5244, %v5401
  %v5414 = vmul.f32 %v5247, %v5401
  %v5415 = vmul.f32 %v5250, %v5401
  %v5416 = vmul.f32 %v5253, %v5401
  %v5417 = vmul.f32 %v5256, %v5401
  %v5418 = vmul.f32 %v5259, %v5401
  %v5419 = vmul.f32 %v5262, %v5401
  %v5420 = vmul.f32 %v5265, %v5401
  %v5421 = vmul.f32 %v5268, %v5401
  %v5422 = vmul.f32 %v5271, %v5401
  %v5423 = vmul.f32 %v5274, %v5401
  %v5424 = vmul.f32 %v5277, %v5401
  %v5425 = vmul.f32 %v5280, %v5401
  %v5426 = vmul.f32 %v5283, %v5401
  %v5427 = vmul.f32 %v5286, %v5401
  %v5428 = vmul.f32 %v5289, %v5401
  %v5429 = vmul.f32 %v5292, %v5401
  %v5430 = vmul.f32 %v5295, %v5401
  %v5431 = vmul.f32 %v5298, %v5401
  %v5432 = vmul.f32 %v5301, %v5401
  %v5433 = vmul.f32 %v5304, %v5401
  %v5434 = vmul.f32 %v5307, %v5401
  %v5435 = vmul.f32 %v5310, %v5401
  %v5436 = vmul.f32 %v5313, %v5401
  %v5437 = vmul.f32 %v5316, %v5401
  %v5438 = vmul.f32 %v5319, %v5401
  %v5439 = vmul.f32 %v5322, %v5401
  %v5440 = vmul.f32 %v5325, %v5401
  %v5441 = vmul.f32 %v5328, %v5401
  %v5442 = vmul.f32 %v5331, %v5401
  %v5443 = vmul.f32 %v5334, %v5401
  %v5444 = vmul.f32 %v5337, %v5401
  %v5445 = vmul.f32 %v5340, %v5401
  %v5446 = vmul.f32 %v5343, %v5401
  %v5447 = vmul.f32 %v5346, %v5401
  %v5448 = vmul.f32 %v5349, %v5401
  %v5449 = vmul.f32 %v5352, %v5401
  %v5450 = vmul.f32 %v5355, %v5401
  %v5451 = vmul.f32 %v5358, %v5401
  %v5452 = vmul.f32 %v5361, %v5401
  %v5453 = vmul.f32 %v5364, %v5401
  %v5454 = vmul.f32 %v5367, %v5401
  %v5455 = vmul.f32 %v5370, %v5401
  %v5456 = vmul.f32 %v5373, %v5401
  %v5457 = vmul.f32 %v5376, %v5401
  %v5458 = vmul.f32 %v5379, %v5401
  %v5459 = vmul.f32 %v5382, %v5401
  %v5460 = vmul.f32 %v5385, %v5401
  %v5461 = vmul.f32 %v5388, %v5401
  %v5462 = vmul.f32 %v5391, %v5401
  %v5463 = vmul.f32 %v5394, %v5401
  %v5464 = vmul.f32 %v5397, %v5401
  %v5465 = vmul.f32 %v5400, %v5401
  %v5466 = vsub.f32 %v5143, %v5402
  %v5467 = vsub.f32 %v5144, %v5403
  %v5468 = vsub.f32 %v5145, %v5404
  %v5469 = vsub.f32 %v5146, %v5405
  %v5470 = vsub.f32 %v5147, %v5406
  %v5471 = vsub.f32 %v5148, %v5407
  %v5472 = vsub.f32 %v5149, %v5408
  %v5473 = vsub.f32 %v5150, %v5409
  %v5474 = vsub.f32 %v5151, %v5410
  %v5475 = vsub.f32 %v5152, %v5411
  %v5476 = vsub.f32 %v5153, %v5412
  %v5477 = vsub.f32 %v5154, %v5413
  %v5478 = vsub.f32 %v5155, %v5414
  %v5479 = vsub.f32 %v5156, %v5415
  %v5480 = vsub.f32 %v5157, %v5416
  %v5481 = vsub.f32 %v5158, %v5417
  %v5482 = vsub.f32 %v5159, %v5418
  %v5483 = vsub.f32 %v5160, %v5419
  %v5484 = vsub.f32 %v5161, %v5420
  %v5485 = vsub.f32 %v5162, %v5421
  %v5486 = vsub.f32 %v5163, %v5422
  %v5487 = vsub.f32 %v5164, %v5423
  %v5488 = vsub.f32 %v5165, %v5424
  %v5489 = vsub.f32 %v5166, %v5425
  %v5490 = vsub.f32 %v5167, %v5426
  %v5491 = vsub.f32 %v5168, %v5427
  %v5492 = vsub.f32 %v5169, %v5428
  %v5493 = vsub.f32 %v5170, %v5429
  %v5494 = vsub.f32 %v5171, %v5430
  %v5495 = vsub.f32 %v5172, %v5431
  %v5496 = vsub.f32 %v5173, %v5432
  %v5497 = vsub.f32 %v5174, %v5433
  %v5498 = vsub.f32 %v5175, %v5434
  %v5499 = vsub.f32 %v5176, %v5435
  %v5500 = vsub.f32 %v5177, %v5436
  %v5501 = vsub.f32 %v5178, %v5437
  %v5502 = vsub.f32 %v5179, %v5438
  %v5503 = vsub.f32 %v5180, %v5439
  %v5504 = vsub.f32 %v5181, %v5440
  %v5505 = vsub.f32 %v5182, %v5441
  %v5506 = vsub.f32 %v5183, %v5442
  %v5507 = vsub.f32 %v5184, %v5443
  %v5508 = vsub.f32 %v5185, %v5444
  %v5509 = vsub.f32 %v5186, %v5445
  %v5510 = vsub.f32 %v5187, %v5446
  %v5511 = vsub.f32 %v5188, %v5447
  %v5512 = vsub.f32 %v5189, %v5448
  %v5513 = vsub.f32 %v5190, %v5449
  %v5514 = vsub.f32 %v5191, %v5450
  %v5515 = vsub.f32 %v5192, %v5451
  %v5516 = vsub.f32 %v5193, %v5452
  %v5517 = vsub.f32 %v5194, %v5453
  %v5518 = vsub.f32 %v5195, %v5454
  %v5519 = vsub.f32 %v5196, %v5455
  %v5520 = vsub.f32 %v5197, %v5456
  %v5521 = vsub.f32 %v5198, %v5457
  %v5522 = vsub.f32 %v5199, %v5458
  %v5523 = vsub.f32 %v5200, %v5459
  %v5524 = vsub.f32 %v5201, %v5460
  %v5525 = vsub.f32 %v5202, %v5461
  %v5526 = vsub.f32 %v5203, %v5462
  %v5527 = vsub.f32 %v5204, %v5463
  %v5528 = vsub.f32 %v5205, %v5464
  %v5529 = vsub.f32 %v5206, %v5465
  %v5530 = vmul.f32 %v5466, %v5466
  %v5531 = vmul.f32 %v5467, %v5467
  %v5532 = vmul.f32 %v5468, %v5468
  %v5533 = vmul.f32 %v5469, %v5469
  %v5534 = vmul.f32 %v5470, %v5470
  %v5535 = vmul.f32 %v5471, %v5471
  %v5536 = vmul.f32 %v5472, %v5472
  %v5537 = vmul.f32 %v5473, %v5473
  %v5538 = vmul.f32 %v5474, %v5474
  %v5539 = vmul.f32 %v5475, %v5475
  %v5540 = vmul.f32 %v5476, %v5476
  %v5541 = vmul.f32 %v5477, %v5477
  %v5542 = vmul.f32 %v5478, %v5478
  %v5543 = vmul.f32 %v5479, %v5479
  %v5544 = vmul.f32 %v5480, %v5480
  %v5545 = vmul.f32 %v5481, %v5481
  %v5546 = vmul.f32 %v5482, %v5482
  %v5547 = vmul.f32 %v5483, %v5483
  %v5548 = vmul.f32 %v5484, %v5484
  %v5549 = vmul.f32 %v5485, %v5485
  %v5550 = vmul.f32 %v5486, %v5486
  %v5551 = vmul.f32 %v5487, %v5487
  %v5552 = vmul.f32 %v5488, %v5488
  %v5553 = vmul.f32 %v5489, %v5489
  %v5554 = vmul.f32 %v5490, %v5490
  %v5555 = vmul.f32 %v5491, %v5491
  %v5556 = vmul.f32 %v5492, %v5492
  %v5557 = vmul.f32 %v5493, %v5493
  %v5558 = vmul.f32 %v5494, %v5494
  %v5559 = vmul.f32 %v5495, %v5495
  %v5560 = vmul.f32 %v5496, %v5496
  %v5561 = vmul.f32 %v5497, %v5497
  %v5562 = vmul.f32 %v5498, %v5498
  %v5563 = vmul.f32 %v5499, %v5499
  %v5564 = vmul.f32 %v5500, %v5500
  %v5565 = vmul.f32 %v5501, %v5501
  %v5566 = vmul.f32 %v5502, %v5502
  %v5567 = vmul.f32 %v5503, %v5503
  %v5568 = vmul.f32 %v5504, %v5504
  %v5569 = vmul.f32 %v5505, %v5505
  %v5570 = vmul.f32 %v5506, %v5506
  %v5571 = vmul.f32 %v5507, %v5507
  %v5572 = vmul.f32 %v5508, %v5508
  %v5573 = vmul.f32 %v5509, %v5509
  %v5574 = vmul.f32 %v5510, %v5510
  %v5575 = vmul.f32 %v5511, %v5511
  %v5576 = vmul.f32 %v5512, %v5512
  %v5577 = vmul.f32 %v5513, %v5513
  %v5578 = vmul.f32 %v5514, %v5514
  %v5579 = vmul.f32 %v5515, %v5515
  %v5580 = vmul.f32 %v5516, %v5516
  %v5581 = vmul.f32 %v5517, %v5517
  %v5582 = vmul.f32 %v5518, %v5518
  %v5583 = vmul.f32 %v5519, %v5519
  %v5584 = vmul.f32 %v5520, %v5520
  %v5585 = vmul.f32 %v5521, %v5521
  %v5586 = vmul.f32 %v5522, %v5522
  %v5587 = vmul.f32 %v5523, %v5523
  %v5588 = vmul.f32 %v5524, %v5524
  %v5589 = vmul.f32 %v5525, %v5525
  %v5590 = vmul.f32 %v5526, %v5526
  %v5591 = vmul.f32 %v5527, %v5527
  %v5592 = vmul.f32 %v5528, %v5528
  %v5593 = vmul.f32 %v5529, %v5529
  %v5594 = vsel %vm186, %v5530, 0.0
  %5595 = vadd.xlane.f32.xlu0 %v5594
  %v5596 = vpop.xlane.xlu0 %5595
  %v5597 = vsel %vm186, %v5531, 0.0
  %5598 = vadd.xlane.f32.xlu0 %v5597
  %v5599 = vpop.xlane.xlu0 %5598
  %v5600 = vsel %vm186, %v5532, 0.0
  %5601 = vadd.xlane.f32.xlu0 %v5600
  %v5602 = vpop.xlane.xlu0 %5601
  %v5603 = vsel %vm186, %v5533, 0.0
  %5604 = vadd.xlane.f32.xlu0 %v5603
  %v5605 = vpop.xlane.xlu0 %5604
  %v5606 = vsel %vm186, %v5534, 0.0
  %5607 = vadd.xlane.f32.xlu0 %v5606
  %v5608 = vpop.xlane.xlu0 %5607
  %v5609 = vsel %vm186, %v5535, 0.0
  %5610 = vadd.xlane.f32.xlu0 %v5609
  %v5611 = vpop.xlane.xlu0 %5610
  %v5612 = vsel %vm186, %v5536, 0.0
  %5613 = vadd.xlane.f32.xlu0 %v5612
  %v5614 = vpop.xlane.xlu0 %5613
  %v5615 = vsel %vm186, %v5537, 0.0
  %5616 = vadd.xlane.f32.xlu0 %v5615
  %v5617 = vpop.xlane.xlu0 %5616
  %v5618 = vsel %vm186, %v5538, 0.0
  %5619 = vadd.xlane.f32.xlu0 %v5618
  %v5620 = vpop.xlane.xlu0 %5619
  %v5621 = vsel %vm186, %v5539, 0.0
  %5622 = vadd.xlane.f32.xlu0 %v5621
  %v5623 = vpop.xlane.xlu0 %5622
  %v5624 = vsel %vm186, %v5540, 0.0
  %5625 = vadd.xlane.f32.xlu0 %v5624
  %v5626 = vpop.xlane.xlu0 %5625
  %v5627 = vsel %vm186, %v5541, 0.0
  %5628 = vadd.xlane.f32.xlu0 %v5627
  %v5629 = vpop.xlane.xlu0 %5628
  %v5630 = vsel %vm186, %v5542, 0.0
  %5631 = vadd.xlane.f32.xlu0 %v5630
  %v5632 = vpop.xlane.xlu0 %5631
  %v5633 = vsel %vm186, %v5543, 0.0
  %5634 = vadd.xlane.f32.xlu0 %v5633
  %v5635 = vpop.xlane.xlu0 %5634
  %v5636 = vsel %vm186, %v5544, 0.0
  %5637 = vadd.xlane.f32.xlu0 %v5636
  %v5638 = vpop.xlane.xlu0 %5637
  %v5639 = vsel %vm186, %v5545, 0.0
  %5640 = vadd.xlane.f32.xlu0 %v5639
  %v5641 = vpop.xlane.xlu0 %5640
  %v5642 = vsel %vm186, %v5546, 0.0
  %5643 = vadd.xlane.f32.xlu0 %v5642
  %v5644 = vpop.xlane.xlu0 %5643
  %v5645 = vsel %vm186, %v5547, 0.0
  %5646 = vadd.xlane.f32.xlu0 %v5645
  %v5647 = vpop.xlane.xlu0 %5646
  %v5648 = vsel %vm186, %v5548, 0.0
  %5649 = vadd.xlane.f32.xlu0 %v5648
  %v5650 = vpop.xlane.xlu0 %5649
  %v5651 = vsel %vm186, %v5549, 0.0
  %5652 = vadd.xlane.f32.xlu0 %v5651
  %v5653 = vpop.xlane.xlu0 %5652
  %v5654 = vsel %vm186, %v5550, 0.0
  %5655 = vadd.xlane.f32.xlu0 %v5654
  %v5656 = vpop.xlane.xlu0 %5655
  %v5657 = vsel %vm186, %v5551, 0.0
  %5658 = vadd.xlane.f32.xlu0 %v5657
  %v5659 = vpop.xlane.xlu0 %5658
  %v5660 = vsel %vm186, %v5552, 0.0
  %5661 = vadd.xlane.f32.xlu0 %v5660
  %v5662 = vpop.xlane.xlu0 %5661
  %v5663 = vsel %vm186, %v5553, 0.0
  %5664 = vadd.xlane.f32.xlu0 %v5663
  %v5665 = vpop.xlane.xlu0 %5664
  %v5666 = vsel %vm186, %v5554, 0.0
  %5667 = vadd.xlane.f32.xlu0 %v5666
  %v5668 = vpop.xlane.xlu0 %5667
  %v5669 = vsel %vm186, %v5555, 0.0
  %5670 = vadd.xlane.f32.xlu0 %v5669
  %v5671 = vpop.xlane.xlu0 %5670
  %v5672 = vsel %vm186, %v5556, 0.0
  %5673 = vadd.xlane.f32.xlu0 %v5672
  %v5674 = vpop.xlane.xlu0 %5673
  %v5675 = vsel %vm186, %v5557, 0.0
  %5676 = vadd.xlane.f32.xlu0 %v5675
  %v5677 = vpop.xlane.xlu0 %5676
  %v5678 = vsel %vm186, %v5558, 0.0
  %5679 = vadd.xlane.f32.xlu0 %v5678
  %v5680 = vpop.xlane.xlu0 %5679
  %v5681 = vsel %vm186, %v5559, 0.0
  %5682 = vadd.xlane.f32.xlu0 %v5681
  %v5683 = vpop.xlane.xlu0 %5682
  %v5684 = vsel %vm186, %v5560, 0.0
  %5685 = vadd.xlane.f32.xlu0 %v5684
  %v5686 = vpop.xlane.xlu0 %5685
  %v5687 = vsel %vm186, %v5561, 0.0
  %5688 = vadd.xlane.f32.xlu0 %v5687
  %v5689 = vpop.xlane.xlu0 %5688
  %v5690 = vsel %vm186, %v5562, 0.0
  %5691 = vadd.xlane.f32.xlu0 %v5690
  %v5692 = vpop.xlane.xlu0 %5691
  %v5693 = vsel %vm186, %v5563, 0.0
  %5694 = vadd.xlane.f32.xlu0 %v5693
  %v5695 = vpop.xlane.xlu0 %5694
  %v5696 = vsel %vm186, %v5564, 0.0
  %5697 = vadd.xlane.f32.xlu0 %v5696
  %v5698 = vpop.xlane.xlu0 %5697
  %v5699 = vsel %vm186, %v5565, 0.0
  %5700 = vadd.xlane.f32.xlu0 %v5699
  %v5701 = vpop.xlane.xlu0 %5700
  %v5702 = vsel %vm186, %v5566, 0.0
  %5703 = vadd.xlane.f32.xlu0 %v5702
  %v5704 = vpop.xlane.xlu0 %5703
  %v5705 = vsel %vm186, %v5567, 0.0
  %5706 = vadd.xlane.f32.xlu0 %v5705
  %v5707 = vpop.xlane.xlu0 %5706
  %v5708 = vsel %vm186, %v5568, 0.0
  %5709 = vadd.xlane.f32.xlu0 %v5708
  %v5710 = vpop.xlane.xlu0 %5709
  %v5711 = vsel %vm186, %v5569, 0.0
  %5712 = vadd.xlane.f32.xlu0 %v5711
  %v5713 = vpop.xlane.xlu0 %5712
  %v5714 = vsel %vm186, %v5570, 0.0
  %5715 = vadd.xlane.f32.xlu0 %v5714
  %v5716 = vpop.xlane.xlu0 %5715
  %v5717 = vsel %vm186, %v5571, 0.0
  %5718 = vadd.xlane.f32.xlu0 %v5717
  %v5719 = vpop.xlane.xlu0 %5718
  %v5720 = vsel %vm186, %v5572, 0.0
  %5721 = vadd.xlane.f32.xlu0 %v5720
  %v5722 = vpop.xlane.xlu0 %5721
  %v5723 = vsel %vm186, %v5573, 0.0
  %5724 = vadd.xlane.f32.xlu0 %v5723
  %v5725 = vpop.xlane.xlu0 %5724
  %v5726 = vsel %vm186, %v5574, 0.0
  %5727 = vadd.xlane.f32.xlu0 %v5726
  %v5728 = vpop.xlane.xlu0 %5727
  %v5729 = vsel %vm186, %v5575, 0.0
  %5730 = vadd.xlane.f32.xlu0 %v5729
  %v5731 = vpop.xlane.xlu0 %5730
  %v5732 = vsel %vm186, %v5576, 0.0
  %5733 = vadd.xlane.f32.xlu0 %v5732
  %v5734 = vpop.xlane.xlu0 %5733
  %v5735 = vsel %vm186, %v5577, 0.0
  %5736 = vadd.xlane.f32.xlu0 %v5735
  %v5737 = vpop.xlane.xlu0 %5736
  %v5738 = vsel %vm186, %v5578, 0.0
  %5739 = vadd.xlane.f32.xlu0 %v5738
  %v5740 = vpop.xlane.xlu0 %5739
  %v5741 = vsel %vm186, %v5579, 0.0
  %5742 = vadd.xlane.f32.xlu0 %v5741
  %v5743 = vpop.xlane.xlu0 %5742
  %v5744 = vsel %vm186, %v5580, 0.0
  %5745 = vadd.xlane.f32.xlu0 %v5744
  %v5746 = vpop.xlane.xlu0 %5745
  %v5747 = vsel %vm186, %v5581, 0.0
  %5748 = vadd.xlane.f32.xlu0 %v5747
  %v5749 = vpop.xlane.xlu0 %5748
  %v5750 = vsel %vm186, %v5582, 0.0
  %5751 = vadd.xlane.f32.xlu0 %v5750
  %v5752 = vpop.xlane.xlu0 %5751
  %v5753 = vsel %vm186, %v5583, 0.0
  %5754 = vadd.xlane.f32.xlu0 %v5753
  %v5755 = vpop.xlane.xlu0 %5754
  %v5756 = vsel %vm186, %v5584, 0.0
  %5757 = vadd.xlane.f32.xlu0 %v5756
  %v5758 = vpop.xlane.xlu0 %5757
  %v5759 = vsel %vm186, %v5585, 0.0
  %5760 = vadd.xlane.f32.xlu0 %v5759
  %v5761 = vpop.xlane.xlu0 %5760
  %v5762 = vsel %vm186, %v5586, 0.0
  %5763 = vadd.xlane.f32.xlu0 %v5762
  %v5764 = vpop.xlane.xlu0 %5763
  %v5765 = vsel %vm186, %v5587, 0.0
  %5766 = vadd.xlane.f32.xlu0 %v5765
  %v5767 = vpop.xlane.xlu0 %5766
  %v5768 = vsel %vm186, %v5588, 0.0
  %5769 = vadd.xlane.f32.xlu0 %v5768
  %v5770 = vpop.xlane.xlu0 %5769
  %v5771 = vsel %vm186, %v5589, 0.0
  %5772 = vadd.xlane.f32.xlu0 %v5771
  %v5773 = vpop.xlane.xlu0 %5772
  %v5774 = vsel %vm186, %v5590, 0.0
  %5775 = vadd.xlane.f32.xlu0 %v5774
  %v5776 = vpop.xlane.xlu0 %5775
  %v5777 = vsel %vm186, %v5591, 0.0
  %5778 = vadd.xlane.f32.xlu0 %v5777
  %v5779 = vpop.xlane.xlu0 %5778
  %v5780 = vsel %vm186, %v5592, 0.0
  %5781 = vadd.xlane.f32.xlu0 %v5780
  %v5782 = vpop.xlane.xlu0 %5781
  %v5783 = vsel %vm186, %v5593, 0.0
  %5784 = vadd.xlane.f32.xlu0 %v5783
  %v5785 = vpop.xlane.xlu0 %5784
  %v5786 = vmul.f32 %v5596, %v5401
  %v5787 = vmul.f32 %v5599, %v5401
  %v5788 = vmul.f32 %v5602, %v5401
  %v5789 = vmul.f32 %v5605, %v5401
  %v5790 = vmul.f32 %v5608, %v5401
  %v5791 = vmul.f32 %v5611, %v5401
  %v5792 = vmul.f32 %v5614, %v5401
  %v5793 = vmul.f32 %v5617, %v5401
  %v5794 = vmul.f32 %v5620, %v5401
  %v5795 = vmul.f32 %v5623, %v5401
  %v5796 = vmul.f32 %v5626, %v5401
  %v5797 = vmul.f32 %v5629, %v5401
  %v5798 = vmul.f32 %v5632, %v5401
  %v5799 = vmul.f32 %v5635, %v5401
  %v5800 = vmul.f32 %v5638, %v5401
  %v5801 = vmul.f32 %v5641, %v5401
  %v5802 = vmul.f32 %v5644, %v5401
  %v5803 = vmul.f32 %v5647, %v5401
  %v5804 = vmul.f32 %v5650, %v5401
  %v5805 = vmul.f32 %v5653, %v5401
  %v5806 = vmul.f32 %v5656, %v5401
  %v5807 = vmul.f32 %v5659, %v5401
  %v5808 = vmul.f32 %v5662, %v5401
  %v5809 = vmul.f32 %v5665, %v5401
  %v5810 = vmul.f32 %v5668, %v5401
  %v5811 = vmul.f32 %v5671, %v5401
  %v5812 = vmul.f32 %v5674, %v5401
  %v5813 = vmul.f32 %v5677, %v5401
  %v5814 = vmul.f32 %v5680, %v5401
  %v5815 = vmul.f32 %v5683, %v5401
  %v5816 = vmul.f32 %v5686, %v5401
  %v5817 = vmul.f32 %v5689, %v5401
  %v5818 = vmul.f32 %v5692, %v5401
  %v5819 = vmul.f32 %v5695, %v5401
  %v5820 = vmul.f32 %v5698, %v5401
  %v5821 = vmul.f32 %v5701, %v5401
  %v5822 = vmul.f32 %v5704, %v5401
  %v5823 = vmul.f32 %v5707, %v5401
  %v5824 = vmul.f32 %v5710, %v5401
  %v5825 = vmul.f32 %v5713, %v5401
  %v5826 = vmul.f32 %v5716, %v5401
  %v5827 = vmul.f32 %v5719, %v5401
  %v5828 = vmul.f32 %v5722, %v5401
  %v5829 = vmul.f32 %v5725, %v5401
  %v5830 = vmul.f32 %v5728, %v5401
  %v5831 = vmul.f32 %v5731, %v5401
  %v5832 = vmul.f32 %v5734, %v5401
  %v5833 = vmul.f32 %v5737, %v5401
  %v5834 = vmul.f32 %v5740, %v5401
  %v5835 = vmul.f32 %v5743, %v5401
  %v5836 = vmul.f32 %v5746, %v5401
  %v5837 = vmul.f32 %v5749, %v5401
  %v5838 = vmul.f32 %v5752, %v5401
  %v5839 = vmul.f32 %v5755, %v5401
  %v5840 = vmul.f32 %v5758, %v5401
  %v5841 = vmul.f32 %v5761, %v5401
  %v5842 = vmul.f32 %v5764, %v5401
  %v5843 = vmul.f32 %v5767, %v5401
  %v5844 = vmul.f32 %v5770, %v5401
  %v5845 = vmul.f32 %v5773, %v5401
  %v5846 = vmul.f32 %v5776, %v5401
  %v5847 = vmul.f32 %v5779, %v5401
  %v5848 = vmul.f32 %v5782, %v5401
  %v5849 = vmul.f32 %v5785, %v5401
  %v5850 = vadd.f32 %v5786, 1e-06
  %v5851 = vadd.f32 %v5787, 1e-06
  %v5852 = vadd.f32 %v5788, 1e-06
  %v5853 = vadd.f32 %v5789, 1e-06
  %v5854 = vadd.f32 %v5790, 1e-06
  %v5855 = vadd.f32 %v5791, 1e-06
  %v5856 = vadd.f32 %v5792, 1e-06
  %v5857 = vadd.f32 %v5793, 1e-06
  %v5858 = vadd.f32 %v5794, 1e-06
  %v5859 = vadd.f32 %v5795, 1e-06
  %v5860 = vadd.f32 %v5796, 1e-06
  %v5861 = vadd.f32 %v5797, 1e-06
  %v5862 = vadd.f32 %v5798, 1e-06
  %v5863 = vadd.f32 %v5799, 1e-06
  %v5864 = vadd.f32 %v5800, 1e-06
  %v5865 = vadd.f32 %v5801, 1e-06
  %v5866 = vadd.f32 %v5802, 1e-06
  %v5867 = vadd.f32 %v5803, 1e-06
  %v5868 = vadd.f32 %v5804, 1e-06
  %v5869 = vadd.f32 %v5805, 1e-06
  %v5870 = vadd.f32 %v5806, 1e-06
  %v5871 = vadd.f32 %v5807, 1e-06
  %v5872 = vadd.f32 %v5808, 1e-06
  %v5873 = vadd.f32 %v5809, 1e-06
  %v5874 = vadd.f32 %v5810, 1e-06
  %v5875 = vadd.f32 %v5811, 1e-06
  %v5876 = vadd.f32 %v5812, 1e-06
  %v5877 = vadd.f32 %v5813, 1e-06
  %v5878 = vadd.f32 %v5814, 1e-06
  %v5879 = vadd.f32 %v5815, 1e-06
  %v5880 = vadd.f32 %v5816, 1e-06
  %v5881 = vadd.f32 %v5817, 1e-06
  %v5882 = vadd.f32 %v5818, 1e-06
  %v5883 = vadd.f32 %v5819, 1e-06
  %v5884 = vadd.f32 %v5820, 1e-06
  %v5885 = vadd.f32 %v5821, 1e-06
  %v5886 = vadd.f32 %v5822, 1e-06
  %v5887 = vadd.f32 %v5823, 1e-06
  %v5888 = vadd.f32 %v5824, 1e-06
  %v5889 = vadd.f32 %v5825, 1e-06
  %v5890 = vadd.f32 %v5826, 1e-06
  %v5891 = vadd.f32 %v5827, 1e-06
  %v5892 = vadd.f32 %v5828, 1e-06
  %v5893 = vadd.f32 %v5829, 1e-06
  %v5894 = vadd.f32 %v5830, 1e-06
  %v5895 = vadd.f32 %v5831, 1e-06
  %v5896 = vadd.f32 %v5832, 1e-06
  %v5897 = vadd.f32 %v5833, 1e-06
  %v5898 = vadd.f32 %v5834, 1e-06
  %v5899 = vadd.f32 %v5835, 1e-06
  %v5900 = vadd.f32 %v5836, 1e-06
  %v5901 = vadd.f32 %v5837, 1e-06
  %v5902 = vadd.f32 %v5838, 1e-06
  %v5903 = vadd.f32 %v5839, 1e-06
  %v5904 = vadd.f32 %v5840, 1e-06
  %v5905 = vadd.f32 %v5841, 1e-06
  %v5906 = vadd.f32 %v5842, 1e-06
  %v5907 = vadd.f32 %v5843, 1e-06
  %v5908 = vadd.f32 %v5844, 1e-06
  %v5909 = vadd.f32 %v5845, 1e-06
  %v5910 = vadd.f32 %v5846, 1e-06
  %v5911 = vadd.f32 %v5847, 1e-06
  %v5912 = vadd.f32 %v5848, 1e-06
  %v5913 = vadd.f32 %v5849, 1e-06
  %v5914 = vrsqrt.pop %v5850
  %v5915 = vrsqrt.pop %v5851
  %v5916 = vrsqrt.pop %v5852
  %v5917 = vrsqrt.pop %v5853
  %v5918 = vrsqrt.pop %v5854
  %v5919 = vrsqrt.pop %v5855
  %v5920 = vrsqrt.pop %v5856
  %v5921 = vrsqrt.pop %v5857
  %v5922 = vrsqrt.pop %v5858
  %v5923 = vrsqrt.pop %v5859
  %v5924 = vrsqrt.pop %v5860
  %v5925 = vrsqrt.pop %v5861
  %v5926 = vrsqrt.pop %v5862
  %v5927 = vrsqrt.pop %v5863
  %v5928 = vrsqrt.pop %v5864
  %v5929 = vrsqrt.pop %v5865
  %v5930 = vrsqrt.pop %v5866
  %v5931 = vrsqrt.pop %v5867
  %v5932 = vrsqrt.pop %v5868
  %v5933 = vrsqrt.pop %v5869
  %v5934 = vrsqrt.pop %v5870
  %v5935 = vrsqrt.pop %v5871
  %v5936 = vrsqrt.pop %v5872
  %v5937 = vrsqrt.pop %v5873
  %v5938 = vrsqrt.pop %v5874
  %v5939 = vrsqrt.pop %v5875
  %v5940 = vrsqrt.pop %v5876
  %v5941 = vrsqrt.pop %v5877
  %v5942 = vrsqrt.pop %v5878
  %v5943 = vrsqrt.pop %v5879
  %v5944 = vrsqrt.pop %v5880
  %v5945 = vrsqrt.pop %v5881
  %v5946 = vrsqrt.pop %v5882
  %v5947 = vrsqrt.pop %v5883
  %v5948 = vrsqrt.pop %v5884
  %v5949 = vrsqrt.pop %v5885
  %v5950 = vrsqrt.pop %v5886
  %v5951 = vrsqrt.pop %v5887
  %v5952 = vrsqrt.pop %v5888
  %v5953 = vrsqrt.pop %v5889
  %v5954 = vrsqrt.pop %v5890
  %v5955 = vrsqrt.pop %v5891
  %v5956 = vrsqrt.pop %v5892
  %v5957 = vrsqrt.pop %v5893
  %v5958 = vrsqrt.pop %v5894
  %v5959 = vrsqrt.pop %v5895
  %v5960 = vrsqrt.pop %v5896
  %v5961 = vrsqrt.pop %v5897
  %v5962 = vrsqrt.pop %v5898
  %v5963 = vrsqrt.pop %v5899
  %v5964 = vrsqrt.pop %v5900
  %v5965 = vrsqrt.pop %v5901
  %v5966 = vrsqrt.pop %v5902
  %v5967 = vrsqrt.pop %v5903
  %v5968 = vrsqrt.pop %v5904
  %v5969 = vrsqrt.pop %v5905
  %v5970 = vrsqrt.pop %v5906
  %v5971 = vrsqrt.pop %v5907
  %v5972 = vrsqrt.pop %v5908
  %v5973 = vrsqrt.pop %v5909
  %v5974 = vrsqrt.pop %v5910
  %v5975 = vrsqrt.pop %v5911
  %v5976 = vrsqrt.pop %v5912
  %v5977 = vrsqrt.pop %v5913
  %v5978 = vmul.f32 %v5466, %v5914
  %v5979 = vmul.f32 %v5467, %v5915
  %v5980 = vmul.f32 %v5468, %v5916
  %v5981 = vmul.f32 %v5469, %v5917
  %v5982 = vmul.f32 %v5470, %v5918
  %v5983 = vmul.f32 %v5471, %v5919
  %v5984 = vmul.f32 %v5472, %v5920
  %v5985 = vmul.f32 %v5473, %v5921
  %v5986 = vmul.f32 %v5474, %v5922
  %v5987 = vmul.f32 %v5475, %v5923
  %v5988 = vmul.f32 %v5476, %v5924
  %v5989 = vmul.f32 %v5477, %v5925
  %v5990 = vmul.f32 %v5478, %v5926
  %v5991 = vmul.f32 %v5479, %v5927
  %v5992 = vmul.f32 %v5480, %v5928
  %v5993 = vmul.f32 %v5481, %v5929
  %v5994 = vmul.f32 %v5482, %v5930
  %v5995 = vmul.f32 %v5483, %v5931
  %v5996 = vmul.f32 %v5484, %v5932
  %v5997 = vmul.f32 %v5485, %v5933
  %v5998 = vmul.f32 %v5486, %v5934
  %v5999 = vmul.f32 %v5487, %v5935
  %v6000 = vmul.f32 %v5488, %v5936
  %v6001 = vmul.f32 %v5489, %v5937
  %v6002 = vmul.f32 %v5490, %v5938
  %v6003 = vmul.f32 %v5491, %v5939
  %v6004 = vmul.f32 %v5492, %v5940
  %v6005 = vmul.f32 %v5493, %v5941
  %v6006 = vmul.f32 %v5494, %v5942
  %v6007 = vmul.f32 %v5495, %v5943
  %v6008 = vmul.f32 %v5496, %v5944
  %v6009 = vmul.f32 %v5497, %v5945
  %v6010 = vmul.f32 %v5498, %v5946
  %v6011 = vmul.f32 %v5499, %v5947
  %v6012 = vmul.f32 %v5500, %v5948
  %v6013 = vmul.f32 %v5501, %v5949
  %v6014 = vmul.f32 %v5502, %v5950
  %v6015 = vmul.f32 %v5503, %v5951
  %v6016 = vmul.f32 %v5504, %v5952
  %v6017 = vmul.f32 %v5505, %v5953
  %v6018 = vmul.f32 %v5506, %v5954
  %v6019 = vmul.f32 %v5507, %v5955
  %v6020 = vmul.f32 %v5508, %v5956
  %v6021 = vmul.f32 %v5509, %v5957
  %v6022 = vmul.f32 %v5510, %v5958
  %v6023 = vmul.f32 %v5511, %v5959
  %v6024 = vmul.f32 %v5512, %v5960
  %v6025 = vmul.f32 %v5513, %v5961
  %v6026 = vmul.f32 %v5514, %v5962
  %v6027 = vmul.f32 %v5515, %v5963
  %v6028 = vmul.f32 %v5516, %v5964
  %v6029 = vmul.f32 %v5517, %v5965
  %v6030 = vmul.f32 %v5518, %v5966
  %v6031 = vmul.f32 %v5519, %v5967
  %v6032 = vmul.f32 %v5520, %v5968
  %v6033 = vmul.f32 %v5521, %v5969
  %v6034 = vmul.f32 %v5522, %v5970
  %v6035 = vmul.f32 %v5523, %v5971
  %v6036 = vmul.f32 %v5524, %v5972
  %v6037 = vmul.f32 %v5525, %v5973
  %v6038 = vmul.f32 %v5526, %v5974
  %v6039 = vmul.f32 %v5527, %v5975
  %v6040 = vmul.f32 %v5528, %v5976
  %v6041 = vmul.f32 %v5529, %v5977
  %v6043 = vlaneseq
  %v6044 = vshrl.u32 %v6043, 7
  %v6045 = vsub.s32 0, %v6044
  %v6046 = vrot.slane %v5207, %v6045
  %v6048 = vmul.f32 %v5978, %v6046
  %v6049 = vmul.f32 %v5979, %v6046
  %v6050 = vmul.f32 %v5980, %v6046
  %v6051 = vmul.f32 %v5981, %v6046
  %v6052 = vmul.f32 %v5982, %v6046
  %v6053 = vmul.f32 %v5983, %v6046
  %v6054 = vmul.f32 %v5984, %v6046
  %v6055 = vmul.f32 %v5985, %v6046
  %v6056 = vmul.f32 %v5986, %v6046
  %v6057 = vmul.f32 %v5987, %v6046
  %v6058 = vmul.f32 %v5988, %v6046
  %v6059 = vmul.f32 %v5989, %v6046
  %v6060 = vmul.f32 %v5990, %v6046
  %v6061 = vmul.f32 %v5991, %v6046
  %v6062 = vmul.f32 %v5992, %v6046
  %v6063 = vmul.f32 %v5993, %v6046
  %v6064 = vmul.f32 %v5994, %v6046
  %v6065 = vmul.f32 %v5995, %v6046
  %v6066 = vmul.f32 %v5996, %v6046
  %v6067 = vmul.f32 %v5997, %v6046
  %v6068 = vmul.f32 %v5998, %v6046
  %v6069 = vmul.f32 %v5999, %v6046
  %v6070 = vmul.f32 %v6000, %v6046
  %v6071 = vmul.f32 %v6001, %v6046
  %v6072 = vmul.f32 %v6002, %v6046
  %v6073 = vmul.f32 %v6003, %v6046
  %v6074 = vmul.f32 %v6004, %v6046
  %v6075 = vmul.f32 %v6005, %v6046
  %v6076 = vmul.f32 %v6006, %v6046
  %v6077 = vmul.f32 %v6007, %v6046
  %v6078 = vmul.f32 %v6008, %v6046
  %v6079 = vmul.f32 %v6009, %v6046
  %v6080 = vmul.f32 %v6010, %v6046
  %v6081 = vmul.f32 %v6011, %v6046
  %v6082 = vmul.f32 %v6012, %v6046
  %v6083 = vmul.f32 %v6013, %v6046
  %v6084 = vmul.f32 %v6014, %v6046
  %v6085 = vmul.f32 %v6015, %v6046
  %v6086 = vmul.f32 %v6016, %v6046
  %v6087 = vmul.f32 %v6017, %v6046
  %v6088 = vmul.f32 %v6018, %v6046
  %v6089 = vmul.f32 %v6019, %v6046
  %v6090 = vmul.f32 %v6020, %v6046
  %v6091 = vmul.f32 %v6021, %v6046
  %v6092 = vmul.f32 %v6022, %v6046
  %v6093 = vmul.f32 %v6023, %v6046
  %v6094 = vmul.f32 %v6024, %v6046
  %v6095 = vmul.f32 %v6025, %v6046
  %v6096 = vmul.f32 %v6026, %v6046
  %v6097 = vmul.f32 %v6027, %v6046
  %v6098 = vmul.f32 %v6028, %v6046
  %v6099 = vmul.f32 %v6029, %v6046
  %v6100 = vmul.f32 %v6030, %v6046
  %v6101 = vmul.f32 %v6031, %v6046
  %v6102 = vmul.f32 %v6032, %v6046
  %v6103 = vmul.f32 %v6033, %v6046
  %v6104 = vmul.f32 %v6034, %v6046
  %v6105 = vmul.f32 %v6035, %v6046
  %v6106 = vmul.f32 %v6036, %v6046
  %v6107 = vmul.f32 %v6037, %v6046
  %v6108 = vmul.f32 %v6038, %v6046
  %v6109 = vmul.f32 %v6039, %v6046
  %v6110 = vmul.f32 %v6040, %v6046
  %v6111 = vmul.f32 %v6041, %v6046
  %v6113 = vlaneseq
  %v6114 = vshrl.u32 %v6113, 7
  %v6115 = vsub.s32 0, %v6114
  %v6116 = vrot.slane %v5208, %v6115
  %v6118 = vadd.f32 %v6048, %v6116
  %v6119 = vadd.f32 %v6049, %v6116
  %v6120 = vadd.f32 %v6050, %v6116
  %v6121 = vadd.f32 %v6051, %v6116
  %v6122 = vadd.f32 %v6052, %v6116
  %v6123 = vadd.f32 %v6053, %v6116
  %v6124 = vadd.f32 %v6054, %v6116
  %v6125 = vadd.f32 %v6055, %v6116
  %v6126 = vadd.f32 %v6056, %v6116
  %v6127 = vadd.f32 %v6057, %v6116
  %v6128 = vadd.f32 %v6058, %v6116
  %v6129 = vadd.f32 %v6059, %v6116
  %v6130 = vadd.f32 %v6060, %v6116
  %v6131 = vadd.f32 %v6061, %v6116
  %v6132 = vadd.f32 %v6062, %v6116
  %v6133 = vadd.f32 %v6063, %v6116
  %v6134 = vadd.f32 %v6064, %v6116
  %v6135 = vadd.f32 %v6065, %v6116
  %v6136 = vadd.f32 %v6066, %v6116
  %v6137 = vadd.f32 %v6067, %v6116
  %v6138 = vadd.f32 %v6068, %v6116
  %v6139 = vadd.f32 %v6069, %v6116
  %v6140 = vadd.f32 %v6070, %v6116
  %v6141 = vadd.f32 %v6071, %v6116
  %v6142 = vadd.f32 %v6072, %v6116
  %v6143 = vadd.f32 %v6073, %v6116
  %v6144 = vadd.f32 %v6074, %v6116
  %v6145 = vadd.f32 %v6075, %v6116
  %v6146 = vadd.f32 %v6076, %v6116
  %v6147 = vadd.f32 %v6077, %v6116
  %v6148 = vadd.f32 %v6078, %v6116
  %v6149 = vadd.f32 %v6079, %v6116
  %v6150 = vadd.f32 %v6080, %v6116
  %v6151 = vadd.f32 %v6081, %v6116
  %v6152 = vadd.f32 %v6082, %v6116
  %v6153 = vadd.f32 %v6083, %v6116
  %v6154 = vadd.f32 %v6084, %v6116
  %v6155 = vadd.f32 %v6085, %v6116
  %v6156 = vadd.f32 %v6086, %v6116
  %v6157 = vadd.f32 %v6087, %v6116
  %v6158 = vadd.f32 %v6088, %v6116
  %v6159 = vadd.f32 %v6089, %v6116
  %v6160 = vadd.f32 %v6090, %v6116
  %v6161 = vadd.f32 %v6091, %v6116
  %v6162 = vadd.f32 %v6092, %v6116
  %v6163 = vadd.f32 %v6093, %v6116
  %v6164 = vadd.f32 %v6094, %v6116
  %v6165 = vadd.f32 %v6095, %v6116
  %v6166 = vadd.f32 %v6096, %v6116
  %v6167 = vadd.f32 %v6097, %v6116
  %v6168 = vadd.f32 %v6098, %v6116
  %v6169 = vadd.f32 %v6099, %v6116
  %v6170 = vadd.f32 %v6100, %v6116
  %v6171 = vadd.f32 %v6101, %v6116
  %v6172 = vadd.f32 %v6102, %v6116
  %v6173 = vadd.f32 %v6103, %v6116
  %v6174 = vadd.f32 %v6104, %v6116
  %v6175 = vadd.f32 %v6105, %v6116
  %v6176 = vadd.f32 %v6106, %v6116
  %v6177 = vadd.f32 %v6107, %v6116
  %v6178 = vadd.f32 %v6108, %v6116
  %v6179 = vadd.f32 %v6109, %v6116
  %v6180 = vadd.f32 %v6110, %v6116
  %v6181 = vadd.f32 %v6111, %v6116
  %v6182 = vpack.c.bf16 %v6119, %v6118
  %v6183 = vpack.c.bf16 %v6121, %v6120
  %v6184 = vpack.c.bf16 %v6123, %v6122
  %v6185 = vpack.c.bf16 %v6125, %v6124
  %v6186 = vpack.c.bf16 %v6127, %v6126
  %v6187 = vpack.c.bf16 %v6129, %v6128
  %v6188 = vpack.c.bf16 %v6131, %v6130
  %v6189 = vpack.c.bf16 %v6133, %v6132
  %v6190 = vpack.c.bf16 %v6135, %v6134
  %v6191 = vpack.c.bf16 %v6137, %v6136
  %v6192 = vpack.c.bf16 %v6139, %v6138
  %v6193 = vpack.c.bf16 %v6141, %v6140
  %v6194 = vpack.c.bf16 %v6143, %v6142
  %v6195 = vpack.c.bf16 %v6145, %v6144
  %v6196 = vpack.c.bf16 %v6147, %v6146
  %v6197 = vpack.c.bf16 %v6149, %v6148
  %v6198 = vpack.c.bf16 %v6151, %v6150
  %v6199 = vpack.c.bf16 %v6153, %v6152
  %v6200 = vpack.c.bf16 %v6155, %v6154
  %v6201 = vpack.c.bf16 %v6157, %v6156
  %v6202 = vpack.c.bf16 %v6159, %v6158
  %v6203 = vpack.c.bf16 %v6161, %v6160
  %v6204 = vpack.c.bf16 %v6163, %v6162
  %v6205 = vpack.c.bf16 %v6165, %v6164
  %v6206 = vpack.c.bf16 %v6167, %v6166
  %v6207 = vpack.c.bf16 %v6169, %v6168
  %v6208 = vpack.c.bf16 %v6171, %v6170
  %v6209 = vpack.c.bf16 %v6173, %v6172
  %v6210 = vpack.c.bf16 %v6175, %v6174
  %v6211 = vpack.c.bf16 %v6177, %v6176
  %v6212 = vpack.c.bf16 %v6179, %v6178
  %v6213 = vpack.c.bf16 %v6181, %v6180
  %v6214 = vld [vmem:[%s8] sm:$0xff]
  %v6215 = vld [vmem:[%s8 + $0x8] sm:$0xff]
  %v6216 = vld [vmem:[%s8 + $0x10] sm:$0xff]
  %v6217 = vld [vmem:[%s8 + $0x18] sm:$0xff]
  %v6218 = vld [vmem:[%s8 + $0x20] sm:$0xff]
  %v6219 = vld [vmem:[%s8 + $0x28] sm:$0xff]
  %v6220 = vld [vmem:[%s8 + $0x30] sm:$0xff]
  %v6221 = vld [vmem:[%s8 + $0x38] sm:$0xff]
  %v6222 = vld [vmem:[%s9] sm:$0x3]
  %v6224 = vlaneseq
  %v6225 = vshrl.u32 %v6224, 7
  %v6226 = vsub.s32 0, %v6225
  %v6227 = vrot.slane %v6222, %v6226
  %v6228 = vlaneseq
  %v6229 = vshrl.u32 %v6228, 7
  %v6230 = vsub.s32 1, %v6229
  %v6231 = vrot.slane %v6222, %v6230
  %v6242 = vunpack.c.l.b16 %v6214
  %v6243 = vunpack.c.h.b16 %v6214
  %v6244 = vunpack.c.l.b16 %v6215
  %v6245 = vunpack.c.h.b16 %v6215
  %v6246 = vunpack.c.l.b16 %v6216
  %v6247 = vunpack.c.h.b16 %v6216
  %v6248 = vunpack.c.l.b16 %v6217
  %v6249 = vunpack.c.h.b16 %v6217
  %v6250 = vunpack.c.l.b16 %v6218
  %v6251 = vunpack.c.h.b16 %v6218
  %v6252 = vunpack.c.l.b16 %v6219
  %v6253 = vunpack.c.h.b16 %v6219
  %v6254 = vunpack.c.l.b16 %v6220
  %v6255 = vunpack.c.h.b16 %v6220
  %v6256 = vunpack.c.l.b16 %v6221
  %v6257 = vunpack.c.h.b16 %v6221
  %v6258 = vpack.c.b16 %v6244, %v6242
  %v6259 = vpack.c.b16 %v6245, %v6243
  %v6260 = vpack.c.b16 %v6248, %v6246
  %v6261 = vpack.c.b16 %v6249, %v6247
  %v6262 = vpack.c.b16 %v6252, %v6250
  %v6263 = vpack.c.b16 %v6253, %v6251
  %v6264 = vpack.c.b16 %v6256, %v6254
  %v6265 = vpack.c.b16 %v6257, %v6255
  %v6275 = vsel %vm186, %v6182, 0
  %v6278 = vsel %vm186, %v6183, 0
  %v6281 = vsel %vm186, %v6184, 0
  %v6284 = vsel %vm186, %v6185, 0
  %v6287 = vsel %vm186, %v6186, 0
  %v6290 = vsel %vm186, %v6187, 0
  %v6293 = vsel %vm186, %v6188, 0
  %v6296 = vsel %vm186, %v6189, 0
  %v6299 = vsel %vm186, %v6190, 0
  %v6302 = vsel %vm186, %v6191, 0
  %v6305 = vsel %vm186, %v6192, 0
  %v6308 = vsel %vm186, %v6193, 0
  %v6311 = vsel %vm186, %v6194, 0
  %v6314 = vsel %vm186, %v6195, 0
  %v6317 = vsel %vm186, %v6196, 0
  %v6320 = vsel %vm186, %v6197, 0
  %v6323 = vsel %vm186, %v6198, 0
  %v6326 = vsel %vm186, %v6199, 0
  %v6329 = vsel %vm186, %v6200, 0
  %v6332 = vsel %vm186, %v6201, 0
  %v6335 = vsel %vm186, %v6202, 0
  %v6338 = vsel %vm186, %v6203, 0
  %v6341 = vsel %vm186, %v6204, 0
  %v6344 = vsel %vm186, %v6205, 0
  %v6347 = vsel %vm186, %v6206, 0
  %v6350 = vsel %vm186, %v6207, 0
  %v6353 = vsel %vm186, %v6208, 0
  %v6356 = vsel %vm186, %v6209, 0
  %v6359 = vsel %vm186, %v6210, 0
  %v6362 = vsel %vm186, %v6211, 0
  %v6365 = vsel %vm186, %v6212, 0
  %v6368 = vsel %vm186, %v6213, 0
  %6370 = vmatprep.subr.bf16.mxu0 %v6259
  %6371 = vmatpush1.bf16.msra.mxu0 %v6258
  %6372 = vmatprep.subr.bf16.mxu0 %v6261
  %6373 = vmatpush1.bf16.msra.mxu0 %v6260
  %6374 = vmatprep.subr.bf16.mxu0 %v6263
  %6375 = vmatpush1.bf16.msra.mxu0 %v6262
  %6376 = vmatprep.subr.bf16.mxu0 %v6265
  %6377 = vmatpush1.bf16.msra.mxu0 %v6264
  %6378 = vmatprep.subr.bf16.mxu0 0
  %6379 = vmatpush1.bf16.msra.mxu0 0
  %6380 = vmatprep.subr.bf16.mxu0 0
  %6381 = vmatpush1.bf16.msra.mxu0 0
  %6382 = vmatprep.subr.bf16.mxu0 0
  %6383 = vmatpush1.bf16.msra.mxu0 0
  %6384 = vmatprep.subr.bf16.mxu0 0
  %6385 = vmatpush1.bf16.msra.mxu0 0
  %6386 = vmatprep.subr.bf16.mxu0 0
  %6387 = vmatpush1.bf16.msra.mxu0 0
  %6388 = vmatprep.subr.bf16.mxu0 0
  %6389 = vmatpush1.bf16.msra.mxu0 0
  %6390 = vmatprep.subr.bf16.mxu0 0
  %6391 = vmatpush1.bf16.msra.mxu0 0
  %6392 = vmatprep.subr.bf16.mxu0 0
  %6393 = vmatpush1.bf16.msra.mxu0 0
  %6394 = vmatprep.subr.bf16.mxu0 0
  %6395 = vmatpush1.bf16.msra.mxu0 0
  %6396 = vmatprep.subr.bf16.mxu0 0
  %6397 = vmatpush1.bf16.msra.mxu0 0
  %6398 = vmatprep.subr.bf16.mxu0 0
  %6399 = vmatpush1.bf16.msra.mxu0 0
  %6400 = vmatprep.subr.bf16.mxu0 0
  %6401 = vmatpush1.bf16.msra.mxu0 0
  %6402 = vmatprep.mubr.bf16.mxu0 0
  %6403 = vmatmul.mubr.bf16.gmra.mrb[0].mxu0 %v6275
  %v6404 = vpop.f32.mrb[0].mxu0
  %v6405 = vadd.f32 %v6227, %v6404
  %v6406 = vpop.f32.mrb[0].mxu0
  %v6407 = vadd.f32 %v6231, %v6406
  %v6408 = vpop.f32.mrb[0].mxu0
  %v6409 = vadd.f32 %v6227, %v6408
  %v6410 = vpop.f32.mrb[0].mxu0
  %v6411 = vadd.f32 %v6231, %v6410
  %6412 = vmatprep.mubr.bf16.mxu0 0
  %6413 = vmatmul.mubr.bf16.gmra.mrb[0].mxu0 %v6278
  %v6414 = vpop.f32.mrb[0].mxu0
  %v6415 = vadd.f32 %v6227, %v6414
  %v6416 = vpop.f32.mrb[0].mxu0
  %v6417 = vadd.f32 %v6231, %v6416
  %v6418 = vpop.f32.mrb[0].mxu0
  %v6419 = vadd.f32 %v6227, %v6418
  %v6420 = vpop.f32.mrb[0].mxu0
  %v6421 = vadd.f32 %v6231, %v6420
  %6422 = vmatprep.mubr.bf16.mxu0 0
  %6423 = vmatmul.mubr.bf16.gmra.mrb[0].mxu0 %v6281
  %v6424 = vpop.f32.mrb[0].mxu0
  %v6425 = vadd.f32 %v6227, %v6424
  %v6426 = vpop.f32.mrb[0].mxu0
  %v6427 = vadd.f32 %v6231, %v6426
  %v6428 = vpop.f32.mrb[0].mxu0
  %v6429 = vadd.f32 %v6227, %v6428
  %v6430 = vpop.f32.mrb[0].mxu0
  %v6431 = vadd.f32 %v6231, %v6430
  %6432 = vmatprep.mubr.bf16.mxu0 0
  %6433 = vmatmul.mubr.bf16.gmra.mrb[0].mxu0 %v6284
  %v6434 = vpop.f32.mrb[0].mxu0
  %v6435 = vadd.f32 %v6227, %v6434
  %v6436 = vpop.f32.mrb[0].mxu0
  %v6437 = vadd.f32 %v6231, %v6436
  %v6438 = vpop.f32.mrb[0].mxu0
  %v6439 = vadd.f32 %v6227, %v6438
  %v6440 = vpop.f32.mrb[0].mxu0
  %v6441 = vadd.f32 %v6231, %v6440
  %6442 = vmatprep.mubr.bf16.mxu0 0
  %6443 = vmatmul.mubr.bf16.gmra.mrb[0].mxu0 %v6287
  %v6444 = vpop.f32.mrb[0].mxu0
  %v6445 = vadd.f32 %v6227, %v6444
  %v6446 = vpop.f32.mrb[0].mxu0
  %v6447 = vadd.f32 %v6231, %v6446
  %v6448 = vpop.f32.mrb[0].mxu0
  %v6449 = vadd.f32 %v6227, %v6448
  %v6450 = vpop.f32.mrb[0].mxu0
  %v6451 = vadd.f32 %v6231, %v6450
  %6452 = vmatprep.mubr.bf16.mxu0 0
  %6453 = vmatmul.mubr.bf16.gmra.mrb[0].mxu0 %v6290
  %v6454 = vpop.f32.mrb[0].mxu0
  %v6455 = vadd.f32 %v6227, %v6454
  %v6456 = vpop.f32.mrb[0].mxu0
  %v6457 = vadd.f32 %v6231, %v6456
  %v6458 = vpop.f32.mrb[0].mxu0
  %v6459 = vadd.f32 %v6227, %v6458
  %v6460 = vpop.f32.mrb[0].mxu0
  %v6461 = vadd.f32 %v6231, %v6460
  %6462 = vmatprep.mubr.bf16.mxu0 0
  %6463 = vmatmul.mubr.bf16.gmra.mrb[0].mxu0 %v6293
  %v6464 = vpop.f32.mrb[0].mxu0
  %v6465 = vadd.f32 %v6227, %v6464
  %v6466 = vpop.f32.mrb[0].mxu0
  %v6467 = vadd.f32 %v6231, %v6466
  %v6468 = vpop.f32.mrb[0].mxu0
  %v6469 = vadd.f32 %v6227, %v6468
  %v6470 = vpop.f32.mrb[0].mxu0
  %v6471 = vadd.f32 %v6231, %v6470
  %6472 = vmatprep.mubr.bf16.mxu0 0
  %6473 = vmatmul.mubr.bf16.gmra.mrb[0].mxu0 %v6296
  %v6474 = vpop.f32.mrb[0].mxu0
  %v6475 = vadd.f32 %v6227, %v6474
  %v6476 = vpop.f32.mrb[0].mxu0
  %v6477 = vadd.f32 %v6231, %v6476
  %v6478 = vpop.f32.mrb[0].mxu0
  %v6479 = vadd.f32 %v6227, %v6478
  %v6480 = vpop.f32.mrb[0].mxu0
  %v6481 = vadd.f32 %v6231, %v6480
  %6482 = vmatprep.mubr.bf16.mxu0 0
  %6483 = vmatmul.mubr.bf16.gmra.mrb[0].mxu0 %v6299
  %v6484 = vpop.f32.mrb[0].mxu0
  %v6485 = vadd.f32 %v6227, %v6484
  %v6486 = vpop.f32.mrb[0].mxu0
  %v6487 = vadd.f32 %v6231, %v6486
  %v6488 = vpop.f32.mrb[0].mxu0
  %v6489 = vadd.f32 %v6227, %v6488
  %v6490 = vpop.f32.mrb[0].mxu0
  %v6491 = vadd.f32 %v6231, %v6490
  %6492 = vmatprep.mubr.bf16.mxu0 0
  %6493 = vmatmul.mubr.bf16.gmra.mrb[0].mxu0 %v6302
  %v6494 = vpop.f32.mrb[0].mxu0
  %v6495 = vadd.f32 %v6227, %v6494
  %v6496 = vpop.f32.mrb[0].mxu0
  %v6497 = vadd.f32 %v6231, %v6496
  %v6498 = vpop.f32.mrb[0].mxu0
  %v6499 = vadd.f32 %v6227, %v6498
  %v6500 = vpop.f32.mrb[0].mxu0
  %v6501 = vadd.f32 %v6231, %v6500
  %6502 = vmatprep.mubr.bf16.mxu0 0
  %6503 = vmatmul.mubr.bf16.gmra.mrb[0].mxu0 %v6305
  %v6504 = vpop.f32.mrb[0].mxu0
  %v6505 = vadd.f32 %v6227, %v6504
  %v6506 = vpop.f32.mrb[0].mxu0
  %v6507 = vadd.f32 %v6231, %v6506
  %v6508 = vpop.f32.mrb[0].mxu0
  %v6509 = vadd.f32 %v6227, %v6508
  %v6510 = vpop.f32.mrb[0].mxu0
  %v6511 = vadd.f32 %v6231, %v6510
  %6512 = vmatprep.mubr.bf16.mxu0 0
  %6513 = vmatmul.mubr.bf16.gmra.mrb[0].mxu0 %v6308
  %v6514 = vpop.f32.mrb[0].mxu0
  %v6515 = vadd.f32 %v6227, %v6514
  %v6516 = vpop.f32.mrb[0].mxu0
  %v6517 = vadd.f32 %v6231, %v6516
  %v6518 = vpop.f32.mrb[0].mxu0
  %v6519 = vadd.f32 %v6227, %v6518
  %v6520 = vpop.f32.mrb[0].mxu0
  %v6521 = vadd.f32 %v6231, %v6520
  %6522 = vmatprep.mubr.bf16.mxu0 0
  %6523 = vmatmul.mubr.bf16.gmra.mrb[0].mxu0 %v6311
  %v6524 = vpop.f32.mrb[0].mxu0
  %v6525 = vadd.f32 %v6227, %v6524
  %v6526 = vpop.f32.mrb[0].mxu0
  %v6527 = vadd.f32 %v6231, %v6526
  %v6528 = vpop.f32.mrb[0].mxu0
  %v6529 = vadd.f32 %v6227, %v6528
  %v6530 = vpop.f32.mrb[0].mxu0
  %v6531 = vadd.f32 %v6231, %v6530
  %6532 = vmatprep.mubr.bf16.mxu0 0
  %6533 = vmatmul.mubr.bf16.gmra.mrb[0].mxu0 %v6314
  %v6534 = vpop.f32.mrb[0].mxu0
  %v6535 = vadd.f32 %v6227, %v6534
  %v6536 = vpop.f32.mrb[0].mxu0
  %v6537 = vadd.f32 %v6231, %v6536
  %v6538 = vpop.f32.mrb[0].mxu0
  %v6539 = vadd.f32 %v6227, %v6538
  %v6540 = vpop.f32.mrb[0].mxu0
  %v6541 = vadd.f32 %v6231, %v6540
  %6542 = vmatprep.mubr.bf16.mxu0 0
  %6543 = vmatmul.mubr.bf16.gmra.mrb[0].mxu0 %v6317
  %v6544 = vpop.f32.mrb[0].mxu0
  %v6545 = vadd.f32 %v6227, %v6544
  %v6546 = vpop.f32.mrb[0].mxu0
  %v6547 = vadd.f32 %v6231, %v6546
  %v6548 = vpop.f32.mrb[0].mxu0
  %v6549 = vadd.f32 %v6227, %v6548
  %v6550 = vpop.f32.mrb[0].mxu0
  %v6551 = vadd.f32 %v6231, %v6550
  %6552 = vmatprep.mubr.bf16.mxu0 0
  %6553 = vmatmul.mubr.bf16.gmra.mrb[0].mxu0 %v6320
  %v6554 = vpop.f32.mrb[0].mxu0
  %v6555 = vadd.f32 %v6227, %v6554
  %v6556 = vpop.f32.mrb[0].mxu0
  %v6557 = vadd.f32 %v6231, %v6556
  %v6558 = vpop.f32.mrb[0].mxu0
  %v6559 = vadd.f32 %v6227, %v6558
  %v6560 = vpop.f32.mrb[0].mxu0
  %v6561 = vadd.f32 %v6231, %v6560
  %6562 = vmatprep.mubr.bf16.mxu0 0
  %6563 = vmatmul.mubr.bf16.gmra.mrb[0].mxu0 %v6323
  %v6564 = vpop.f32.mrb[0].mxu0
  %v6565 = vadd.f32 %v6227, %v6564
  %v6566 = vpop.f32.mrb[0].mxu0
  %v6567 = vadd.f32 %v6231, %v6566
  %v6568 = vpop.f32.mrb[0].mxu0
  %v6569 = vadd.f32 %v6227, %v6568
  %v6570 = vpop.f32.mrb[0].mxu0
  %v6571 = vadd.f32 %v6231, %v6570
  %6572 = vmatprep.mubr.bf16.mxu0 0
  %6573 = vmatmul.mubr.bf16.gmra.mrb[0].mxu0 %v6326
  %v6574 = vpop.f32.mrb[0].mxu0
  %v6575 = vadd.f32 %v6227, %v6574
  %v6576 = vpop.f32.mrb[0].mxu0
  %v6577 = vadd.f32 %v6231, %v6576
  %v6578 = vpop.f32.mrb[0].mxu0
  %v6579 = vadd.f32 %v6227, %v6578
  %v6580 = vpop.f32.mrb[0].mxu0
  %v6581 = vadd.f32 %v6231, %v6580
  %6582 = vmatprep.mubr.bf16.mxu0 0
  %6583 = vmatmul.mubr.bf16.gmra.mrb[0].mxu0 %v6329
  %v6584 = vpop.f32.mrb[0].mxu0
  %v6585 = vadd.f32 %v6227, %v6584
  %v6586 = vpop.f32.mrb[0].mxu0
  %v6587 = vadd.f32 %v6231, %v6586
  %v6588 = vpop.f32.mrb[0].mxu0
  %v6589 = vadd.f32 %v6227, %v6588
  %v6590 = vpop.f32.mrb[0].mxu0
  %v6591 = vadd.f32 %v6231, %v6590
  %6592 = vmatprep.mubr.bf16.mxu0 0
  %6593 = vmatmul.mubr.bf16.gmra.mrb[0].mxu0 %v6332
  %v6594 = vpop.f32.mrb[0].mxu0
  %v6595 = vadd.f32 %v6227, %v6594
  %v6596 = vpop.f32.mrb[0].mxu0
  %v6597 = vadd.f32 %v6231, %v6596
  %v6598 = vpop.f32.mrb[0].mxu0
  %v6599 = vadd.f32 %v6227, %v6598
  %v6600 = vpop.f32.mrb[0].mxu0
  %v6601 = vadd.f32 %v6231, %v6600
  %6602 = vmatprep.mubr.bf16.mxu0 0
  %6603 = vmatmul.mubr.bf16.gmra.mrb[0].mxu0 %v6335
  %v6604 = vpop.f32.mrb[0].mxu0
  %v6605 = vadd.f32 %v6227, %v6604
  %v6606 = vpop.f32.mrb[0].mxu0
  %v6607 = vadd.f32 %v6231, %v6606
  %v6608 = vpop.f32.mrb[0].mxu0
  %v6609 = vadd.f32 %v6227, %v6608
  %v6610 = vpop.f32.mrb[0].mxu0
  %v6611 = vadd.f32 %v6231, %v6610
  %6612 = vmatprep.mubr.bf16.mxu0 0
  %6613 = vmatmul.mubr.bf16.gmra.mrb[0].mxu0 %v6338
  %v6614 = vpop.f32.mrb[0].mxu0
  %v6615 = vadd.f32 %v6227, %v6614
  %v6616 = vpop.f32.mrb[0].mxu0
  %v6617 = vadd.f32 %v6231, %v6616
  %v6618 = vpop.f32.mrb[0].mxu0
  %v6619 = vadd.f32 %v6227, %v6618
  %v6620 = vpop.f32.mrb[0].mxu0
  %v6621 = vadd.f32 %v6231, %v6620
  %6622 = vmatprep.mubr.bf16.mxu0 0
  %6623 = vmatmul.mubr.bf16.gmra.mrb[0].mxu0 %v6341
  %v6624 = vpop.f32.mrb[0].mxu0
  %v6625 = vadd.f32 %v6227, %v6624
  %v6626 = vpop.f32.mrb[0].mxu0
  %v6627 = vadd.f32 %v6231, %v6626
  %v6628 = vpop.f32.mrb[0].mxu0
  %v6629 = vadd.f32 %v6227, %v6628
  %v6630 = vpop.f32.mrb[0].mxu0
  %v6631 = vadd.f32 %v6231, %v6630
  %6632 = vmatprep.mubr.bf16.mxu0 0
  %6633 = vmatmul.mubr.bf16.gmra.mrb[0].mxu0 %v6344
  %v6634 = vpop.f32.mrb[0].mxu0
  %v6635 = vadd.f32 %v6227, %v6634
  %v6636 = vpop.f32.mrb[0].mxu0
  %v6637 = vadd.f32 %v6231, %v6636
  %v6638 = vpop.f32.mrb[0].mxu0
  %v6639 = vadd.f32 %v6227, %v6638
  %v6640 = vpop.f32.mrb[0].mxu0
  %v6641 = vadd.f32 %v6231, %v6640
  %6642 = vmatprep.mubr.bf16.mxu0 0
  %6643 = vmatmul.mubr.bf16.gmra.mrb[0].mxu0 %v6347
  %v6644 = vpop.f32.mrb[0].mxu0
  %v6645 = vadd.f32 %v6227, %v6644
  %v6646 = vpop.f32.mrb[0].mxu0
  %v6647 = vadd.f32 %v6231, %v6646
  %v6648 = vpop.f32.mrb[0].mxu0
  %v6649 = vadd.f32 %v6227, %v6648
  %v6650 = vpop.f32.mrb[0].mxu0
  %v6651 = vadd.f32 %v6231, %v6650
  %6652 = vmatprep.mubr.bf16.mxu0 0
  %6653 = vmatmul.mubr.bf16.gmra.mrb[0].mxu0 %v6350
  %v6654 = vpop.f32.mrb[0].mxu0
  %v6655 = vadd.f32 %v6227, %v6654
  %v6656 = vpop.f32.mrb[0].mxu0
  %v6657 = vadd.f32 %v6231, %v6656
  %v6658 = vpop.f32.mrb[0].mxu0
  %v6659 = vadd.f32 %v6227, %v6658
  %v6660 = vpop.f32.mrb[0].mxu0
  %v6661 = vadd.f32 %v6231, %v6660
  %6662 = vmatprep.mubr.bf16.mxu0 0
  %6663 = vmatmul.mubr.bf16.gmra.mrb[0].mxu0 %v6353
  %v6664 = vpop.f32.mrb[0].mxu0
  %v6665 = vadd.f32 %v6227, %v6664
  %v6666 = vpop.f32.mrb[0].mxu0
  %v6667 = vadd.f32 %v6231, %v6666
  %v6668 = vpop.f32.mrb[0].mxu0
  %v6669 = vadd.f32 %v6227, %v6668
  %v6670 = vpop.f32.mrb[0].mxu0
  %v6671 = vadd.f32 %v6231, %v6670
  %6672 = vmatprep.mubr.bf16.mxu0 0
  %6673 = vmatmul.mubr.bf16.gmra.mrb[0].mxu0 %v6356
  %v6674 = vpop.f32.mrb[0].mxu0
  %v6675 = vadd.f32 %v6227, %v6674
  %v6676 = vpop.f32.mrb[0].mxu0
  %v6677 = vadd.f32 %v6231, %v6676
  %v6678 = vpop.f32.mrb[0].mxu0
  %v6679 = vadd.f32 %v6227, %v6678
  %v6680 = vpop.f32.mrb[0].mxu0
  %v6681 = vadd.f32 %v6231, %v6680
  %6682 = vmatprep.mubr.bf16.mxu0 0
  %6683 = vmatmul.mubr.bf16.gmra.mrb[0].mxu0 %v6359
  %v6684 = vpop.f32.mrb[0].mxu0
  %v6685 = vadd.f32 %v6227, %v6684
  %v6686 = vpop.f32.mrb[0].mxu0
  %v6687 = vadd.f32 %v6231, %v6686
  %v6688 = vpop.f32.mrb[0].mxu0
  %v6689 = vadd.f32 %v6227, %v6688
  %v6690 = vpop.f32.mrb[0].mxu0
  %v6691 = vadd.f32 %v6231, %v6690
  %6692 = vmatprep.mubr.bf16.mxu0 0
  %6693 = vmatmul.mubr.bf16.gmra.mrb[0].mxu0 %v6362
  %v6694 = vpop.f32.mrb[0].mxu0
  %v6695 = vadd.f32 %v6227, %v6694
  %v6696 = vpop.f32.mrb[0].mxu0
  %v6697 = vadd.f32 %v6231, %v6696
  %v6698 = vpop.f32.mrb[0].mxu0
  %v6699 = vadd.f32 %v6227, %v6698
  %v6700 = vpop.f32.mrb[0].mxu0
  %v6701 = vadd.f32 %v6231, %v6700
  %6702 = vmatprep.mubr.bf16.mxu0 0
  %6703 = vmatmul.mubr.bf16.gmra.mrb[0].mxu0 %v6365
  %v6704 = vpop.f32.mrb[0].mxu0
  %v6705 = vadd.f32 %v6227, %v6704
  %v6706 = vpop.f32.mrb[0].mxu0
  %v6707 = vadd.f32 %v6231, %v6706
  %v6708 = vpop.f32.mrb[0].mxu0
  %v6709 = vadd.f32 %v6227, %v6708
  %v6710 = vpop.f32.mrb[0].mxu0
  %v6711 = vadd.f32 %v6231, %v6710
  %6712 = vmatprep.mubr.bf16.mxu0 0
  %6713 = vmatmul.mubr.bf16.gmra.mrb[0].mxu0 %v6368
  %v6714 = vpop.f32.mrb[0].mxu0
  %v6715 = vadd.f32 %v6227, %v6714
  %v6716 = vpop.f32.mrb[0].mxu0
  %v6717 = vadd.f32 %v6231, %v6716
  %v6718 = vpop.f32.mrb[0].mxu0
  %v6719 = vadd.f32 %v6227, %v6718
  %v6720 = vpop.f32.mrb[0].mxu0
  %v6721 = vadd.f32 %v6231, %v6720
  %6722 = vdwg.mxu0
  %v6723 = vmul.f32 %v6405, 0.70710677
  %v6724 = vmul.f32 %v6407, 0.70710677
  %v6725 = vmul.f32 %v6409, 0.70710677
  %v6726 = vmul.f32 %v6411, 0.70710677
  %v6727 = vmul.f32 %v6415, 0.70710677
  %v6728 = vmul.f32 %v6417, 0.70710677
  %v6729 = vmul.f32 %v6419, 0.70710677
  %v6730 = vmul.f32 %v6421, 0.70710677
  %v6731 = vmul.f32 %v6425, 0.70710677
  %v6732 = vmul.f32 %v6427, 0.70710677
  %v6733 = vmul.f32 %v6429, 0.70710677
  %v6734 = vmul.f32 %v6431, 0.70710677
  %v6735 = vmul.f32 %v6435, 0.70710677
  %v6736 = vmul.f32 %v6437, 0.70710677
  %v6737 = vmul.f32 %v6439, 0.70710677
  %v6738 = vmul.f32 %v6441, 0.70710677
  %v6739 = vmul.f32 %v6445, 0.70710677
  %v6740 = vmul.f32 %v6447, 0.70710677
  %v6741 = vmul.f32 %v6449, 0.70710677
  %v6742 = vmul.f32 %v6451, 0.70710677
  %v6743 = vmul.f32 %v6455, 0.70710677
  %v6744 = vmul.f32 %v6457, 0.70710677
  %v6745 = vmul.f32 %v6459, 0.70710677
  %v6746 = vmul.f32 %v6461, 0.70710677
  %v6747 = vmul.f32 %v6465, 0.70710677
  %v6748 = vmul.f32 %v6467, 0.70710677
  %v6749 = vmul.f32 %v6469, 0.70710677
  %v6750 = vmul.f32 %v6471, 0.70710677
  %v6751 = vmul.f32 %v6475, 0.70710677
  %v6752 = vmul.f32 %v6477, 0.70710677
  %v6753 = vmul.f32 %v6479, 0.70710677
  %v6754 = vmul.f32 %v6481, 0.70710677
  %v6755 = vmul.f32 %v6485, 0.70710677
  %v6756 = vmul.f32 %v6487, 0.70710677
  %v6757 = vmul.f32 %v6489, 0.70710677
  %v6758 = vmul.f32 %v6491, 0.70710677
  %v6759 = vmul.f32 %v6495, 0.70710677
  %v6760 = vmul.f32 %v6497, 0.70710677
  %v6761 = vmul.f32 %v6499, 0.70710677
  %v6762 = vmul.f32 %v6501, 0.70710677
  %v6763 = vmul.f32 %v6505, 0.70710677
  %v6764 = vmul.f32 %v6507, 0.70710677
  %v6765 = vmul.f32 %v6509, 0.70710677
  %v6766 = vmul.f32 %v6511, 0.70710677
  %v6767 = vmul.f32 %v6515, 0.70710677
  %v6768 = vmul.f32 %v6517, 0.70710677
  %v6769 = vmul.f32 %v6519, 0.70710677
  %v6770 = vmul.f32 %v6521, 0.70710677
  %v6771 = vmul.f32 %v6525, 0.70710677
  %v6772 = vmul.f32 %v6527, 0.70710677
  %v6773 = vmul.f32 %v6529, 0.70710677
  %v6774 = vmul.f32 %v6531, 0.70710677
  %v6775 = vmul.f32 %v6535, 0.70710677
  %v6776 = vmul.f32 %v6537, 0.70710677
  %v6777 = vmul.f32 %v6539, 0.70710677
  %v6778 = vmul.f32 %v6541, 0.70710677
  %v6779 = vmul.f32 %v6545, 0.70710677
  %v6780 = vmul.f32 %v6547, 0.70710677
  %v6781 = vmul.f32 %v6549, 0.70710677
  %v6782 = vmul.f32 %v6551, 0.70710677
  %v6783 = vmul.f32 %v6555, 0.70710677
  %v6784 = vmul.f32 %v6557, 0.70710677
  %v6785 = vmul.f32 %v6559, 0.70710677
  %v6786 = vmul.f32 %v6561, 0.70710677
  %v6787 = vmul.f32 %v6565, 0.70710677
  %v6788 = vmul.f32 %v6567, 0.70710677
  %v6789 = vmul.f32 %v6569, 0.70710677
  %v6790 = vmul.f32 %v6571, 0.70710677
  %v6791 = vmul.f32 %v6575, 0.70710677
  %v6792 = vmul.f32 %v6577, 0.70710677
  %v6793 = vmul.f32 %v6579, 0.70710677
  %v6794 = vmul.f32 %v6581, 0.70710677
  %v6795 = vmul.f32 %v6585, 0.70710677
  %v6796 = vmul.f32 %v6587, 0.70710677
  %v6797 = vmul.f32 %v6589, 0.70710677
  %v6798 = vmul.f32 %v6591, 0.70710677
  %v6799 = vmul.f32 %v6595, 0.70710677
  %v6800 = vmul.f32 %v6597, 0.70710677
  %v6801 = vmul.f32 %v6599, 0.70710677
  %v6802 = vmul.f32 %v6601, 0.70710677
  %v6803 = vmul.f32 %v6605, 0.70710677
  %v6804 = vmul.f32 %v6607, 0.70710677
  %v6805 = vmul.f32 %v6609, 0.70710677
  %v6806 = vmul.f32 %v6611, 0.70710677
  %v6807 = vmul.f32 %v6615, 0.70710677
  %v6808 = vmul.f32 %v6617, 0.70710677
  %v6809 = vmul.f32 %v6619, 0.70710677
  %v6810 = vmul.f32 %v6621, 0.70710677
  %v6811 = vmul.f32 %v6625, 0.70710677
  %v6812 = vmul.f32 %v6627, 0.70710677
  %v6813 = vmul.f32 %v6629, 0.70710677
  %v6814 = vmul.f32 %v6631, 0.70710677
  %v6815 = vmul.f32 %v6635, 0.70710677
  %v6816 = vmul.f32 %v6637, 0.70710677
  %v6817 = vmul.f32 %v6639, 0.70710677
  %v6818 = vmul.f32 %v6641, 0.70710677
  %v6819 = vmul.f32 %v6645, 0.70710677
  %v6820 = vmul.f32 %v6647, 0.70710677
  %v6821 = vmul.f32 %v6649, 0.70710677
  %v6822 = vmul.f32 %v6651, 0.70710677
  %v6823 = vmul.f32 %v6655, 0.70710677
  %v6824 = vmul.f32 %v6657, 0.70710677
  %v6825 = vmul.f32 %v6659, 0.70710677
  %v6826 = vmul.f32 %v6661, 0.70710677
  %v6827 = vmul.f32 %v6665, 0.70710677
  %v6828 = vmul.f32 %v6667, 0.70710677
  %v6829 = vmul.f32 %v6669, 0.70710677
  %v6830 = vmul.f32 %v6671, 0.70710677
  %v6831 = vmul.f32 %v6675, 0.70710677
  %v6832 = vmul.f32 %v6677, 0.70710677
  %v6833 = vmul.f32 %v6679, 0.70710677
  %v6834 = vmul.f32 %v6681, 0.70710677
  %v6835 = vmul.f32 %v6685, 0.70710677
  %v6836 = vmul.f32 %v6687, 0.70710677
  %v6837 = vmul.f32 %v6689, 0.70710677
  %v6838 = vmul.f32 %v6691, 0.70710677
  %v6839 = vmul.f32 %v6695, 0.70710677
  %v6840 = vmul.f32 %v6697, 0.70710677
  %v6841 = vmul.f32 %v6699, 0.70710677
  %v6842 = vmul.f32 %v6701, 0.70710677
  %v6843 = vmul.f32 %v6705, 0.70710677
  %v6844 = vmul.f32 %v6707, 0.70710677
  %v6845 = vmul.f32 %v6709, 0.70710677
  %v6846 = vmul.f32 %v6711, 0.70710677
  %v6847 = vmul.f32 %v6715, 0.70710677
  %v6848 = vmul.f32 %v6717, 0.70710677
  %v6849 = vmul.f32 %v6719, 0.70710677
  %v6850 = vmul.f32 %v6721, 0.70710677
  %v6851 = vand.u32 2147483647, %v6723
  %v6852 = vand.u32 2147483647, %v6724
  %v6853 = vand.u32 2147483647, %v6725
  %v6854 = vand.u32 2147483647, %v6726
  %v6855 = vand.u32 2147483647, %v6727
  %v6856 = vand.u32 2147483647, %v6728
  %v6857 = vand.u32 2147483647, %v6729
  %v6858 = vand.u32 2147483647, %v6730
  %v6859 = vand.u32 2147483647, %v6731
  %v6860 = vand.u32 2147483647, %v6732
  %v6861 = vand.u32 2147483647, %v6733
  %v6862 = vand.u32 2147483647, %v6734
  %v6863 = vand.u32 2147483647, %v6735
  %v6864 = vand.u32 2147483647, %v6736
  %v6865 = vand.u32 2147483647, %v6737
  %v6866 = vand.u32 2147483647, %v6738
  %v6867 = vand.u32 2147483647, %v6739
  %v6868 = vand.u32 2147483647, %v6740
  %v6869 = vand.u32 2147483647, %v6741
  %v6870 = vand.u32 2147483647, %v6742
  %v6871 = vand.u32 2147483647, %v6743
  %v6872 = vand.u32 2147483647, %v6744
  %v6873 = vand.u32 2147483647, %v6745
  %v6874 = vand.u32 2147483647, %v6746
  %v6875 = vand.u32 2147483647, %v6747
  %v6876 = vand.u32 2147483647, %v6748
  %v6877 = vand.u32 2147483647, %v6749
  %v6878 = vand.u32 2147483647, %v6750
  %v6879 = vand.u32 2147483647, %v6751
  %v6880 = vand.u32 2147483647, %v6752
  %v6881 = vand.u32 2147483647, %v6753
  %v6882 = vand.u32 2147483647, %v6754
  %v6883 = vand.u32 2147483647, %v6755
  %v6884 = vand.u32 2147483647, %v6756
  %v6885 = vand.u32 2147483647, %v6757
  %v6886 = vand.u32 2147483647, %v6758
  %v6887 = vand.u32 2147483647, %v6759
  %v6888 = vand.u32 2147483647, %v6760
  %v6889 = vand.u32 2147483647, %v6761
  %v6890 = vand.u32 2147483647, %v6762
  %v6891 = vand.u32 2147483647, %v6763
  %v6892 = vand.u32 2147483647, %v6764
  %v6893 = vand.u32 2147483647, %v6765
  %v6894 = vand.u32 2147483647, %v6766
  %v6895 = vand.u32 2147483647, %v6767
  %v6896 = vand.u32 2147483647, %v6768
  %v6897 = vand.u32 2147483647, %v6769
  %v6898 = vand.u32 2147483647, %v6770
  %v6899 = vand.u32 2147483647, %v6771
  %v6900 = vand.u32 2147483647, %v6772
  %v6901 = vand.u32 2147483647, %v6773
  %v6902 = vand.u32 2147483647, %v6774
  %v6903 = vand.u32 2147483647, %v6775
  %v6904 = vand.u32 2147483647, %v6776
  %v6905 = vand.u32 2147483647, %v6777
  %v6906 = vand.u32 2147483647, %v6778
  %v6907 = vand.u32 2147483647, %v6779
  %v6908 = vand.u32 2147483647, %v6780
  %v6909 = vand.u32 2147483647, %v6781
  %v6910 = vand.u32 2147483647, %v6782
  %v6911 = vand.u32 2147483647, %v6783
  %v6912 = vand.u32 2147483647, %v6784
  %v6913 = vand.u32 2147483647, %v6785
  %v6914 = vand.u32 2147483647, %v6786
  %v6915 = vand.u32 2147483647, %v6787
  %v6916 = vand.u32 2147483647, %v6788
  %v6917 = vand.u32 2147483647, %v6789
  %v6918 = vand.u32 2147483647, %v6790
  %v6919 = vand.u32 2147483647, %v6791
  %v6920 = vand.u32 2147483647, %v6792
  %v6921 = vand.u32 2147483647, %v6793
  %v6922 = vand.u32 2147483647, %v6794
  %v6923 = vand.u32 2147483647, %v6795
  %v6924 = vand.u32 2147483647, %v6796
  %v6925 = vand.u32 2147483647, %v6797
  %v6926 = vand.u32 2147483647, %v6798
  %v6927 = vand.u32 2147483647, %v6799
  %v6928 = vand.u32 2147483647, %v6800
  %v6929 = vand.u32 2147483647, %v6801
  %v6930 = vand.u32 2147483647, %v6802
  %v6931 = vand.u32 2147483647, %v6803
  %v6932 = vand.u32 2147483647, %v6804
  %v6933 = vand.u32 2147483647, %v6805
  %v6934 = vand.u32 2147483647, %v6806
  %v6935 = vand.u32 2147483647, %v6807
  %v6936 = vand.u32 2147483647, %v6808
  %v6937 = vand.u32 2147483647, %v6809
  %v6938 = vand.u32 2147483647, %v6810
  %v6939 = vand.u32 2147483647, %v6811
  %v6940 = vand.u32 2147483647, %v6812
  %v6941 = vand.u32 2147483647, %v6813
  %v6942 = vand.u32 2147483647, %v6814
  %v6943 = vand.u32 2147483647, %v6815
  %v6944 = vand.u32 2147483647, %v6816
  %v6945 = vand.u32 2147483647, %v6817
  %v6946 = vand.u32 2147483647, %v6818
  %v6947 = vand.u32 2147483647, %v6819
  %v6948 = vand.u32 2147483647, %v6820
  %v6949 = vand.u32 2147483647, %v6821
  %v6950 = vand.u32 2147483647, %v6822
  %v6951 = vand.u32 2147483647, %v6823
  %v6952 = vand.u32 2147483647, %v6824
  %v6953 = vand.u32 2147483647, %v6825
  %v6954 = vand.u32 2147483647, %v6826
  %v6955 = vand.u32 2147483647, %v6827
  %v6956 = vand.u32 2147483647, %v6828
  %v6957 = vand.u32 2147483647, %v6829
  %v6958 = vand.u32 2147483647, %v6830
  %v6959 = vand.u32 2147483647, %v6831
  %v6960 = vand.u32 2147483647, %v6832
  %v6961 = vand.u32 2147483647, %v6833
  %v6962 = vand.u32 2147483647, %v6834
  %v6963 = vand.u32 2147483647, %v6835
  %v6964 = vand.u32 2147483647, %v6836
  %v6965 = vand.u32 2147483647, %v6837
  %v6966 = vand.u32 2147483647, %v6838
  %v6967 = vand.u32 2147483647, %v6839
  %v6968 = vand.u32 2147483647, %v6840
  %v6969 = vand.u32 2147483647, %v6841
  %v6970 = vand.u32 2147483647, %v6842
  %v6971 = vand.u32 2147483647, %v6843
  %v6972 = vand.u32 2147483647, %v6844
  %v6973 = vand.u32 2147483647, %v6845
  %v6974 = vand.u32 2147483647, %v6846
  %v6975 = vand.u32 2147483647, %v6847
  %v6976 = vand.u32 2147483647, %v6848
  %v6977 = vand.u32 2147483647, %v6849
  %v6978 = vand.u32 2147483647, %v6850
  %v6979 = vmul.f32 %v6851, 0.3275911
  %v6980 = vmul.f32 %v6852, 0.3275911
  %v6981 = vmul.f32 %v6853, 0.3275911
  %v6982 = vmul.f32 %v6854, 0.3275911
  %v6983 = vmul.f32 %v6855, 0.3275911
  %v6984 = vmul.f32 %v6856, 0.3275911
  %v6985 = vmul.f32 %v6857, 0.3275911
  %v6986 = vmul.f32 %v6858, 0.3275911
  %v6987 = vmul.f32 %v6859, 0.3275911
  %v6988 = vmul.f32 %v6860, 0.3275911
  %v6989 = vmul.f32 %v6861, 0.3275911
  %v6990 = vmul.f32 %v6862, 0.3275911
  %v6991 = vmul.f32 %v6863, 0.3275911
  %v6992 = vmul.f32 %v6864, 0.3275911
  %v6993 = vmul.f32 %v6865, 0.3275911
  %v6994 = vmul.f32 %v6866, 0.3275911
  %v6995 = vmul.f32 %v6867, 0.3275911
  %v6996 = vmul.f32 %v6868, 0.3275911
  %v6997 = vmul.f32 %v6869, 0.3275911
  %v6998 = vmul.f32 %v6870, 0.3275911
  %v6999 = vmul.f32 %v6871, 0.3275911
  %v7000 = vmul.f32 %v6872, 0.3275911
  %v7001 = vmul.f32 %v6873, 0.3275911
  %v7002 = vmul.f32 %v6874, 0.3275911
  %v7003 = vmul.f32 %v6875, 0.3275911
  %v7004 = vmul.f32 %v6876, 0.3275911
  %v7005 = vmul.f32 %v6877, 0.3275911
  %v7006 = vmul.f32 %v6878, 0.3275911
  %v7007 = vmul.f32 %v6879, 0.3275911
  %v7008 = vmul.f32 %v6880, 0.3275911
  %v7009 = vmul.f32 %v6881, 0.3275911
  %v7010 = vmul.f32 %v6882, 0.3275911
  %v7011 = vmul.f32 %v6883, 0.3275911
  %v7012 = vmul.f32 %v6884, 0.3275911
  %v7013 = vmul.f32 %v6885, 0.3275911
  %v7014 = vmul.f32 %v6886, 0.3275911
  %v7015 = vmul.f32 %v6887, 0.3275911
  %v7016 = vmul.f32 %v6888, 0.3275911
  %v7017 = vmul.f32 %v6889, 0.3275911
  %v7018 = vmul.f32 %v6890, 0.3275911
  %v7019 = vmul.f32 %v6891, 0.3275911
  %v7020 = vmul.f32 %v6892, 0.3275911
  %v7021 = vmul.f32 %v6893, 0.3275911
  %v7022 = vmul.f32 %v6894, 0.3275911
  %v7023 = vmul.f32 %v6895, 0.3275911
  %v7024 = vmul.f32 %v6896, 0.3275911
  %v7025 = vmul.f32 %v6897, 0.3275911
  %v7026 = vmul.f32 %v6898, 0.3275911
  %v7027 = vmul.f32 %v6899, 0.3275911
  %v7028 = vmul.f32 %v6900, 0.3275911
  %v7029 = vmul.f32 %v6901, 0.3275911
  %v7030 = vmul.f32 %v6902, 0.3275911
  %v7031 = vmul.f32 %v6903, 0.3275911
  %v7032 = vmul.f32 %v6904, 0.3275911
  %v7033 = vmul.f32 %v6905, 0.3275911
  %v7034 = vmul.f32 %v6906, 0.3275911
  %v7035 = vmul.f32 %v6907, 0.3275911
  %v7036 = vmul.f32 %v6908, 0.3275911
  %v7037 = vmul.f32 %v6909, 0.3275911
  %v7038 = vmul.f32 %v6910, 0.3275911
  %v7039 = vmul.f32 %v6911, 0.3275911
  %v7040 = vmul.f32 %v6912, 0.3275911
  %v7041 = vmul.f32 %v6913, 0.3275911
  %v7042 = vmul.f32 %v6914, 0.3275911
  %v7043 = vmul.f32 %v6915, 0.3275911
  %v7044 = vmul.f32 %v6916, 0.3275911
  %v7045 = vmul.f32 %v6917, 0.3275911
  %v7046 = vmul.f32 %v6918, 0.3275911
  %v7047 = vmul.f32 %v6919, 0.3275911
  %v7048 = vmul.f32 %v6920, 0.3275911
  %v7049 = vmul.f32 %v6921, 0.3275911
  %v7050 = vmul.f32 %v6922, 0.3275911
  %v7051 = vmul.f32 %v6923, 0.3275911
  %v7052 = vmul.f32 %v6924, 0.3275911
  %v7053 = vmul.f32 %v6925, 0.3275911
  %v7054 = vmul.f32 %v6926, 0.3275911
  %v7055 = vmul.f32 %v6927, 0.3275911
  %v7056 = vmul.f32 %v6928, 0.3275911
  %v7057 = vmul.f32 %v6929, 0.3275911
  %v7058 = vmul.f32 %v6930, 0.3275911
  %v7059 = vmul.f32 %v6931, 0.3275911
  %v7060 = vmul.f32 %v6932, 0.3275911
  %v7061 = vmul.f32 %v6933, 0.3275911
  %v7062 = vmul.f32 %v6934, 0.3275911
  %v7063 = vmul.f32 %v6935, 0.3275911
  %v7064 = vmul.f32 %v6936, 0.3275911
  %v7065 = vmul.f32 %v6937, 0.3275911
  %v7066 = vmul.f32 %v6938, 0.3275911
  %v7067 = vmul.f32 %v6939, 0.3275911
  %v7068 = vmul.f32 %v6940, 0.3275911
  %v7069 = vmul.f32 %v6941, 0.3275911
  %v7070 = vmul.f32 %v6942, 0.3275911
  %v7071 = vmul.f32 %v6943, 0.3275911
  %v7072 = vmul.f32 %v6944, 0.3275911
  %v7073 = vmul.f32 %v6945, 0.3275911
  %v7074 = vmul.f32 %v6946, 0.3275911
  %v7075 = vmul.f32 %v6947, 0.3275911
  %v7076 = vmul.f32 %v6948, 0.3275911
  %v7077 = vmul.f32 %v6949, 0.3275911
  %v7078 = vmul.f32 %v6950, 0.3275911
  %v7079 = vmul.f32 %v6951, 0.3275911
  %v7080 = vmul.f32 %v6952, 0.3275911
  %v7081 = vmul.f32 %v6953, 0.3275911
  %v7082 = vmul.f32 %v6954, 0.3275911
  %v7083 = vmul.f32 %v6955, 0.3275911
  %v7084 = vmul.f32 %v6956, 0.3275911
  %v7085 = vmul.f32 %v6957, 0.3275911
  %v7086 = vmul.f32 %v6958, 0.3275911
  %v7087 = vmul.f32 %v6959, 0.3275911
  %v7088 = vmul.f32 %v6960, 0.3275911
  %v7089 = vmul.f32 %v6961, 0.3275911
  %v7090 = vmul.f32 %v6962, 0.3275911
  %v7091 = vmul.f32 %v6963, 0.3275911
  %v7092 = vmul.f32 %v6964, 0.3275911
  %v7093 = vmul.f32 %v6965, 0.3275911
  %v7094 = vmul.f32 %v6966, 0.3275911
  %v7095 = vmul.f32 %v6967, 0.3275911
  %v7096 = vmul.f32 %v6968, 0.3275911
  %v7097 = vmul.f32 %v6969, 0.3275911
  %v7098 = vmul.f32 %v6970, 0.3275911
  %v7099 = vmul.f32 %v6971, 0.3275911
  %v7100 = vmul.f32 %v6972, 0.3275911
  %v7101 = vmul.f32 %v6973, 0.3275911
  %v7102 = vmul.f32 %v6974, 0.3275911
  %v7103 = vmul.f32 %v6975, 0.3275911
  %v7104 = vmul.f32 %v6976, 0.3275911
  %v7105 = vmul.f32 %v6977, 0.3275911
  %v7106 = vmul.f32 %v6978, 0.3275911
  %v7107 = vadd.f32 %v6979, 1.0
  %v7108 = vadd.f32 %v6980, 1.0
  %v7109 = vadd.f32 %v6981, 1.0
  %v7110 = vadd.f32 %v6982, 1.0
  %v7111 = vadd.f32 %v6983, 1.0
  %v7112 = vadd.f32 %v6984, 1.0
  %v7113 = vadd.f32 %v6985, 1.0
  %v7114 = vadd.f32 %v6986, 1.0
  %v7115 = vadd.f32 %v6987, 1.0
  %v7116 = vadd.f32 %v6988, 1.0
  %v7117 = vadd.f32 %v6989, 1.0
  %v7118 = vadd.f32 %v6990, 1.0
  %v7119 = vadd.f32 %v6991, 1.0
  %v7120 = vadd.f32 %v6992, 1.0
  %v7121 = vadd.f32 %v6993, 1.0
  %v7122 = vadd.f32 %v6994, 1.0
  %v7123 = vadd.f32 %v6995, 1.0
  %v7124 = vadd.f32 %v6996, 1.0
  %v7125 = vadd.f32 %v6997, 1.0
  %v7126 = vadd.f32 %v6998, 1.0
  %v7127 = vadd.f32 %v6999, 1.0
  %v7128 = vadd.f32 %v7000, 1.0
  %v7129 = vadd.f32 %v7001, 1.0
  %v7130 = vadd.f32 %v7002, 1.0
  %v7131 = vadd.f32 %v7003, 1.0
  %v7132 = vadd.f32 %v7004, 1.0
  %v7133 = vadd.f32 %v7005, 1.0
  %v7134 = vadd.f32 %v7006, 1.0
  %v7135 = vadd.f32 %v7007, 1.0
  %v7136 = vadd.f32 %v7008, 1.0
  %v7137 = vadd.f32 %v7009, 1.0
  %v7138 = vadd.f32 %v7010, 1.0
  %v7139 = vadd.f32 %v7011, 1.0
  %v7140 = vadd.f32 %v7012, 1.0
  %v7141 = vadd.f32 %v7013, 1.0
  %v7142 = vadd.f32 %v7014, 1.0
  %v7143 = vadd.f32 %v7015, 1.0
  %v7144 = vadd.f32 %v7016, 1.0
  %v7145 = vadd.f32 %v7017, 1.0
  %v7146 = vadd.f32 %v7018, 1.0
  %v7147 = vadd.f32 %v7019, 1.0
  %v7148 = vadd.f32 %v7020, 1.0
  %v7149 = vadd.f32 %v7021, 1.0
  %v7150 = vadd.f32 %v7022, 1.0
  %v7151 = vadd.f32 %v7023, 1.0
  %v7152 = vadd.f32 %v7024, 1.0
  %v7153 = vadd.f32 %v7025, 1.0
  %v7154 = vadd.f32 %v7026, 1.0
  %v7155 = vadd.f32 %v7027, 1.0
  %v7156 = vadd.f32 %v7028, 1.0
  %v7157 = vadd.f32 %v7029, 1.0
  %v7158 = vadd.f32 %v7030, 1.0
  %v7159 = vadd.f32 %v7031, 1.0
  %v7160 = vadd.f32 %v7032, 1.0
  %v7161 = vadd.f32 %v7033, 1.0
  %v7162 = vadd.f32 %v7034, 1.0
  %v7163 = vadd.f32 %v7035, 1.0
  %v7164 = vadd.f32 %v7036, 1.0
  %v7165 = vadd.f32 %v7037, 1.0
  %v7166 = vadd.f32 %v7038, 1.0
  %v7167 = vadd.f32 %v7039, 1.0
  %v7168 = vadd.f32 %v7040, 1.0
  %v7169 = vadd.f32 %v7041, 1.0
  %v7170 = vadd.f32 %v7042, 1.0
  %v7171 = vadd.f32 %v7043, 1.0
  %v7172 = vadd.f32 %v7044, 1.0
  %v7173 = vadd.f32 %v7045, 1.0
  %v7174 = vadd.f32 %v7046, 1.0
  %v7175 = vadd.f32 %v7047, 1.0
  %v7176 = vadd.f32 %v7048, 1.0
  %v7177 = vadd.f32 %v7049, 1.0
  %v7178 = vadd.f32 %v7050, 1.0
  %v7179 = vadd.f32 %v7051, 1.0
  %v7180 = vadd.f32 %v7052, 1.0
  %v7181 = vadd.f32 %v7053, 1.0
  %v7182 = vadd.f32 %v7054, 1.0
  %v7183 = vadd.f32 %v7055, 1.0
  %v7184 = vadd.f32 %v7056, 1.0
  %v7185 = vadd.f32 %v7057, 1.0
  %v7186 = vadd.f32 %v7058, 1.0
  %v7187 = vadd.f32 %v7059, 1.0
  %v7188 = vadd.f32 %v7060, 1.0
  %v7189 = vadd.f32 %v7061, 1.0
  %v7190 = vadd.f32 %v7062, 1.0
  %v7191 = vadd.f32 %v7063, 1.0
  %v7192 = vadd.f32 %v7064, 1.0
  %v7193 = vadd.f32 %v7065, 1.0
  %v7194 = vadd.f32 %v7066, 1.0
  %v7195 = vadd.f32 %v7067, 1.0
  %v7196 = vadd.f32 %v7068, 1.0
  %v7197 = vadd.f32 %v7069, 1.0
  %v7198 = vadd.f32 %v7070, 1.0
  %v7199 = vadd.f32 %v7071, 1.0
  %v7200 = vadd.f32 %v7072, 1.0
  %v7201 = vadd.f32 %v7073, 1.0
  %v7202 = vadd.f32 %v7074, 1.0
  %v7203 = vadd.f32 %v7075, 1.0
  %v7204 = vadd.f32 %v7076, 1.0
  %v7205 = vadd.f32 %v7077, 1.0
  %v7206 = vadd.f32 %v7078, 1.0
  %v7207 = vadd.f32 %v7079, 1.0
  %v7208 = vadd.f32 %v7080, 1.0
  %v7209 = vadd.f32 %v7081, 1.0
  %v7210 = vadd.f32 %v7082, 1.0
  %v7211 = vadd.f32 %v7083, 1.0
  %v7212 = vadd.f32 %v7084, 1.0
  %v7213 = vadd.f32 %v7085, 1.0
  %v7214 = vadd.f32 %v7086, 1.0
  %v7215 = vadd.f32 %v7087, 1.0
  %v7216 = vadd.f32 %v7088, 1.0
  %v7217 = vadd.f32 %v7089, 1.0
  %v7218 = vadd.f32 %v7090, 1.0
  %v7219 = vadd.f32 %v7091, 1.0
  %v7220 = vadd.f32 %v7092, 1.0
  %v7221 = vadd.f32 %v7093, 1.0
  %v7222 = vadd.f32 %v7094, 1.0
  %v7223 = vadd.f32 %v7095, 1.0
  %v7224 = vadd.f32 %v7096, 1.0
  %v7225 = vadd.f32 %v7097, 1.0
  %v7226 = vadd.f32 %v7098, 1.0
  %v7227 = vadd.f32 %v7099, 1.0
  %v7228 = vadd.f32 %v7100, 1.0
  %v7229 = vadd.f32 %v7101, 1.0
  %v7230 = vadd.f32 %v7102, 1.0
  %v7231 = vadd.f32 %v7103, 1.0
  %v7232 = vadd.f32 %v7104, 1.0
  %v7233 = vadd.f32 %v7105, 1.0
  %v7234 = vadd.f32 %v7106, 1.0
  %v7235 = vrcp.pop %v7107
  %v7236 = vrcp.pop %v7108
  %v7237 = vrcp.pop %v7109
  %v7238 = vrcp.pop %v7110
  %v7239 = vrcp.pop %v7111
  %v7240 = vrcp.pop %v7112
  %v7241 = vrcp.pop %v7113
  %v7242 = vrcp.pop %v7114
  %v7243 = vrcp.pop %v7115
  %v7244 = vrcp.pop %v7116
  %v7245 = vrcp.pop %v7117
  %v7246 = vrcp.pop %v7118
  %v7247 = vrcp.pop %v7119
  %v7248 = vrcp.pop %v7120
  %v7249 = vrcp.pop %v7121
  %v7250 = vrcp.pop %v7122
  %v7251 = vrcp.pop %v7123
  %v7252 = vrcp.pop %v7124
  %v7253 = vrcp.pop %v7125
  %v7254 = vrcp.pop %v7126
  %v7255 = vrcp.pop %v7127
  %v7256 = vrcp.pop %v7128
  %v7257 = vrcp.pop %v7129
  %v7258 = vrcp.pop %v7130
  %v7259 = vrcp.pop %v7131
  %v7260 = vrcp.pop %v7132
  %v7261 = vrcp.pop %v7133
  %v7262 = vrcp.pop %v7134
  %v7263 = vrcp.pop %v7135
  %v7264 = vrcp.pop %v7136
  %v7265 = vrcp.pop %v7137
  %v7266 = vrcp.pop %v7138
  %v7267 = vrcp.pop %v7139
  %v7268 = vrcp.pop %v7140
  %v7269 = vrcp.pop %v7141
  %v7270 = vrcp.pop %v7142
  %v7271 = vrcp.pop %v7143
  %v7272 = vrcp.pop %v7144
  %v7273 = vrcp.pop %v7145
  %v7274 = vrcp.pop %v7146
  %v7275 = vrcp.pop %v7147
  %v7276 = vrcp.pop %v7148
  %v7277 = vrcp.pop %v7149
  %v7278 = vrcp.pop %v7150
  %v7279 = vrcp.pop %v7151
  %v7280 = vrcp.pop %v7152
  %v7281 = vrcp.pop %v7153
  %v7282 = vrcp.pop %v7154
  %v7283 = vrcp.pop %v7155
  %v7284 = vrcp.pop %v7156
  %v7285 = vrcp.pop %v7157
  %v7286 = vrcp.pop %v7158
  %v7287 = vrcp.pop %v7159
  %v7288 = vrcp.pop %v7160
  %v7289 = vrcp.pop %v7161
  %v7290 = vrcp.pop %v7162
  %v7291 = vrcp.pop %v7163
  %v7292 = vrcp.pop %v7164
  %v7293 = vrcp.pop %v7165
  %v7294 = vrcp.pop %v7166
  %v7295 = vrcp.pop %v7167
  %v7296 = vrcp.pop %v7168
  %v7297 = vrcp.pop %v7169
  %v7298 = vrcp.pop %v7170
  %v7299 = vrcp.pop %v7171
  %v7300 = vrcp.pop %v7172
  %v7301 = vrcp.pop %v7173
  %v7302 = vrcp.pop %v7174
  %v7303 = vrcp.pop %v7175
  %v7304 = vrcp.pop %v7176
  %v7305 = vrcp.pop %v7177
  %v7306 = vrcp.pop %v7178
  %v7307 = vrcp.pop %v7179
  %v7308 = vrcp.pop %v7180
  %v7309 = vrcp.pop %v7181
  %v7310 = vrcp.pop %v7182
  %v7311 = vrcp.pop %v7183
  %v7312 = vrcp.pop %v7184
  %v7313 = vrcp.pop %v7185
  %v7314 = vrcp.pop %v7186
  %v7315 = vrcp.pop %v7187
  %v7316 = vrcp.pop %v7188
  %v7317 = vrcp.pop %v7189
  %v7318 = vrcp.pop %v7190
  %v7319 = vrcp.pop %v7191
  %v7320 = vrcp.pop %v7192
  %v7321 = vrcp.pop %v7193
  %v7322 = vrcp.pop %v7194
  %v7323 = vrcp.pop %v7195
  %v7324 = vrcp.pop %v7196
  %v7325 = vrcp.pop %v7197
  %v7326 = vrcp.pop %v7198
  %v7327 = vrcp.pop %v7199
  %v7328 = vrcp.pop %v7200
  %v7329 = vrcp.pop %v7201
  %v7330 = vrcp.pop %v7202
  %v7331 = vrcp.pop %v7203
  %v7332 = vrcp.pop %v7204
  %v7333 = vrcp.pop %v7205
  %v7334 = vrcp.pop %v7206
  %v7335 = vrcp.pop %v7207
  %v7336 = vrcp.pop %v7208
  %v7337 = vrcp.pop %v7209
  %v7338 = vrcp.pop %v7210
  %v7339 = vrcp.pop %v7211
  %v7340 = vrcp.pop %v7212
  %v7341 = vrcp.pop %v7213
  %v7342 = vrcp.pop %v7214
  %v7343 = vrcp.pop %v7215
  %v7344 = vrcp.pop %v7216
  %v7345 = vrcp.pop %v7217
  %v7346 = vrcp.pop %v7218
  %v7347 = vrcp.pop %v7219
  %v7348 = vrcp.pop %v7220
  %v7349 = vrcp.pop %v7221
  %v7350 = vrcp.pop %v7222
  %v7351 = vrcp.pop %v7223
  %v7352 = vrcp.pop %v7224
  %v7353 = vrcp.pop %v7225
  %v7354 = vrcp.pop %v7226
  %v7355 = vrcp.pop %v7227
  %v7356 = vrcp.pop %v7228
  %v7357 = vrcp.pop %v7229
  %v7358 = vrcp.pop %v7230
  %v7359 = vrcp.pop %v7231
  %v7360 = vrcp.pop %v7232
  %v7361 = vrcp.pop %v7233
  %v7362 = vrcp.pop %v7234
  %v7363 = vmul.f32 %v7235, 1.0614054
  %v7364 = vmul.f32 %v7236, 1.0614054
  %v7365 = vmul.f32 %v7237, 1.0614054
  %v7366 = vmul.f32 %v7238, 1.0614054
  %v7367 = vmul.f32 %v7239, 1.0614054
  %v7368 = vmul.f32 %v7240, 1.0614054
  %v7369 = vmul.f32 %v7241, 1.0614054
  %v7370 = vmul.f32 %v7242, 1.0614054
  %v7371 = vmul.f32 %v7243, 1.0614054
  %v7372 = vmul.f32 %v7244, 1.0614054
  %v7373 = vmul.f32 %v7245, 1.0614054
  %v7374 = vmul.f32 %v7246, 1.0614054
  %v7375 = vmul.f32 %v7247, 1.0614054
  %v7376 = vmul.f32 %v7248, 1.0614054
  %v7377 = vmul.f32 %v7249, 1.0614054
  %v7378 = vmul.f32 %v7250, 1.0614054
  %v7379 = vmul.f32 %v7251, 1.0614054
  %v7380 = vmul.f32 %v7252, 1.0614054
  %v7381 = vmul.f32 %v7253, 1.0614054
  %v7382 = vmul.f32 %v7254, 1.0614054
  %v7383 = vmul.f32 %v7255, 1.0614054
  %v7384 = vmul.f32 %v7256, 1.0614054
  %v7385 = vmul.f32 %v7257, 1.0614054
  %v7386 = vmul.f32 %v7258, 1.0614054
  %v7387 = vmul.f32 %v7259, 1.0614054
  %v7388 = vmul.f32 %v7260, 1.0614054
  %v7389 = vmul.f32 %v7261, 1.0614054
  %v7390 = vmul.f32 %v7262, 1.0614054
  %v7391 = vmul.f32 %v7263, 1.0614054
  %v7392 = vmul.f32 %v7264, 1.0614054
  %v7393 = vmul.f32 %v7265, 1.0614054
  %v7394 = vmul.f32 %v7266, 1.0614054
  %v7395 = vmul.f32 %v7267, 1.0614054
  %v7396 = vmul.f32 %v7268, 1.0614054
  %v7397 = vmul.f32 %v7269, 1.0614054
  %v7398 = vmul.f32 %v7270, 1.0614054
  %v7399 = vmul.f32 %v7271, 1.0614054
  %v7400 = vmul.f32 %v7272, 1.0614054
  %v7401 = vmul.f32 %v7273, 1.0614054
  %v7402 = vmul.f32 %v7274, 1.0614054
  %v7403 = vmul.f32 %v7275, 1.0614054
  %v7404 = vmul.f32 %v7276, 1.0614054
  %v7405 = vmul.f32 %v7277, 1.0614054
  %v7406 = vmul.f32 %v7278, 1.0614054
  %v7407 = vmul.f32 %v7279, 1.0614054
  %v7408 = vmul.f32 %v7280, 1.0614054
  %v7409 = vmul.f32 %v7281, 1.0614054
  %v7410 = vmul.f32 %v7282, 1.0614054
  %v7411 = vmul.f32 %v7283, 1.0614054
  %v7412 = vmul.f32 %v7284, 1.0614054
  %v7413 = vmul.f32 %v7285, 1.0614054
  %v7414 = vmul.f32 %v7286, 1.0614054
  %v7415 = vmul.f32 %v7287, 1.0614054
  %v7416 = vmul.f32 %v7288, 1.0614054
  %v7417 = vmul.f32 %v7289, 1.0614054
  %v7418 = vmul.f32 %v7290, 1.0614054
  %v7419 = vmul.f32 %v7291, 1.0614054
  %v7420 = vmul.f32 %v7292, 1.0614054
  %v7421 = vmul.f32 %v7293, 1.0614054
  %v7422 = vmul.f32 %v7294, 1.0614054
  %v7423 = vmul.f32 %v7295, 1.0614054
  %v7424 = vmul.f32 %v7296, 1.0614054
  %v7425 = vmul.f32 %v7297, 1.0614054
  %v7426 = vmul.f32 %v7298, 1.0614054
  %v7427 = vmul.f32 %v7299, 1.0614054
  %v7428 = vmul.f32 %v7300, 1.0614054
  %v7429 = vmul.f32 %v7301, 1.0614054
  %v7430 = vmul.f32 %v7302, 1.0614054
  %v7431 = vmul.f32 %v7303, 1.0614054
  %v7432 = vmul.f32 %v7304, 1.0614054
  %v7433 = vmul.f32 %v7305, 1.0614054
  %v7434 = vmul.f32 %v7306, 1.0614054
  %v7435 = vmul.f32 %v7307, 1.0614054
  %v7436 = vmul.f32 %v7308, 1.0614054
  %v7437 = vmul.f32 %v7309, 1.0614054
  %v7438 = vmul.f32 %v7310, 1.0614054
  %v7439 = vmul.f32 %v7311, 1.0614054
  %v7440 = vmul.f32 %v7312, 1.0614054
  %v7441 = vmul.f32 %v7313, 1.0614054
  %v7442 = vmul.f32 %v7314, 1.0614054
  %v7443 = vmul.f32 %v7315, 1.0614054
  %v7444 = vmul.f32 %v7316, 1.0614054
  %v7445 = vmul.f32 %v7317, 1.0614054
  %v7446 = vmul.f32 %v7318, 1.0614054
  %v7447 = vmul.f32 %v7319, 1.0614054
  %v7448 = vmul.f32 %v7320, 1.0614054
  %v7449 = vmul.f32 %v7321, 1.0614054
  %v7450 = vmul.f32 %v7322, 1.0614054
  %v7451 = vmul.f32 %v7323, 1.0614054
  %v7452 = vmul.f32 %v7324, 1.0614054
  %v7453 = vmul.f32 %v7325, 1.0614054
  %v7454 = vmul.f32 %v7326, 1.0614054
  %v7455 = vmul.f32 %v7327, 1.0614054
  %v7456 = vmul.f32 %v7328, 1.0614054
  %v7457 = vmul.f32 %v7329, 1.0614054
  %v7458 = vmul.f32 %v7330, 1.0614054
  %v7459 = vmul.f32 %v7331, 1.0614054
  %v7460 = vmul.f32 %v7332, 1.0614054
  %v7461 = vmul.f32 %v7333, 1.0614054
  %v7462 = vmul.f32 %v7334, 1.0614054
  %v7463 = vmul.f32 %v7335, 1.0614054
  %v7464 = vmul.f32 %v7336, 1.0614054
  %v7465 = vmul.f32 %v7337, 1.0614054
  %v7466 = vmul.f32 %v7338, 1.0614054
  %v7467 = vmul.f32 %v7339, 1.0614054
  %v7468 = vmul.f32 %v7340, 1.0614054
  %v7469 = vmul.f32 %v7341, 1.0614054
  %v7470 = vmul.f32 %v7342, 1.0614054
  %v7471 = vmul.f32 %v7343, 1.0614054
  %v7472 = vmul.f32 %v7344, 1.0614054
  %v7473 = vmul.f32 %v7345, 1.0614054
  %v7474 = vmul.f32 %v7346, 1.0614054
  %v7475 = vmul.f32 %v7347, 1.0614054
  %v7476 = vmul.f32 %v7348, 1.0614054
  %v7477 = vmul.f32 %v7349, 1.0614054
  %v7478 = vmul.f32 %v7350, 1.0614054
  %v7479 = vmul.f32 %v7351, 1.0614054
  %v7480 = vmul.f32 %v7352, 1.0614054
  %v7481 = vmul.f32 %v7353, 1.0614054
  %v7482 = vmul.f32 %v7354, 1.0614054
  %v7483 = vmul.f32 %v7355, 1.0614054
  %v7484 = vmul.f32 %v7356, 1.0614054
  %v7485 = vmul.f32 %v7357, 1.0614054
  %v7486 = vmul.f32 %v7358, 1.0614054
  %v7487 = vmul.f32 %v7359, 1.0614054
  %v7488 = vmul.f32 %v7360, 1.0614054
  %v7489 = vmul.f32 %v7361, 1.0614054
  %v7490 = vmul.f32 %v7362, 1.0614054
  %v7491 = vadd.f32 %v7363, -1.4531521
  %v7492 = vadd.f32 %v7364, -1.4531521
  %v7493 = vadd.f32 %v7365, -1.4531521
  %v7494 = vadd.f32 %v7366, -1.4531521
  %v7495 = vadd.f32 %v7367, -1.4531521
  %v7496 = vadd.f32 %v7368, -1.4531521
  %v7497 = vadd.f32 %v7369, -1.4531521
  %v7498 = vadd.f32 %v7370, -1.4531521
  %v7499 = vadd.f32 %v7371, -1.4531521
  %v7500 = vadd.f32 %v7372, -1.4531521
  %v7501 = vadd.f32 %v7373, -1.4531521
  %v7502 = vadd.f32 %v7374, -1.4531521
  %v7503 = vadd.f32 %v7375, -1.4531521
  %v7504 = vadd.f32 %v7376, -1.4531521
  %v7505 = vadd.f32 %v7377, -1.4531521
  %v7506 = vadd.f32 %v7378, -1.4531521
  %v7507 = vadd.f32 %v7379, -1.4531521
  %v7508 = vadd.f32 %v7380, -1.4531521
  %v7509 = vadd.f32 %v7381, -1.4531521
  %v7510 = vadd.f32 %v7382, -1.4531521
  %v7511 = vadd.f32 %v7383, -1.4531521
  %v7512 = vadd.f32 %v7384, -1.4531521
  %v7513 = vadd.f32 %v7385, -1.4531521
  %v7514 = vadd.f32 %v7386, -1.4531521
  %v7515 = vadd.f32 %v7387, -1.4531521
  %v7516 = vadd.f32 %v7388, -1.4531521
  %v7517 = vadd.f32 %v7389, -1.4531521
  %v7518 = vadd.f32 %v7390, -1.4531521
  %v7519 = vadd.f32 %v7391, -1.4531521
  %v7520 = vadd.f32 %v7392, -1.4531521
  %v7521 = vadd.f32 %v7393, -1.4531521
  %v7522 = vadd.f32 %v7394, -1.4531521
  %v7523 = vadd.f32 %v7395, -1.4531521
  %v7524 = vadd.f32 %v7396, -1.4531521
  %v7525 = vadd.f32 %v7397, -1.4531521
  %v7526 = vadd.f32 %v7398, -1.4531521
  %v7527 = vadd.f32 %v7399, -1.4531521
  %v7528 = vadd.f32 %v7400, -1.4531521
  %v7529 = vadd.f32 %v7401, -1.4531521
  %v7530 = vadd.f32 %v7402, -1.4531521
  %v7531 = vadd.f32 %v7403, -1.4531521
  %v7532 = vadd.f32 %v7404, -1.4531521
  %v7533 = vadd.f32 %v7405, -1.4531521
  %v7534 = vadd.f32 %v7406, -1.4531521
  %v7535 = vadd.f32 %v7407, -1.4531521
  %v7536 = vadd.f32 %v7408, -1.4531521
  %v7537 = vadd.f32 %v7409, -1.4531521
  %v7538 = vadd.f32 %v7410, -1.4531521
  %v7539 = vadd.f32 %v7411, -1.4531521
  %v7540 = vadd.f32 %v7412, -1.4531521
  %v7541 = vadd.f32 %v7413, -1.4531521
  %v7542 = vadd.f32 %v7414, -1.4531521
  %v7543 = vadd.f32 %v7415, -1.4531521
  %v7544 = vadd.f32 %v7416, -1.4531521
  %v7545 = vadd.f32 %v7417, -1.4531521
  %v7546 = vadd.f32 %v7418, -1.4531521
  %v7547 = vadd.f32 %v7419, -1.4531521
  %v7548 = vadd.f32 %v7420, -1.4531521
  %v7549 = vadd.f32 %v7421, -1.4531521
  %v7550 = vadd.f32 %v7422, -1.4531521
  %v7551 = vadd.f32 %v7423, -1.4531521
  %v7552 = vadd.f32 %v7424, -1.4531521
  %v7553 = vadd.f32 %v7425, -1.4531521
  %v7554 = vadd.f32 %v7426, -1.4531521
  %v7555 = vadd.f32 %v7427, -1.4531521
  %v7556 = vadd.f32 %v7428, -1.4531521
  %v7557 = vadd.f32 %v7429, -1.4531521
  %v7558 = vadd.f32 %v7430, -1.4531521
  %v7559 = vadd.f32 %v7431, -1.4531521
  %v7560 = vadd.f32 %v7432, -1.4531521
  %v7561 = vadd.f32 %v7433, -1.4531521
  %v7562 = vadd.f32 %v7434, -1.4531521
  %v7563 = vadd.f32 %v7435, -1.4531521
  %v7564 = vadd.f32 %v7436, -1.4531521
  %v7565 = vadd.f32 %v7437, -1.4531521
  %v7566 = vadd.f32 %v7438, -1.4531521
  %v7567 = vadd.f32 %v7439, -1.4531521
  %v7568 = vadd.f32 %v7440, -1.4531521
  %v7569 = vadd.f32 %v7441, -1.4531521
  %v7570 = vadd.f32 %v7442, -1.4531521
  %v7571 = vadd.f32 %v7443, -1.4531521
  %v7572 = vadd.f32 %v7444, -1.4531521
  %v7573 = vadd.f32 %v7445, -1.4531521
  %v7574 = vadd.f32 %v7446, -1.4531521
  %v7575 = vadd.f32 %v7447, -1.4531521
  %v7576 = vadd.f32 %v7448, -1.4531521
  %v7577 = vadd.f32 %v7449, -1.4531521
  %v7578 = vadd.f32 %v7450, -1.4531521
  %v7579 = vadd.f32 %v7451, -1.4531521
  %v7580 = vadd.f32 %v7452, -1.4531521
  %v7581 = vadd.f32 %v7453, -1.4531521
  %v7582 = vadd.f32 %v7454, -1.4531521
  %v7583 = vadd.f32 %v7455, -1.4531521
  %v7584 = vadd.f32 %v7456, -1.4531521
  %v7585 = vadd.f32 %v7457, -1.4531521
  %v7586 = vadd.f32 %v7458, -1.4531521
  %v7587 = vadd.f32 %v7459, -1.4531521
  %v7588 = vadd.f32 %v7460, -1.4531521
  %v7589 = vadd.f32 %v7461, -1.4531521
  %v7590 = vadd.f32 %v7462, -1.4531521
  %v7591 = vadd.f32 %v7463, -1.4531521
  %v7592 = vadd.f32 %v7464, -1.4531521
  %v7593 = vadd.f32 %v7465, -1.4531521
  %v7594 = vadd.f32 %v7466, -1.4531521
  %v7595 = vadd.f32 %v7467, -1.4531521
  %v7596 = vadd.f32 %v7468, -1.4531521
  %v7597 = vadd.f32 %v7469, -1.4531521
  %v7598 = vadd.f32 %v7470, -1.4531521
  %v7599 = vadd.f32 %v7471, -1.4531521
  %v7600 = vadd.f32 %v7472, -1.4531521
  %v7601 = vadd.f32 %v7473, -1.4531521
  %v7602 = vadd.f32 %v7474, -1.4531521
  %v7603 = vadd.f32 %v7475, -1.4531521
  %v7604 = vadd.f32 %v7476, -1.4531521
  %v7605 = vadd.f32 %v7477, -1.4531521
  %v7606 = vadd.f32 %v7478, -1.4531521
  %v7607 = vadd.f32 %v7479, -1.4531521
  %v7608 = vadd.f32 %v7480, -1.4531521
  %v7609 = vadd.f32 %v7481, -1.4531521
  %v7610 = vadd.f32 %v7482, -1.4531521
  %v7611 = vadd.f32 %v7483, -1.4531521
  %v7612 = vadd.f32 %v7484, -1.4531521
  %v7613 = vadd.f32 %v7485, -1.4531521
  %v7614 = vadd.f32 %v7486, -1.4531521
  %v7615 = vadd.f32 %v7487, -1.4531521
  %v7616 = vadd.f32 %v7488, -1.4531521
  %v7617 = vadd.f32 %v7489, -1.4531521
  %v7618 = vadd.f32 %v7490, -1.4531521
  %v7619 = vmul.f32 %v7235, %v7491
  %v7620 = vmul.f32 %v7236, %v7492
  %v7621 = vmul.f32 %v7237, %v7493
  %v7622 = vmul.f32 %v7238, %v7494
  %v7623 = vmul.f32 %v7239, %v7495
  %v7624 = vmul.f32 %v7240, %v7496
  %v7625 = vmul.f32 %v7241, %v7497
  %v7626 = vmul.f32 %v7242, %v7498
  %v7627 = vmul.f32 %v7243, %v7499
  %v7628 = vmul.f32 %v7244, %v7500
  %v7629 = vmul.f32 %v7245, %v7501
  %v7630 = vmul.f32 %v7246, %v7502
  %v7631 = vmul.f32 %v7247, %v7503
  %v7632 = vmul.f32 %v7248, %v7504
  %v7633 = vmul.f32 %v7249, %v7505
  %v7634 = vmul.f32 %v7250, %v7506
  %v7635 = vmul.f32 %v7251, %v7507
  %v7636 = vmul.f32 %v7252, %v7508
  %v7637 = vmul.f32 %v7253, %v7509
  %v7638 = vmul.f32 %v7254, %v7510
  %v7639 = vmul.f32 %v7255, %v7511
  %v7640 = vmul.f32 %v7256, %v7512
  %v7641 = vmul.f32 %v7257, %v7513
  %v7642 = vmul.f32 %v7258, %v7514
  %v7643 = vmul.f32 %v7259, %v7515
  %v7644 = vmul.f32 %v7260, %v7516
  %v7645 = vmul.f32 %v7261, %v7517
  %v7646 = vmul.f32 %v7262, %v7518
  %v7647 = vmul.f32 %v7263, %v7519
  %v7648 = vmul.f32 %v7264, %v7520
  %v7649 = vmul.f32 %v7265, %v7521
  %v7650 = vmul.f32 %v7266, %v7522
  %v7651 = vmul.f32 %v7267, %v7523
  %v7652 = vmul.f32 %v7268, %v7524
  %v7653 = vmul.f32 %v7269, %v7525
  %v7654 = vmul.f32 %v7270, %v7526
  %v7655 = vmul.f32 %v7271, %v7527
  %v7656 = vmul.f32 %v7272, %v7528
  %v7657 = vmul.f32 %v7273, %v7529
  %v7658 = vmul.f32 %v7274, %v7530
  %v7659 = vmul.f32 %v7275, %v7531
  %v7660 = vmul.f32 %v7276, %v7532
  %v7661 = vmul.f32 %v7277, %v7533
  %v7662 = vmul.f32 %v7278, %v7534
  %v7663 = vmul.f32 %v7279, %v7535
  %v7664 = vmul.f32 %v7280, %v7536
  %v7665 = vmul.f32 %v7281, %v7537
  %v7666 = vmul.f32 %v7282, %v7538
  %v7667 = vmul.f32 %v7283, %v7539
  %v7668 = vmul.f32 %v7284, %v7540
  %v7669 = vmul.f32 %v7285, %v7541
  %v7670 = vmul.f32 %v7286, %v7542
  %v7671 = vmul.f32 %v7287, %v7543
  %v7672 = vmul.f32 %v7288, %v7544
  %v7673 = vmul.f32 %v7289, %v7545
  %v7674 = vmul.f32 %v7290, %v7546
  %v7675 = vmul.f32 %v7291, %v7547
  %v7676 = vmul.f32 %v7292, %v7548
  %v7677 = vmul.f32 %v7293, %v7549
  %v7678 = vmul.f32 %v7294, %v7550
  %v7679 = vmul.f32 %v7295, %v7551
  %v7680 = vmul.f32 %v7296, %v7552
  %v7681 = vmul.f32 %v7297, %v7553
  %v7682 = vmul.f32 %v7298, %v7554
  %v7683 = vmul.f32 %v7299, %v7555
  %v7684 = vmul.f32 %v7300, %v7556
  %v7685 = vmul.f32 %v7301, %v7557
  %v7686 = vmul.f32 %v7302, %v7558
  %v7687 = vmul.f32 %v7303, %v7559
  %v7688 = vmul.f32 %v7304, %v7560
  %v7689 = vmul.f32 %v7305, %v7561
  %v7690 = vmul.f32 %v7306, %v7562
  %v7691 = vmul.f32 %v7307, %v7563
  %v7692 = vmul.f32 %v7308, %v7564
  %v7693 = vmul.f32 %v7309, %v7565
  %v7694 = vmul.f32 %v7310, %v7566
  %v7695 = vmul.f32 %v7311, %v7567
  %v7696 = vmul.f32 %v7312, %v7568
  %v7697 = vmul.f32 %v7313, %v7569
  %v7698 = vmul.f32 %v7314, %v7570
  %v7699 = vmul.f32 %v7315, %v7571
  %v7700 = vmul.f32 %v7316, %v7572
  %v7701 = vmul.f32 %v7317, %v7573
  %v7702 = vmul.f32 %v7318, %v7574
  %v7703 = vmul.f32 %v7319, %v7575
  %v7704 = vmul.f32 %v7320, %v7576
  %v7705 = vmul.f32 %v7321, %v7577
  %v7706 = vmul.f32 %v7322, %v7578
  %v7707 = vmul.f32 %v7323, %v7579
  %v7708 = vmul.f32 %v7324, %v7580
  %v7709 = vmul.f32 %v7325, %v7581
  %v7710 = vmul.f32 %v7326, %v7582
  %v7711 = vmul.f32 %v7327, %v7583
  %v7712 = vmul.f32 %v7328, %v7584
  %v7713 = vmul.f32 %v7329, %v7585
  %v7714 = vmul.f32 %v7330, %v7586
  %v7715 = vmul.f32 %v7331, %v7587
  %v7716 = vmul.f32 %v7332, %v7588
  %v7717 = vmul.f32 %v7333, %v7589
  %v7718 = vmul.f32 %v7334, %v7590
  %v7719 = vmul.f32 %v7335, %v7591
  %v7720 = vmul.f32 %v7336, %v7592
  %v7721 = vmul.f32 %v7337, %v7593
  %v7722 = vmul.f32 %v7338, %v7594
  %v7723 = vmul.f32 %v7339, %v7595
  %v7724 = vmul.f32 %v7340, %v7596
  %v7725 = vmul.f32 %v7341, %v7597
  %v7726 = vmul.f32 %v7342, %v7598
  %v7727 = vmul.f32 %v7343, %v7599
  %v7728 = vmul.f32 %v7344, %v7600
  %v7729 = vmul.f32 %v7345, %v7601
  %v7730 = vmul.f32 %v7346, %v7602
  %v7731 = vmul.f32 %v7347, %v7603
  %v7732 = vmul.f32 %v7348, %v7604
  %v7733 = vmul.f32 %v7349, %v7605
  %v7734 = vmul.f32 %v7350, %v7606
  %v7735 = vmul.f32 %v7351, %v7607
  %v7736 = vmul.f32 %v7352, %v7608
  %v7737 = vmul.f32 %v7353, %v7609
  %v7738 = vmul.f32 %v7354, %v7610
  %v7739 = vmul.f32 %v7355, %v7611
  %v7740 = vmul.f32 %v7356, %v7612
  %v7741 = vmul.f32 %v7357, %v7613
  %v7742 = vmul.f32 %v7358, %v7614
  %v7743 = vmul.f32 %v7359, %v7615
  %v7744 = vmul.f32 %v7360, %v7616
  %v7745 = vmul.f32 %v7361, %v7617
  %v7746 = vmul.f32 %v7362, %v7618
  %v7747 = vadd.f32 %v7619, 1.4214138
  %v7748 = vadd.f32 %v7620, 1.4214138
  %v7749 = vadd.f32 %v7621, 1.4214138
  %v7750 = vadd.f32 %v7622, 1.4214138
  %v7751 = vadd.f32 %v7623, 1.4214138
  %v7752 = vadd.f32 %v7624, 1.4214138
  %v7753 = vadd.f32 %v7625, 1.4214138
  %v7754 = vadd.f32 %v7626, 1.4214138
  %v7755 = vadd.f32 %v7627, 1.4214138
  %v7756 = vadd.f32 %v7628, 1.4214138
  %v7757 = vadd.f32 %v7629, 1.4214138
  %v7758 = vadd.f32 %v7630, 1.4214138
  %v7759 = vadd.f32 %v7631, 1.4214138
  %v7760 = vadd.f32 %v7632, 1.4214138
  %v7761 = vadd.f32 %v7633, 1.4214138
  %v7762 = vadd.f32 %v7634, 1.4214138
  %v7763 = vadd.f32 %v7635, 1.4214138
  %v7764 = vadd.f32 %v7636, 1.4214138
  %v7765 = vadd.f32 %v7637, 1.4214138
  %v7766 = vadd.f32 %v7638, 1.4214138
  %v7767 = vadd.f32 %v7639, 1.4214138
  %v7768 = vadd.f32 %v7640, 1.4214138
  %v7769 = vadd.f32 %v7641, 1.4214138
  %v7770 = vadd.f32 %v7642, 1.4214138
  %v7771 = vadd.f32 %v7643, 1.4214138
  %v7772 = vadd.f32 %v7644, 1.4214138
  %v7773 = vadd.f32 %v7645, 1.4214138
  %v7774 = vadd.f32 %v7646, 1.4214138
  %v7775 = vadd.f32 %v7647, 1.4214138
  %v7776 = vadd.f32 %v7648, 1.4214138
  %v7777 = vadd.f32 %v7649, 1.4214138
  %v7778 = vadd.f32 %v7650, 1.4214138
  %v7779 = vadd.f32 %v7651, 1.4214138
  %v7780 = vadd.f32 %v7652, 1.4214138
  %v7781 = vadd.f32 %v7653, 1.4214138
  %v7782 = vadd.f32 %v7654, 1.4214138
  %v7783 = vadd.f32 %v7655, 1.4214138
  %v7784 = vadd.f32 %v7656, 1.4214138
  %v7785 = vadd.f32 %v7657, 1.4214138
  %v7786 = vadd.f32 %v7658, 1.4214138
  %v7787 = vadd.f32 %v7659, 1.4214138
  %v7788 = vadd.f32 %v7660, 1.4214138
  %v7789 = vadd.f32 %v7661, 1.4214138
  %v7790 = vadd.f32 %v7662, 1.4214138
  %v7791 = vadd.f32 %v7663, 1.4214138
  %v7792 = vadd.f32 %v7664, 1.4214138
  %v7793 = vadd.f32 %v7665, 1.4214138
  %v7794 = vadd.f32 %v7666, 1.4214138
  %v7795 = vadd.f32 %v7667, 1.4214138
  %v7796 = vadd.f32 %v7668, 1.4214138
  %v7797 = vadd.f32 %v7669, 1.4214138
  %v7798 = vadd.f32 %v7670, 1.4214138
  %v7799 = vadd.f32 %v7671, 1.4214138
  %v7800 = vadd.f32 %v7672, 1.4214138
  %v7801 = vadd.f32 %v7673, 1.4214138
  %v7802 = vadd.f32 %v7674, 1.4214138
  %v7803 = vadd.f32 %v7675, 1.4214138
  %v7804 = vadd.f32 %v7676, 1.4214138
  %v7805 = vadd.f32 %v7677, 1.4214138
  %v7806 = vadd.f32 %v7678, 1.4214138
  %v7807 = vadd.f32 %v7679, 1.4214138
  %v7808 = vadd.f32 %v7680, 1.4214138
  %v7809 = vadd.f32 %v7681, 1.4214138
  %v7810 = vadd.f32 %v7682, 1.4214138
  %v7811 = vadd.f32 %v7683, 1.4214138
  %v7812 = vadd.f32 %v7684, 1.4214138
  %v7813 = vadd.f32 %v7685, 1.4214138
  %v7814 = vadd.f32 %v7686, 1.4214138
  %v7815 = vadd.f32 %v7687, 1.4214138
  %v7816 = vadd.f32 %v7688, 1.4214138
  %v7817 = vadd.f32 %v7689, 1.4214138
  %v7818 = vadd.f32 %v7690, 1.4214138
  %v7819 = vadd.f32 %v7691, 1.4214138
  %v7820 = vadd.f32 %v7692, 1.4214138
  %v7821 = vadd.f32 %v7693, 1.4214138
  %v7822 = vadd.f32 %v7694, 1.4214138
  %v7823 = vadd.f32 %v7695, 1.4214138
  %v7824 = vadd.f32 %v7696, 1.4214138
  %v7825 = vadd.f32 %v7697, 1.4214138
  %v7826 = vadd.f32 %v7698, 1.4214138
  %v7827 = vadd.f32 %v7699, 1.4214138
  %v7828 = vadd.f32 %v7700, 1.4214138
  %v7829 = vadd.f32 %v7701, 1.4214138
  %v7830 = vadd.f32 %v7702, 1.4214138
  %v7831 = vadd.f32 %v7703, 1.4214138
  %v7832 = vadd.f32 %v7704, 1.4214138
  %v7833 = vadd.f32 %v7705, 1.4214138
  %v7834 = vadd.f32 %v7706, 1.4214138
  %v7835 = vadd.f32 %v7707, 1.4214138
  %v7836 = vadd.f32 %v7708, 1.4214138
  %v7837 = vadd.f32 %v7709, 1.4214138
  %v7838 = vadd.f32 %v7710, 1.4214138
  %v7839 = vadd.f32 %v7711, 1.4214138
  %v7840 = vadd.f32 %v7712, 1.4214138
  %v7841 = vadd.f32 %v7713, 1.4214138
  %v7842 = vadd.f32 %v7714, 1.4214138
  %v7843 = vadd.f32 %v7715, 1.4214138
  %v7844 = vadd.f32 %v7716, 1.4214138
  %v7845 = vadd.f32 %v7717, 1.4214138
  %v7846 = vadd.f32 %v7718, 1.4214138
  %v7847 = vadd.f32 %v7719, 1.4214138
  %v7848 = vadd.f32 %v7720, 1.4214138
  %v7849 = vadd.f32 %v7721, 1.4214138
  %v7850 = vadd.f32 %v7722, 1.4214138
  %v7851 = vadd.f32 %v7723, 1.4214138
  %v7852 = vadd.f32 %v7724, 1.4214138
  %v7853 = vadd.f32 %v7725, 1.4214138
  %v7854 = vadd.f32 %v7726, 1.4214138
  %v7855 = vadd.f32 %v7727, 1.4214138
  %v7856 = vadd.f32 %v7728, 1.4214138
  %v7857 = vadd.f32 %v7729, 1.4214138
  %v7858 = vadd.f32 %v7730, 1.4214138
  %v7859 = vadd.f32 %v7731, 1.4214138
  %v7860 = vadd.f32 %v7732, 1.4214138
  %v7861 = vadd.f32 %v7733, 1.4214138
  %v7862 = vadd.f32 %v7734, 1.4214138
  %v7863 = vadd.f32 %v7735, 1.4214138
  %v7864 = vadd.f32 %v7736, 1.4214138
  %v7865 = vadd.f32 %v7737, 1.4214138
  %v7866 = vadd.f32 %v7738, 1.4214138
  %v7867 = vadd.f32 %v7739, 1.4214138
  %v7868 = vadd.f32 %v7740, 1.4214138
  %v7869 = vadd.f32 %v7741, 1.4214138
  %v7870 = vadd.f32 %v7742, 1.4214138
  %v7871 = vadd.f32 %v7743, 1.4214138
  %v7872 = vadd.f32 %v7744, 1.4214138
  %v7873 = vadd.f32 %v7745, 1.4214138
  %v7874 = vadd.f32 %v7746, 1.4214138
  %v7875 = vmul.f32 %v7235, %v7747
  %v7876 = vmul.f32 %v7236, %v7748
  %v7877 = vmul.f32 %v7237, %v7749
  %v7878 = vmul.f32 %v7238, %v7750
  %v7879 = vmul.f32 %v7239, %v7751
  %v7880 = vmul.f32 %v7240, %v7752
  %v7881 = vmul.f32 %v7241, %v7753
  %v7882 = vmul.f32 %v7242, %v7754
  %v7883 = vmul.f32 %v7243, %v7755
  %v7884 = vmul.f32 %v7244, %v7756
  %v7885 = vmul.f32 %v7245, %v7757
  %v7886 = vmul.f32 %v7246, %v7758
  %v7887 = vmul.f32 %v7247, %v7759
  %v7888 = vmul.f32 %v7248, %v7760
  %v7889 = vmul.f32 %v7249, %v7761
  %v7890 = vmul.f32 %v7250, %v7762
  %v7891 = vmul.f32 %v7251, %v7763
  %v7892 = vmul.f32 %v7252, %v7764
  %v7893 = vmul.f32 %v7253, %v7765
  %v7894 = vmul.f32 %v7254, %v7766
  %v7895 = vmul.f32 %v7255, %v7767
  %v7896 = vmul.f32 %v7256, %v7768
  %v7897 = vmul.f32 %v7257, %v7769
  %v7898 = vmul.f32 %v7258, %v7770
  %v7899 = vmul.f32 %v7259, %v7771
  %v7900 = vmul.f32 %v7260, %v7772
  %v7901 = vmul.f32 %v7261, %v7773
  %v7902 = vmul.f32 %v7262, %v7774
  %v7903 = vmul.f32 %v7263, %v7775
  %v7904 = vmul.f32 %v7264, %v7776
  %v7905 = vmul.f32 %v7265, %v7777
  %v7906 = vmul.f32 %v7266, %v7778
  %v7907 = vmul.f32 %v7267, %v7779
  %v7908 = vmul.f32 %v7268, %v7780
  %v7909 = vmul.f32 %v7269, %v7781
  %v7910 = vmul.f32 %v7270, %v7782
  %v7911 = vmul.f32 %v7271, %v7783
  %v7912 = vmul.f32 %v7272, %v7784
  %v7913 = vmul.f32 %v7273, %v7785
  %v7914 = vmul.f32 %v7274, %v7786
  %v7915 = vmul.f32 %v7275, %v7787
  %v7916 = vmul.f32 %v7276, %v7788
  %v7917 = vmul.f32 %v7277, %v7789
  %v7918 = vmul.f32 %v7278, %v7790
  %v7919 = vmul.f32 %v7279, %v7791
  %v7920 = vmul.f32 %v7280, %v7792
  %v7921 = vmul.f32 %v7281, %v7793
  %v7922 = vmul.f32 %v7282, %v7794
  %v7923 = vmul.f32 %v7283, %v7795
  %v7924 = vmul.f32 %v7284, %v7796
  %v7925 = vmul.f32 %v7285, %v7797
  %v7926 = vmul.f32 %v7286, %v7798
  %v7927 = vmul.f32 %v7287, %v7799
  %v7928 = vmul.f32 %v7288, %v7800
  %v7929 = vmul.f32 %v7289, %v7801
  %v7930 = vmul.f32 %v7290, %v7802
  %v7931 = vmul.f32 %v7291, %v7803
  %v7932 = vmul.f32 %v7292, %v7804
  %v7933 = vmul.f32 %v7293, %v7805
  %v7934 = vmul.f32 %v7294, %v7806
  %v7935 = vmul.f32 %v7295, %v7807
  %v7936 = vmul.f32 %v7296, %v7808
  %v7937 = vmul.f32 %v7297, %v7809
  %v7938 = vmul.f32 %v7298, %v7810
  %v7939 = vmul.f32 %v7299, %v7811
  %v7940 = vmul.f32 %v7300, %v7812
  %v7941 = vmul.f32 %v7301, %v7813
  %v7942 = vmul.f32 %v7302, %v7814
  %v7943 = vmul.f32 %v7303, %v7815
  %v7944 = vmul.f32 %v7304, %v7816
  %v7945 = vmul.f32 %v7305, %v7817
  %v7946 = vmul.f32 %v7306, %v7818
  %v7947 = vmul.f32 %v7307, %v7819
  %v7948 = vmul.f32 %v7308, %v7820
  %v7949 = vmul.f32 %v7309, %v7821
  %v7950 = vmul.f32 %v7310, %v7822
  %v7951 = vmul.f32 %v7311, %v7823
  %v7952 = vmul.f32 %v7312, %v7824
  %v7953 = vmul.f32 %v7313, %v7825
  %v7954 = vmul.f32 %v7314, %v7826
  %v7955 = vmul.f32 %v7315, %v7827
  %v7956 = vmul.f32 %v7316, %v7828
  %v7957 = vmul.f32 %v7317, %v7829
  %v7958 = vmul.f32 %v7318, %v7830
  %v7959 = vmul.f32 %v7319, %v7831
  %v7960 = vmul.f32 %v7320, %v7832
  %v7961 = vmul.f32 %v7321, %v7833
  %v7962 = vmul.f32 %v7322, %v7834
  %v7963 = vmul.f32 %v7323, %v7835
  %v7964 = vmul.f32 %v7324, %v7836
  %v7965 = vmul.f32 %v7325, %v7837
  %v7966 = vmul.f32 %v7326, %v7838
  %v7967 = vmul.f32 %v7327, %v7839
  %v7968 = vmul.f32 %v7328, %v7840
  %v7969 = vmul.f32 %v7329, %v7841
  %v7970 = vmul.f32 %v7330, %v7842
  %v7971 = vmul.f32 %v7331, %v7843
  %v7972 = vmul.f32 %v7332, %v7844
  %v7973 = vmul.f32 %v7333, %v7845
  %v7974 = vmul.f32 %v7334, %v7846
  %v7975 = vmul.f32 %v7335, %v7847
  %v7976 = vmul.f32 %v7336, %v7848
  %v7977 = vmul.f32 %v7337, %v7849
  %v7978 = vmul.f32 %v7338, %v7850
  %v7979 = vmul.f32 %v7339, %v7851
  %v7980 = vmul.f32 %v7340, %v7852
  %v7981 = vmul.f32 %v7341, %v7853
  %v7982 = vmul.f32 %v7342, %v7854
  %v7983 = vmul.f32 %v7343, %v7855
  %v7984 = vmul.f32 %v7344, %v7856
  %v7985 = vmul.f32 %v7345, %v7857
  %v7986 = vmul.f32 %v7346, %v7858
  %v7987 = vmul.f32 %v7347, %v7859
  %v7988 = vmul.f32 %v7348, %v7860
  %v7989 = vmul.f32 %v7349, %v7861
  %v7990 = vmul.f32 %v7350, %v7862
  %v7991 = vmul.f32 %v7351, %v7863
  %v7992 = vmul.f32 %v7352, %v7864
  %v7993 = vmul.f32 %v7353, %v7865
  %v7994 = vmul.f32 %v7354, %v7866
  %v7995 = vmul.f32 %v7355, %v7867
  %v7996 = vmul.f32 %v7356, %v7868
  %v7997 = vmul.f32 %v7357, %v7869
  %v7998 = vmul.f32 %v7358, %v7870
  %v7999 = vmul.f32 %v7359, %v7871
  %v8000 = vmul.f32 %v7360, %v7872
  %v8001 = vmul.f32 %v7361, %v7873
  %v8002 = vmul.f32 %v7362, %v7874
  %v8003 = vadd.f32 %v7875, -0.28449672
  %v8004 = vadd.f32 %v7876, -0.28449672
  %v8005 = vadd.f32 %v7877, -0.28449672
  %v8006 = vadd.f32 %v7878, -0.28449672
  %v8007 = vadd.f32 %v7879, -0.28449672
  %v8008 = vadd.f32 %v7880, -0.28449672
  %v8009 = vadd.f32 %v7881, -0.28449672
  %v8010 = vadd.f32 %v7882, -0.28449672
  %v8011 = vadd.f32 %v7883, -0.28449672
  %v8012 = vadd.f32 %v7884, -0.28449672
  %v8013 = vadd.f32 %v7885, -0.28449672
  %v8014 = vadd.f32 %v7886, -0.28449672
  %v8015 = vadd.f32 %v7887, -0.28449672
  %v8016 = vadd.f32 %v7888, -0.28449672
  %v8017 = vadd.f32 %v7889, -0.28449672
  %v8018 = vadd.f32 %v7890, -0.28449672
  %v8019 = vadd.f32 %v7891, -0.28449672
  %v8020 = vadd.f32 %v7892, -0.28449672
  %v8021 = vadd.f32 %v7893, -0.28449672
  %v8022 = vadd.f32 %v7894, -0.28449672
  %v8023 = vadd.f32 %v7895, -0.28449672
  %v8024 = vadd.f32 %v7896, -0.28449672
  %v8025 = vadd.f32 %v7897, -0.28449672
  %v8026 = vadd.f32 %v7898, -0.28449672
  %v8027 = vadd.f32 %v7899, -0.28449672
  %v8028 = vadd.f32 %v7900, -0.28449672
  %v8029 = vadd.f32 %v7901, -0.28449672
  %v8030 = vadd.f32 %v7902, -0.28449672
  %v8031 = vadd.f32 %v7903, -0.28449672
  %v8032 = vadd.f32 %v7904, -0.28449672
  %v8033 = vadd.f32 %v7905, -0.28449672
  %v8034 = vadd.f32 %v7906, -0.28449672
  %v8035 = vadd.f32 %v7907, -0.28449672
  %v8036 = vadd.f32 %v7908, -0.28449672
  %v8037 = vadd.f32 %v7909, -0.28449672
  %v8038 = vadd.f32 %v7910, -0.28449672
  %v8039 = vadd.f32 %v7911, -0.28449672
  %v8040 = vadd.f32 %v7912, -0.28449672
  %v8041 = vadd.f32 %v7913, -0.28449672
  %v8042 = vadd.f32 %v7914, -0.28449672
  %v8043 = vadd.f32 %v7915, -0.28449672
  %v8044 = vadd.f32 %v7916, -0.28449672
  %v8045 = vadd.f32 %v7917, -0.28449672
  %v8046 = vadd.f32 %v7918, -0.28449672
  %v8047 = vadd.f32 %v7919, -0.28449672
  %v8048 = vadd.f32 %v7920, -0.28449672
  %v8049 = vadd.f32 %v7921, -0.28449672
  %v8050 = vadd.f32 %v7922, -0.28449672
  %v8051 = vadd.f32 %v7923, -0.28449672
  %v8052 = vadd.f32 %v7924, -0.28449672
  %v8053 = vadd.f32 %v7925, -0.28449672
  %v8054 = vadd.f32 %v7926, -0.28449672
  %v8055 = vadd.f32 %v7927, -0.28449672
  %v8056 = vadd.f32 %v7928, -0.28449672
  %v8057 = vadd.f32 %v7929, -0.28449672
  %v8058 = vadd.f32 %v7930, -0.28449672
  %v8059 = vadd.f32 %v7931, -0.28449672
  %v8060 = vadd.f32 %v7932, -0.28449672
  %v8061 = vadd.f32 %v7933, -0.28449672
  %v8062 = vadd.f32 %v7934, -0.28449672
  %v8063 = vadd.f32 %v7935, -0.28449672
  %v8064 = vadd.f32 %v7936, -0.28449672
  %v8065 = vadd.f32 %v7937, -0.28449672
  %v8066 = vadd.f32 %v7938, -0.28449672
  %v8067 = vadd.f32 %v7939, -0.28449672
  %v8068 = vadd.f32 %v7940, -0.28449672
  %v8069 = vadd.f32 %v7941, -0.28449672
  %v8070 = vadd.f32 %v7942, -0.28449672
  %v8071 = vadd.f32 %v7943, -0.28449672
  %v8072 = vadd.f32 %v7944, -0.28449672
  %v8073 = vadd.f32 %v7945, -0.28449672
  %v8074 = vadd.f32 %v7946, -0.28449672
  %v8075 = vadd.f32 %v7947, -0.28449672
  %v8076 = vadd.f32 %v7948, -0.28449672
  %v8077 = vadd.f32 %v7949, -0.28449672
  %v8078 = vadd.f32 %v7950, -0.28449672
  %v8079 = vadd.f32 %v7951, -0.28449672
  %v8080 = vadd.f32 %v7952, -0.28449672
  %v8081 = vadd.f32 %v7953, -0.28449672
  %v8082 = vadd.f32 %v7954, -0.28449672
  %v8083 = vadd.f32 %v7955, -0.28449672
  %v8084 = vadd.f32 %v7956, -0.28449672
  %v8085 = vadd.f32 %v7957, -0.28449672
  %v8086 = vadd.f32 %v7958, -0.28449672
  %v8087 = vadd.f32 %v7959, -0.28449672
  %v8088 = vadd.f32 %v7960, -0.28449672
  %v8089 = vadd.f32 %v7961, -0.28449672
  %v8090 = vadd.f32 %v7962, -0.28449672
  %v8091 = vadd.f32 %v7963, -0.28449672
  %v8092 = vadd.f32 %v7964, -0.28449672
  %v8093 = vadd.f32 %v7965, -0.28449672
  %v8094 = vadd.f32 %v7966, -0.28449672
  %v8095 = vadd.f32 %v7967, -0.28449672
  %v8096 = vadd.f32 %v7968, -0.28449672
  %v8097 = vadd.f32 %v7969, -0.28449672
  %v8098 = vadd.f32 %v7970, -0.28449672
  %v8099 = vadd.f32 %v7971, -0.28449672
  %v8100 = vadd.f32 %v7972, -0.28449672
  %v8101 = vadd.f32 %v7973, -0.28449672
  %v8102 = vadd.f32 %v7974, -0.28449672
  %v8103 = vadd.f32 %v7975, -0.28449672
  %v8104 = vadd.f32 %v7976, -0.28449672
  %v8105 = vadd.f32 %v7977, -0.28449672
  %v8106 = vadd.f32 %v7978, -0.28449672
  %v8107 = vadd.f32 %v7979, -0.28449672
  %v8108 = vadd.f32 %v7980, -0.28449672
  %v8109 = vadd.f32 %v7981, -0.28449672
  %v8110 = vadd.f32 %v7982, -0.28449672
  %v8111 = vadd.f32 %v7983, -0.28449672
  %v8112 = vadd.f32 %v7984, -0.28449672
  %v8113 = vadd.f32 %v7985, -0.28449672
  %v8114 = vadd.f32 %v7986, -0.28449672
  %v8115 = vadd.f32 %v7987, -0.28449672
  %v8116 = vadd.f32 %v7988, -0.28449672
  %v8117 = vadd.f32 %v7989, -0.28449672
  %v8118 = vadd.f32 %v7990, -0.28449672
  %v8119 = vadd.f32 %v7991, -0.28449672
  %v8120 = vadd.f32 %v7992, -0.28449672
  %v8121 = vadd.f32 %v7993, -0.28449672
  %v8122 = vadd.f32 %v7994, -0.28449672
  %v8123 = vadd.f32 %v7995, -0.28449672
  %v8124 = vadd.f32 %v7996, -0.28449672
  %v8125 = vadd.f32 %v7997, -0.28449672
  %v8126 = vadd.f32 %v7998, -0.28449672
  %v8127 = vadd.f32 %v7999, -0.28449672
  %v8128 = vadd.f32 %v8000, -0.28449672
  %v8129 = vadd.f32 %v8001, -0.28449672
  %v8130 = vadd.f32 %v8002, -0.28449672
  %v8131 = vmul.f32 %v7235, %v8003
  %v8132 = vmul.f32 %v7236, %v8004
  %v8133 = vmul.f32 %v7237, %v8005
  %v8134 = vmul.f32 %v7238, %v8006
  %v8135 = vmul.f32 %v7239, %v8007
  %v8136 = vmul.f32 %v7240, %v8008
  %v8137 = vmul.f32 %v7241, %v8009
  %v8138 = vmul.f32 %v7242, %v8010
  %v8139 = vmul.f32 %v7243, %v8011
  %v8140 = vmul.f32 %v7244, %v8012
  %v8141 = vmul.f32 %v7245, %v8013
  %v8142 = vmul.f32 %v7246, %v8014
  %v8143 = vmul.f32 %v7247, %v8015
  %v8144 = vmul.f32 %v7248, %v8016
  %v8145 = vmul.f32 %v7249, %v8017
  %v8146 = vmul.f32 %v7250, %v8018
  %v8147 = vmul.f32 %v7251, %v8019
  %v8148 = vmul.f32 %v7252, %v8020
  %v8149 = vmul.f32 %v7253, %v8021
  %v8150 = vmul.f32 %v7254, %v8022
  %v8151 = vmul.f32 %v7255, %v8023
  %v8152 = vmul.f32 %v7256, %v8024
  %v8153 = vmul.f32 %v7257, %v8025
  %v8154 = vmul.f32 %v7258, %v8026
  %v8155 = vmul.f32 %v7259, %v8027
  %v8156 = vmul.f32 %v7260, %v8028
  %v8157 = vmul.f32 %v7261, %v8029
  %v8158 = vmul.f32 %v7262, %v8030
  %v8159 = vmul.f32 %v7263, %v8031
  %v8160 = vmul.f32 %v7264, %v8032
  %v8161 = vmul.f32 %v7265, %v8033
  %v8162 = vmul.f32 %v7266, %v8034
  %v8163 = vmul.f32 %v7267, %v8035
  %v8164 = vmul.f32 %v7268, %v8036
  %v8165 = vmul.f32 %v7269, %v8037
  %v8166 = vmul.f32 %v7270, %v8038
  %v8167 = vmul.f32 %v7271, %v8039
  %v8168 = vmul.f32 %v7272, %v8040
  %v8169 = vmul.f32 %v7273, %v8041
  %v8170 = vmul.f32 %v7274, %v8042
  %v8171 = vmul.f32 %v7275, %v8043
  %v8172 = vmul.f32 %v7276, %v8044
  %v8173 = vmul.f32 %v7277, %v8045
  %v8174 = vmul.f32 %v7278, %v8046
  %v8175 = vmul.f32 %v7279, %v8047
  %v8176 = vmul.f32 %v7280, %v8048
  %v8177 = vmul.f32 %v7281, %v8049
  %v8178 = vmul.f32 %v7282, %v8050
  %v8179 = vmul.f32 %v7283, %v8051
  %v8180 = vmul.f32 %v7284, %v8052
  %v8181 = vmul.f32 %v7285, %v8053
  %v8182 = vmul.f32 %v7286, %v8054
  %v8183 = vmul.f32 %v7287, %v8055
  %v8184 = vmul.f32 %v7288, %v8056
  %v8185 = vmul.f32 %v7289, %v8057
  %v8186 = vmul.f32 %v7290, %v8058
  %v8187 = vmul.f32 %v7291, %v8059
  %v8188 = vmul.f32 %v7292, %v8060
  %v8189 = vmul.f32 %v7293, %v8061
  %v8190 = vmul.f32 %v7294, %v8062
  %v8191 = vmul.f32 %v7295, %v8063
  %v8192 = vmul.f32 %v7296, %v8064
  %v8193 = vmul.f32 %v7297, %v8065
  %v8194 = vmul.f32 %v7298, %v8066
  %v8195 = vmul.f32 %v7299, %v8067
  %v8196 = vmul.f32 %v7300, %v8068
  %v8197 = vmul.f32 %v7301, %v8069
  %v8198 = vmul.f32 %v7302, %v8070
  %v8199 = vmul.f32 %v7303, %v8071
  %v8200 = vmul.f32 %v7304, %v8072
  %v8201 = vmul.f32 %v7305, %v8073
  %v8202 = vmul.f32 %v7306, %v8074
  %v8203 = vmul.f32 %v7307, %v8075
  %v8204 = vmul.f32 %v7308, %v8076
  %v8205 = vmul.f32 %v7309, %v8077
  %v8206 = vmul.f32 %v7310, %v8078
  %v8207 = vmul.f32 %v7311, %v8079
  %v8208 = vmul.f32 %v7312, %v8080
  %v8209 = vmul.f32 %v7313, %v8081
  %v8210 = vmul.f32 %v7314, %v8082
  %v8211 = vmul.f32 %v7315, %v8083
  %v8212 = vmul.f32 %v7316, %v8084
  %v8213 = vmul.f32 %v7317, %v8085
  %v8214 = vmul.f32 %v7318, %v8086
  %v8215 = vmul.f32 %v7319, %v8087
  %v8216 = vmul.f32 %v7320, %v8088
  %v8217 = vmul.f32 %v7321, %v8089
  %v8218 = vmul.f32 %v7322, %v8090
  %v8219 = vmul.f32 %v7323, %v8091
  %v8220 = vmul.f32 %v7324, %v8092
  %v8221 = vmul.f32 %v7325, %v8093
  %v8222 = vmul.f32 %v7326, %v8094
  %v8223 = vmul.f32 %v7327, %v8095
  %v8224 = vmul.f32 %v7328, %v8096
  %v8225 = vmul.f32 %v7329, %v8097
  %v8226 = vmul.f32 %v7330, %v8098
  %v8227 = vmul.f32 %v7331, %v8099
  %v8228 = vmul.f32 %v7332, %v8100
  %v8229 = vmul.f32 %v7333, %v8101
  %v8230 = vmul.f32 %v7334, %v8102
  %v8231 = vmul.f32 %v7335, %v8103
  %v8232 = vmul.f32 %v7336, %v8104
  %v8233 = vmul.f32 %v7337, %v8105
  %v8234 = vmul.f32 %v7338, %v8106
  %v8235 = vmul.f32 %v7339, %v8107
  %v8236 = vmul.f32 %v7340, %v8108
  %v8237 = vmul.f32 %v7341, %v8109
  %v8238 = vmul.f32 %v7342, %v8110
  %v8239 = vmul.f32 %v7343, %v8111
  %v8240 = vmul.f32 %v7344, %v8112
  %v8241 = vmul.f32 %v7345, %v8113
  %v8242 = vmul.f32 %v7346, %v8114
  %v8243 = vmul.f32 %v7347, %v8115
  %v8244 = vmul.f32 %v7348, %v8116
  %v8245 = vmul.f32 %v7349, %v8117
  %v8246 = vmul.f32 %v7350, %v8118
  %v8247 = vmul.f32 %v7351, %v8119
  %v8248 = vmul.f32 %v7352, %v8120
  %v8249 = vmul.f32 %v7353, %v8121
  %v8250 = vmul.f32 %v7354, %v8122
  %v8251 = vmul.f32 %v7355, %v8123
  %v8252 = vmul.f32 %v7356, %v8124
  %v8253 = vmul.f32 %v7357, %v8125
  %v8254 = vmul.f32 %v7358, %v8126
  %v8255 = vmul.f32 %v7359, %v8127
  %v8256 = vmul.f32 %v7360, %v8128
  %v8257 = vmul.f32 %v7361, %v8129
  %v8258 = vmul.f32 %v7362, %v8130
  %v8259 = vadd.f32 %v8131, 0.2548296
  %v8260 = vadd.f32 %v8132, 0.2548296
  %v8261 = vadd.f32 %v8133, 0.2548296
  %v8262 = vadd.f32 %v8134, 0.2548296
  %v8263 = vadd.f32 %v8135, 0.2548296
  %v8264 = vadd.f32 %v8136, 0.2548296
  %v8265 = vadd.f32 %v8137, 0.2548296
  %v8266 = vadd.f32 %v8138, 0.2548296
  %v8267 = vadd.f32 %v8139, 0.2548296
  %v8268 = vadd.f32 %v8140, 0.2548296
  %v8269 = vadd.f32 %v8141, 0.2548296
  %v8270 = vadd.f32 %v8142, 0.2548296
  %v8271 = vadd.f32 %v8143, 0.2548296
  %v8272 = vadd.f32 %v8144, 0.2548296
  %v8273 = vadd.f32 %v8145, 0.2548296
  %v8274 = vadd.f32 %v8146, 0.2548296
  %v8275 = vadd.f32 %v8147, 0.2548296
  %v8276 = vadd.f32 %v8148, 0.2548296
  %v8277 = vadd.f32 %v8149, 0.2548296
  %v8278 = vadd.f32 %v8150, 0.2548296
  %v8279 = vadd.f32 %v8151, 0.2548296
  %v8280 = vadd.f32 %v8152, 0.2548296
  %v8281 = vadd.f32 %v8153, 0.2548296
  %v8282 = vadd.f32 %v8154, 0.2548296
  %v8283 = vadd.f32 %v8155, 0.2548296
  %v8284 = vadd.f32 %v8156, 0.2548296
  %v8285 = vadd.f32 %v8157, 0.2548296
  %v8286 = vadd.f32 %v8158, 0.2548296
  %v8287 = vadd.f32 %v8159, 0.2548296
  %v8288 = vadd.f32 %v8160, 0.2548296
  %v8289 = vadd.f32 %v8161, 0.2548296
  %v8290 = vadd.f32 %v8162, 0.2548296
  %v8291 = vadd.f32 %v8163, 0.2548296
  %v8292 = vadd.f32 %v8164, 0.2548296
  %v8293 = vadd.f32 %v8165, 0.2548296
  %v8294 = vadd.f32 %v8166, 0.2548296
  %v8295 = vadd.f32 %v8167, 0.2548296
  %v8296 = vadd.f32 %v8168, 0.2548296
  %v8297 = vadd.f32 %v8169, 0.2548296
  %v8298 = vadd.f32 %v8170, 0.2548296
  %v8299 = vadd.f32 %v8171, 0.2548296
  %v8300 = vadd.f32 %v8172, 0.2548296
  %v8301 = vadd.f32 %v8173, 0.2548296
  %v8302 = vadd.f32 %v8174, 0.2548296
  %v8303 = vadd.f32 %v8175, 0.2548296
  %v8304 = vadd.f32 %v8176, 0.2548296
  %v8305 = vadd.f32 %v8177, 0.2548296
  %v8306 = vadd.f32 %v8178, 0.2548296
  %v8307 = vadd.f32 %v8179, 0.2548296
  %v8308 = vadd.f32 %v8180, 0.2548296
  %v8309 = vadd.f32 %v8181, 0.2548296
  %v8310 = vadd.f32 %v8182, 0.2548296
  %v8311 = vadd.f32 %v8183, 0.2548296
  %v8312 = vadd.f32 %v8184, 0.2548296
  %v8313 = vadd.f32 %v8185, 0.2548296
  %v8314 = vadd.f32 %v8186, 0.2548296
  %v8315 = vadd.f32 %v8187, 0.2548296
  %v8316 = vadd.f32 %v8188, 0.2548296
  %v8317 = vadd.f32 %v8189, 0.2548296
  %v8318 = vadd.f32 %v8190, 0.2548296
  %v8319 = vadd.f32 %v8191, 0.2548296
  %v8320 = vadd.f32 %v8192, 0.2548296
  %v8321 = vadd.f32 %v8193, 0.2548296
  %v8322 = vadd.f32 %v8194, 0.2548296
  %v8323 = vadd.f32 %v8195, 0.2548296
  %v8324 = vadd.f32 %v8196, 0.2548296
  %v8325 = vadd.f32 %v8197, 0.2548296
  %v8326 = vadd.f32 %v8198, 0.2548296
  %v8327 = vadd.f32 %v8199, 0.2548296
  %v8328 = vadd.f32 %v8200, 0.2548296
  %v8329 = vadd.f32 %v8201, 0.2548296
  %v8330 = vadd.f32 %v8202, 0.2548296
  %v8331 = vadd.f32 %v8203, 0.2548296
  %v8332 = vadd.f32 %v8204, 0.2548296
  %v8333 = vadd.f32 %v8205, 0.2548296
  %v8334 = vadd.f32 %v8206, 0.2548296
  %v8335 = vadd.f32 %v8207, 0.2548296
  %v8336 = vadd.f32 %v8208, 0.2548296
  %v8337 = vadd.f32 %v8209, 0.2548296
  %v8338 = vadd.f32 %v8210, 0.2548296
  %v8339 = vadd.f32 %v8211, 0.2548296
  %v8340 = vadd.f32 %v8212, 0.2548296
  %v8341 = vadd.f32 %v8213, 0.2548296
  %v8342 = vadd.f32 %v8214, 0.2548296
  %v8343 = vadd.f32 %v8215, 0.2548296
  %v8344 = vadd.f32 %v8216, 0.2548296
  %v8345 = vadd.f32 %v8217, 0.2548296
  %v8346 = vadd.f32 %v8218, 0.2548296
  %v8347 = vadd.f32 %v8219, 0.2548296
  %v8348 = vadd.f32 %v8220, 0.2548296
  %v8349 = vadd.f32 %v8221, 0.2548296
  %v8350 = vadd.f32 %v8222, 0.2548296
  %v8351 = vadd.f32 %v8223, 0.2548296
  %v8352 = vadd.f32 %v8224, 0.2548296
  %v8353 = vadd.f32 %v8225, 0.2548296
  %v8354 = vadd.f32 %v8226, 0.2548296
  %v8355 = vadd.f32 %v8227, 0.2548296
  %v8356 = vadd.f32 %v8228, 0.2548296
  %v8357 = vadd.f32 %v8229, 0.2548296
  %v8358 = vadd.f32 %v8230, 0.2548296
  %v8359 = vadd.f32 %v8231, 0.2548296
  %v8360 = vadd.f32 %v8232, 0.2548296
  %v8361 = vadd.f32 %v8233, 0.2548296
  %v8362 = vadd.f32 %v8234, 0.2548296
  %v8363 = vadd.f32 %v8235, 0.2548296
  %v8364 = vadd.f32 %v8236, 0.2548296
  %v8365 = vadd.f32 %v8237, 0.2548296
  %v8366 = vadd.f32 %v8238, 0.2548296
  %v8367 = vadd.f32 %v8239, 0.2548296
  %v8368 = vadd.f32 %v8240, 0.2548296
  %v8369 = vadd.f32 %v8241, 0.2548296
  %v8370 = vadd.f32 %v8242, 0.2548296
  %v8371 = vadd.f32 %v8243, 0.2548296
  %v8372 = vadd.f32 %v8244, 0.2548296
  %v8373 = vadd.f32 %v8245, 0.2548296
  %v8374 = vadd.f32 %v8246, 0.2548296
  %v8375 = vadd.f32 %v8247, 0.2548296
  %v8376 = vadd.f32 %v8248, 0.2548296
  %v8377 = vadd.f32 %v8249, 0.2548296
  %v8378 = vadd.f32 %v8250, 0.2548296
  %v8379 = vadd.f32 %v8251, 0.2548296
  %v8380 = vadd.f32 %v8252, 0.2548296
  %v8381 = vadd.f32 %v8253, 0.2548296
  %v8382 = vadd.f32 %v8254, 0.2548296
  %v8383 = vadd.f32 %v8255, 0.2548296
  %v8384 = vadd.f32 %v8256, 0.2548296
  %v8385 = vadd.f32 %v8257, 0.2548296
  %v8386 = vadd.f32 %v8258, 0.2548296
  %v8387 = vmul.f32 %v7235, %v8259
  %v8388 = vmul.f32 %v7236, %v8260
  %v8389 = vmul.f32 %v7237, %v8261
  %v8390 = vmul.f32 %v7238, %v8262
  %v8391 = vmul.f32 %v7239, %v8263
  %v8392 = vmul.f32 %v7240, %v8264
  %v8393 = vmul.f32 %v7241, %v8265
  %v8394 = vmul.f32 %v7242, %v8266
  %v8395 = vmul.f32 %v7243, %v8267
  %v8396 = vmul.f32 %v7244, %v8268
  %v8397 = vmul.f32 %v7245, %v8269
  %v8398 = vmul.f32 %v7246, %v8270
  %v8399 = vmul.f32 %v7247, %v8271
  %v8400 = vmul.f32 %v7248, %v8272
  %v8401 = vmul.f32 %v7249, %v8273
  %v8402 = vmul.f32 %v7250, %v8274
  %v8403 = vmul.f32 %v7251, %v8275
  %v8404 = vmul.f32 %v7252, %v8276
  %v8405 = vmul.f32 %v7253, %v8277
  %v8406 = vmul.f32 %v7254, %v8278
  %v8407 = vmul.f32 %v7255, %v8279
  %v8408 = vmul.f32 %v7256, %v8280
  %v8409 = vmul.f32 %v7257, %v8281
  %v8410 = vmul.f32 %v7258, %v8282
  %v8411 = vmul.f32 %v7259, %v8283
  %v8412 = vmul.f32 %v7260, %v8284
  %v8413 = vmul.f32 %v7261, %v8285
  %v8414 = vmul.f32 %v7262, %v8286
  %v8415 = vmul.f32 %v7263, %v8287
  %v8416 = vmul.f32 %v7264, %v8288
  %v8417 = vmul.f32 %v7265, %v8289
  %v8418 = vmul.f32 %v7266, %v8290
  %v8419 = vmul.f32 %v7267, %v8291
  %v8420 = vmul.f32 %v7268, %v8292
  %v8421 = vmul.f32 %v7269, %v8293
  %v8422 = vmul.f32 %v7270, %v8294
  %v8423 = vmul.f32 %v7271, %v8295
  %v8424 = vmul.f32 %v7272, %v8296
  %v8425 = vmul.f32 %v7273, %v8297
  %v8426 = vmul.f32 %v7274, %v8298
  %v8427 = vmul.f32 %v7275, %v8299
  %v8428 = vmul.f32 %v7276, %v8300
  %v8429 = vmul.f32 %v7277, %v8301
  %v8430 = vmul.f32 %v7278, %v8302
  %v8431 = vmul.f32 %v7279, %v8303
  %v8432 = vmul.f32 %v7280, %v8304
  %v8433 = vmul.f32 %v7281, %v8305
  %v8434 = vmul.f32 %v7282, %v8306
  %v8435 = vmul.f32 %v7283, %v8307
  %v8436 = vmul.f32 %v7284, %v8308
  %v8437 = vmul.f32 %v7285, %v8309
  %v8438 = vmul.f32 %v7286, %v8310
  %v8439 = vmul.f32 %v7287, %v8311
  %v8440 = vmul.f32 %v7288, %v8312
  %v8441 = vmul.f32 %v7289, %v8313
  %v8442 = vmul.f32 %v7290, %v8314
  %v8443 = vmul.f32 %v7291, %v8315
  %v8444 = vmul.f32 %v7292, %v8316
  %v8445 = vmul.f32 %v7293, %v8317
  %v8446 = vmul.f32 %v7294, %v8318
  %v8447 = vmul.f32 %v7295, %v8319
  %v8448 = vmul.f32 %v7296, %v8320
  %v8449 = vmul.f32 %v7297, %v8321
  %v8450 = vmul.f32 %v7298, %v8322
  %v8451 = vmul.f32 %v7299, %v8323
  %v8452 = vmul.f32 %v7300, %v8324
  %v8453 = vmul.f32 %v7301, %v8325
  %v8454 = vmul.f32 %v7302, %v8326
  %v8455 = vmul.f32 %v7303, %v8327
  %v8456 = vmul.f32 %v7304, %v8328
  %v8457 = vmul.f32 %v7305, %v8329
  %v8458 = vmul.f32 %v7306, %v8330
  %v8459 = vmul.f32 %v7307, %v8331
  %v8460 = vmul.f32 %v7308, %v8332
  %v8461 = vmul.f32 %v7309, %v8333
  %v8462 = vmul.f32 %v7310, %v8334
  %v8463 = vmul.f32 %v7311, %v8335
  %v8464 = vmul.f32 %v7312, %v8336
  %v8465 = vmul.f32 %v7313, %v8337
  %v8466 = vmul.f32 %v7314, %v8338
  %v8467 = vmul.f32 %v7315, %v8339
  %v8468 = vmul.f32 %v7316, %v8340
  %v8469 = vmul.f32 %v7317, %v8341
  %v8470 = vmul.f32 %v7318, %v8342
  %v8471 = vmul.f32 %v7319, %v8343
  %v8472 = vmul.f32 %v7320, %v8344
  %v8473 = vmul.f32 %v7321, %v8345
  %v8474 = vmul.f32 %v7322, %v8346
  %v8475 = vmul.f32 %v7323, %v8347
  %v8476 = vmul.f32 %v7324, %v8348
  %v8477 = vmul.f32 %v7325, %v8349
  %v8478 = vmul.f32 %v7326, %v8350
  %v8479 = vmul.f32 %v7327, %v8351
  %v8480 = vmul.f32 %v7328, %v8352
  %v8481 = vmul.f32 %v7329, %v8353
  %v8482 = vmul.f32 %v7330, %v8354
  %v8483 = vmul.f32 %v7331, %v8355
  %v8484 = vmul.f32 %v7332, %v8356
  %v8485 = vmul.f32 %v7333, %v8357
  %v8486 = vmul.f32 %v7334, %v8358
  %v8487 = vmul.f32 %v7335, %v8359
  %v8488 = vmul.f32 %v7336, %v8360
  %v8489 = vmul.f32 %v7337, %v8361
  %v8490 = vmul.f32 %v7338, %v8362
  %v8491 = vmul.f32 %v7339, %v8363
  %v8492 = vmul.f32 %v7340, %v8364
  %v8493 = vmul.f32 %v7341, %v8365
  %v8494 = vmul.f32 %v7342, %v8366
  %v8495 = vmul.f32 %v7343, %v8367
  %v8496 = vmul.f32 %v7344, %v8368
  %v8497 = vmul.f32 %v7345, %v8369
  %v8498 = vmul.f32 %v7346, %v8370
  %v8499 = vmul.f32 %v7347, %v8371
  %v8500 = vmul.f32 %v7348, %v8372
  %v8501 = vmul.f32 %v7349, %v8373
  %v8502 = vmul.f32 %v7350, %v8374
  %v8503 = vmul.f32 %v7351, %v8375
  %v8504 = vmul.f32 %v7352, %v8376
  %v8505 = vmul.f32 %v7353, %v8377
  %v8506 = vmul.f32 %v7354, %v8378
  %v8507 = vmul.f32 %v7355, %v8379
  %v8508 = vmul.f32 %v7356, %v8380
  %v8509 = vmul.f32 %v7357, %v8381
  %v8510 = vmul.f32 %v7358, %v8382
  %v8511 = vmul.f32 %v7359, %v8383
  %v8512 = vmul.f32 %v7360, %v8384
  %v8513 = vmul.f32 %v7361, %v8385
  %v8514 = vmul.f32 %v7362, %v8386
  %v8515 = vsub.f32 0.0, %v6851
  %v8516 = vsub.f32 0.0, %v6852
  %v8517 = vsub.f32 0.0, %v6853
  %v8518 = vsub.f32 0.0, %v6854
  %v8519 = vsub.f32 0.0, %v6855
  %v8520 = vsub.f32 0.0, %v6856
  %v8521 = vsub.f32 0.0, %v6857
  %v8522 = vsub.f32 0.0, %v6858
  %v8523 = vsub.f32 0.0, %v6859
  %v8524 = vsub.f32 0.0, %v6860
  %v8525 = vsub.f32 0.0, %v6861
  %v8526 = vsub.f32 0.0, %v6862
  %v8527 = vsub.f32 0.0, %v6863
  %v8528 = vsub.f32 0.0, %v6864
  %v8529 = vsub.f32 0.0, %v6865
  %v8530 = vsub.f32 0.0, %v6866
  %v8531 = vsub.f32 0.0, %v6867
  %v8532 = vsub.f32 0.0, %v6868
  %v8533 = vsub.f32 0.0, %v6869
  %v8534 = vsub.f32 0.0, %v6870
  %v8535 = vsub.f32 0.0, %v6871
  %v8536 = vsub.f32 0.0, %v6872
  %v8537 = vsub.f32 0.0, %v6873
  %v8538 = vsub.f32 0.0, %v6874
  %v8539 = vsub.f32 0.0, %v6875
  %v8540 = vsub.f32 0.0, %v6876
  %v8541 = vsub.f32 0.0, %v6877
  %v8542 = vsub.f32 0.0, %v6878
  %v8543 = vsub.f32 0.0, %v6879
  %v8544 = vsub.f32 0.0, %v6880
  %v8545 = vsub.f32 0.0, %v6881
  %v8546 = vsub.f32 0.0, %v6882
  %v8547 = vsub.f32 0.0, %v6883
  %v8548 = vsub.f32 0.0, %v6884
  %v8549 = vsub.f32 0.0, %v6885
  %v8550 = vsub.f32 0.0, %v6886
  %v8551 = vsub.f32 0.0, %v6887
  %v8552 = vsub.f32 0.0, %v6888
  %v8553 = vsub.f32 0.0, %v6889
  %v8554 = vsub.f32 0.0, %v6890
  %v8555 = vsub.f32 0.0, %v6891
  %v8556 = vsub.f32 0.0, %v6892
  %v8557 = vsub.f32 0.0, %v6893
  %v8558 = vsub.f32 0.0, %v6894
  %v8559 = vsub.f32 0.0, %v6895
  %v8560 = vsub.f32 0.0, %v6896
  %v8561 = vsub.f32 0.0, %v6897
  %v8562 = vsub.f32 0.0, %v6898
  %v8563 = vsub.f32 0.0, %v6899
  %v8564 = vsub.f32 0.0, %v6900
  %v8565 = vsub.f32 0.0, %v6901
  %v8566 = vsub.f32 0.0, %v6902
  %v8567 = vsub.f32 0.0, %v6903
  %v8568 = vsub.f32 0.0, %v6904
  %v8569 = vsub.f32 0.0, %v6905
  %v8570 = vsub.f32 0.0, %v6906
  %v8571 = vsub.f32 0.0, %v6907
  %v8572 = vsub.f32 0.0, %v6908
  %v8573 = vsub.f32 0.0, %v6909
  %v8574 = vsub.f32 0.0, %v6910
  %v8575 = vsub.f32 0.0, %v6911
  %v8576 = vsub.f32 0.0, %v6912
  %v8577 = vsub.f32 0.0, %v6913
  %v8578 = vsub.f32 0.0, %v6914
  %v8579 = vsub.f32 0.0, %v6915
  %v8580 = vsub.f32 0.0, %v6916
  %v8581 = vsub.f32 0.0, %v6917
  %v8582 = vsub.f32 0.0, %v6918
  %v8583 = vsub.f32 0.0, %v6919
  %v8584 = vsub.f32 0.0, %v6920
  %v8585 = vsub.f32 0.0, %v6921
  %v8586 = vsub.f32 0.0, %v6922
  %v8587 = vsub.f32 0.0, %v6923
  %v8588 = vsub.f32 0.0, %v6924
  %v8589 = vsub.f32 0.0, %v6925
  %v8590 = vsub.f32 0.0, %v6926
  %v8591 = vsub.f32 0.0, %v6927
  %v8592 = vsub.f32 0.0, %v6928
  %v8593 = vsub.f32 0.0, %v6929
  %v8594 = vsub.f32 0.0, %v6930
  %v8595 = vsub.f32 0.0, %v6931
  %v8596 = vsub.f32 0.0, %v6932
  %v8597 = vsub.f32 0.0, %v6933
  %v8598 = vsub.f32 0.0, %v6934
  %v8599 = vsub.f32 0.0, %v6935
  %v8600 = vsub.f32 0.0, %v6936
  %v8601 = vsub.f32 0.0, %v6937
  %v8602 = vsub.f32 0.0, %v6938
  %v8603 = vsub.f32 0.0, %v6939
  %v8604 = vsub.f32 0.0, %v6940
  %v8605 = vsub.f32 0.0, %v6941
  %v8606 = vsub.f32 0.0, %v6942
  %v8607 = vsub.f32 0.0, %v6943
  %v8608 = vsub.f32 0.0, %v6944
  %v8609 = vsub.f32 0.0, %v6945
  %v8610 = vsub.f32 0.0, %v6946
  %v8611 = vsub.f32 0.0, %v6947
  %v8612 = vsub.f32 0.0, %v6948
  %v8613 = vsub.f32 0.0, %v6949
  %v8614 = vsub.f32 0.0, %v6950
  %v8615 = vsub.f32 0.0, %v6951
  %v8616 = vsub.f32 0.0, %v6952
  %v8617 = vsub.f32 0.0, %v6953
  %v8618 = vsub.f32 0.0, %v6954
  %v8619 = vsub.f32 0.0, %v6955
  %v8620 = vsub.f32 0.0, %v6956
  %v8621 = vsub.f32 0.0, %v6957
  %v8622 = vsub.f32 0.0, %v6958
  %v8623 = vsub.f32 0.0, %v6959
  %v8624 = vsub.f32 0.0, %v6960
  %v8625 = vsub.f32 0.0, %v6961
  %v8626 = vsub.f32 0.0, %v6962
  %v8627 = vsub.f32 0.0, %v6963
  %v8628 = vsub.f32 0.0, %v6964
  %v8629 = vsub.f32 0.0, %v6965
  %v8630 = vsub.f32 0.0, %v6966
  %v8631 = vsub.f32 0.0, %v6967
  %v8632 = vsub.f32 0.0, %v6968
  %v8633 = vsub.f32 0.0, %v6969
  %v8634 = vsub.f32 0.0, %v6970
  %v8635 = vsub.f32 0.0, %v6971
  %v8636 = vsub.f32 0.0, %v6972
  %v8637 = vsub.f32 0.0, %v6973
  %v8638 = vsub.f32 0.0, %v6974
  %v8639 = vsub.f32 0.0, %v6975
  %v8640 = vsub.f32 0.0, %v6976
  %v8641 = vsub.f32 0.0, %v6977
  %v8642 = vsub.f32 0.0, %v6978
  %v8643 = vmul.f32 %v8515, %v6851
  %v8644 = vmul.f32 %v8516, %v6852
  %v8645 = vmul.f32 %v8517, %v6853
  %v8646 = vmul.f32 %v8518, %v6854
  %v8647 = vmul.f32 %v8519, %v6855
  %v8648 = vmul.f32 %v8520, %v6856
  %v8649 = vmul.f32 %v8521, %v6857
  %v8650 = vmul.f32 %v8522, %v6858
  %v8651 = vmul.f32 %v8523, %v6859
  %v8652 = vmul.f32 %v8524, %v6860
  %v8653 = vmul.f32 %v8525, %v6861
  %v8654 = vmul.f32 %v8526, %v6862
  %v8655 = vmul.f32 %v8527, %v6863
  %v8656 = vmul.f32 %v8528, %v6864
  %v8657 = vmul.f32 %v8529, %v6865
  %v8658 = vmul.f32 %v8530, %v6866
  %v8659 = vmul.f32 %v8531, %v6867
  %v8660 = vmul.f32 %v8532, %v6868
  %v8661 = vmul.f32 %v8533, %v6869
  %v8662 = vmul.f32 %v8534, %v6870
  %v8663 = vmul.f32 %v8535, %v6871
  %v8664 = vmul.f32 %v8536, %v6872
  %v8665 = vmul.f32 %v8537, %v6873
  %v8666 = vmul.f32 %v8538, %v6874
  %v8667 = vmul.f32 %v8539, %v6875
  %v8668 = vmul.f32 %v8540, %v6876
  %v8669 = vmul.f32 %v8541, %v6877
  %v8670 = vmul.f32 %v8542, %v6878
  %v8671 = vmul.f32 %v8543, %v6879
  %v8672 = vmul.f32 %v8544, %v6880
  %v8673 = vmul.f32 %v8545, %v6881
  %v8674 = vmul.f32 %v8546, %v6882
  %v8675 = vmul.f32 %v8547, %v6883
  %v8676 = vmul.f32 %v8548, %v6884
  %v8677 = vmul.f32 %v8549, %v6885
  %v8678 = vmul.f32 %v8550, %v6886
  %v8679 = vmul.f32 %v8551, %v6887
  %v8680 = vmul.f32 %v8552, %v6888
  %v8681 = vmul.f32 %v8553, %v6889
  %v8682 = vmul.f32 %v8554, %v6890
  %v8683 = vmul.f32 %v8555, %v6891
  %v8684 = vmul.f32 %v8556, %v6892
  %v8685 = vmul.f32 %v8557, %v6893
  %v8686 = vmul.f32 %v8558, %v6894
  %v8687 = vmul.f32 %v8559, %v6895
  %v8688 = vmul.f32 %v8560, %v6896
  %v8689 = vmul.f32 %v8561, %v6897
  %v8690 = vmul.f32 %v8562, %v6898
  %v8691 = vmul.f32 %v8563, %v6899
  %v8692 = vmul.f32 %v8564, %v6900
  %v8693 = vmul.f32 %v8565, %v6901
  %v8694 = vmul.f32 %v8566, %v6902
  %v8695 = vmul.f32 %v8567, %v6903
  %v8696 = vmul.f32 %v8568, %v6904
  %v8697 = vmul.f32 %v8569, %v6905
  %v8698 = vmul.f32 %v8570, %v6906
  %v8699 = vmul.f32 %v8571, %v6907
  %v8700 = vmul.f32 %v8572, %v6908
  %v8701 = vmul.f32 %v8573, %v6909
  %v8702 = vmul.f32 %v8574, %v6910
  %v8703 = vmul.f32 %v8575, %v6911
  %v8704 = vmul.f32 %v8576, %v6912
  %v8705 = vmul.f32 %v8577, %v6913
  %v8706 = vmul.f32 %v8578, %v6914
  %v8707 = vmul.f32 %v8579, %v6915
  %v8708 = vmul.f32 %v8580, %v6916
  %v8709 = vmul.f32 %v8581, %v6917
  %v8710 = vmul.f32 %v8582, %v6918
  %v8711 = vmul.f32 %v8583, %v6919
  %v8712 = vmul.f32 %v8584, %v6920
  %v8713 = vmul.f32 %v8585, %v6921
  %v8714 = vmul.f32 %v8586, %v6922
  %v8715 = vmul.f32 %v8587, %v6923
  %v8716 = vmul.f32 %v8588, %v6924
  %v8717 = vmul.f32 %v8589, %v6925
  %v8718 = vmul.f32 %v8590, %v6926
  %v8719 = vmul.f32 %v8591, %v6927
  %v8720 = vmul.f32 %v8592, %v6928
  %v8721 = vmul.f32 %v8593, %v6929
  %v8722 = vmul.f32 %v8594, %v6930
  %v8723 = vmul.f32 %v8595, %v6931
  %v8724 = vmul.f32 %v8596, %v6932
  %v8725 = vmul.f32 %v8597, %v6933
  %v8726 = vmul.f32 %v8598, %v6934
  %v8727 = vmul.f32 %v8599, %v6935
  %v8728 = vmul.f32 %v8600, %v6936
  %v8729 = vmul.f32 %v8601, %v6937
  %v8730 = vmul.f32 %v8602, %v6938
  %v8731 = vmul.f32 %v8603, %v6939
  %v8732 = vmul.f32 %v8604, %v6940
  %v8733 = vmul.f32 %v8605, %v6941
  %v8734 = vmul.f32 %v8606, %v6942
  %v8735 = vmul.f32 %v8607, %v6943
  %v8736 = vmul.f32 %v8608, %v6944
  %v8737 = vmul.f32 %v8609, %v6945
  %v8738 = vmul.f32 %v8610, %v6946
  %v8739 = vmul.f32 %v8611, %v6947
  %v8740 = vmul.f32 %v8612, %v6948
  %v8741 = vmul.f32 %v8613, %v6949
  %v8742 = vmul.f32 %v8614, %v6950
  %v8743 = vmul.f32 %v8615, %v6951
  %v8744 = vmul.f32 %v8616, %v6952
  %v8745 = vmul.f32 %v8617, %v6953
  %v8746 = vmul.f32 %v8618, %v6954
  %v8747 = vmul.f32 %v8619, %v6955
  %v8748 = vmul.f32 %v8620, %v6956
  %v8749 = vmul.f32 %v8621, %v6957
  %v8750 = vmul.f32 %v8622, %v6958
  %v8751 = vmul.f32 %v8623, %v6959
  %v8752 = vmul.f32 %v8624, %v6960
  %v8753 = vmul.f32 %v8625, %v6961
  %v8754 = vmul.f32 %v8626, %v6962
  %v8755 = vmul.f32 %v8627, %v6963
  %v8756 = vmul.f32 %v8628, %v6964
  %v8757 = vmul.f32 %v8629, %v6965
  %v8758 = vmul.f32 %v8630, %v6966
  %v8759 = vmul.f32 %v8631, %v6967
  %v8760 = vmul.f32 %v8632, %v6968
  %v8761 = vmul.f32 %v8633, %v6969
  %v8762 = vmul.f32 %v8634, %v6970
  %v8763 = vmul.f32 %v8635, %v6971
  %v8764 = vmul.f32 %v8636, %v6972
  %v8765 = vmul.f32 %v8637, %v6973
  %v8766 = vmul.f32 %v8638, %v6974
  %v8767 = vmul.f32 %v8639, %v6975
  %v8768 = vmul.f32 %v8640, %v6976
  %v8769 = vmul.f32 %v8641, %v6977
  %v8770 = vmul.f32 %v8642, %v6978
  %v8771 = vmul.f32 %v8643, 1.442695
  %v8772 = vpow.pop %v8771
  %v8773 = vmul.f32 %v8644, 1.442695
  %v8774 = vpow.pop %v8773
  %v8775 = vmul.f32 %v8645, 1.442695
  %v8776 = vpow.pop %v8775
  %v8777 = vmul.f32 %v8646, 1.442695
  %v8778 = vpow.pop %v8777
  %v8779 = vmul.f32 %v8647, 1.442695
  %v8780 = vpow.pop %v8779
  %v8781 = vmul.f32 %v8648, 1.442695
  %v8782 = vpow.pop %v8781
  %v8783 = vmul.f32 %v8649, 1.442695
  %v8784 = vpow.pop %v8783
  %v8785 = vmul.f32 %v8650, 1.442695
  %v8786 = vpow.pop %v8785
  %v8787 = vmul.f32 %v8651, 1.442695
  %v8788 = vpow.pop %v8787
  %v8789 = vmul.f32 %v8652, 1.442695
  %v8790 = vpow.pop %v8789
  %v8791 = vmul.f32 %v8653, 1.442695
  %v8792 = vpow.pop %v8791
  %v8793 = vmul.f32 %v8654, 1.442695
  %v8794 = vpow.pop %v8793
  %v8795 = vmul.f32 %v8655, 1.442695
  %v8796 = vpow.pop %v8795
  %v8797 = vmul.f32 %v8656, 1.442695
  %v8798 = vpow.pop %v8797
  %v8799 = vmul.f32 %v8657, 1.442695
  %v8800 = vpow.pop %v8799
  %v8801 = vmul.f32 %v8658, 1.442695
  %v8802 = vpow.pop %v8801
  %v8803 = vmul.f32 %v8659, 1.442695
  %v8804 = vpow.pop %v8803
  %v8805 = vmul.f32 %v8660, 1.442695
  %v8806 = vpow.pop %v8805
  %v8807 = vmul.f32 %v8661, 1.442695
  %v8808 = vpow.pop %v8807
  %v8809 = vmul.f32 %v8662, 1.442695
  %v8810 = vpow.pop %v8809
  %v8811 = vmul.f32 %v8663, 1.442695
  %v8812 = vpow.pop %v8811
  %v8813 = vmul.f32 %v8664, 1.442695
  %v8814 = vpow.pop %v8813
  %v8815 = vmul.f32 %v8665, 1.442695
  %v8816 = vpow.pop %v8815
  %v8817 = vmul.f32 %v8666, 1.442695
  %v8818 = vpow.pop %v8817
  %v8819 = vmul.f32 %v8667, 1.442695
  %v8820 = vpow.pop %v8819
  %v8821 = vmul.f32 %v8668, 1.442695
  %v8822 = vpow.pop %v8821
  %v8823 = vmul.f32 %v8669, 1.442695
  %v8824 = vpow.pop %v8823
  %v8825 = vmul.f32 %v8670, 1.442695
  %v8826 = vpow.pop %v8825
  %v8827 = vmul.f32 %v8671, 1.442695
  %v8828 = vpow.pop %v8827
  %v8829 = vmul.f32 %v8672, 1.442695
  %v8830 = vpow.pop %v8829
  %v8831 = vmul.f32 %v8673, 1.442695
  %v8832 = vpow.pop %v8831
  %v8833 = vmul.f32 %v8674, 1.442695
  %v8834 = vpow.pop %v8833
  %v8835 = vmul.f32 %v8675, 1.442695
  %v8836 = vpow.pop %v8835
  %v8837 = vmul.f32 %v8676, 1.442695
  %v8838 = vpow.pop %v8837
  %v8839 = vmul.f32 %v8677, 1.442695
  %v8840 = vpow.pop %v8839
  %v8841 = vmul.f32 %v8678, 1.442695
  %v8842 = vpow.pop %v8841
  %v8843 = vmul.f32 %v8679, 1.442695
  %v8844 = vpow.pop %v8843
  %v8845 = vmul.f32 %v8680, 1.442695
  %v8846 = vpow.pop %v8845
  %v8847 = vmul.f32 %v8681, 1.442695
  %v8848 = vpow.pop %v8847
  %v8849 = vmul.f32 %v8682, 1.442695
  %v8850 = vpow.pop %v8849
  %v8851 = vmul.f32 %v8683, 1.442695
  %v8852 = vpow.pop %v8851
  %v8853 = vmul.f32 %v8684, 1.442695
  %v8854 = vpow.pop %v8853
  %v8855 = vmul.f32 %v8685, 1.442695
  %v8856 = vpow.pop %v8855
  %v8857 = vmul.f32 %v8686, 1.442695
  %v8858 = vpow.pop %v8857
  %v8859 = vmul.f32 %v8687, 1.442695
  %v8860 = vpow.pop %v8859
  %v8861 = vmul.f32 %v8688, 1.442695
  %v8862 = vpow.pop %v8861
  %v8863 = vmul.f32 %v8689, 1.442695
  %v8864 = vpow.pop %v8863
  %v8865 = vmul.f32 %v8690, 1.442695
  %v8866 = vpow.pop %v8865
  %v8867 = vmul.f32 %v8691, 1.442695
  %v8868 = vpow.pop %v8867
  %v8869 = vmul.f32 %v8692, 1.442695
  %v8870 = vpow.pop %v8869
  %v8871 = vmul.f32 %v8693, 1.442695
  %v8872 = vpow.pop %v8871
  %v8873 = vmul.f32 %v8694, 1.442695
  %v8874 = vpow.pop %v8873
  %v8875 = vmul.f32 %v8695, 1.442695
  %v8876 = vpow.pop %v8875
  %v8877 = vmul.f32 %v8696, 1.442695
  %v8878 = vpow.pop %v8877
  %v8879 = vmul.f32 %v8697, 1.442695
  %v8880 = vpow.pop %v8879
  %v8881 = vmul.f32 %v8698, 1.442695
  %v8882 = vpow.pop %v8881
  %v8883 = vmul.f32 %v8699, 1.442695
  %v8884 = vpow.pop %v8883
  %v8885 = vmul.f32 %v8700, 1.442695
  %v8886 = vpow.pop %v8885
  %v8887 = vmul.f32 %v8701, 1.442695
  %v8888 = vpow.pop %v8887
  %v8889 = vmul.f32 %v8702, 1.442695
  %v8890 = vpow.pop %v8889
  %v8891 = vmul.f32 %v8703, 1.442695
  %v8892 = vpow.pop %v8891
  %v8893 = vmul.f32 %v8704, 1.442695
  %v8894 = vpow.pop %v8893
  %v8895 = vmul.f32 %v8705, 1.442695
  %v8896 = vpow.pop %v8895
  %v8897 = vmul.f32 %v8706, 1.442695
  %v8898 = vpow.pop %v8897
  %v8899 = vmul.f32 %v8707, 1.442695
  %v8900 = vpow.pop %v8899
  %v8901 = vmul.f32 %v8708, 1.442695
  %v8902 = vpow.pop %v8901
  %v8903 = vmul.f32 %v8709, 1.442695
  %v8904 = vpow.pop %v8903
  %v8905 = vmul.f32 %v8710, 1.442695
  %v8906 = vpow.pop %v8905
  %v8907 = vmul.f32 %v8711, 1.442695
  %v8908 = vpow.pop %v8907
  %v8909 = vmul.f32 %v8712, 1.442695
  %v8910 = vpow.pop %v8909
  %v8911 = vmul.f32 %v8713, 1.442695
  %v8912 = vpow.pop %v8911
  %v8913 = vmul.f32 %v8714, 1.442695
  %v8914 = vpow.pop %v8913
  %v8915 = vmul.f32 %v8715, 1.442695
  %v8916 = vpow.pop %v8915
  %v8917 = vmul.f32 %v8716, 1.442695
  %v8918 = vpow.pop %v8917
  %v8919 = vmul.f32 %v8717, 1.442695
  %v8920 = vpow.pop %v8919
  %v8921 = vmul.f32 %v8718, 1.442695
  %v8922 = vpow.pop %v8921
  %v8923 = vmul.f32 %v8719, 1.442695
  %v8924 = vpow.pop %v8923
  %v8925 = vmul.f32 %v8720, 1.442695
  %v8926 = vpow.pop %v8925
  %v8927 = vmul.f32 %v8721, 1.442695
  %v8928 = vpow.pop %v8927
  %v8929 = vmul.f32 %v8722, 1.442695
  %v8930 = vpow.pop %v8929
  %v8931 = vmul.f32 %v8723, 1.442695
  %v8932 = vpow.pop %v8931
  %v8933 = vmul.f32 %v8724, 1.442695
  %v8934 = vpow.pop %v8933
  %v8935 = vmul.f32 %v8725, 1.442695
  %v8936 = vpow.pop %v8935
  %v8937 = vmul.f32 %v8726, 1.442695
  %v8938 = vpow.pop %v8937
  %v8939 = vmul.f32 %v8727, 1.442695
  %v8940 = vpow.pop %v8939
  %v8941 = vmul.f32 %v8728, 1.442695
  %v8942 = vpow.pop %v8941
  %v8943 = vmul.f32 %v8729, 1.442695
  %v8944 = vpow.pop %v8943
  %v8945 = vmul.f32 %v8730, 1.442695
  %v8946 = vpow.pop %v8945
  %v8947 = vmul.f32 %v8731, 1.442695
  %v8948 = vpow.pop %v8947
  %v8949 = vmul.f32 %v8732, 1.442695
  %v8950 = vpow.pop %v8949
  %v8951 = vmul.f32 %v8733, 1.442695
  %v8952 = vpow.pop %v8951
  %v8953 = vmul.f32 %v8734, 1.442695
  %v8954 = vpow.pop %v8953
  %v8955 = vmul.f32 %v8735, 1.442695
  %v8956 = vpow.pop %v8955
  %v8957 = vmul.f32 %v8736, 1.442695
  %v8958 = vpow.pop %v8957
  %v8959 = vmul.f32 %v8737, 1.442695
  %v8960 = vpow.pop %v8959
  %v8961 = vmul.f32 %v8738, 1.442695
  %v8962 = vpow.pop %v8961
  %v8963 = vmul.f32 %v8739, 1.442695
  %v8964 = vpow.pop %v8963
  %v8965 = vmul.f32 %v8740, 1.442695
  %v8966 = vpow.pop %v8965
  %v8967 = vmul.f32 %v8741, 1.442695
  %v8968 = vpow.pop %v8967
  %v8969 = vmul.f32 %v8742, 1.442695
  %v8970 = vpow.pop %v8969
  %v8971 = vmul.f32 %v8743, 1.442695
  %v8972 = vpow.pop %v8971
  %v8973 = vmul.f32 %v8744, 1.442695
  %v8974 = vpow.pop %v8973
  %v8975 = vmul.f32 %v8745, 1.442695
  %v8976 = vpow.pop %v8975
  %v8977 = vmul.f32 %v8746, 1.442695
  %v8978 = vpow.pop %v8977
  %v8979 = vmul.f32 %v8747, 1.442695
  %v8980 = vpow.pop %v8979
  %v8981 = vmul.f32 %v8748, 1.442695
  %v8982 = vpow.pop %v8981
  %v8983 = vmul.f32 %v8749, 1.442695
  %v8984 = vpow.pop %v8983
  %v8985 = vmul.f32 %v8750, 1.442695
  %v8986 = vpow.pop %v8985
  %v8987 = vmul.f32 %v8751, 1.442695
  %v8988 = vpow.pop %v8987
  %v8989 = vmul.f32 %v8752, 1.442695
  %v8990 = vpow.pop %v8989
  %v8991 = vmul.f32 %v8753, 1.442695
  %v8992 = vpow.pop %v8991
  %v8993 = vmul.f32 %v8754, 1.442695
  %v8994 = vpow.pop %v8993
  %v8995 = vmul.f32 %v8755, 1.442695
  %v8996 = vpow.pop %v8995
  %v8997 = vmul.f32 %v8756, 1.442695
  %v8998 = vpow.pop %v8997
  %v8999 = vmul.f32 %v8757, 1.442695
  %v9000 = vpow.pop %v8999
  %v9001 = vmul.f32 %v8758, 1.442695
  %v9002 = vpow.pop %v9001
  %v9003 = vmul.f32 %v8759, 1.442695
  %v9004 = vpow.pop %v9003
  %v9005 = vmul.f32 %v8760, 1.442695
  %v9006 = vpow.pop %v9005
  %v9007 = vmul.f32 %v8761, 1.442695
  %v9008 = vpow.pop %v9007
  %v9009 = vmul.f32 %v8762, 1.442695
  %v9010 = vpow.pop %v9009
  %v9011 = vmul.f32 %v8763, 1.442695
  %v9012 = vpow.pop %v9011
  %v9013 = vmul.f32 %v8764, 1.442695
  %v9014 = vpow.pop %v9013
  %v9015 = vmul.f32 %v8765, 1.442695
  %v9016 = vpow.pop %v9015
  %v9017 = vmul.f32 %v8766, 1.442695
  %v9018 = vpow.pop %v9017
  %v9019 = vmul.f32 %v8767, 1.442695
  %v9020 = vpow.pop %v9019
  %v9021 = vmul.f32 %v8768, 1.442695
  %v9022 = vpow.pop %v9021
  %v9023 = vmul.f32 %v8769, 1.442695
  %v9024 = vpow.pop %v9023
  %v9025 = vmul.f32 %v8770, 1.442695
  %v9026 = vpow.pop %v9025
  %v9027 = vmul.f32 %v8387, %v8772
  %v9028 = vmul.f32 %v8388, %v8774
  %v9029 = vmul.f32 %v8389, %v8776
  %v9030 = vmul.f32 %v8390, %v8778
  %v9031 = vmul.f32 %v8391, %v8780
  %v9032 = vmul.f32 %v8392, %v8782
  %v9033 = vmul.f32 %v8393, %v8784
  %v9034 = vmul.f32 %v8394, %v8786
  %v9035 = vmul.f32 %v8395, %v8788
  %v9036 = vmul.f32 %v8396, %v8790
  %v9037 = vmul.f32 %v8397, %v8792
  %v9038 = vmul.f32 %v8398, %v8794
  %v9039 = vmul.f32 %v8399, %v8796
  %v9040 = vmul.f32 %v8400, %v8798
  %v9041 = vmul.f32 %v8401, %v8800
  %v9042 = vmul.f32 %v8402, %v8802
  %v9043 = vmul.f32 %v8403, %v8804
  %v9044 = vmul.f32 %v8404, %v8806
  %v9045 = vmul.f32 %v8405, %v8808
  %v9046 = vmul.f32 %v8406, %v8810
  %v9047 = vmul.f32 %v8407, %v8812
  %v9048 = vmul.f32 %v8408, %v8814
  %v9049 = vmul.f32 %v8409, %v8816
  %v9050 = vmul.f32 %v8410, %v8818
  %v9051 = vmul.f32 %v8411, %v8820
  %v9052 = vmul.f32 %v8412, %v8822
  %v9053 = vmul.f32 %v8413, %v8824
  %v9054 = vmul.f32 %v8414, %v8826
  %v9055 = vmul.f32 %v8415, %v8828
  %v9056 = vmul.f32 %v8416, %v8830
  %v9057 = vmul.f32 %v8417, %v8832
  %v9058 = vmul.f32 %v8418, %v8834
  %v9059 = vmul.f32 %v8419, %v8836
  %v9060 = vmul.f32 %v8420, %v8838
  %v9061 = vmul.f32 %v8421, %v8840
  %v9062 = vmul.f32 %v8422, %v8842
  %v9063 = vmul.f32 %v8423, %v8844
  %v9064 = vmul.f32 %v8424, %v8846
  %v9065 = vmul.f32 %v8425, %v8848
  %v9066 = vmul.f32 %v8426, %v8850
  %v9067 = vmul.f32 %v8427, %v8852
  %v9068 = vmul.f32 %v8428, %v8854
  %v9069 = vmul.f32 %v8429, %v8856
  %v9070 = vmul.f32 %v8430, %v8858
  %v9071 = vmul.f32 %v8431, %v8860
  %v9072 = vmul.f32 %v8432, %v8862
  %v9073 = vmul.f32 %v8433, %v8864
  %v9074 = vmul.f32 %v8434, %v8866
  %v9075 = vmul.f32 %v8435, %v8868
  %v9076 = vmul.f32 %v8436, %v8870
  %v9077 = vmul.f32 %v8437, %v8872
  %v9078 = vmul.f32 %v8438, %v8874
  %v9079 = vmul.f32 %v8439, %v8876
  %v9080 = vmul.f32 %v8440, %v8878
  %v9081 = vmul.f32 %v8441, %v8880
  %v9082 = vmul.f32 %v8442, %v8882
  %v9083 = vmul.f32 %v8443, %v8884
  %v9084 = vmul.f32 %v8444, %v8886
  %v9085 = vmul.f32 %v8445, %v8888
  %v9086 = vmul.f32 %v8446, %v8890
  %v9087 = vmul.f32 %v8447, %v8892
  %v9088 = vmul.f32 %v8448, %v8894
  %v9089 = vmul.f32 %v8449, %v8896
  %v9090 = vmul.f32 %v8450, %v8898
  %v9091 = vmul.f32 %v8451, %v8900
  %v9092 = vmul.f32 %v8452, %v8902
  %v9093 = vmul.f32 %v8453, %v8904
  %v9094 = vmul.f32 %v8454, %v8906
  %v9095 = vmul.f32 %v8455, %v8908
  %v9096 = vmul.f32 %v8456, %v8910
  %v9097 = vmul.f32 %v8457, %v8912
  %v9098 = vmul.f32 %v8458, %v8914
  %v9099 = vmul.f32 %v8459, %v8916
  %v9100 = vmul.f32 %v8460, %v8918
  %v9101 = vmul.f32 %v8461, %v8920
  %v9102 = vmul.f32 %v8462, %v8922
  %v9103 = vmul.f32 %v8463, %v8924
  %v9104 = vmul.f32 %v8464, %v8926
  %v9105 = vmul.f32 %v8465, %v8928
  %v9106 = vmul.f32 %v8466, %v8930
  %v9107 = vmul.f32 %v8467, %v8932
  %v9108 = vmul.f32 %v8468, %v8934
  %v9109 = vmul.f32 %v8469, %v8936
  %v9110 = vmul.f32 %v8470, %v8938
  %v9111 = vmul.f32 %v8471, %v8940
  %v9112 = vmul.f32 %v8472, %v8942
  %v9113 = vmul.f32 %v8473, %v8944
  %v9114 = vmul.f32 %v8474, %v8946
  %v9115 = vmul.f32 %v8475, %v8948
  %v9116 = vmul.f32 %v8476, %v8950
  %v9117 = vmul.f32 %v8477, %v8952
  %v9118 = vmul.f32 %v8478, %v8954
  %v9119 = vmul.f32 %v8479, %v8956
  %v9120 = vmul.f32 %v8480, %v8958
  %v9121 = vmul.f32 %v8481, %v8960
  %v9122 = vmul.f32 %v8482, %v8962
  %v9123 = vmul.f32 %v8483, %v8964
  %v9124 = vmul.f32 %v8484, %v8966
  %v9125 = vmul.f32 %v8485, %v8968
  %v9126 = vmul.f32 %v8486, %v8970
  %v9127 = vmul.f32 %v8487, %v8972
  %v9128 = vmul.f32 %v8488, %v8974
  %v9129 = vmul.f32 %v8489, %v8976
  %v9130 = vmul.f32 %v8490, %v8978
  %v9131 = vmul.f32 %v8491, %v8980
  %v9132 = vmul.f32 %v8492, %v8982
  %v9133 = vmul.f32 %v8493, %v8984
  %v9134 = vmul.f32 %v8494, %v8986
  %v9135 = vmul.f32 %v8495, %v8988
  %v9136 = vmul.f32 %v8496, %v8990
  %v9137 = vmul.f32 %v8497, %v8992
  %v9138 = vmul.f32 %v8498, %v8994
  %v9139 = vmul.f32 %v8499, %v8996
  %v9140 = vmul.f32 %v8500, %v8998
  %v9141 = vmul.f32 %v8501, %v9000
  %v9142 = vmul.f32 %v8502, %v9002
  %v9143 = vmul.f32 %v8503, %v9004
  %v9144 = vmul.f32 %v8504, %v9006
  %v9145 = vmul.f32 %v8505, %v9008
  %v9146 = vmul.f32 %v8506, %v9010
  %v9147 = vmul.f32 %v8507, %v9012
  %v9148 = vmul.f32 %v8508, %v9014
  %v9149 = vmul.f32 %v8509, %v9016
  %v9150 = vmul.f32 %v8510, %v9018
  %v9151 = vmul.f32 %v8511, %v9020
  %v9152 = vmul.f32 %v8512, %v9022
  %v9153 = vmul.f32 %v8513, %v9024
  %v9154 = vmul.f32 %v8514, %v9026
  %v9155 = vsub.f32 1.0, %v9027
  %v9156 = vsub.f32 1.0, %v9028
  %v9157 = vsub.f32 1.0, %v9029
  %v9158 = vsub.f32 1.0, %v9030
  %v9159 = vsub.f32 1.0, %v9031
  %v9160 = vsub.f32 1.0, %v9032
  %v9161 = vsub.f32 1.0, %v9033
  %v9162 = vsub.f32 1.0, %v9034
  %v9163 = vsub.f32 1.0, %v9035
  %v9164 = vsub.f32 1.0, %v9036
  %v9165 = vsub.f32 1.0, %v9037
  %v9166 = vsub.f32 1.0, %v9038
  %v9167 = vsub.f32 1.0, %v9039
  %v9168 = vsub.f32 1.0, %v9040
  %v9169 = vsub.f32 1.0, %v9041
  %v9170 = vsub.f32 1.0, %v9042
  %v9171 = vsub.f32 1.0, %v9043
  %v9172 = vsub.f32 1.0, %v9044
  %v9173 = vsub.f32 1.0, %v9045
  %v9174 = vsub.f32 1.0, %v9046
  %v9175 = vsub.f32 1.0, %v9047
  %v9176 = vsub.f32 1.0, %v9048
  %v9177 = vsub.f32 1.0, %v9049
  %v9178 = vsub.f32 1.0, %v9050
  %v9179 = vsub.f32 1.0, %v9051
  %v9180 = vsub.f32 1.0, %v9052
  %v9181 = vsub.f32 1.0, %v9053
  %v9182 = vsub.f32 1.0, %v9054
  %v9183 = vsub.f32 1.0, %v9055
  %v9184 = vsub.f32 1.0, %v9056
  %v9185 = vsub.f32 1.0, %v9057
  %v9186 = vsub.f32 1.0, %v9058
  %v9187 = vsub.f32 1.0, %v9059
  %v9188 = vsub.f32 1.0, %v9060
  %v9189 = vsub.f32 1.0, %v9061
  %v9190 = vsub.f32 1.0, %v9062
  %v9191 = vsub.f32 1.0, %v9063
  %v9192 = vsub.f32 1.0, %v9064
  %v9193 = vsub.f32 1.0, %v9065
  %v9194 = vsub.f32 1.0, %v9066
  %v9195 = vsub.f32 1.0, %v9067
  %v9196 = vsub.f32 1.0, %v9068
  %v9197 = vsub.f32 1.0, %v9069
  %v9198 = vsub.f32 1.0, %v9070
  %v9199 = vsub.f32 1.0, %v9071
  %v9200 = vsub.f32 1.0, %v9072
  %v9201 = vsub.f32 1.0, %v9073
  %v9202 = vsub.f32 1.0, %v9074
  %v9203 = vsub.f32 1.0, %v9075
  %v9204 = vsub.f32 1.0, %v9076
  %v9205 = vsub.f32 1.0, %v9077
  %v9206 = vsub.f32 1.0, %v9078
  %v9207 = vsub.f32 1.0, %v9079
  %v9208 = vsub.f32 1.0, %v9080
  %v9209 = vsub.f32 1.0, %v9081
  %v9210 = vsub.f32 1.0, %v9082
  %v9211 = vsub.f32 1.0, %v9083
  %v9212 = vsub.f32 1.0, %v9084
  %v9213 = vsub.f32 1.0, %v9085
  %v9214 = vsub.f32 1.0, %v9086
  %v9215 = vsub.f32 1.0, %v9087
  %v9216 = vsub.f32 1.0, %v9088
  %v9217 = vsub.f32 1.0, %v9089
  %v9218 = vsub.f32 1.0, %v9090
  %v9219 = vsub.f32 1.0, %v9091
  %v9220 = vsub.f32 1.0, %v9092
  %v9221 = vsub.f32 1.0, %v9093
  %v9222 = vsub.f32 1.0, %v9094
  %v9223 = vsub.f32 1.0, %v9095
  %v9224 = vsub.f32 1.0, %v9096
  %v9225 = vsub.f32 1.0, %v9097
  %v9226 = vsub.f32 1.0, %v9098
  %v9227 = vsub.f32 1.0, %v9099
  %v9228 = vsub.f32 1.0, %v9100
  %v9229 = vsub.f32 1.0, %v9101
  %v9230 = vsub.f32 1.0, %v9102
  %v9231 = vsub.f32 1.0, %v9103
  %v9232 = vsub.f32 1.0, %v9104
  %v9233 = vsub.f32 1.0, %v9105
  %v9234 = vsub.f32 1.0, %v9106
  %v9235 = vsub.f32 1.0, %v9107
  %v9236 = vsub.f32 1.0, %v9108
  %v9237 = vsub.f32 1.0, %v9109
  %v9238 = vsub.f32 1.0, %v9110
  %v9239 = vsub.f32 1.0, %v9111
  %v9240 = vsub.f32 1.0, %v9112
  %v9241 = vsub.f32 1.0, %v9113
  %v9242 = vsub.f32 1.0, %v9114
  %v9243 = vsub.f32 1.0, %v9115
  %v9244 = vsub.f32 1.0, %v9116
  %v9245 = vsub.f32 1.0, %v9117
  %v9246 = vsub.f32 1.0, %v9118
  %v9247 = vsub.f32 1.0, %v9119
  %v9248 = vsub.f32 1.0, %v9120
  %v9249 = vsub.f32 1.0, %v9121
  %v9250 = vsub.f32 1.0, %v9122
  %v9251 = vsub.f32 1.0, %v9123
  %v9252 = vsub.f32 1.0, %v9124
  %v9253 = vsub.f32 1.0, %v9125
  %v9254 = vsub.f32 1.0, %v9126
  %v9255 = vsub.f32 1.0, %v9127
  %v9256 = vsub.f32 1.0, %v9128
  %v9257 = vsub.f32 1.0, %v9129
  %v9258 = vsub.f32 1.0, %v9130
  %v9259 = vsub.f32 1.0, %v9131
  %v9260 = vsub.f32 1.0, %v9132
  %v9261 = vsub.f32 1.0, %v9133
  %v9262 = vsub.f32 1.0, %v9134
  %v9263 = vsub.f32 1.0, %v9135
  %v9264 = vsub.f32 1.0, %v9136
  %v9265 = vsub.f32 1.0, %v9137
  %v9266 = vsub.f32 1.0, %v9138
  %v9267 = vsub.f32 1.0, %v9139
  %v9268 = vsub.f32 1.0, %v9140
  %v9269 = vsub.f32 1.0, %v9141
  %v9270 = vsub.f32 1.0, %v9142
  %v9271 = vsub.f32 1.0, %v9143
  %v9272 = vsub.f32 1.0, %v9144
  %v9273 = vsub.f32 1.0, %v9145
  %v9274 = vsub.f32 1.0, %v9146
  %v9275 = vsub.f32 1.0, %v9147
  %v9276 = vsub.f32 1.0, %v9148
  %v9277 = vsub.f32 1.0, %v9149
  %v9278 = vsub.f32 1.0, %v9150
  %v9279 = vsub.f32 1.0, %v9151
  %v9280 = vsub.f32 1.0, %v9152
  %v9281 = vsub.f32 1.0, %v9153
  %v9282 = vsub.f32 1.0, %v9154
  %vm9283 = vcmp.lt.f32.partialorder %v6723, 0.0
  %vm9284 = vcmp.lt.f32.partialorder %v6724, 0.0
  %vm9285 = vcmp.lt.f32.partialorder %v6725, 0.0
  %vm9286 = vcmp.lt.f32.partialorder %v6726, 0.0
  %vm9287 = vcmp.lt.f32.partialorder %v6727, 0.0
  %vm9288 = vcmp.lt.f32.partialorder %v6728, 0.0
  %vm9289 = vcmp.lt.f32.partialorder %v6729, 0.0
  %vm9290 = vcmp.lt.f32.partialorder %v6730, 0.0
  %vm9291 = vcmp.lt.f32.partialorder %v6731, 0.0
  %vm9292 = vcmp.lt.f32.partialorder %v6732, 0.0
  %vm9293 = vcmp.lt.f32.partialorder %v6733, 0.0
  %vm9294 = vcmp.lt.f32.partialorder %v6734, 0.0
  %vm9295 = vcmp.lt.f32.partialorder %v6735, 0.0
  %vm9296 = vcmp.lt.f32.partialorder %v6736, 0.0
  %vm9297 = vcmp.lt.f32.partialorder %v6737, 0.0
  %vm9298 = vcmp.lt.f32.partialorder %v6738, 0.0
  %vm9299 = vcmp.lt.f32.partialorder %v6739, 0.0
  %vm9300 = vcmp.lt.f32.partialorder %v6740, 0.0
  %vm9301 = vcmp.lt.f32.partialorder %v6741, 0.0
  %vm9302 = vcmp.lt.f32.partialorder %v6742, 0.0
  %vm9303 = vcmp.lt.f32.partialorder %v6743, 0.0
  %vm9304 = vcmp.lt.f32.partialorder %v6744, 0.0
  %vm9305 = vcmp.lt.f32.partialorder %v6745, 0.0
  %vm9306 = vcmp.lt.f32.partialorder %v6746, 0.0
  %vm9307 = vcmp.lt.f32.partialorder %v6747, 0.0
  %vm9308 = vcmp.lt.f32.partialorder %v6748, 0.0
  %vm9309 = vcmp.lt.f32.partialorder %v6749, 0.0
  %vm9310 = vcmp.lt.f32.partialorder %v6750, 0.0
  %vm9311 = vcmp.lt.f32.partialorder %v6751, 0.0
  %vm9312 = vcmp.lt.f32.partialorder %v6752, 0.0
  %vm9313 = vcmp.lt.f32.partialorder %v6753, 0.0
  %vm9314 = vcmp.lt.f32.partialorder %v6754, 0.0
  %vm9315 = vcmp.lt.f32.partialorder %v6755, 0.0
  %vm9316 = vcmp.lt.f32.partialorder %v6756, 0.0
  %vm9317 = vcmp.lt.f32.partialorder %v6757, 0.0
  %vm9318 = vcmp.lt.f32.partialorder %v6758, 0.0
  %vm9319 = vcmp.lt.f32.partialorder %v6759, 0.0
  %vm9320 = vcmp.lt.f32.partialorder %v6760, 0.0
  %vm9321 = vcmp.lt.f32.partialorder %v6761, 0.0
  %vm9322 = vcmp.lt.f32.partialorder %v6762, 0.0
  %vm9323 = vcmp.lt.f32.partialorder %v6763, 0.0
  %vm9324 = vcmp.lt.f32.partialorder %v6764, 0.0
  %vm9325 = vcmp.lt.f32.partialorder %v6765, 0.0
  %vm9326 = vcmp.lt.f32.partialorder %v6766, 0.0
  %vm9327 = vcmp.lt.f32.partialorder %v6767, 0.0
  %vm9328 = vcmp.lt.f32.partialorder %v6768, 0.0
  %vm9329 = vcmp.lt.f32.partialorder %v6769, 0.0
  %vm9330 = vcmp.lt.f32.partialorder %v6770, 0.0
  %vm9331 = vcmp.lt.f32.partialorder %v6771, 0.0
  %vm9332 = vcmp.lt.f32.partialorder %v6772, 0.0
  %vm9333 = vcmp.lt.f32.partialorder %v6773, 0.0
  %vm9334 = vcmp.lt.f32.partialorder %v6774, 0.0
  %vm9335 = vcmp.lt.f32.partialorder %v6775, 0.0
  %vm9336 = vcmp.lt.f32.partialorder %v6776, 0.0
  %vm9337 = vcmp.lt.f32.partialorder %v6777, 0.0
  %vm9338 = vcmp.lt.f32.partialorder %v6778, 0.0
  %vm9339 = vcmp.lt.f32.partialorder %v6779, 0.0
  %vm9340 = vcmp.lt.f32.partialorder %v6780, 0.0
  %vm9341 = vcmp.lt.f32.partialorder %v6781, 0.0
  %vm9342 = vcmp.lt.f32.partialorder %v6782, 0.0
  %vm9343 = vcmp.lt.f32.partialorder %v6783, 0.0
  %vm9344 = vcmp.lt.f32.partialorder %v6784, 0.0
  %vm9345 = vcmp.lt.f32.partialorder %v6785, 0.0
  %vm9346 = vcmp.lt.f32.partialorder %v6786, 0.0
  %vm9347 = vcmp.lt.f32.partialorder %v6787, 0.0
  %vm9348 = vcmp.lt.f32.partialorder %v6788, 0.0
  %vm9349 = vcmp.lt.f32.partialorder %v6789, 0.0
  %vm9350 = vcmp.lt.f32.partialorder %v6790, 0.0
  %vm9351 = vcmp.lt.f32.partialorder %v6791, 0.0
  %vm9352 = vcmp.lt.f32.partialorder %v6792, 0.0
  %vm9353 = vcmp.lt.f32.partialorder %v6793, 0.0
  %vm9354 = vcmp.lt.f32.partialorder %v6794, 0.0
  %vm9355 = vcmp.lt.f32.partialorder %v6795, 0.0
  %vm9356 = vcmp.lt.f32.partialorder %v6796, 0.0
  %vm9357 = vcmp.lt.f32.partialorder %v6797, 0.0
  %vm9358 = vcmp.lt.f32.partialorder %v6798, 0.0
  %vm9359 = vcmp.lt.f32.partialorder %v6799, 0.0
  %vm9360 = vcmp.lt.f32.partialorder %v6800, 0.0
  %vm9361 = vcmp.lt.f32.partialorder %v6801, 0.0
  %vm9362 = vcmp.lt.f32.partialorder %v6802, 0.0
  %vm9363 = vcmp.lt.f32.partialorder %v6803, 0.0
  %vm9364 = vcmp.lt.f32.partialorder %v6804, 0.0
  %vm9365 = vcmp.lt.f32.partialorder %v6805, 0.0
  %vm9366 = vcmp.lt.f32.partialorder %v6806, 0.0
  %vm9367 = vcmp.lt.f32.partialorder %v6807, 0.0
  %vm9368 = vcmp.lt.f32.partialorder %v6808, 0.0
  %vm9369 = vcmp.lt.f32.partialorder %v6809, 0.0
  %vm9370 = vcmp.lt.f32.partialorder %v6810, 0.0
  %vm9371 = vcmp.lt.f32.partialorder %v6811, 0.0
  %vm9372 = vcmp.lt.f32.partialorder %v6812, 0.0
  %vm9373 = vcmp.lt.f32.partialorder %v6813, 0.0
  %vm9374 = vcmp.lt.f32.partialorder %v6814, 0.0
  %vm9375 = vcmp.lt.f32.partialorder %v6815, 0.0
  %vm9376 = vcmp.lt.f32.partialorder %v6816, 0.0
  %vm9377 = vcmp.lt.f32.partialorder %v6817, 0.0
  %vm9378 = vcmp.lt.f32.partialorder %v6818, 0.0
  %vm9379 = vcmp.lt.f32.partialorder %v6819, 0.0
  %vm9380 = vcmp.lt.f32.partialorder %v6820, 0.0
  %vm9381 = vcmp.lt.f32.partialorder %v6821, 0.0
  %vm9382 = vcmp.lt.f32.partialorder %v6822, 0.0
  %vm9383 = vcmp.lt.f32.partialorder %v6823, 0.0
  %vm9384 = vcmp.lt.f32.partialorder %v6824, 0.0
  %vm9385 = vcmp.lt.f32.partialorder %v6825, 0.0
  %vm9386 = vcmp.lt.f32.partialorder %v6826, 0.0
  %vm9387 = vcmp.lt.f32.partialorder %v6827, 0.0
  %vm9388 = vcmp.lt.f32.partialorder %v6828, 0.0
  %vm9389 = vcmp.lt.f32.partialorder %v6829, 0.0
  %vm9390 = vcmp.lt.f32.partialorder %v6830, 0.0
  %vm9391 = vcmp.lt.f32.partialorder %v6831, 0.0
  %vm9392 = vcmp.lt.f32.partialorder %v6832, 0.0
  %vm9393 = vcmp.lt.f32.partialorder %v6833, 0.0
  %vm9394 = vcmp.lt.f32.partialorder %v6834, 0.0
  %vm9395 = vcmp.lt.f32.partialorder %v6835, 0.0
  %vm9396 = vcmp.lt.f32.partialorder %v6836, 0.0
  %vm9397 = vcmp.lt.f32.partialorder %v6837, 0.0
  %vm9398 = vcmp.lt.f32.partialorder %v6838, 0.0
  %vm9399 = vcmp.lt.f32.partialorder %v6839, 0.0
  %vm9400 = vcmp.lt.f32.partialorder %v6840, 0.0
  %vm9401 = vcmp.lt.f32.partialorder %v6841, 0.0
  %vm9402 = vcmp.lt.f32.partialorder %v6842, 0.0
  %vm9403 = vcmp.lt.f32.partialorder %v6843, 0.0
  %vm9404 = vcmp.lt.f32.partialorder %v6844, 0.0
  %vm9405 = vcmp.lt.f32.partialorder %v6845, 0.0
  %vm9406 = vcmp.lt.f32.partialorder %v6846, 0.0
  %vm9407 = vcmp.lt.f32.partialorder %v6847, 0.0
  %vm9408 = vcmp.lt.f32.partialorder %v6848, 0.0
  %vm9409 = vcmp.lt.f32.partialorder %v6849, 0.0
  %vm9410 = vcmp.lt.f32.partialorder %v6850, 0.0
  %v9411 = vsub.f32 0.0, %v9155
  %v9412 = vsub.f32 0.0, %v9156
  %v9413 = vsub.f32 0.0, %v9157
  %v9414 = vsub.f32 0.0, %v9158
  %v9415 = vsub.f32 0.0, %v9159
  %v9416 = vsub.f32 0.0, %v9160
  %v9417 = vsub.f32 0.0, %v9161
  %v9418 = vsub.f32 0.0, %v9162
  %v9419 = vsub.f32 0.0, %v9163
  %v9420 = vsub.f32 0.0, %v9164
  %v9421 = vsub.f32 0.0, %v9165
  %v9422 = vsub.f32 0.0, %v9166
  %v9423 = vsub.f32 0.0, %v9167
  %v9424 = vsub.f32 0.0, %v9168
  %v9425 = vsub.f32 0.0, %v9169
  %v9426 = vsub.f32 0.0, %v9170
  %v9427 = vsub.f32 0.0, %v9171
  %v9428 = vsub.f32 0.0, %v9172
  %v9429 = vsub.f32 0.0, %v9173
  %v9430 = vsub.f32 0.0, %v9174
  %v9431 = vsub.f32 0.0, %v9175
  %v9432 = vsub.f32 0.0, %v9176
  %v9433 = vsub.f32 0.0, %v9177
  %v9434 = vsub.f32 0.0, %v9178
  %v9435 = vsub.f32 0.0, %v9179
  %v9436 = vsub.f32 0.0, %v9180
  %v9437 = vsub.f32 0.0, %v9181
  %v9438 = vsub.f32 0.0, %v9182
  %v9439 = vsub.f32 0.0, %v9183
  %v9440 = vsub.f32 0.0, %v9184
  %v9441 = vsub.f32 0.0, %v9185
  %v9442 = vsub.f32 0.0, %v9186
  %v9443 = vsub.f32 0.0, %v9187
  %v9444 = vsub.f32 0.0, %v9188
  %v9445 = vsub.f32 0.0, %v9189
  %v9446 = vsub.f32 0.0, %v9190
  %v9447 = vsub.f32 0.0, %v9191
  %v9448 = vsub.f32 0.0, %v9192
  %v9449 = vsub.f32 0.0, %v9193
  %v9450 = vsub.f32 0.0, %v9194
  %v9451 = vsub.f32 0.0, %v9195
  %v9452 = vsub.f32 0.0, %v9196
  %v9453 = vsub.f32 0.0, %v9197
  %v9454 = vsub.f32 0.0, %v9198
  %v9455 = vsub.f32 0.0, %v9199
  %v9456 = vsub.f32 0.0, %v9200
  %v9457 = vsub.f32 0.0, %v9201
  %v9458 = vsub.f32 0.0, %v9202
  %v9459 = vsub.f32 0.0, %v9203
  %v9460 = vsub.f32 0.0, %v9204
  %v9461 = vsub.f32 0.0, %v9205
  %v9462 = vsub.f32 0.0, %v9206
  %v9463 = vsub.f32 0.0, %v9207
  %v9464 = vsub.f32 0.0, %v9208
  %v9465 = vsub.f32 0.0, %v9209
  %v9466 = vsub.f32 0.0, %v9210
  %v9467 = vsub.f32 0.0, %v9211
  %v9468 = vsub.f32 0.0, %v9212
  %v9469 = vsub.f32 0.0, %v9213
  %v9470 = vsub.f32 0.0, %v9214
  %v9471 = vsub.f32 0.0, %v9215
  %v9472 = vsub.f32 0.0, %v9216
  %v9473 = vsub.f32 0.0, %v9217
  %v9474 = vsub.f32 0.0, %v9218
  %v9475 = vsub.f32 0.0, %v9219
  %v9476 = vsub.f32 0.0, %v9220
  %v9477 = vsub.f32 0.0, %v9221
  %v9478 = vsub.f32 0.0, %v9222
  %v9479 = vsub.f32 0.0, %v9223
  %v9480 = vsub.f32 0.0, %v9224
  %v9481 = vsub.f32 0.0, %v9225
  %v9482 = vsub.f32 0.0, %v9226
  %v9483 = vsub.f32 0.0, %v9227
  %v9484 = vsub.f32 0.0, %v9228
  %v9485 = vsub.f32 0.0, %v9229
  %v9486 = vsub.f32 0.0, %v9230
  %v9487 = vsub.f32 0.0, %v9231
  %v9488 = vsub.f32 0.0, %v9232
  %v9489 = vsub.f32 0.0, %v9233
  %v9490 = vsub.f32 0.0, %v9234
  %v9491 = vsub.f32 0.0, %v9235
  %v9492 = vsub.f32 0.0, %v9236
  %v9493 = vsub.f32 0.0, %v9237
  %v9494 = vsub.f32 0.0, %v9238
  %v9495 = vsub.f32 0.0, %v9239
  %v9496 = vsub.f32 0.0, %v9240
  %v9497 = vsub.f32 0.0, %v9241
  %v9498 = vsub.f32 0.0, %v9242
  %v9499 = vsub.f32 0.0, %v9243
  %v9500 = vsub.f32 0.0, %v9244
  %v9501 = vsub.f32 0.0, %v9245
  %v9502 = vsub.f32 0.0, %v9246
  %v9503 = vsub.f32 0.0, %v9247
  %v9504 = vsub.f32 0.0, %v9248
  %v9505 = vsub.f32 0.0, %v9249
  %v9506 = vsub.f32 0.0, %v9250
  %v9507 = vsub.f32 0.0, %v9251
  %v9508 = vsub.f32 0.0, %v9252
  %v9509 = vsub.f32 0.0, %v9253
  %v9510 = vsub.f32 0.0, %v9254
  %v9511 = vsub.f32 0.0, %v9255
  %v9512 = vsub.f32 0.0, %v9256
  %v9513 = vsub.f32 0.0, %v9257
  %v9514 = vsub.f32 0.0, %v9258
  %v9515 = vsub.f32 0.0, %v9259
  %v9516 = vsub.f32 0.0, %v9260
  %v9517 = vsub.f32 0.0, %v9261
  %v9518 = vsub.f32 0.0, %v9262
  %v9519 = vsub.f32 0.0, %v9263
  %v9520 = vsub.f32 0.0, %v9264
  %v9521 = vsub.f32 0.0, %v9265
  %v9522 = vsub.f32 0.0, %v9266
  %v9523 = vsub.f32 0.0, %v9267
  %v9524 = vsub.f32 0.0, %v9268
  %v9525 = vsub.f32 0.0, %v9269
  %v9526 = vsub.f32 0.0, %v9270
  %v9527 = vsub.f32 0.0, %v9271
  %v9528 = vsub.f32 0.0, %v9272
  %v9529 = vsub.f32 0.0, %v9273
  %v9530 = vsub.f32 0.0, %v9274
  %v9531 = vsub.f32 0.0, %v9275
  %v9532 = vsub.f32 0.0, %v9276
  %v9533 = vsub.f32 0.0, %v9277
  %v9534 = vsub.f32 0.0, %v9278
  %v9535 = vsub.f32 0.0, %v9279
  %v9536 = vsub.f32 0.0, %v9280
  %v9537 = vsub.f32 0.0, %v9281
  %v9538 = vsub.f32 0.0, %v9282
  %v9539 = vsel %vm9283, %v9411, %v9155
  %v9540 = vsel %vm9284, %v9412, %v9156
  %v9541 = vsel %vm9285, %v9413, %v9157
  %v9542 = vsel %vm9286, %v9414, %v9158
  %v9543 = vsel %vm9287, %v9415, %v9159
  %v9544 = vsel %vm9288, %v9416, %v9160
  %v9545 = vsel %vm9289, %v9417, %v9161
  %v9546 = vsel %vm9290, %v9418, %v9162
  %v9547 = vsel %vm9291, %v9419, %v9163
  %v9548 = vsel %vm9292, %v9420, %v9164
  %v9549 = vsel %vm9293, %v9421, %v9165
  %v9550 = vsel %vm9294, %v9422, %v9166
  %v9551 = vsel %vm9295, %v9423, %v9167
  %v9552 = vsel %vm9296, %v9424, %v9168
  %v9553 = vsel %vm9297, %v9425, %v9169
  %v9554 = vsel %vm9298, %v9426, %v9170
  %v9555 = vsel %vm9299, %v9427, %v9171
  %v9556 = vsel %vm9300, %v9428, %v9172
  %v9557 = vsel %vm9301, %v9429, %v9173
  %v9558 = vsel %vm9302, %v9430, %v9174
  %v9559 = vsel %vm9303, %v9431, %v9175
  %v9560 = vsel %vm9304, %v9432, %v9176
  %v9561 = vsel %vm9305, %v9433, %v9177
  %v9562 = vsel %vm9306, %v9434, %v9178
  %v9563 = vsel %vm9307, %v9435, %v9179
  %v9564 = vsel %vm9308, %v9436, %v9180
  %v9565 = vsel %vm9309, %v9437, %v9181
  %v9566 = vsel %vm9310, %v9438, %v9182
  %v9567 = vsel %vm9311, %v9439, %v9183
  %v9568 = vsel %vm9312, %v9440, %v9184
  %v9569 = vsel %vm9313, %v9441, %v9185
  %v9570 = vsel %vm9314, %v9442, %v9186
  %v9571 = vsel %vm9315, %v9443, %v9187
  %v9572 = vsel %vm9316, %v9444, %v9188
  %v9573 = vsel %vm9317, %v9445, %v9189
  %v9574 = vsel %vm9318, %v9446, %v9190
  %v9575 = vsel %vm9319, %v9447, %v9191
  %v9576 = vsel %vm9320, %v9448, %v9192
  %v9577 = vsel %vm9321, %v9449, %v9193
  %v9578 = vsel %vm9322, %v9450, %v9194
  %v9579 = vsel %vm9323, %v9451, %v9195
  %v9580 = vsel %vm9324, %v9452, %v9196
  %v9581 = vsel %vm9325, %v9453, %v9197
  %v9582 = vsel %vm9326, %v9454, %v9198
  %v9583 = vsel %vm9327, %v9455, %v9199
  %v9584 = vsel %vm9328, %v9456, %v9200
  %v9585 = vsel %vm9329, %v9457, %v9201
  %v9586 = vsel %vm9330, %v9458, %v9202
  %v9587 = vsel %vm9331, %v9459, %v9203
  %v9588 = vsel %vm9332, %v9460, %v9204
  %v9589 = vsel %vm9333, %v9461, %v9205
  %v9590 = vsel %vm9334, %v9462, %v9206
  %v9591 = vsel %vm9335, %v9463, %v9207
  %v9592 = vsel %vm9336, %v9464, %v9208
  %v9593 = vsel %vm9337, %v9465, %v9209
  %v9594 = vsel %vm9338, %v9466, %v9210
  %v9595 = vsel %vm9339, %v9467, %v9211
  %v9596 = vsel %vm9340, %v9468, %v9212
  %v9597 = vsel %vm9341, %v9469, %v9213
  %v9598 = vsel %vm9342, %v9470, %v9214
  %v9599 = vsel %vm9343, %v9471, %v9215
  %v9600 = vsel %vm9344, %v9472, %v9216
  %v9601 = vsel %vm9345, %v9473, %v9217
  %v9602 = vsel %vm9346, %v9474, %v9218
  %v9603 = vsel %vm9347, %v9475, %v9219
  %v9604 = vsel %vm9348, %v9476, %v9220
  %v9605 = vsel %vm9349, %v9477, %v9221
  %v9606 = vsel %vm9350, %v9478, %v9222
  %v9607 = vsel %vm9351, %v9479, %v9223
  %v9608 = vsel %vm9352, %v9480, %v9224
  %v9609 = vsel %vm9353, %v9481, %v9225
  %v9610 = vsel %vm9354, %v9482, %v9226
  %v9611 = vsel %vm9355, %v9483, %v9227
  %v9612 = vsel %vm9356, %v9484, %v9228
  %v9613 = vsel %vm9357, %v9485, %v9229
  %v9614 = vsel %vm9358, %v9486, %v9230
  %v9615 = vsel %vm9359, %v9487, %v9231
  %v9616 = vsel %vm9360, %v9488, %v9232
  %v9617 = vsel %vm9361, %v9489, %v9233
  %v9618 = vsel %vm9362, %v9490, %v9234
  %v9619 = vsel %vm9363, %v9491, %v9235
  %v9620 = vsel %vm9364, %v9492, %v9236
  %v9621 = vsel %vm9365, %v9493, %v9237
  %v9622 = vsel %vm9366, %v9494, %v9238
  %v9623 = vsel %vm9367, %v9495, %v9239
  %v9624 = vsel %vm9368, %v9496, %v9240
  %v9625 = vsel %vm9369, %v9497, %v9241
  %v9626 = vsel %vm9370, %v9498, %v9242
  %v9627 = vsel %vm9371, %v9499, %v9243
  %v9628 = vsel %vm9372, %v9500, %v9244
  %v9629 = vsel %vm9373, %v9501, %v9245
  %v9630 = vsel %vm9374, %v9502, %v9246
  %v9631 = vsel %vm9375, %v9503, %v9247
  %v9632 = vsel %vm9376, %v9504, %v9248
  %v9633 = vsel %vm9377, %v9505, %v9249
  %v9634 = vsel %vm9378, %v9506, %v9250
  %v9635 = vsel %vm9379, %v9507, %v9251
  %v9636 = vsel %vm9380, %v9508, %v9252
  %v9637 = vsel %vm9381, %v9509, %v9253
  %v9638 = vsel %vm9382, %v9510, %v9254
  %v9639 = vsel %vm9383, %v9511, %v9255
  %v9640 = vsel %vm9384, %v9512, %v9256
  %v9641 = vsel %vm9385, %v9513, %v9257
  %v9642 = vsel %vm9386, %v9514, %v9258
  %v9643 = vsel %vm9387, %v9515, %v9259
  %v9644 = vsel %vm9388, %v9516, %v9260
  %v9645 = vsel %vm9389, %v9517, %v9261
  %v9646 = vsel %vm9390, %v9518, %v9262
  %v9647 = vsel %vm9391, %v9519, %v9263
  %v9648 = vsel %vm9392, %v9520, %v9264
  %v9649 = vsel %vm9393, %v9521, %v9265
  %v9650 = vsel %vm9394, %v9522, %v9266
  %v9651 = vsel %vm9395, %v9523, %v9267
  %v9652 = vsel %vm9396, %v9524, %v9268
  %v9653 = vsel %vm9397, %v9525, %v9269
  %v9654 = vsel %vm9398, %v9526, %v9270
  %v9655 = vsel %vm9399, %v9527, %v9271
  %v9656 = vsel %vm9400, %v9528, %v9272
  %v9657 = vsel %vm9401, %v9529, %v9273
  %v9658 = vsel %vm9402, %v9530, %v9274
  %v9659 = vsel %vm9403, %v9531, %v9275
  %v9660 = vsel %vm9404, %v9532, %v9276
  %v9661 = vsel %vm9405, %v9533, %v9277
  %v9662 = vsel %vm9406, %v9534, %v9278
  %v9663 = vsel %vm9407, %v9535, %v9279
  %v9664 = vsel %vm9408, %v9536, %v9280
  %v9665 = vsel %vm9409, %v9537, %v9281
  %v9666 = vsel %vm9410, %v9538, %v9282
  %v9667 = vmul.f32 %v6405, 0.5
  %v9668 = vmul.f32 %v6407, 0.5
  %v9669 = vmul.f32 %v6409, 0.5
  %v9670 = vmul.f32 %v6411, 0.5
  %v9671 = vmul.f32 %v6415, 0.5
  %v9672 = vmul.f32 %v6417, 0.5
  %v9673 = vmul.f32 %v6419, 0.5
  %v9674 = vmul.f32 %v6421, 0.5
  %v9675 = vmul.f32 %v6425, 0.5
  %v9676 = vmul.f32 %v6427, 0.5
  %v9677 = vmul.f32 %v6429, 0.5
  %v9678 = vmul.f32 %v6431, 0.5
  %v9679 = vmul.f32 %v6435, 0.5
  %v9680 = vmul.f32 %v6437, 0.5
  %v9681 = vmul.f32 %v6439, 0.5
  %v9682 = vmul.f32 %v6441, 0.5
  %v9683 = vmul.f32 %v6445, 0.5
  %v9684 = vmul.f32 %v6447, 0.5
  %v9685 = vmul.f32 %v6449, 0.5
  %v9686 = vmul.f32 %v6451, 0.5
  %v9687 = vmul.f32 %v6455, 0.5
  %v9688 = vmul.f32 %v6457, 0.5
  %v9689 = vmul.f32 %v6459, 0.5
  %v9690 = vmul.f32 %v6461, 0.5
  %v9691 = vmul.f32 %v6465, 0.5
  %v9692 = vmul.f32 %v6467, 0.5
  %v9693 = vmul.f32 %v6469, 0.5
  %v9694 = vmul.f32 %v6471, 0.5
  %v9695 = vmul.f32 %v6475, 0.5
  %v9696 = vmul.f32 %v6477, 0.5
  %v9697 = vmul.f32 %v6479, 0.5
  %v9698 = vmul.f32 %v6481, 0.5
  %v9699 = vmul.f32 %v6485, 0.5
  %v9700 = vmul.f32 %v6487, 0.5
  %v9701 = vmul.f32 %v6489, 0.5
  %v9702 = vmul.f32 %v6491, 0.5
  %v9703 = vmul.f32 %v6495, 0.5
  %v9704 = vmul.f32 %v6497, 0.5
  %v9705 = vmul.f32 %v6499, 0.5
  %v9706 = vmul.f32 %v6501, 0.5
  %v9707 = vmul.f32 %v6505, 0.5
  %v9708 = vmul.f32 %v6507, 0.5
  %v9709 = vmul.f32 %v6509, 0.5
  %v9710 = vmul.f32 %v6511, 0.5
  %v9711 = vmul.f32 %v6515, 0.5
  %v9712 = vmul.f32 %v6517, 0.5
  %v9713 = vmul.f32 %v6519, 0.5
  %v9714 = vmul.f32 %v6521, 0.5
  %v9715 = vmul.f32 %v6525, 0.5
  %v9716 = vmul.f32 %v6527, 0.5
  %v9717 = vmul.f32 %v6529, 0.5
  %v9718 = vmul.f32 %v6531, 0.5
  %v9719 = vmul.f32 %v6535, 0.5
  %v9720 = vmul.f32 %v6537, 0.5
  %v9721 = vmul.f32 %v6539, 0.5
  %v9722 = vmul.f32 %v6541, 0.5
  %v9723 = vmul.f32 %v6545, 0.5
  %v9724 = vmul.f32 %v6547, 0.5
  %v9725 = vmul.f32 %v6549, 0.5
  %v9726 = vmul.f32 %v6551, 0.5
  %v9727 = vmul.f32 %v6555, 0.5
  %v9728 = vmul.f32 %v6557, 0.5
  %v9729 = vmul.f32 %v6559, 0.5
  %v9730 = vmul.f32 %v6561, 0.5
  %v9731 = vmul.f32 %v6565, 0.5
  %v9732 = vmul.f32 %v6567, 0.5
  %v9733 = vmul.f32 %v6569, 0.5
  %v9734 = vmul.f32 %v6571, 0.5
  %v9735 = vmul.f32 %v6575, 0.5
  %v9736 = vmul.f32 %v6577, 0.5
  %v9737 = vmul.f32 %v6579, 0.5
  %v9738 = vmul.f32 %v6581, 0.5
  %v9739 = vmul.f32 %v6585, 0.5
  %v9740 = vmul.f32 %v6587, 0.5
  %v9741 = vmul.f32 %v6589, 0.5
  %v9742 = vmul.f32 %v6591, 0.5
  %v9743 = vmul.f32 %v6595, 0.5
  %v9744 = vmul.f32 %v6597, 0.5
  %v9745 = vmul.f32 %v6599, 0.5
  %v9746 = vmul.f32 %v6601, 0.5
  %v9747 = vmul.f32 %v6605, 0.5
  %v9748 = vmul.f32 %v6607, 0.5
  %v9749 = vmul.f32 %v6609, 0.5
  %v9750 = vmul.f32 %v6611, 0.5
  %v9751 = vmul.f32 %v6615, 0.5
  %v9752 = vmul.f32 %v6617, 0.5
  %v9753 = vmul.f32 %v6619, 0.5
  %v9754 = vmul.f32 %v6621, 0.5
  %v9755 = vmul.f32 %v6625, 0.5
  %v9756 = vmul.f32 %v6627, 0.5
  %v9757 = vmul.f32 %v6629, 0.5
  %v9758 = vmul.f32 %v6631, 0.5
  %v9759 = vmul.f32 %v6635, 0.5
  %v9760 = vmul.f32 %v6637, 0.5
  %v9761 = vmul.f32 %v6639, 0.5
  %v9762 = vmul.f32 %v6641, 0.5
  %v9763 = vmul.f32 %v6645, 0.5
  %v9764 = vmul.f32 %v6647, 0.5
  %v9765 = vmul.f32 %v6649, 0.5
  %v9766 = vmul.f32 %v6651, 0.5
  %v9767 = vmul.f32 %v6655, 0.5
  %v9768 = vmul.f32 %v6657, 0.5
  %v9769 = vmul.f32 %v6659, 0.5
  %v9770 = vmul.f32 %v6661, 0.5
  %v9771 = vmul.f32 %v6665, 0.5
  %v9772 = vmul.f32 %v6667, 0.5
  %v9773 = vmul.f32 %v6669, 0.5
  %v9774 = vmul.f32 %v6671, 0.5
  %v9775 = vmul.f32 %v6675, 0.5
  %v9776 = vmul.f32 %v6677, 0.5
  %v9777 = vmul.f32 %v6679, 0.5
  %v9778 = vmul.f32 %v6681, 0.5
  %v9779 = vmul.f32 %v6685, 0.5
  %v9780 = vmul.f32 %v6687, 0.5
  %v9781 = vmul.f32 %v6689, 0.5
  %v9782 = vmul.f32 %v6691, 0.5
  %v9783 = vmul.f32 %v6695, 0.5
  %v9784 = vmul.f32 %v6697, 0.5
  %v9785 = vmul.f32 %v6699, 0.5
  %v9786 = vmul.f32 %v6701, 0.5
  %v9787 = vmul.f32 %v6705, 0.5
  %v9788 = vmul.f32 %v6707, 0.5
  %v9789 = vmul.f32 %v6709, 0.5
  %v9790 = vmul.f32 %v6711, 0.5
  %v9791 = vmul.f32 %v6715, 0.5
  %v9792 = vmul.f32 %v6717, 0.5
  %v9793 = vmul.f32 %v6719, 0.5
  %v9794 = vmul.f32 %v6721, 0.5
  %v9795 = vadd.f32 %v9539, 1.0
  %v9796 = vadd.f32 %v9540, 1.0
  %v9797 = vadd.f32 %v9541, 1.0
  %v9798 = vadd.f32 %v9542, 1.0
  %v9799 = vadd.f32 %v9543, 1.0
  %v9800 = vadd.f32 %v9544, 1.0
  %v9801 = vadd.f32 %v9545, 1.0
  %v9802 = vadd.f32 %v9546, 1.0
  %v9803 = vadd.f32 %v9547, 1.0
  %v9804 = vadd.f32 %v9548, 1.0
  %v9805 = vadd.f32 %v9549, 1.0
  %v9806 = vadd.f32 %v9550, 1.0
  %v9807 = vadd.f32 %v9551, 1.0
  %v9808 = vadd.f32 %v9552, 1.0
  %v9809 = vadd.f32 %v9553, 1.0
  %v9810 = vadd.f32 %v9554, 1.0
  %v9811 = vadd.f32 %v9555, 1.0
  %v9812 = vadd.f32 %v9556, 1.0
  %v9813 = vadd.f32 %v9557, 1.0
  %v9814 = vadd.f32 %v9558, 1.0
  %v9815 = vadd.f32 %v9559, 1.0
  %v9816 = vadd.f32 %v9560, 1.0
  %v9817 = vadd.f32 %v9561, 1.0
  %v9818 = vadd.f32 %v9562, 1.0
  %v9819 = vadd.f32 %v9563, 1.0
  %v9820 = vadd.f32 %v9564, 1.0
  %v9821 = vadd.f32 %v9565, 1.0
  %v9822 = vadd.f32 %v9566, 1.0
  %v9823 = vadd.f32 %v9567, 1.0
  %v9824 = vadd.f32 %v9568, 1.0
  %v9825 = vadd.f32 %v9569, 1.0
  %v9826 = vadd.f32 %v9570, 1.0
  %v9827 = vadd.f32 %v9571, 1.0
  %v9828 = vadd.f32 %v9572, 1.0
  %v9829 = vadd.f32 %v9573, 1.0
  %v9830 = vadd.f32 %v9574, 1.0
  %v9831 = vadd.f32 %v9575, 1.0
  %v9832 = vadd.f32 %v9576, 1.0
  %v9833 = vadd.f32 %v9577, 1.0
  %v9834 = vadd.f32 %v9578, 1.0
  %v9835 = vadd.f32 %v9579, 1.0
  %v9836 = vadd.f32 %v9580, 1.0
  %v9837 = vadd.f32 %v9581, 1.0
  %v9838 = vadd.f32 %v9582, 1.0
  %v9839 = vadd.f32 %v9583, 1.0
  %v9840 = vadd.f32 %v9584, 1.0
  %v9841 = vadd.f32 %v9585, 1.0
  %v9842 = vadd.f32 %v9586, 1.0
  %v9843 = vadd.f32 %v9587, 1.0
  %v9844 = vadd.f32 %v9588, 1.0
  %v9845 = vadd.f32 %v9589, 1.0
  %v9846 = vadd.f32 %v9590, 1.0
  %v9847 = vadd.f32 %v9591, 1.0
  %v9848 = vadd.f32 %v9592, 1.0
  %v9849 = vadd.f32 %v9593, 1.0
  %v9850 = vadd.f32 %v9594, 1.0
  %v9851 = vadd.f32 %v9595, 1.0
  %v9852 = vadd.f32 %v9596, 1.0
  %v9853 = vadd.f32 %v9597, 1.0
  %v9854 = vadd.f32 %v9598, 1.0
  %v9855 = vadd.f32 %v9599, 1.0
  %v9856 = vadd.f32 %v9600, 1.0
  %v9857 = vadd.f32 %v9601, 1.0
  %v9858 = vadd.f32 %v9602, 1.0
  %v9859 = vadd.f32 %v9603, 1.0
  %v9860 = vadd.f32 %v9604, 1.0
  %v9861 = vadd.f32 %v9605, 1.0
  %v9862 = vadd.f32 %v9606, 1.0
  %v9863 = vadd.f32 %v9607, 1.0
  %v9864 = vadd.f32 %v9608, 1.0
  %v9865 = vadd.f32 %v9609, 1.0
  %v9866 = vadd.f32 %v9610, 1.0
  %v9867 = vadd.f32 %v9611, 1.0
  %v9868 = vadd.f32 %v9612, 1.0
  %v9869 = vadd.f32 %v9613, 1.0
  %v9870 = vadd.f32 %v9614, 1.0
  %v9871 = vadd.f32 %v9615, 1.0
  %v9872 = vadd.f32 %v9616, 1.0
  %v9873 = vadd.f32 %v9617, 1.0
  %v9874 = vadd.f32 %v9618, 1.0
  %v9875 = vadd.f32 %v9619, 1.0
  %v9876 = vadd.f32 %v9620, 1.0
  %v9877 = vadd.f32 %v9621, 1.0
  %v9878 = vadd.f32 %v9622, 1.0
  %v9879 = vadd.f32 %v9623, 1.0
  %v9880 = vadd.f32 %v9624, 1.0
  %v9881 = vadd.f32 %v9625, 1.0
  %v9882 = vadd.f32 %v9626, 1.0
  %v9883 = vadd.f32 %v9627, 1.0
  %v9884 = vadd.f32 %v9628, 1.0
  %v9885 = vadd.f32 %v9629, 1.0
  %v9886 = vadd.f32 %v9630, 1.0
  %v9887 = vadd.f32 %v9631, 1.0
  %v9888 = vadd.f32 %v9632, 1.0
  %v9889 = vadd.f32 %v9633, 1.0
  %v9890 = vadd.f32 %v9634, 1.0
  %v9891 = vadd.f32 %v9635, 1.0
  %v9892 = vadd.f32 %v9636, 1.0
  %v9893 = vadd.f32 %v9637, 1.0
  %v9894 = vadd.f32 %v9638, 1.0
  %v9895 = vadd.f32 %v9639, 1.0
  %v9896 = vadd.f32 %v9640, 1.0
  %v9897 = vadd.f32 %v9641, 1.0
  %v9898 = vadd.f32 %v9642, 1.0
  %v9899 = vadd.f32 %v9643, 1.0
  %v9900 = vadd.f32 %v9644, 1.0
  %v9901 = vadd.f32 %v9645, 1.0
  %v9902 = vadd.f32 %v9646, 1.0
  %v9903 = vadd.f32 %v9647, 1.0
  %v9904 = vadd.f32 %v9648, 1.0
  %v9905 = vadd.f32 %v9649, 1.0
  %v9906 = vadd.f32 %v9650, 1.0
  %v9907 = vadd.f32 %v9651, 1.0
  %v9908 = vadd.f32 %v9652, 1.0
  %v9909 = vadd.f32 %v9653, 1.0
  %v9910 = vadd.f32 %v9654, 1.0
  %v9911 = vadd.f32 %v9655, 1.0
  %v9912 = vadd.f32 %v9656, 1.0
  %v9913 = vadd.f32 %v9657, 1.0
  %v9914 = vadd.f32 %v9658, 1.0
  %v9915 = vadd.f32 %v9659, 1.0
  %v9916 = vadd.f32 %v9660, 1.0
  %v9917 = vadd.f32 %v9661, 1.0
  %v9918 = vadd.f32 %v9662, 1.0
  %v9919 = vadd.f32 %v9663, 1.0
  %v9920 = vadd.f32 %v9664, 1.0
  %v9921 = vadd.f32 %v9665, 1.0
  %v9922 = vadd.f32 %v9666, 1.0
  %v9923 = vmul.f32 %v9667, %v9795
  %v9924 = vmul.f32 %v9668, %v9796
  %v9925 = vmul.f32 %v9669, %v9797
  %v9926 = vmul.f32 %v9670, %v9798
  %v9927 = vmul.f32 %v9671, %v9799
  %v9928 = vmul.f32 %v9672, %v9800
  %v9929 = vmul.f32 %v9673, %v9801
  %v9930 = vmul.f32 %v9674, %v9802
  %v9931 = vmul.f32 %v9675, %v9803
  %v9932 = vmul.f32 %v9676, %v9804
  %v9933 = vmul.f32 %v9677, %v9805
  %v9934 = vmul.f32 %v9678, %v9806
  %v9935 = vmul.f32 %v9679, %v9807
  %v9936 = vmul.f32 %v9680, %v9808
  %v9937 = vmul.f32 %v9681, %v9809
  %v9938 = vmul.f32 %v9682, %v9810
  %v9939 = vmul.f32 %v9683, %v9811
  %v9940 = vmul.f32 %v9684, %v9812
  %v9941 = vmul.f32 %v9685, %v9813
  %v9942 = vmul.f32 %v9686, %v9814
  %v9943 = vmul.f32 %v9687, %v9815
  %v9944 = vmul.f32 %v9688, %v9816
  %v9945 = vmul.f32 %v9689, %v9817
  %v9946 = vmul.f32 %v9690, %v9818
  %v9947 = vmul.f32 %v9691, %v9819
  %v9948 = vmul.f32 %v9692, %v9820
  %v9949 = vmul.f32 %v9693, %v9821
  %v9950 = vmul.f32 %v9694, %v9822
  %v9951 = vmul.f32 %v9695, %v9823
  %v9952 = vmul.f32 %v9696, %v9824
  %v9953 = vmul.f32 %v9697, %v9825
  %v9954 = vmul.f32 %v9698, %v9826
  %v9955 = vmul.f32 %v9699, %v9827
  %v9956 = vmul.f32 %v9700, %v9828
  %v9957 = vmul.f32 %v9701, %v9829
  %v9958 = vmul.f32 %v9702, %v9830
  %v9959 = vmul.f32 %v9703, %v9831
  %v9960 = vmul.f32 %v9704, %v9832
  %v9961 = vmul.f32 %v9705, %v9833
  %v9962 = vmul.f32 %v9706, %v9834
  %v9963 = vmul.f32 %v9707, %v9835
  %v9964 = vmul.f32 %v9708, %v9836
  %v9965 = vmul.f32 %v9709, %v9837
  %v9966 = vmul.f32 %v9710, %v9838
  %v9967 = vmul.f32 %v9711, %v9839
  %v9968 = vmul.f32 %v9712, %v9840
  %v9969 = vmul.f32 %v9713, %v9841
  %v9970 = vmul.f32 %v9714, %v9842
  %v9971 = vmul.f32 %v9715, %v9843
  %v9972 = vmul.f32 %v9716, %v9844
  %v9973 = vmul.f32 %v9717, %v9845
  %v9974 = vmul.f32 %v9718, %v9846
  %v9975 = vmul.f32 %v9719, %v9847
  %v9976 = vmul.f32 %v9720, %v9848
  %v9977 = vmul.f32 %v9721, %v9849
  %v9978 = vmul.f32 %v9722, %v9850
  %v9979 = vmul.f32 %v9723, %v9851
  %v9980 = vmul.f32 %v9724, %v9852
  %v9981 = vmul.f32 %v9725, %v9853
  %v9982 = vmul.f32 %v9726, %v9854
  %v9983 = vmul.f32 %v9727, %v9855
  %v9984 = vmul.f32 %v9728, %v9856
  %v9985 = vmul.f32 %v9729, %v9857
  %v9986 = vmul.f32 %v9730, %v9858
  %v9987 = vmul.f32 %v9731, %v9859
  %v9988 = vmul.f32 %v9732, %v9860
  %v9989 = vmul.f32 %v9733, %v9861
  %v9990 = vmul.f32 %v9734, %v9862
  %v9991 = vmul.f32 %v9735, %v9863
  %v9992 = vmul.f32 %v9736, %v9864
  %v9993 = vmul.f32 %v9737, %v9865
  %v9994 = vmul.f32 %v9738, %v9866
  %v9995 = vmul.f32 %v9739, %v9867
  %v9996 = vmul.f32 %v9740, %v9868
  %v9997 = vmul.f32 %v9741, %v9869
  %v9998 = vmul.f32 %v9742, %v9870
  %v9999 = vmul.f32 %v9743, %v9871
  %v10000 = vmul.f32 %v9744, %v9872
  %v10001 = vmul.f32 %v9745, %v9873
  %v10002 = vmul.f32 %v9746, %v9874
  %v10003 = vmul.f32 %v9747, %v9875
  %v10004 = vmul.f32 %v9748, %v9876
  %v10005 = vmul.f32 %v9749, %v9877
  %v10006 = vmul.f32 %v9750, %v9878
  %v10007 = vmul.f32 %v9751, %v9879
  %v10008 = vmul.f32 %v9752, %v9880
  %v10009 = vmul.f32 %v9753, %v9881
  %v10010 = vmul.f32 %v9754, %v9882
  %v10011 = vmul.f32 %v9755, %v9883
  %v10012 = vmul.f32 %v9756, %v9884
  %v10013 = vmul.f32 %v9757, %v9885
  %v10014 = vmul.f32 %v9758, %v9886
  %v10015 = vmul.f32 %v9759, %v9887
  %v10016 = vmul.f32 %v9760, %v9888
  %v10017 = vmul.f32 %v9761, %v9889
  %v10018 = vmul.f32 %v9762, %v9890
  %v10019 = vmul.f32 %v9763, %v9891
  %v10020 = vmul.f32 %v9764, %v9892
  %v10021 = vmul.f32 %v9765, %v9893
  %v10022 = vmul.f32 %v9766, %v9894
  %v10023 = vmul.f32 %v9767, %v9895
  %v10024 = vmul.f32 %v9768, %v9896
  %v10025 = vmul.f32 %v9769, %v9897
  %v10026 = vmul.f32 %v9770, %v9898
  %v10027 = vmul.f32 %v9771, %v9899
  %v10028 = vmul.f32 %v9772, %v9900
  %v10029 = vmul.f32 %v9773, %v9901
  %v10030 = vmul.f32 %v9774, %v9902
  %v10031 = vmul.f32 %v9775, %v9903
  %v10032 = vmul.f32 %v9776, %v9904
  %v10033 = vmul.f32 %v9777, %v9905
  %v10034 = vmul.f32 %v9778, %v9906
  %v10035 = vmul.f32 %v9779, %v9907
  %v10036 = vmul.f32 %v9780, %v9908
  %v10037 = vmul.f32 %v9781, %v9909
  %v10038 = vmul.f32 %v9782, %v9910
  %v10039 = vmul.f32 %v9783, %v9911
  %v10040 = vmul.f32 %v9784, %v9912
  %v10041 = vmul.f32 %v9785, %v9913
  %v10042 = vmul.f32 %v9786, %v9914
  %v10043 = vmul.f32 %v9787, %v9915
  %v10044 = vmul.f32 %v9788, %v9916
  %v10045 = vmul.f32 %v9789, %v9917
  %v10046 = vmul.f32 %v9790, %v9918
  %v10047 = vmul.f32 %v9791, %v9919
  %v10048 = vmul.f32 %v9792, %v9920
  %v10049 = vmul.f32 %v9793, %v9921
  %v10050 = vmul.f32 %v9794, %v9922
  %v10051 = vpack.c.bf16 %v9925, %v9923
  %v10052 = vpack.c.bf16 %v9926, %v9924
  %v10053 = vpack.c.bf16 %v9929, %v9927
  %v10054 = vpack.c.bf16 %v9930, %v9928
  %v10055 = vpack.c.bf16 %v9933, %v9931
  %v10056 = vpack.c.bf16 %v9934, %v9932
  %v10057 = vpack.c.bf16 %v9937, %v9935
  %v10058 = vpack.c.bf16 %v9938, %v9936
  %v10059 = vpack.c.bf16 %v9941, %v9939
  %v10060 = vpack.c.bf16 %v9942, %v9940
  %v10061 = vpack.c.bf16 %v9945, %v9943
  %v10062 = vpack.c.bf16 %v9946, %v9944
  %v10063 = vpack.c.bf16 %v9949, %v9947
  %v10064 = vpack.c.bf16 %v9950, %v9948
  %v10065 = vpack.c.bf16 %v9953, %v9951
  %v10066 = vpack.c.bf16 %v9954, %v9952
  %v10067 = vpack.c.bf16 %v9957, %v9955
  %v10068 = vpack.c.bf16 %v9958, %v9956
  %v10069 = vpack.c.bf16 %v9961, %v9959
  %v10070 = vpack.c.bf16 %v9962, %v9960
  %v10071 = vpack.c.bf16 %v9965, %v9963
  %v10072 = vpack.c.bf16 %v9966, %v9964
  %v10073 = vpack.c.bf16 %v9969, %v9967
  %v10074 = vpack.c.bf16 %v9970, %v9968
  %v10075 = vpack.c.bf16 %v9973, %v9971
  %v10076 = vpack.c.bf16 %v9974, %v9972
  %v10077 = vpack.c.bf16 %v9977, %v9975
  %v10078 = vpack.c.bf16 %v9978, %v9976
  %v10079 = vpack.c.bf16 %v9981, %v9979
  %v10080 = vpack.c.bf16 %v9982, %v9980
  %v10081 = vpack.c.bf16 %v9985, %v9983
  %v10082 = vpack.c.bf16 %v9986, %v9984
  %v10083 = vpack.c.bf16 %v9989, %v9987
  %v10084 = vpack.c.bf16 %v9990, %v9988
  %v10085 = vpack.c.bf16 %v9993, %v9991
  %v10086 = vpack.c.bf16 %v9994, %v9992
  %v10087 = vpack.c.bf16 %v9997, %v9995
  %v10088 = vpack.c.bf16 %v9998, %v9996
  %v10089 = vpack.c.bf16 %v10001, %v9999
  %v10090 = vpack.c.bf16 %v10002, %v10000
  %v10091 = vpack.c.bf16 %v10005, %v10003
  %v10092 = vpack.c.bf16 %v10006, %v10004
  %v10093 = vpack.c.bf16 %v10009, %v10007
  %v10094 = vpack.c.bf16 %v10010, %v10008
  %v10095 = vpack.c.bf16 %v10013, %v10011
  %v10096 = vpack.c.bf16 %v10014, %v10012
  %v10097 = vpack.c.bf16 %v10017, %v10015
  %v10098 = vpack.c.bf16 %v10018, %v10016
  %v10099 = vpack.c.bf16 %v10021, %v10019
  %v10100 = vpack.c.bf16 %v10022, %v10020
  %v10101 = vpack.c.bf16 %v10025, %v10023
  %v10102 = vpack.c.bf16 %v10026, %v10024
  %v10103 = vpack.c.bf16 %v10029, %v10027
  %v10104 = vpack.c.bf16 %v10030, %v10028
  %v10105 = vpack.c.bf16 %v10033, %v10031
  %v10106 = vpack.c.bf16 %v10034, %v10032
  %v10107 = vpack.c.bf16 %v10037, %v10035
  %v10108 = vpack.c.bf16 %v10038, %v10036
  %v10109 = vpack.c.bf16 %v10041, %v10039
  %v10110 = vpack.c.bf16 %v10042, %v10040
  %v10111 = vpack.c.bf16 %v10045, %v10043
  %v10112 = vpack.c.bf16 %v10046, %v10044
  %v10113 = vpack.c.bf16 %v10049, %v10047
  %v10114 = vpack.c.bf16 %v10050, %v10048
  %v10115 = vld [vmem:[%s10] sm:$0xf]
  %v10116 = vld [vmem:[%s10 + $0x4] sm:$0xf]
  %v10117 = vld [vmem:[%s10 + $0x8] sm:$0xf]
  %v10118 = vld [vmem:[%s10 + $0xc] sm:$0xf]
  %v10119 = vld [vmem:[%s10 + $0x10] sm:$0xf]
  %v10120 = vld [vmem:[%s10 + $0x14] sm:$0xf]
  %v10121 = vld [vmem:[%s10 + $0x18] sm:$0xf]
  %v10122 = vld [vmem:[%s10 + $0x1c] sm:$0xf]
  %v10123 = vld [vmem:[%s10 + $0x20] sm:$0xf]
  %v10124 = vld [vmem:[%s10 + $0x24] sm:$0xf]
  %v10125 = vld [vmem:[%s10 + $0x28] sm:$0xf]
  %v10126 = vld [vmem:[%s10 + $0x2c] sm:$0xf]
  %v10127 = vld [vmem:[%s10 + $0x30] sm:$0xf]
  %v10128 = vld [vmem:[%s10 + $0x34] sm:$0xf]
  %v10129 = vld [vmem:[%s10 + $0x38] sm:$0xf]
  %v10130 = vld [vmem:[%s10 + $0x3c] sm:$0xf]
  %v10131 = vld [vmem:[%s10 + $0x40] sm:$0xf]
  %v10132 = vld [vmem:[%s10 + $0x44] sm:$0xf]
  %v10133 = vld [vmem:[%s10 + $0x48] sm:$0xf]
  %v10134 = vld [vmem:[%s10 + $0x4c] sm:$0xf]
  %v10135 = vld [vmem:[%s10 + $0x50] sm:$0xf]
  %v10136 = vld [vmem:[%s10 + $0x54] sm:$0xf]
  %v10137 = vld [vmem:[%s10 + $0x58] sm:$0xf]
  %v10138 = vld [vmem:[%s10 + $0x5c] sm:$0xf]
  %v10139 = vld [vmem:[%s10 + $0x60] sm:$0xf]
  %v10140 = vld [vmem:[%s10 + $0x64] sm:$0xf]
  %v10141 = vld [vmem:[%s10 + $0x68] sm:$0xf]
  %v10142 = vld [vmem:[%s10 + $0x6c] sm:$0xf]
  %v10143 = vld [vmem:[%s10 + $0x70] sm:$0xf]
  %v10144 = vld [vmem:[%s10 + $0x74] sm:$0xf]
  %v10145 = vld [vmem:[%s10 + $0x78] sm:$0xf]
  %v10146 = vld [vmem:[%s10 + $0x7c] sm:$0xf]
  %v10147 = vld [vmem:[%s11] sm:$0x1]
  %v10149 = vlaneseq
  %v10150 = vshrl.u32 %v10149, 7
  %v10151 = vsub.s32 0, %v10150
  %v10152 = vrot.slane %v10147, %v10151
  %v10186 = vunpack.c.l.b16 %v10115
  %v10187 = vunpack.c.l.b16 %v10116
  %v10188 = vunpack.c.l.b16 %v10117
  %v10189 = vunpack.c.l.b16 %v10118
  %v10190 = vunpack.c.l.b16 %v10119
  %v10191 = vunpack.c.l.b16 %v10120
  %v10192 = vunpack.c.l.b16 %v10121
  %v10193 = vunpack.c.l.b16 %v10122
  %v10194 = vunpack.c.l.b16 %v10123
  %v10195 = vunpack.c.l.b16 %v10124
  %v10196 = vunpack.c.l.b16 %v10125
  %v10197 = vunpack.c.l.b16 %v10126
  %v10198 = vunpack.c.l.b16 %v10127
  %v10199 = vunpack.c.l.b16 %v10128
  %v10200 = vunpack.c.l.b16 %v10129
  %v10201 = vunpack.c.l.b16 %v10130
  %v10202 = vunpack.c.l.b16 %v10131
  %v10203 = vunpack.c.l.b16 %v10132
  %v10204 = vunpack.c.l.b16 %v10133
  %v10205 = vunpack.c.l.b16 %v10134
  %v10206 = vunpack.c.l.b16 %v10135
  %v10207 = vunpack.c.l.b16 %v10136
  %v10208 = vunpack.c.l.b16 %v10137
  %v10209 = vunpack.c.l.b16 %v10138
  %v10210 = vunpack.c.l.b16 %v10139
  %v10211 = vunpack.c.l.b16 %v10140
  %v10212 = vunpack.c.l.b16 %v10141
  %v10213 = vunpack.c.l.b16 %v10142
  %v10214 = vunpack.c.l.b16 %v10143
  %v10215 = vunpack.c.l.b16 %v10144
  %v10216 = vunpack.c.l.b16 %v10145
  %v10217 = vunpack.c.l.b16 %v10146
  %v10218 = vpack.c.b16 %v10187, %v10186
  %v10219 = vpack.c.b16 %v10189, %v10188
  %v10220 = vpack.c.b16 %v10191, %v10190
  %v10221 = vpack.c.b16 %v10193, %v10192
  %v10222 = vpack.c.b16 %v10195, %v10194
  %v10223 = vpack.c.b16 %v10197, %v10196
  %v10224 = vpack.c.b16 %v10199, %v10198
  %v10225 = vpack.c.b16 %v10201, %v10200
  %v10226 = vpack.c.b16 %v10203, %v10202
  %v10227 = vpack.c.b16 %v10205, %v10204
  %v10228 = vpack.c.b16 %v10207, %v10206
  %v10229 = vpack.c.b16 %v10209, %v10208
  %v10230 = vpack.c.b16 %v10211, %v10210
  %v10231 = vpack.c.b16 %v10213, %v10212
  %v10232 = vpack.c.b16 %v10215, %v10214
  %v10233 = vpack.c.b16 %v10217, %v10216
  %10250 = vmatprep.subr.bf16.mxu0 0
  %10251 = vmatpush1.bf16.msra.mxu0 %v10218
  %10252 = vmatprep.subr.bf16.mxu0 0
  %10253 = vmatpush1.bf16.msra.mxu0 %v10219
  %10254 = vmatprep.subr.bf16.mxu0 0
  %10255 = vmatpush1.bf16.msra.mxu0 %v10220
  %10256 = vmatprep.subr.bf16.mxu0 0
  %10257 = vmatpush1.bf16.msra.mxu0 %v10221
  %10258 = vmatprep.subr.bf16.mxu0 0
  %10259 = vmatpush1.bf16.msra.mxu0 %v10222
  %10260 = vmatprep.subr.bf16.mxu0 0
  %10261 = vmatpush1.bf16.msra.mxu0 %v10223
  %10262 = vmatprep.subr.bf16.mxu0 0
  %10263 = vmatpush1.bf16.msra.mxu0 %v10224
  %10264 = vmatprep.subr.bf16.mxu0 0
  %10265 = vmatpush1.bf16.msra.mxu0 %v10225
  %10266 = vmatprep.subr.bf16.mxu0 0
  %10267 = vmatpush1.bf16.msra.mxu0 %v10226
  %10268 = vmatprep.subr.bf16.mxu0 0
  %10269 = vmatpush1.bf16.msra.mxu0 %v10227
  %10270 = vmatprep.subr.bf16.mxu0 0
  %10271 = vmatpush1.bf16.msra.mxu0 %v10228
  %10272 = vmatprep.subr.bf16.mxu0 0
  %10273 = vmatpush1.bf16.msra.mxu0 %v10229
  %10274 = vmatprep.subr.bf16.mxu0 0
  %10275 = vmatpush1.bf16.msra.mxu0 %v10230
  %10276 = vmatprep.subr.bf16.mxu0 0
  %10277 = vmatpush1.bf16.msra.mxu0 %v10231
  %10278 = vmatprep.subr.bf16.mxu0 0
  %10279 = vmatpush1.bf16.msra.mxu0 %v10232
  %10280 = vmatprep.subr.bf16.mxu0 0
  %10281 = vmatpush1.bf16.msra.mxu0 %v10233
  %10282 = vmatprep.mubr.bf16.mxu0 %v10052
  %10283 = vmatmul.mubr.bf16.gmra.mrb[0].mxu0 %v10051
  %v10284 = vpop.f32.mrb[0].mxu0
  %v10285 = vadd.f32 %v10152, %v10284
  %v10286 = vpop.f32.mrb[0].mxu0
  %v10287 = vpop.f32.mrb[0].mxu0
  %v10288 = vadd.f32 %v10152, %v10287
  %v10289 = vpop.f32.mrb[0].mxu0
  %10290 = vmatprep.mubr.bf16.mxu0 %v10054
  %10291 = vmatmul.mubr.bf16.gmra.mrb[0].mxu0 %v10053
  %v10292 = vpop.f32.mrb[0].mxu0
  %v10293 = vadd.f32 %v10152, %v10292
  %v10294 = vpop.f32.mrb[0].mxu0
  %v10295 = vpop.f32.mrb[0].mxu0
  %v10296 = vadd.f32 %v10152, %v10295
  %v10297 = vpop.f32.mrb[0].mxu0
  %10298 = vmatprep.mubr.bf16.mxu0 %v10056
  %10299 = vmatmul.mubr.bf16.gmra.mrb[0].mxu0 %v10055
  %v10300 = vpop.f32.mrb[0].mxu0
  %v10301 = vadd.f32 %v10152, %v10300
  %v10302 = vpop.f32.mrb[0].mxu0
  %v10303 = vpop.f32.mrb[0].mxu0
  %v10304 = vadd.f32 %v10152, %v10303
  %v10305 = vpop.f32.mrb[0].mxu0
  %10306 = vmatprep.mubr.bf16.mxu0 %v10058
  %10307 = vmatmul.mubr.bf16.gmra.mrb[0].mxu0 %v10057
  %v10308 = vpop.f32.mrb[0].mxu0
  %v10309 = vadd.f32 %v10152, %v10308
  %v10310 = vpop.f32.mrb[0].mxu0
  %v10311 = vpop.f32.mrb[0].mxu0
  %v10312 = vadd.f32 %v10152, %v10311
  %v10313 = vpop.f32.mrb[0].mxu0
  %10314 = vmatprep.mubr.bf16.mxu0 %v10060
  %10315 = vmatmul.mubr.bf16.gmra.mrb[0].mxu0 %v10059
  %v10316 = vpop.f32.mrb[0].mxu0
  %v10317 = vadd.f32 %v10152, %v10316
  %v10318 = vpop.f32.mrb[0].mxu0
  %v10319 = vpop.f32.mrb[0].mxu0
  %v10320 = vadd.f32 %v10152, %v10319
  %v10321 = vpop.f32.mrb[0].mxu0
  %10322 = vmatprep.mubr.bf16.mxu0 %v10062
  %10323 = vmatmul.mubr.bf16.gmra.mrb[0].mxu0 %v10061
  %v10324 = vpop.f32.mrb[0].mxu0
  %v10325 = vadd.f32 %v10152, %v10324
  %v10326 = vpop.f32.mrb[0].mxu0
  %v10327 = vpop.f32.mrb[0].mxu0
  %v10328 = vadd.f32 %v10152, %v10327
  %v10329 = vpop.f32.mrb[0].mxu0
  %10330 = vmatprep.mubr.bf16.mxu0 %v10064
  %10331 = vmatmul.mubr.bf16.gmra.mrb[0].mxu0 %v10063
  %v10332 = vpop.f32.mrb[0].mxu0
  %v10333 = vadd.f32 %v10152, %v10332
  %v10334 = vpop.f32.mrb[0].mxu0
  %v10335 = vpop.f32.mrb[0].mxu0
  %v10336 = vadd.f32 %v10152, %v10335
  %v10337 = vpop.f32.mrb[0].mxu0
  %10338 = vmatprep.mubr.bf16.mxu0 %v10066
  %10339 = vmatmul.mubr.bf16.gmra.mrb[0].mxu0 %v10065
  %v10340 = vpop.f32.mrb[0].mxu0
  %v10341 = vadd.f32 %v10152, %v10340
  %v10342 = vpop.f32.mrb[0].mxu0
  %v10343 = vpop.f32.mrb[0].mxu0
  %v10344 = vadd.f32 %v10152, %v10343
  %v10345 = vpop.f32.mrb[0].mxu0
  %10346 = vmatprep.mubr.bf16.mxu0 %v10068
  %10347 = vmatmul.mubr.bf16.gmra.mrb[0].mxu0 %v10067
  %v10348 = vpop.f32.mrb[0].mxu0
  %v10349 = vadd.f32 %v10152, %v10348
  %v10350 = vpop.f32.mrb[0].mxu0
  %v10351 = vpop.f32.mrb[0].mxu0
  %v10352 = vadd.f32 %v10152, %v10351
  %v10353 = vpop.f32.mrb[0].mxu0
  %10354 = vmatprep.mubr.bf16.mxu0 %v10070
  %10355 = vmatmul.mubr.bf16.gmra.mrb[0].mxu0 %v10069
  %v10356 = vpop.f32.mrb[0].mxu0
  %v10357 = vadd.f32 %v10152, %v10356
  %v10358 = vpop.f32.mrb[0].mxu0
  %v10359 = vpop.f32.mrb[0].mxu0
  %v10360 = vadd.f32 %v10152, %v10359
  %v10361 = vpop.f32.mrb[0].mxu0
  %10362 = vmatprep.mubr.bf16.mxu0 %v10072
  %10363 = vmatmul.mubr.bf16.gmra.mrb[0].mxu0 %v10071
  %v10364 = vpop.f32.mrb[0].mxu0
  %v10365 = vadd.f32 %v10152, %v10364
  %v10366 = vpop.f32.mrb[0].mxu0
  %v10367 = vpop.f32.mrb[0].mxu0
  %v10368 = vadd.f32 %v10152, %v10367
  %v10369 = vpop.f32.mrb[0].mxu0
  %10370 = vmatprep.mubr.bf16.mxu0 %v10074
  %10371 = vmatmul.mubr.bf16.gmra.mrb[0].mxu0 %v10073
  %v10372 = vpop.f32.mrb[0].mxu0
  %v10373 = vadd.f32 %v10152, %v10372
  %v10374 = vpop.f32.mrb[0].mxu0
  %v10375 = vpop.f32.mrb[0].mxu0
  %v10376 = vadd.f32 %v10152, %v10375
  %v10377 = vpop.f32.mrb[0].mxu0
  %10378 = vmatprep.mubr.bf16.mxu0 %v10076
  %10379 = vmatmul.mubr.bf16.gmra.mrb[0].mxu0 %v10075
  %v10380 = vpop.f32.mrb[0].mxu0
  %v10381 = vadd.f32 %v10152, %v10380
  %v10382 = vpop.f32.mrb[0].mxu0
  %v10383 = vpop.f32.mrb[0].mxu0
  %v10384 = vadd.f32 %v10152, %v10383
  %v10385 = vpop.f32.mrb[0].mxu0
  %10386 = vmatprep.mubr.bf16.mxu0 %v10078
  %10387 = vmatmul.mubr.bf16.gmra.mrb[0].mxu0 %v10077
  %v10388 = vpop.f32.mrb[0].mxu0
  %v10389 = vadd.f32 %v10152, %v10388
  %v10390 = vpop.f32.mrb[0].mxu0
  %v10391 = vpop.f32.mrb[0].mxu0
  %v10392 = vadd.f32 %v10152, %v10391
  %v10393 = vpop.f32.mrb[0].mxu0
  %10394 = vmatprep.mubr.bf16.mxu0 %v10080
  %10395 = vmatmul.mubr.bf16.gmra.mrb[0].mxu0 %v10079
  %v10396 = vpop.f32.mrb[0].mxu0
  %v10397 = vadd.f32 %v10152, %v10396
  %v10398 = vpop.f32.mrb[0].mxu0
  %v10399 = vpop.f32.mrb[0].mxu0
  %v10400 = vadd.f32 %v10152, %v10399
  %v10401 = vpop.f32.mrb[0].mxu0
  %10402 = vmatprep.mubr.bf16.mxu0 %v10082
  %10403 = vmatmul.mubr.bf16.gmra.mrb[0].mxu0 %v10081
  %v10404 = vpop.f32.mrb[0].mxu0
  %v10405 = vadd.f32 %v10152, %v10404
  %v10406 = vpop.f32.mrb[0].mxu0
  %v10407 = vpop.f32.mrb[0].mxu0
  %v10408 = vadd.f32 %v10152, %v10407
  %v10409 = vpop.f32.mrb[0].mxu0
  %10410 = vmatprep.mubr.bf16.mxu0 %v10084
  %10411 = vmatmul.mubr.bf16.gmra.mrb[0].mxu0 %v10083
  %v10412 = vpop.f32.mrb[0].mxu0
  %v10413 = vadd.f32 %v10152, %v10412
  %v10414 = vpop.f32.mrb[0].mxu0
  %v10415 = vpop.f32.mrb[0].mxu0
  %v10416 = vadd.f32 %v10152, %v10415
  %v10417 = vpop.f32.mrb[0].mxu0
  %10418 = vmatprep.mubr.bf16.mxu0 %v10086
  %10419 = vmatmul.mubr.bf16.gmra.mrb[0].mxu0 %v10085
  %v10420 = vpop.f32.mrb[0].mxu0
  %v10421 = vadd.f32 %v10152, %v10420
  %v10422 = vpop.f32.mrb[0].mxu0
  %v10423 = vpop.f32.mrb[0].mxu0
  %v10424 = vadd.f32 %v10152, %v10423
  %v10425 = vpop.f32.mrb[0].mxu0
  %10426 = vmatprep.mubr.bf16.mxu0 %v10088
  %10427 = vmatmul.mubr.bf16.gmra.mrb[0].mxu0 %v10087
  %v10428 = vpop.f32.mrb[0].mxu0
  %v10429 = vadd.f32 %v10152, %v10428
  %v10430 = vpop.f32.mrb[0].mxu0
  %v10431 = vpop.f32.mrb[0].mxu0
  %v10432 = vadd.f32 %v10152, %v10431
  %v10433 = vpop.f32.mrb[0].mxu0
  %10434 = vmatprep.mubr.bf16.mxu0 %v10090
  %10435 = vmatmul.mubr.bf16.gmra.mrb[0].mxu0 %v10089
  %v10436 = vpop.f32.mrb[0].mxu0
  %v10437 = vadd.f32 %v10152, %v10436
  %v10438 = vpop.f32.mrb[0].mxu0
  %v10439 = vpop.f32.mrb[0].mxu0
  %v10440 = vadd.f32 %v10152, %v10439
  %v10441 = vpop.f32.mrb[0].mxu0
  %10442 = vmatprep.mubr.bf16.mxu0 %v10092
  %10443 = vmatmul.mubr.bf16.gmra.mrb[0].mxu0 %v10091
  %v10444 = vpop.f32.mrb[0].mxu0
  %v10445 = vadd.f32 %v10152, %v10444
  %v10446 = vpop.f32.mrb[0].mxu0
  %v10447 = vpop.f32.mrb[0].mxu0
  %v10448 = vadd.f32 %v10152, %v10447
  %v10449 = vpop.f32.mrb[0].mxu0
  %10450 = vmatprep.mubr.bf16.mxu0 %v10094
  %10451 = vmatmul.mubr.bf16.gmra.mrb[0].mxu0 %v10093
  %v10452 = vpop.f32.mrb[0].mxu0
  %v10453 = vadd.f32 %v10152, %v10452
  %v10454 = vpop.f32.mrb[0].mxu0
  %v10455 = vpop.f32.mrb[0].mxu0
  %v10456 = vadd.f32 %v10152, %v10455
  %v10457 = vpop.f32.mrb[0].mxu0
  %10458 = vmatprep.mubr.bf16.mxu0 %v10096
  %10459 = vmatmul.mubr.bf16.gmra.mrb[0].mxu0 %v10095
  %v10460 = vpop.f32.mrb[0].mxu0
  %v10461 = vadd.f32 %v10152, %v10460
  %v10462 = vpop.f32.mrb[0].mxu0
  %v10463 = vpop.f32.mrb[0].mxu0
  %v10464 = vadd.f32 %v10152, %v10463
  %v10465 = vpop.f32.mrb[0].mxu0
  %10466 = vmatprep.mubr.bf16.mxu0 %v10098
  %10467 = vmatmul.mubr.bf16.gmra.mrb[0].mxu0 %v10097
  %v10468 = vpop.f32.mrb[0].mxu0
  %v10469 = vadd.f32 %v10152, %v10468
  %v10470 = vpop.f32.mrb[0].mxu0
  %v10471 = vpop.f32.mrb[0].mxu0
  %v10472 = vadd.f32 %v10152, %v10471
  %v10473 = vpop.f32.mrb[0].mxu0
  %10474 = vmatprep.mubr.bf16.mxu0 %v10100
  %10475 = vmatmul.mubr.bf16.gmra.mrb[0].mxu0 %v10099
  %v10476 = vpop.f32.mrb[0].mxu0
  %v10477 = vadd.f32 %v10152, %v10476
  %v10478 = vpop.f32.mrb[0].mxu0
  %v10479 = vpop.f32.mrb[0].mxu0
  %v10480 = vadd.f32 %v10152, %v10479
  %v10481 = vpop.f32.mrb[0].mxu0
  %10482 = vmatprep.mubr.bf16.mxu0 %v10102
  %10483 = vmatmul.mubr.bf16.gmra.mrb[0].mxu0 %v10101
  %v10484 = vpop.f32.mrb[0].mxu0
  %v10485 = vadd.f32 %v10152, %v10484
  %v10486 = vpop.f32.mrb[0].mxu0
  %v10487 = vpop.f32.mrb[0].mxu0
  %v10488 = vadd.f32 %v10152, %v10487
  %v10489 = vpop.f32.mrb[0].mxu0
  %10490 = vmatprep.mubr.bf16.mxu0 %v10104
  %10491 = vmatmul.mubr.bf16.gmra.mrb[0].mxu0 %v10103
  %v10492 = vpop.f32.mrb[0].mxu0
  %v10493 = vadd.f32 %v10152, %v10492
  %v10494 = vpop.f32.mrb[0].mxu0
  %v10495 = vpop.f32.mrb[0].mxu0
  %v10496 = vadd.f32 %v10152, %v10495
  %v10497 = vpop.f32.mrb[0].mxu0
  %10498 = vmatprep.mubr.bf16.mxu0 %v10106
  %10499 = vmatmul.mubr.bf16.gmra.mrb[0].mxu0 %v10105
  %v10500 = vpop.f32.mrb[0].mxu0
  %v10501 = vadd.f32 %v10152, %v10500
  %v10502 = vpop.f32.mrb[0].mxu0
  %v10503 = vpop.f32.mrb[0].mxu0
  %v10504 = vadd.f32 %v10152, %v10503
  %v10505 = vpop.f32.mrb[0].mxu0
  %10506 = vmatprep.mubr.bf16.mxu0 %v10108
  %10507 = vmatmul.mubr.bf16.gmra.mrb[0].mxu0 %v10107
  %v10508 = vpop.f32.mrb[0].mxu0
  %v10509 = vadd.f32 %v10152, %v10508
  %v10510 = vpop.f32.mrb[0].mxu0
  %v10511 = vpop.f32.mrb[0].mxu0
  %v10512 = vadd.f32 %v10152, %v10511
  %v10513 = vpop.f32.mrb[0].mxu0
  %10514 = vmatprep.mubr.bf16.mxu0 %v10110
  %10515 = vmatmul.mubr.bf16.gmra.mrb[0].mxu0 %v10109
  %v10516 = vpop.f32.mrb[0].mxu0
  %v10517 = vadd.f32 %v10152, %v10516
  %v10518 = vpop.f32.mrb[0].mxu0
  %v10519 = vpop.f32.mrb[0].mxu0
  %v10520 = vadd.f32 %v10152, %v10519
  %v10521 = vpop.f32.mrb[0].mxu0
  %10522 = vmatprep.mubr.bf16.mxu0 %v10112
  %10523 = vmatmul.mubr.bf16.gmra.mrb[0].mxu0 %v10111
  %v10524 = vpop.f32.mrb[0].mxu0
  %v10525 = vadd.f32 %v10152, %v10524
  %v10526 = vpop.f32.mrb[0].mxu0
  %v10527 = vpop.f32.mrb[0].mxu0
  %v10528 = vadd.f32 %v10152, %v10527
  %v10529 = vpop.f32.mrb[0].mxu0
  %10530 = vmatprep.mubr.bf16.mxu0 %v10114
  %10531 = vmatmul.mubr.bf16.gmra.mrb[0].mxu0 %v10113
  %v10532 = vpop.f32.mrb[0].mxu0
  %v10533 = vadd.f32 %v10152, %v10532
  %v10534 = vpop.f32.mrb[0].mxu0
  %v10535 = vpop.f32.mrb[0].mxu0
  %v10536 = vadd.f32 %v10152, %v10535
  %v10537 = vpop.f32.mrb[0].mxu0
  %10538 = vdwg.mxu0
  %v10539 = vadd.f32 %v6118, %v10285
  %v10540 = vadd.f32 %v6119, %v10288
  %v10541 = vadd.f32 %v6120, %v10293
  %v10542 = vadd.f32 %v6121, %v10296
  %v10543 = vadd.f32 %v6122, %v10301
  %v10544 = vadd.f32 %v6123, %v10304
  %v10545 = vadd.f32 %v6124, %v10309
  %v10546 = vadd.f32 %v6125, %v10312
  %v10547 = vadd.f32 %v6126, %v10317
  %v10548 = vadd.f32 %v6127, %v10320
  %v10549 = vadd.f32 %v6128, %v10325
  %v10550 = vadd.f32 %v6129, %v10328
  %v10551 = vadd.f32 %v6130, %v10333
  %v10552 = vadd.f32 %v6131, %v10336
  %v10553 = vadd.f32 %v6132, %v10341
  %v10554 = vadd.f32 %v6133, %v10344
  %v10555 = vadd.f32 %v6134, %v10349
  %v10556 = vadd.f32 %v6135, %v10352
  %v10557 = vadd.f32 %v6136, %v10357
  %v10558 = vadd.f32 %v6137, %v10360
  %v10559 = vadd.f32 %v6138, %v10365
  %v10560 = vadd.f32 %v6139, %v10368
  %v10561 = vadd.f32 %v6140, %v10373
  %v10562 = vadd.f32 %v6141, %v10376
  %v10563 = vadd.f32 %v6142, %v10381
  %v10564 = vadd.f32 %v6143, %v10384
  %v10565 = vadd.f32 %v6144, %v10389
  %v10566 = vadd.f32 %v6145, %v10392
  %v10567 = vadd.f32 %v6146, %v10397
  %v10568 = vadd.f32 %v6147, %v10400
  %v10569 = vadd.f32 %v6148, %v10405
  %v10570 = vadd.f32 %v6149, %v10408
  %v10571 = vadd.f32 %v6150, %v10413
  %v10572 = vadd.f32 %v6151, %v10416
  %v10573 = vadd.f32 %v6152, %v10421
  %v10574 = vadd.f32 %v6153, %v10424
  %v10575 = vadd.f32 %v6154, %v10429
  %v10576 = vadd.f32 %v6155, %v10432
  %v10577 = vadd.f32 %v6156, %v10437
  %v10578 = vadd.f32 %v6157, %v10440
  %v10579 = vadd.f32 %v6158, %v10445
  %v10580 = vadd.f32 %v6159, %v10448
  %v10581 = vadd.f32 %v6160, %v10453
  %v10582 = vadd.f32 %v6161, %v10456
  %v10583 = vadd.f32 %v6162, %v10461
  %v10584 = vadd.f32 %v6163, %v10464
  %v10585 = vadd.f32 %v6164, %v10469
  %v10586 = vadd.f32 %v6165, %v10472
  %v10587 = vadd.f32 %v6166, %v10477
  %v10588 = vadd.f32 %v6167, %v10480
  %v10589 = vadd.f32 %v6168, %v10485
  %v10590 = vadd.f32 %v6169, %v10488
  %v10591 = vadd.f32 %v6170, %v10493
  %v10592 = vadd.f32 %v6171, %v10496
  %v10593 = vadd.f32 %v6172, %v10501
  %v10594 = vadd.f32 %v6173, %v10504
  %v10595 = vadd.f32 %v6174, %v10509
  %v10596 = vadd.f32 %v6175, %v10512
  %v10597 = vadd.f32 %v6176, %v10517
  %v10598 = vadd.f32 %v6177, %v10520
  %v10599 = vadd.f32 %v6178, %v10525
  %v10600 = vadd.f32 %v6179, %v10528
  %v10601 = vadd.f32 %v6180, %v10533
  %v10602 = vadd.f32 %v6181, %v10536
  %v10603 = vld [vmem:[%s6] sm:$0x1]
  %v10604 = vld [vmem:[%s7] sm:$0x1]
  %v10605 = vsel %vm186, %v10539, 0.0
  %10606 = vadd.xlane.f32.xlu0 %v10605
  %v10607 = vpop.xlane.xlu0 %10606
  %v10608 = vsel %vm186, %v10540, 0.0
  %10609 = vadd.xlane.f32.xlu0 %v10608
  %v10610 = vpop.xlane.xlu0 %10609
  %v10611 = vsel %vm186, %v10541, 0.0
  %10612 = vadd.xlane.f32.xlu0 %v10611
  %v10613 = vpop.xlane.xlu0 %10612
  %v10614 = vsel %vm186, %v10542, 0.0
  %10615 = vadd.xlane.f32.xlu0 %v10614
  %v10616 = vpop.xlane.xlu0 %10615
  %v10617 = vsel %vm186, %v10543, 0.0
  %10618 = vadd.xlane.f32.xlu0 %v10617
  %v10619 = vpop.xlane.xlu0 %10618
  %v10620 = vsel %vm186, %v10544, 0.0
  %10621 = vadd.xlane.f32.xlu0 %v10620
  %v10622 = vpop.xlane.xlu0 %10621
  %v10623 = vsel %vm186, %v10545, 0.0
  %10624 = vadd.xlane.f32.xlu0 %v10623
  %v10625 = vpop.xlane.xlu0 %10624
  %v10626 = vsel %vm186, %v10546, 0.0
  %10627 = vadd.xlane.f32.xlu0 %v10626
  %v10628 = vpop.xlane.xlu0 %10627
  %v10629 = vsel %vm186, %v10547, 0.0
  %10630 = vadd.xlane.f32.xlu0 %v10629
  %v10631 = vpop.xlane.xlu0 %10630
  %v10632 = vsel %vm186, %v10548, 0.0
  %10633 = vadd.xlane.f32.xlu0 %v10632
  %v10634 = vpop.xlane.xlu0 %10633
  %v10635 = vsel %vm186, %v10549, 0.0
  %10636 = vadd.xlane.f32.xlu0 %v10635
  %v10637 = vpop.xlane.xlu0 %10636
  %v10638 = vsel %vm186, %v10550, 0.0
  %10639 = vadd.xlane.f32.xlu0 %v10638
  %v10640 = vpop.xlane.xlu0 %10639
  %v10641 = vsel %vm186, %v10551, 0.0
  %10642 = vadd.xlane.f32.xlu0 %v10641
  %v10643 = vpop.xlane.xlu0 %10642
  %v10644 = vsel %vm186, %v10552, 0.0
  %10645 = vadd.xlane.f32.xlu0 %v10644
  %v10646 = vpop.xlane.xlu0 %10645
  %v10647 = vsel %vm186, %v10553, 0.0
  %10648 = vadd.xlane.f32.xlu0 %v10647
  %v10649 = vpop.xlane.xlu0 %10648
  %v10650 = vsel %vm186, %v10554, 0.0
  %10651 = vadd.xlane.f32.xlu0 %v10650
  %v10652 = vpop.xlane.xlu0 %10651
  %v10653 = vsel %vm186, %v10555, 0.0
  %10654 = vadd.xlane.f32.xlu0 %v10653
  %v10655 = vpop.xlane.xlu0 %10654
  %v10656 = vsel %vm186, %v10556, 0.0
  %10657 = vadd.xlane.f32.xlu0 %v10656
  %v10658 = vpop.xlane.xlu0 %10657
  %v10659 = vsel %vm186, %v10557, 0.0
  %10660 = vadd.xlane.f32.xlu0 %v10659
  %v10661 = vpop.xlane.xlu0 %10660
  %v10662 = vsel %vm186, %v10558, 0.0
  %10663 = vadd.xlane.f32.xlu0 %v10662
  %v10664 = vpop.xlane.xlu0 %10663
  %v10665 = vsel %vm186, %v10559, 0.0
  %10666 = vadd.xlane.f32.xlu0 %v10665
  %v10667 = vpop.xlane.xlu0 %10666
  %v10668 = vsel %vm186, %v10560, 0.0
  %10669 = vadd.xlane.f32.xlu0 %v10668
  %v10670 = vpop.xlane.xlu0 %10669
  %v10671 = vsel %vm186, %v10561, 0.0
  %10672 = vadd.xlane.f32.xlu0 %v10671
  %v10673 = vpop.xlane.xlu0 %10672
  %v10674 = vsel %vm186, %v10562, 0.0
  %10675 = vadd.xlane.f32.xlu0 %v10674
  %v10676 = vpop.xlane.xlu0 %10675
  %v10677 = vsel %vm186, %v10563, 0.0
  %10678 = vadd.xlane.f32.xlu0 %v10677
  %v10679 = vpop.xlane.xlu0 %10678
  %v10680 = vsel %vm186, %v10564, 0.0
  %10681 = vadd.xlane.f32.xlu0 %v10680
  %v10682 = vpop.xlane.xlu0 %10681
  %v10683 = vsel %vm186, %v10565, 0.0
  %10684 = vadd.xlane.f32.xlu0 %v10683
  %v10685 = vpop.xlane.xlu0 %10684
  %v10686 = vsel %vm186, %v10566, 0.0
  %10687 = vadd.xlane.f32.xlu0 %v10686
  %v10688 = vpop.xlane.xlu0 %10687
  %v10689 = vsel %vm186, %v10567, 0.0
  %10690 = vadd.xlane.f32.xlu0 %v10689
  %v10691 = vpop.xlane.xlu0 %10690
  %v10692 = vsel %vm186, %v10568, 0.0
  %10693 = vadd.xlane.f32.xlu0 %v10692
  %v10694 = vpop.xlane.xlu0 %10693
  %v10695 = vsel %vm186, %v10569, 0.0
  %10696 = vadd.xlane.f32.xlu0 %v10695
  %v10697 = vpop.xlane.xlu0 %10696
  %v10698 = vsel %vm186, %v10570, 0.0
  %10699 = vadd.xlane.f32.xlu0 %v10698
  %v10700 = vpop.xlane.xlu0 %10699
  %v10701 = vsel %vm186, %v10571, 0.0
  %10702 = vadd.xlane.f32.xlu0 %v10701
  %v10703 = vpop.xlane.xlu0 %10702
  %v10704 = vsel %vm186, %v10572, 0.0
  %10705 = vadd.xlane.f32.xlu0 %v10704
  %v10706 = vpop.xlane.xlu0 %10705
  %v10707 = vsel %vm186, %v10573, 0.0
  %10708 = vadd.xlane.f32.xlu0 %v10707
  %v10709 = vpop.xlane.xlu0 %10708
  %v10710 = vsel %vm186, %v10574, 0.0
  %10711 = vadd.xlane.f32.xlu0 %v10710
  %v10712 = vpop.xlane.xlu0 %10711
  %v10713 = vsel %vm186, %v10575, 0.0
  %10714 = vadd.xlane.f32.xlu0 %v10713
  %v10715 = vpop.xlane.xlu0 %10714
  %v10716 = vsel %vm186, %v10576, 0.0
  %10717 = vadd.xlane.f32.xlu0 %v10716
  %v10718 = vpop.xlane.xlu0 %10717
  %v10719 = vsel %vm186, %v10577, 0.0
  %10720 = vadd.xlane.f32.xlu0 %v10719
  %v10721 = vpop.xlane.xlu0 %10720
  %v10722 = vsel %vm186, %v10578, 0.0
  %10723 = vadd.xlane.f32.xlu0 %v10722
  %v10724 = vpop.xlane.xlu0 %10723
  %v10725 = vsel %vm186, %v10579, 0.0
  %10726 = vadd.xlane.f32.xlu0 %v10725
  %v10727 = vpop.xlane.xlu0 %10726
  %v10728 = vsel %vm186, %v10580, 0.0
  %10729 = vadd.xlane.f32.xlu0 %v10728
  %v10730 = vpop.xlane.xlu0 %10729
  %v10731 = vsel %vm186, %v10581, 0.0
  %10732 = vadd.xlane.f32.xlu0 %v10731
  %v10733 = vpop.xlane.xlu0 %10732
  %v10734 = vsel %vm186, %v10582, 0.0
  %10735 = vadd.xlane.f32.xlu0 %v10734
  %v10736 = vpop.xlane.xlu0 %10735
  %v10737 = vsel %vm186, %v10583, 0.0
  %10738 = vadd.xlane.f32.xlu0 %v10737
  %v10739 = vpop.xlane.xlu0 %10738
  %v10740 = vsel %vm186, %v10584, 0.0
  %10741 = vadd.xlane.f32.xlu0 %v10740
  %v10742 = vpop.xlane.xlu0 %10741
  %v10743 = vsel %vm186, %v10585, 0.0
  %10744 = vadd.xlane.f32.xlu0 %v10743
  %v10745 = vpop.xlane.xlu0 %10744
  %v10746 = vsel %vm186, %v10586, 0.0
  %10747 = vadd.xlane.f32.xlu0 %v10746
  %v10748 = vpop.xlane.xlu0 %10747
  %v10749 = vsel %vm186, %v10587, 0.0
  %10750 = vadd.xlane.f32.xlu0 %v10749
  %v10751 = vpop.xlane.xlu0 %10750
  %v10752 = vsel %vm186, %v10588, 0.0
  %10753 = vadd.xlane.f32.xlu0 %v10752
  %v10754 = vpop.xlane.xlu0 %10753
  %v10755 = vsel %vm186, %v10589, 0.0
  %10756 = vadd.xlane.f32.xlu0 %v10755
  %v10757 = vpop.xlane.xlu0 %10756
  %v10758 = vsel %vm186, %v10590, 0.0
  %10759 = vadd.xlane.f32.xlu0 %v10758
  %v10760 = vpop.xlane.xlu0 %10759
  %v10761 = vsel %vm186, %v10591, 0.0
  %10762 = vadd.xlane.f32.xlu0 %v10761
  %v10763 = vpop.xlane.xlu0 %10762
  %v10764 = vsel %vm186, %v10592, 0.0
  %10765 = vadd.xlane.f32.xlu0 %v10764
  %v10766 = vpop.xlane.xlu0 %10765
  %v10767 = vsel %vm186, %v10593, 0.0
  %10768 = vadd.xlane.f32.xlu0 %v10767
  %v10769 = vpop.xlane.xlu0 %10768
  %v10770 = vsel %vm186, %v10594, 0.0
  %10771 = vadd.xlane.f32.xlu0 %v10770
  %v10772 = vpop.xlane.xlu0 %10771
  %v10773 = vsel %vm186, %v10595, 0.0
  %10774 = vadd.xlane.f32.xlu0 %v10773
  %v10775 = vpop.xlane.xlu0 %10774
  %v10776 = vsel %vm186, %v10596, 0.0
  %10777 = vadd.xlane.f32.xlu0 %v10776
  %v10778 = vpop.xlane.xlu0 %10777
  %v10779 = vsel %vm186, %v10597, 0.0
  %10780 = vadd.xlane.f32.xlu0 %v10779
  %v10781 = vpop.xlane.xlu0 %10780
  %v10782 = vsel %vm186, %v10598, 0.0
  %10783 = vadd.xlane.f32.xlu0 %v10782
  %v10784 = vpop.xlane.xlu0 %10783
  %v10785 = vsel %vm186, %v10599, 0.0
  %10786 = vadd.xlane.f32.xlu0 %v10785
  %v10787 = vpop.xlane.xlu0 %10786
  %v10788 = vsel %vm186, %v10600, 0.0
  %10789 = vadd.xlane.f32.xlu0 %v10788
  %v10790 = vpop.xlane.xlu0 %10789
  %v10791 = vsel %vm186, %v10601, 0.0
  %10792 = vadd.xlane.f32.xlu0 %v10791
  %v10793 = vpop.xlane.xlu0 %10792
  %v10794 = vsel %vm186, %v10602, 0.0
  %10795 = vadd.xlane.f32.xlu0 %v10794
  %v10796 = vpop.xlane.xlu0 %10795
  %v10797 = vmul.f32 %v10607, %v5401
  %v10798 = vmul.f32 %v10610, %v5401
  %v10799 = vmul.f32 %v10613, %v5401
  %v10800 = vmul.f32 %v10616, %v5401
  %v10801 = vmul.f32 %v10619, %v5401
  %v10802 = vmul.f32 %v10622, %v5401
  %v10803 = vmul.f32 %v10625, %v5401
  %v10804 = vmul.f32 %v10628, %v5401
  %v10805 = vmul.f32 %v10631, %v5401
  %v10806 = vmul.f32 %v10634, %v5401
  %v10807 = vmul.f32 %v10637, %v5401
  %v10808 = vmul.f32 %v10640, %v5401
  %v10809 = vmul.f32 %v10643, %v5401
  %v10810 = vmul.f32 %v10646, %v5401
  %v10811 = vmul.f32 %v10649, %v5401
  %v10812 = vmul.f32 %v10652, %v5401
  %v10813 = vmul.f32 %v10655, %v5401
  %v10814 = vmul.f32 %v10658, %v5401
  %v10815 = vmul.f32 %v10661, %v5401
  %v10816 = vmul.f32 %v10664, %v5401
  %v10817 = vmul.f32 %v10667, %v5401
  %v10818 = vmul.f32 %v10670, %v5401
  %v10819 = vmul.f32 %v10673, %v5401
  %v10820 = vmul.f32 %v10676, %v5401
  %v10821 = vmul.f32 %v10679, %v5401
  %v10822 = vmul.f32 %v10682, %v5401
  %v10823 = vmul.f32 %v10685, %v5401
  %v10824 = vmul.f32 %v10688, %v5401
  %v10825 = vmul.f32 %v10691, %v5401
  %v10826 = vmul.f32 %v10694, %v5401
  %v10827 = vmul.f32 %v10697, %v5401
  %v10828 = vmul.f32 %v10700, %v5401
  %v10829 = vmul.f32 %v10703, %v5401
  %v10830 = vmul.f32 %v10706, %v5401
  %v10831 = vmul.f32 %v10709, %v5401
  %v10832 = vmul.f32 %v10712, %v5401
  %v10833 = vmul.f32 %v10715, %v5401
  %v10834 = vmul.f32 %v10718, %v5401
  %v10835 = vmul.f32 %v10721, %v5401
  %v10836 = vmul.f32 %v10724, %v5401
  %v10837 = vmul.f32 %v10727, %v5401
  %v10838 = vmul.f32 %v10730, %v5401
  %v10839 = vmul.f32 %v10733, %v5401
  %v10840 = vmul.f32 %v10736, %v5401
  %v10841 = vmul.f32 %v10739, %v5401
  %v10842 = vmul.f32 %v10742, %v5401
  %v10843 = vmul.f32 %v10745, %v5401
  %v10844 = vmul.f32 %v10748, %v5401
  %v10845 = vmul.f32 %v10751, %v5401
  %v10846 = vmul.f32 %v10754, %v5401
  %v10847 = vmul.f32 %v10757, %v5401
  %v10848 = vmul.f32 %v10760, %v5401
  %v10849 = vmul.f32 %v10763, %v5401
  %v10850 = vmul.f32 %v10766, %v5401
  %v10851 = vmul.f32 %v10769, %v5401
  %v10852 = vmul.f32 %v10772, %v5401
  %v10853 = vmul.f32 %v10775, %v5401
  %v10854 = vmul.f32 %v10778, %v5401
  %v10855 = vmul.f32 %v10781, %v5401
  %v10856 = vmul.f32 %v10784, %v5401
  %v10857 = vmul.f32 %v10787, %v5401
  %v10858 = vmul.f32 %v10790, %v5401
  %v10859 = vmul.f32 %v10793, %v5401
  %v10860 = vmul.f32 %v10796, %v5401
  %v10861 = vsub.f32 %v10539, %v10797
  %v10862 = vsub.f32 %v10540, %v10798
  %v10863 = vsub.f32 %v10541, %v10799
  %v10864 = vsub.f32 %v10542, %v10800
  %v10865 = vsub.f32 %v10543, %v10801
  %v10866 = vsub.f32 %v10544, %v10802
  %v10867 = vsub.f32 %v10545, %v10803
  %v10868 = vsub.f32 %v10546, %v10804
  %v10869 = vsub.f32 %v10547, %v10805
  %v10870 = vsub.f32 %v10548, %v10806
  %v10871 = vsub.f32 %v10549, %v10807
  %v10872 = vsub.f32 %v10550, %v10808
  %v10873 = vsub.f32 %v10551, %v10809
  %v10874 = vsub.f32 %v10552, %v10810
  %v10875 = vsub.f32 %v10553, %v10811
  %v10876 = vsub.f32 %v10554, %v10812
  %v10877 = vsub.f32 %v10555, %v10813
  %v10878 = vsub.f32 %v10556, %v10814
  %v10879 = vsub.f32 %v10557, %v10815
  %v10880 = vsub.f32 %v10558, %v10816
  %v10881 = vsub.f32 %v10559, %v10817
  %v10882 = vsub.f32 %v10560, %v10818
  %v10883 = vsub.f32 %v10561, %v10819
  %v10884 = vsub.f32 %v10562, %v10820
  %v10885 = vsub.f32 %v10563, %v10821
  %v10886 = vsub.f32 %v10564, %v10822
  %v10887 = vsub.f32 %v10565, %v10823
  %v10888 = vsub.f32 %v10566, %v10824
  %v10889 = vsub.f32 %v10567, %v10825
  %v10890 = vsub.f32 %v10568, %v10826
  %v10891 = vsub.f32 %v10569, %v10827
  %v10892 = vsub.f32 %v10570, %v10828
  %v10893 = vsub.f32 %v10571, %v10829
  %v10894 = vsub.f32 %v10572, %v10830
  %v10895 = vsub.f32 %v10573, %v10831
  %v10896 = vsub.f32 %v10574, %v10832
  %v10897 = vsub.f32 %v10575, %v10833
  %v10898 = vsub.f32 %v10576, %v10834
  %v10899 = vsub.f32 %v10577, %v10835
  %v10900 = vsub.f32 %v10578, %v10836
  %v10901 = vsub.f32 %v10579, %v10837
  %v10902 = vsub.f32 %v10580, %v10838
  %v10903 = vsub.f32 %v10581, %v10839
  %v10904 = vsub.f32 %v10582, %v10840
  %v10905 = vsub.f32 %v10583, %v10841
  %v10906 = vsub.f32 %v10584, %v10842
  %v10907 = vsub.f32 %v10585, %v10843
  %v10908 = vsub.f32 %v10586, %v10844
  %v10909 = vsub.f32 %v10587, %v10845
  %v10910 = vsub.f32 %v10588, %v10846
  %v10911 = vsub.f32 %v10589, %v10847
  %v10912 = vsub.f32 %v10590, %v10848
  %v10913 = vsub.f32 %v10591, %v10849
  %v10914 = vsub.f32 %v10592, %v10850
  %v10915 = vsub.f32 %v10593, %v10851
  %v10916 = vsub.f32 %v10594, %v10852
  %v10917 = vsub.f32 %v10595, %v10853
  %v10918 = vsub.f32 %v10596, %v10854
  %v10919 = vsub.f32 %v10597, %v10855
  %v10920 = vsub.f32 %v10598, %v10856
  %v10921 = vsub.f32 %v10599, %v10857
  %v10922 = vsub.f32 %v10600, %v10858
  %v10923 = vsub.f32 %v10601, %v10859
  %v10924 = vsub.f32 %v10602, %v10860
  %v10925 = vmul.f32 %v10861, %v10861
  %v10926 = vmul.f32 %v10862, %v10862
  %v10927 = vmul.f32 %v10863, %v10863
  %v10928 = vmul.f32 %v10864, %v10864
  %v10929 = vmul.f32 %v10865, %v10865
  %v10930 = vmul.f32 %v10866, %v10866
  %v10931 = vmul.f32 %v10867, %v10867
  %v10932 = vmul.f32 %v10868, %v10868
  %v10933 = vmul.f32 %v10869, %v10869
  %v10934 = vmul.f32 %v10870, %v10870
  %v10935 = vmul.f32 %v10871, %v10871
  %v10936 = vmul.f32 %v10872, %v10872
  %v10937 = vmul.f32 %v10873, %v10873
  %v10938 = vmul.f32 %v10874, %v10874
  %v10939 = vmul.f32 %v10875, %v10875
  %v10940 = vmul.f32 %v10876, %v10876
  %v10941 = vmul.f32 %v10877, %v10877
  %v10942 = vmul.f32 %v10878, %v10878
  %v10943 = vmul.f32 %v10879, %v10879
  %v10944 = vmul.f32 %v10880, %v10880
  %v10945 = vmul.f32 %v10881, %v10881
  %v10946 = vmul.f32 %v10882, %v10882
  %v10947 = vmul.f32 %v10883, %v10883
  %v10948 = vmul.f32 %v10884, %v10884
  %v10949 = vmul.f32 %v10885, %v10885
  %v10950 = vmul.f32 %v10886, %v10886
  %v10951 = vmul.f32 %v10887, %v10887
  %v10952 = vmul.f32 %v10888, %v10888
  %v10953 = vmul.f32 %v10889, %v10889
  %v10954 = vmul.f32 %v10890, %v10890
  %v10955 = vmul.f32 %v10891, %v10891
  %v10956 = vmul.f32 %v10892, %v10892
  %v10957 = vmul.f32 %v10893, %v10893
  %v10958 = vmul.f32 %v10894, %v10894
  %v10959 = vmul.f32 %v10895, %v10895
  %v10960 = vmul.f32 %v10896, %v10896
  %v10961 = vmul.f32 %v10897, %v10897
  %v10962 = vmul.f32 %v10898, %v10898
  %v10963 = vmul.f32 %v10899, %v10899
  %v10964 = vmul.f32 %v10900, %v10900
  %v10965 = vmul.f32 %v10901, %v10901
  %v10966 = vmul.f32 %v10902, %v10902
  %v10967 = vmul.f32 %v10903, %v10903
  %v10968 = vmul.f32 %v10904, %v10904
  %v10969 = vmul.f32 %v10905, %v10905
  %v10970 = vmul.f32 %v10906, %v10906
  %v10971 = vmul.f32 %v10907, %v10907
  %v10972 = vmul.f32 %v10908, %v10908
  %v10973 = vmul.f32 %v10909, %v10909
  %v10974 = vmul.f32 %v10910, %v10910
  %v10975 = vmul.f32 %v10911, %v10911
  %v10976 = vmul.f32 %v10912, %v10912
  %v10977 = vmul.f32 %v10913, %v10913
  %v10978 = vmul.f32 %v10914, %v10914
  %v10979 = vmul.f32 %v10915, %v10915
  %v10980 = vmul.f32 %v10916, %v10916
  %v10981 = vmul.f32 %v10917, %v10917
  %v10982 = vmul.f32 %v10918, %v10918
  %v10983 = vmul.f32 %v10919, %v10919
  %v10984 = vmul.f32 %v10920, %v10920
  %v10985 = vmul.f32 %v10921, %v10921
  %v10986 = vmul.f32 %v10922, %v10922
  %v10987 = vmul.f32 %v10923, %v10923
  %v10988 = vmul.f32 %v10924, %v10924
  %v10989 = vsel %vm186, %v10925, 0.0
  %10990 = vadd.xlane.f32.xlu0 %v10989
  %v10991 = vpop.xlane.xlu0 %10990
  %v10992 = vsel %vm186, %v10926, 0.0
  %10993 = vadd.xlane.f32.xlu0 %v10992
  %v10994 = vpop.xlane.xlu0 %10993
  %v10995 = vsel %vm186, %v10927, 0.0
  %10996 = vadd.xlane.f32.xlu0 %v10995
  %v10997 = vpop.xlane.xlu0 %10996
  %v10998 = vsel %vm186, %v10928, 0.0
  %10999 = vadd.xlane.f32.xlu0 %v10998
  %v11000 = vpop.xlane.xlu0 %10999
  %v11001 = vsel %vm186, %v10929, 0.0
  %11002 = vadd.xlane.f32.xlu0 %v11001
  %v11003 = vpop.xlane.xlu0 %11002
  %v11004 = vsel %vm186, %v10930, 0.0
  %11005 = vadd.xlane.f32.xlu0 %v11004
  %v11006 = vpop.xlane.xlu0 %11005
  %v11007 = vsel %vm186, %v10931, 0.0
  %11008 = vadd.xlane.f32.xlu0 %v11007
  %v11009 = vpop.xlane.xlu0 %11008
  %v11010 = vsel %vm186, %v10932, 0.0
  %11011 = vadd.xlane.f32.xlu0 %v11010
  %v11012 = vpop.xlane.xlu0 %11011
  %v11013 = vsel %vm186, %v10933, 0.0
  %11014 = vadd.xlane.f32.xlu0 %v11013
  %v11015 = vpop.xlane.xlu0 %11014
  %v11016 = vsel %vm186, %v10934, 0.0
  %11017 = vadd.xlane.f32.xlu0 %v11016
  %v11018 = vpop.xlane.xlu0 %11017
  %v11019 = vsel %vm186, %v10935, 0.0
  %11020 = vadd.xlane.f32.xlu0 %v11019
  %v11021 = vpop.xlane.xlu0 %11020
  %v11022 = vsel %vm186, %v10936, 0.0
  %11023 = vadd.xlane.f32.xlu0 %v11022
  %v11024 = vpop.xlane.xlu0 %11023
  %v11025 = vsel %vm186, %v10937, 0.0
  %11026 = vadd.xlane.f32.xlu0 %v11025
  %v11027 = vpop.xlane.xlu0 %11026
  %v11028 = vsel %vm186, %v10938, 0.0
  %11029 = vadd.xlane.f32.xlu0 %v11028
  %v11030 = vpop.xlane.xlu0 %11029
  %v11031 = vsel %vm186, %v10939, 0.0
  %11032 = vadd.xlane.f32.xlu0 %v11031
  %v11033 = vpop.xlane.xlu0 %11032
  %v11034 = vsel %vm186, %v10940, 0.0
  %11035 = vadd.xlane.f32.xlu0 %v11034
  %v11036 = vpop.xlane.xlu0 %11035
  %v11037 = vsel %vm186, %v10941, 0.0
  %11038 = vadd.xlane.f32.xlu0 %v11037
  %v11039 = vpop.xlane.xlu0 %11038
  %v11040 = vsel %vm186, %v10942, 0.0
  %11041 = vadd.xlane.f32.xlu0 %v11040
  %v11042 = vpop.xlane.xlu0 %11041
  %v11043 = vsel %vm186, %v10943, 0.0
  %11044 = vadd.xlane.f32.xlu0 %v11043
  %v11045 = vpop.xlane.xlu0 %11044
  %v11046 = vsel %vm186, %v10944, 0.0
  %11047 = vadd.xlane.f32.xlu0 %v11046
  %v11048 = vpop.xlane.xlu0 %11047
  %v11049 = vsel %vm186, %v10945, 0.0
  %11050 = vadd.xlane.f32.xlu0 %v11049
  %v11051 = vpop.xlane.xlu0 %11050
  %v11052 = vsel %vm186, %v10946, 0.0
  %11053 = vadd.xlane.f32.xlu0 %v11052
  %v11054 = vpop.xlane.xlu0 %11053
  %v11055 = vsel %vm186, %v10947, 0.0
  %11056 = vadd.xlane.f32.xlu0 %v11055
  %v11057 = vpop.xlane.xlu0 %11056
  %v11058 = vsel %vm186, %v10948, 0.0
  %11059 = vadd.xlane.f32.xlu0 %v11058
  %v11060 = vpop.xlane.xlu0 %11059
  %v11061 = vsel %vm186, %v10949, 0.0
  %11062 = vadd.xlane.f32.xlu0 %v11061
  %v11063 = vpop.xlane.xlu0 %11062
  %v11064 = vsel %vm186, %v10950, 0.0
  %11065 = vadd.xlane.f32.xlu0 %v11064
  %v11066 = vpop.xlane.xlu0 %11065
  %v11067 = vsel %vm186, %v10951, 0.0
  %11068 = vadd.xlane.f32.xlu0 %v11067
  %v11069 = vpop.xlane.xlu0 %11068
  %v11070 = vsel %vm186, %v10952, 0.0
  %11071 = vadd.xlane.f32.xlu0 %v11070
  %v11072 = vpop.xlane.xlu0 %11071
  %v11073 = vsel %vm186, %v10953, 0.0
  %11074 = vadd.xlane.f32.xlu0 %v11073
  %v11075 = vpop.xlane.xlu0 %11074
  %v11076 = vsel %vm186, %v10954, 0.0
  %11077 = vadd.xlane.f32.xlu0 %v11076
  %v11078 = vpop.xlane.xlu0 %11077
  %v11079 = vsel %vm186, %v10955, 0.0
  %11080 = vadd.xlane.f32.xlu0 %v11079
  %v11081 = vpop.xlane.xlu0 %11080
  %v11082 = vsel %vm186, %v10956, 0.0
  %11083 = vadd.xlane.f32.xlu0 %v11082
  %v11084 = vpop.xlane.xlu0 %11083
  %v11085 = vsel %vm186, %v10957, 0.0
  %11086 = vadd.xlane.f32.xlu0 %v11085
  %v11087 = vpop.xlane.xlu0 %11086
  %v11088 = vsel %vm186, %v10958, 0.0
  %11089 = vadd.xlane.f32.xlu0 %v11088
  %v11090 = vpop.xlane.xlu0 %11089
  %v11091 = vsel %vm186, %v10959, 0.0
  %11092 = vadd.xlane.f32.xlu0 %v11091
  %v11093 = vpop.xlane.xlu0 %11092
  %v11094 = vsel %vm186, %v10960, 0.0
  %11095 = vadd.xlane.f32.xlu0 %v11094
  %v11096 = vpop.xlane.xlu0 %11095
  %v11097 = vsel %vm186, %v10961, 0.0
  %11098 = vadd.xlane.f32.xlu0 %v11097
  %v11099 = vpop.xlane.xlu0 %11098
  %v11100 = vsel %vm186, %v10962, 0.0
  %11101 = vadd.xlane.f32.xlu0 %v11100
  %v11102 = vpop.xlane.xlu0 %11101
  %v11103 = vsel %vm186, %v10963, 0.0
  %11104 = vadd.xlane.f32.xlu0 %v11103
  %v11105 = vpop.xlane.xlu0 %11104
  %v11106 = vsel %vm186, %v10964, 0.0
  %11107 = vadd.xlane.f32.xlu0 %v11106
  %v11108 = vpop.xlane.xlu0 %11107
  %v11109 = vsel %vm186, %v10965, 0.0
  %11110 = vadd.xlane.f32.xlu0 %v11109
  %v11111 = vpop.xlane.xlu0 %11110
  %v11112 = vsel %vm186, %v10966, 0.0
  %11113 = vadd.xlane.f32.xlu0 %v11112
  %v11114 = vpop.xlane.xlu0 %11113
  %v11115 = vsel %vm186, %v10967, 0.0
  %11116 = vadd.xlane.f32.xlu0 %v11115
  %v11117 = vpop.xlane.xlu0 %11116
  %v11118 = vsel %vm186, %v10968, 0.0
  %11119 = vadd.xlane.f32.xlu0 %v11118
  %v11120 = vpop.xlane.xlu0 %11119
  %v11121 = vsel %vm186, %v10969, 0.0
  %11122 = vadd.xlane.f32.xlu0 %v11121
  %v11123 = vpop.xlane.xlu0 %11122
  %v11124 = vsel %vm186, %v10970, 0.0
  %11125 = vadd.xlane.f32.xlu0 %v11124
  %v11126 = vpop.xlane.xlu0 %11125
  %v11127 = vsel %vm186, %v10971, 0.0
  %11128 = vadd.xlane.f32.xlu0 %v11127
  %v11129 = vpop.xlane.xlu0 %11128
  %v11130 = vsel %vm186, %v10972, 0.0
  %11131 = vadd.xlane.f32.xlu0 %v11130
  %v11132 = vpop.xlane.xlu0 %11131
  %v11133 = vsel %vm186, %v10973, 0.0
  %11134 = vadd.xlane.f32.xlu0 %v11133
  %v11135 = vpop.xlane.xlu0 %11134
  %v11136 = vsel %vm186, %v10974, 0.0
  %11137 = vadd.xlane.f32.xlu0 %v11136
  %v11138 = vpop.xlane.xlu0 %11137
  %v11139 = vsel %vm186, %v10975, 0.0
  %11140 = vadd.xlane.f32.xlu0 %v11139
  %v11141 = vpop.xlane.xlu0 %11140
  %v11142 = vsel %vm186, %v10976, 0.0
  %11143 = vadd.xlane.f32.xlu0 %v11142
  %v11144 = vpop.xlane.xlu0 %11143
  %v11145 = vsel %vm186, %v10977, 0.0
  %11146 = vadd.xlane.f32.xlu0 %v11145
  %v11147 = vpop.xlane.xlu0 %11146
  %v11148 = vsel %vm186, %v10978, 0.0
  %11149 = vadd.xlane.f32.xlu0 %v11148
  %v11150 = vpop.xlane.xlu0 %11149
  %v11151 = vsel %vm186, %v10979, 0.0
  %11152 = vadd.xlane.f32.xlu0 %v11151
  %v11153 = vpop.xlane.xlu0 %11152
  %v11154 = vsel %vm186, %v10980, 0.0
  %11155 = vadd.xlane.f32.xlu0 %v11154
  %v11156 = vpop.xlane.xlu0 %11155
  %v11157 = vsel %vm186, %v10981, 0.0
  %11158 = vadd.xlane.f32.xlu0 %v11157
  %v11159 = vpop.xlane.xlu0 %11158
  %v11160 = vsel %vm186, %v10982, 0.0
  %11161 = vadd.xlane.f32.xlu0 %v11160
  %v11162 = vpop.xlane.xlu0 %11161
  %v11163 = vsel %vm186, %v10983, 0.0
  %11164 = vadd.xlane.f32.xlu0 %v11163
  %v11165 = vpop.xlane.xlu0 %11164
  %v11166 = vsel %vm186, %v10984, 0.0
  %11167 = vadd.xlane.f32.xlu0 %v11166
  %v11168 = vpop.xlane.xlu0 %11167
  %v11169 = vsel %vm186, %v10985, 0.0
  %11170 = vadd.xlane.f32.xlu0 %v11169
  %v11171 = vpop.xlane.xlu0 %11170
  %v11172 = vsel %vm186, %v10986, 0.0
  %11173 = vadd.xlane.f32.xlu0 %v11172
  %v11174 = vpop.xlane.xlu0 %11173
  %v11175 = vsel %vm186, %v10987, 0.0
  %11176 = vadd.xlane.f32.xlu0 %v11175
  %v11177 = vpop.xlane.xlu0 %11176
  %v11178 = vsel %vm186, %v10988, 0.0
  %11179 = vadd.xlane.f32.xlu0 %v11178
  %v11180 = vpop.xlane.xlu0 %11179
  %v11181 = vmul.f32 %v10991, %v5401
  %v11182 = vmul.f32 %v10994, %v5401
  %v11183 = vmul.f32 %v10997, %v5401
  %v11184 = vmul.f32 %v11000, %v5401
  %v11185 = vmul.f32 %v11003, %v5401
  %v11186 = vmul.f32 %v11006, %v5401
  %v11187 = vmul.f32 %v11009, %v5401
  %v11188 = vmul.f32 %v11012, %v5401
  %v11189 = vmul.f32 %v11015, %v5401
  %v11190 = vmul.f32 %v11018, %v5401
  %v11191 = vmul.f32 %v11021, %v5401
  %v11192 = vmul.f32 %v11024, %v5401
  %v11193 = vmul.f32 %v11027, %v5401
  %v11194 = vmul.f32 %v11030, %v5401
  %v11195 = vmul.f32 %v11033, %v5401
  %v11196 = vmul.f32 %v11036, %v5401
  %v11197 = vmul.f32 %v11039, %v5401
  %v11198 = vmul.f32 %v11042, %v5401
  %v11199 = vmul.f32 %v11045, %v5401
  %v11200 = vmul.f32 %v11048, %v5401
  %v11201 = vmul.f32 %v11051, %v5401
  %v11202 = vmul.f32 %v11054, %v5401
  %v11203 = vmul.f32 %v11057, %v5401
  %v11204 = vmul.f32 %v11060, %v5401
  %v11205 = vmul.f32 %v11063, %v5401
  %v11206 = vmul.f32 %v11066, %v5401
  %v11207 = vmul.f32 %v11069, %v5401
  %v11208 = vmul.f32 %v11072, %v5401
  %v11209 = vmul.f32 %v11075, %v5401
  %v11210 = vmul.f32 %v11078, %v5401
  %v11211 = vmul.f32 %v11081, %v5401
  %v11212 = vmul.f32 %v11084, %v5401
  %v11213 = vmul.f32 %v11087, %v5401
  %v11214 = vmul.f32 %v11090, %v5401
  %v11215 = vmul.f32 %v11093, %v5401
  %v11216 = vmul.f32 %v11096, %v5401
  %v11217 = vmul.f32 %v11099, %v5401
  %v11218 = vmul.f32 %v11102, %v5401
  %v11219 = vmul.f32 %v11105, %v5401
  %v11220 = vmul.f32 %v11108, %v5401
  %v11221 = vmul.f32 %v11111, %v5401
  %v11222 = vmul.f32 %v11114, %v5401
  %v11223 = vmul.f32 %v11117, %v5401
  %v11224 = vmul.f32 %v11120, %v5401
  %v11225 = vmul.f32 %v11123, %v5401
  %v11226 = vmul.f32 %v11126, %v5401
  %v11227 = vmul.f32 %v11129, %v5401
  %v11228 = vmul.f32 %v11132, %v5401
  %v11229 = vmul.f32 %v11135, %v5401
  %v11230 = vmul.f32 %v11138, %v5401
  %v11231 = vmul.f32 %v11141, %v5401
  %v11232 = vmul.f32 %v11144, %v5401
  %v11233 = vmul.f32 %v11147, %v5401
  %v11234 = vmul.f32 %v11150, %v5401
  %v11235 = vmul.f32 %v11153, %v5401
  %v11236 = vmul.f32 %v11156, %v5401
  %v11237 = vmul.f32 %v11159, %v5401
  %v11238 = vmul.f32 %v11162, %v5401
  %v11239 = vmul.f32 %v11165, %v5401
  %v11240 = vmul.f32 %v11168, %v5401
  %v11241 = vmul.f32 %v11171, %v5401
  %v11242 = vmul.f32 %v11174, %v5401
  %v11243 = vmul.f32 %v11177, %v5401
  %v11244 = vmul.f32 %v11180, %v5401
  %v11245 = vadd.f32 %v11181, 1e-06
  %v11246 = vadd.f32 %v11182, 1e-06
  %v11247 = vadd.f32 %v11183, 1e-06
  %v11248 = vadd.f32 %v11184, 1e-06
  %v11249 = vadd.f32 %v11185, 1e-06
  %v11250 = vadd.f32 %v11186, 1e-06
  %v11251 = vadd.f32 %v11187, 1e-06
  %v11252 = vadd.f32 %v11188, 1e-06
  %v11253 = vadd.f32 %v11189, 1e-06
  %v11254 = vadd.f32 %v11190, 1e-06
  %v11255 = vadd.f32 %v11191, 1e-06
  %v11256 = vadd.f32 %v11192, 1e-06
  %v11257 = vadd.f32 %v11193, 1e-06
  %v11258 = vadd.f32 %v11194, 1e-06
  %v11259 = vadd.f32 %v11195, 1e-06
  %v11260 = vadd.f32 %v11196, 1e-06
  %v11261 = vadd.f32 %v11197, 1e-06
  %v11262 = vadd.f32 %v11198, 1e-06
  %v11263 = vadd.f32 %v11199, 1e-06
  %v11264 = vadd.f32 %v11200, 1e-06
  %v11265 = vadd.f32 %v11201, 1e-06
  %v11266 = vadd.f32 %v11202, 1e-06
  %v11267 = vadd.f32 %v11203, 1e-06
  %v11268 = vadd.f32 %v11204, 1e-06
  %v11269 = vadd.f32 %v11205, 1e-06
  %v11270 = vadd.f32 %v11206, 1e-06
  %v11271 = vadd.f32 %v11207, 1e-06
  %v11272 = vadd.f32 %v11208, 1e-06
  %v11273 = vadd.f32 %v11209, 1e-06
  %v11274 = vadd.f32 %v11210, 1e-06
  %v11275 = vadd.f32 %v11211, 1e-06
  %v11276 = vadd.f32 %v11212, 1e-06
  %v11277 = vadd.f32 %v11213, 1e-06
  %v11278 = vadd.f32 %v11214, 1e-06
  %v11279 = vadd.f32 %v11215, 1e-06
  %v11280 = vadd.f32 %v11216, 1e-06
  %v11281 = vadd.f32 %v11217, 1e-06
  %v11282 = vadd.f32 %v11218, 1e-06
  %v11283 = vadd.f32 %v11219, 1e-06
  %v11284 = vadd.f32 %v11220, 1e-06
  %v11285 = vadd.f32 %v11221, 1e-06
  %v11286 = vadd.f32 %v11222, 1e-06
  %v11287 = vadd.f32 %v11223, 1e-06
  %v11288 = vadd.f32 %v11224, 1e-06
  %v11289 = vadd.f32 %v11225, 1e-06
  %v11290 = vadd.f32 %v11226, 1e-06
  %v11291 = vadd.f32 %v11227, 1e-06
  %v11292 = vadd.f32 %v11228, 1e-06
  %v11293 = vadd.f32 %v11229, 1e-06
  %v11294 = vadd.f32 %v11230, 1e-06
  %v11295 = vadd.f32 %v11231, 1e-06
  %v11296 = vadd.f32 %v11232, 1e-06
  %v11297 = vadd.f32 %v11233, 1e-06
  %v11298 = vadd.f32 %v11234, 1e-06
  %v11299 = vadd.f32 %v11235, 1e-06
  %v11300 = vadd.f32 %v11236, 1e-06
  %v11301 = vadd.f32 %v11237, 1e-06
  %v11302 = vadd.f32 %v11238, 1e-06
  %v11303 = vadd.f32 %v11239, 1e-06
  %v11304 = vadd.f32 %v11240, 1e-06
  %v11305 = vadd.f32 %v11241, 1e-06
  %v11306 = vadd.f32 %v11242, 1e-06
  %v11307 = vadd.f32 %v11243, 1e-06
  %v11308 = vadd.f32 %v11244, 1e-06
  %v11309 = vrsqrt.pop %v11245
  %v11310 = vrsqrt.pop %v11246
  %v11311 = vrsqrt.pop %v11247
  %v11312 = vrsqrt.pop %v11248
  %v11313 = vrsqrt.pop %v11249
  %v11314 = vrsqrt.pop %v11250
  %v11315 = vrsqrt.pop %v11251
  %v11316 = vrsqrt.pop %v11252
  %v11317 = vrsqrt.pop %v11253
  %v11318 = vrsqrt.pop %v11254
  %v11319 = vrsqrt.pop %v11255
  %v11320 = vrsqrt.pop %v11256
  %v11321 = vrsqrt.pop %v11257
  %v11322 = vrsqrt.pop %v11258
  %v11323 = vrsqrt.pop %v11259
  %v11324 = vrsqrt.pop %v11260
  %v11325 = vrsqrt.pop %v11261
  %v11326 = vrsqrt.pop %v11262
  %v11327 = vrsqrt.pop %v11263
  %v11328 = vrsqrt.pop %v11264
  %v11329 = vrsqrt.pop %v11265
  %v11330 = vrsqrt.pop %v11266
  %v11331 = vrsqrt.pop %v11267
  %v11332 = vrsqrt.pop %v11268
  %v11333 = vrsqrt.pop %v11269
  %v11334 = vrsqrt.pop %v11270
  %v11335 = vrsqrt.pop %v11271
  %v11336 = vrsqrt.pop %v11272
  %v11337 = vrsqrt.pop %v11273
  %v11338 = vrsqrt.pop %v11274
  %v11339 = vrsqrt.pop %v11275
  %v11340 = vrsqrt.pop %v11276
  %v11341 = vrsqrt.pop %v11277
  %v11342 = vrsqrt.pop %v11278
  %v11343 = vrsqrt.pop %v11279
  %v11344 = vrsqrt.pop %v11280
  %v11345 = vrsqrt.pop %v11281
  %v11346 = vrsqrt.pop %v11282
  %v11347 = vrsqrt.pop %v11283
  %v11348 = vrsqrt.pop %v11284
  %v11349 = vrsqrt.pop %v11285
  %v11350 = vrsqrt.pop %v11286
  %v11351 = vrsqrt.pop %v11287
  %v11352 = vrsqrt.pop %v11288
  %v11353 = vrsqrt.pop %v11289
  %v11354 = vrsqrt.pop %v11290
  %v11355 = vrsqrt.pop %v11291
  %v11356 = vrsqrt.pop %v11292
  %v11357 = vrsqrt.pop %v11293
  %v11358 = vrsqrt.pop %v11294
  %v11359 = vrsqrt.pop %v11295
  %v11360 = vrsqrt.pop %v11296
  %v11361 = vrsqrt.pop %v11297
  %v11362 = vrsqrt.pop %v11298
  %v11363 = vrsqrt.pop %v11299
  %v11364 = vrsqrt.pop %v11300
  %v11365 = vrsqrt.pop %v11301
  %v11366 = vrsqrt.pop %v11302
  %v11367 = vrsqrt.pop %v11303
  %v11368 = vrsqrt.pop %v11304
  %v11369 = vrsqrt.pop %v11305
  %v11370 = vrsqrt.pop %v11306
  %v11371 = vrsqrt.pop %v11307
  %v11372 = vrsqrt.pop %v11308
  %v11373 = vmul.f32 %v10861, %v11309
  %v11374 = vmul.f32 %v10862, %v11310
  %v11375 = vmul.f32 %v10863, %v11311
  %v11376 = vmul.f32 %v10864, %v11312
  %v11377 = vmul.f32 %v10865, %v11313
  %v11378 = vmul.f32 %v10866, %v11314
  %v11379 = vmul.f32 %v10867, %v11315
  %v11380 = vmul.f32 %v10868, %v11316
  %v11381 = vmul.f32 %v10869, %v11317
  %v11382 = vmul.f32 %v10870, %v11318
  %v11383 = vmul.f32 %v10871, %v11319
  %v11384 = vmul.f32 %v10872, %v11320
  %v11385 = vmul.f32 %v10873, %v11321
  %v11386 = vmul.f32 %v10874, %v11322
  %v11387 = vmul.f32 %v10875, %v11323
  %v11388 = vmul.f32 %v10876, %v11324
  %v11389 = vmul.f32 %v10877, %v11325
  %v11390 = vmul.f32 %v10878, %v11326
  %v11391 = vmul.f32 %v10879, %v11327
  %v11392 = vmul.f32 %v10880, %v11328
  %v11393 = vmul.f32 %v10881, %v11329
  %v11394 = vmul.f32 %v10882, %v11330
  %v11395 = vmul.f32 %v10883, %v11331
  %v11396 = vmul.f32 %v10884, %v11332
  %v11397 = vmul.f32 %v10885, %v11333
  %v11398 = vmul.f32 %v10886, %v11334
  %v11399 = vmul.f32 %v10887, %v11335
  %v11400 = vmul.f32 %v10888, %v11336
  %v11401 = vmul.f32 %v10889, %v11337
  %v11402 = vmul.f32 %v10890, %v11338
  %v11403 = vmul.f32 %v10891, %v11339
  %v11404 = vmul.f32 %v10892, %v11340
  %v11405 = vmul.f32 %v10893, %v11341
  %v11406 = vmul.f32 %v10894, %v11342
  %v11407 = vmul.f32 %v10895, %v11343
  %v11408 = vmul.f32 %v10896, %v11344
  %v11409 = vmul.f32 %v10897, %v11345
  %v11410 = vmul.f32 %v10898, %v11346
  %v11411 = vmul.f32 %v10899, %v11347
  %v11412 = vmul.f32 %v10900, %v11348
  %v11413 = vmul.f32 %v10901, %v11349
  %v11414 = vmul.f32 %v10902, %v11350
  %v11415 = vmul.f32 %v10903, %v11351
  %v11416 = vmul.f32 %v10904, %v11352
  %v11417 = vmul.f32 %v10905, %v11353
  %v11418 = vmul.f32 %v10906, %v11354
  %v11419 = vmul.f32 %v10907, %v11355
  %v11420 = vmul.f32 %v10908, %v11356
  %v11421 = vmul.f32 %v10909, %v11357
  %v11422 = vmul.f32 %v10910, %v11358
  %v11423 = vmul.f32 %v10911, %v11359
  %v11424 = vmul.f32 %v10912, %v11360
  %v11425 = vmul.f32 %v10913, %v11361
  %v11426 = vmul.f32 %v10914, %v11362
  %v11427 = vmul.f32 %v10915, %v11363
  %v11428 = vmul.f32 %v10916, %v11364
  %v11429 = vmul.f32 %v10917, %v11365
  %v11430 = vmul.f32 %v10918, %v11366
  %v11431 = vmul.f32 %v10919, %v11367
  %v11432 = vmul.f32 %v10920, %v11368
  %v11433 = vmul.f32 %v10921, %v11369
  %v11434 = vmul.f32 %v10922, %v11370
  %v11435 = vmul.f32 %v10923, %v11371
  %v11436 = vmul.f32 %v10924, %v11372
  %v11438 = vlaneseq
  %v11439 = vshrl.u32 %v11438, 7
  %v11440 = vsub.s32 0, %v11439
  %v11441 = vrot.slane %v10603, %v11440
  %v11443 = vmul.f32 %v11373, %v11441
  %v11444 = vmul.f32 %v11374, %v11441
  %v11445 = vmul.f32 %v11375, %v11441
  %v11446 = vmul.f32 %v11376, %v11441
  %v11447 = vmul.f32 %v11377, %v11441
  %v11448 = vmul.f32 %v11378, %v11441
  %v11449 = vmul.f32 %v11379, %v11441
  %v11450 = vmul.f32 %v11380, %v11441
  %v11451 = vmul.f32 %v11381, %v11441
  %v11452 = vmul.f32 %v11382, %v11441
  %v11453 = vmul.f32 %v11383, %v11441
  %v11454 = vmul.f32 %v11384, %v11441
  %v11455 = vmul.f32 %v11385, %v11441
  %v11456 = vmul.f32 %v11386, %v11441
  %v11457 = vmul.f32 %v11387, %v11441
  %v11458 = vmul.f32 %v11388, %v11441
  %v11459 = vmul.f32 %v11389, %v11441
  %v11460 = vmul.f32 %v11390, %v11441
  %v11461 = vmul.f32 %v11391, %v11441
  %v11462 = vmul.f32 %v11392, %v11441
  %v11463 = vmul.f32 %v11393, %v11441
  %v11464 = vmul.f32 %v11394, %v11441
  %v11465 = vmul.f32 %v11395, %v11441
  %v11466 = vmul.f32 %v11396, %v11441
  %v11467 = vmul.f32 %v11397, %v11441
  %v11468 = vmul.f32 %v11398, %v11441
  %v11469 = vmul.f32 %v11399, %v11441
  %v11470 = vmul.f32 %v11400, %v11441
  %v11471 = vmul.f32 %v11401, %v11441
  %v11472 = vmul.f32 %v11402, %v11441
  %v11473 = vmul.f32 %v11403, %v11441
  %v11474 = vmul.f32 %v11404, %v11441
  %v11475 = vmul.f32 %v11405, %v11441
  %v11476 = vmul.f32 %v11406, %v11441
  %v11477 = vmul.f32 %v11407, %v11441
  %v11478 = vmul.f32 %v11408, %v11441
  %v11479 = vmul.f32 %v11409, %v11441
  %v11480 = vmul.f32 %v11410, %v11441
  %v11481 = vmul.f32 %v11411, %v11441
  %v11482 = vmul.f32 %v11412, %v11441
  %v11483 = vmul.f32 %v11413, %v11441
  %v11484 = vmul.f32 %v11414, %v11441
  %v11485 = vmul.f32 %v11415, %v11441
  %v11486 = vmul.f32 %v11416, %v11441
  %v11487 = vmul.f32 %v11417, %v11441
  %v11488 = vmul.f32 %v11418, %v11441
  %v11489 = vmul.f32 %v11419, %v11441
  %v11490 = vmul.f32 %v11420, %v11441
  %v11491 = vmul.f32 %v11421, %v11441
  %v11492 = vmul.f32 %v11422, %v11441
  %v11493 = vmul.f32 %v11423, %v11441
  %v11494 = vmul.f32 %v11424, %v11441
  %v11495 = vmul.f32 %v11425, %v11441
  %v11496 = vmul.f32 %v11426, %v11441
  %v11497 = vmul.f32 %v11427, %v11441
  %v11498 = vmul.f32 %v11428, %v11441
  %v11499 = vmul.f32 %v11429, %v11441
  %v11500 = vmul.f32 %v11430, %v11441
  %v11501 = vmul.f32 %v11431, %v11441
  %v11502 = vmul.f32 %v11432, %v11441
  %v11503 = vmul.f32 %v11433, %v11441
  %v11504 = vmul.f32 %v11434, %v11441
  %v11505 = vmul.f32 %v11435, %v11441
  %v11506 = vmul.f32 %v11436, %v11441
  %v11508 = vlaneseq
  %v11509 = vshrl.u32 %v11508, 7
  %v11510 = vsub.s32 0, %v11509
  %v11511 = vrot.slane %v10604, %v11510
  %v11513 = vadd.f32 %v11443, %v11511
  %v11514 = vadd.f32 %v11444, %v11511
  %v11515 = vadd.f32 %v11445, %v11511
  %v11516 = vadd.f32 %v11446, %v11511
  %v11517 = vadd.f32 %v11447, %v11511
  %v11518 = vadd.f32 %v11448, %v11511
  %v11519 = vadd.f32 %v11449, %v11511
  %v11520 = vadd.f32 %v11450, %v11511
  %v11521 = vadd.f32 %v11451, %v11511
  %v11522 = vadd.f32 %v11452, %v11511
  %v11523 = vadd.f32 %v11453, %v11511
  %v11524 = vadd.f32 %v11454, %v11511
  %v11525 = vadd.f32 %v11455, %v11511
  %v11526 = vadd.f32 %v11456, %v11511
  %v11527 = vadd.f32 %v11457, %v11511
  %v11528 = vadd.f32 %v11458, %v11511
  %v11529 = vadd.f32 %v11459, %v11511
  %v11530 = vadd.f32 %v11460, %v11511
  %v11531 = vadd.f32 %v11461, %v11511
  %v11532 = vadd.f32 %v11462, %v11511
  %v11533 = vadd.f32 %v11463, %v11511
  %v11534 = vadd.f32 %v11464, %v11511
  %v11535 = vadd.f32 %v11465, %v11511
  %v11536 = vadd.f32 %v11466, %v11511
  %v11537 = vadd.f32 %v11467, %v11511
  %v11538 = vadd.f32 %v11468, %v11511
  %v11539 = vadd.f32 %v11469, %v11511
  %v11540 = vadd.f32 %v11470, %v11511
  %v11541 = vadd.f32 %v11471, %v11511
  %v11542 = vadd.f32 %v11472, %v11511
  %v11543 = vadd.f32 %v11473, %v11511
  %v11544 = vadd.f32 %v11474, %v11511
  %v11545 = vadd.f32 %v11475, %v11511
  %v11546 = vadd.f32 %v11476, %v11511
  %v11547 = vadd.f32 %v11477, %v11511
  %v11548 = vadd.f32 %v11478, %v11511
  %v11549 = vadd.f32 %v11479, %v11511
  %v11550 = vadd.f32 %v11480, %v11511
  %v11551 = vadd.f32 %v11481, %v11511
  %v11552 = vadd.f32 %v11482, %v11511
  %v11553 = vadd.f32 %v11483, %v11511
  %v11554 = vadd.f32 %v11484, %v11511
  %v11555 = vadd.f32 %v11485, %v11511
  %v11556 = vadd.f32 %v11486, %v11511
  %v11557 = vadd.f32 %v11487, %v11511
  %v11558 = vadd.f32 %v11488, %v11511
  %v11559 = vadd.f32 %v11489, %v11511
  %v11560 = vadd.f32 %v11490, %v11511
  %v11561 = vadd.f32 %v11491, %v11511
  %v11562 = vadd.f32 %v11492, %v11511
  %v11563 = vadd.f32 %v11493, %v11511
  %v11564 = vadd.f32 %v11494, %v11511
  %v11565 = vadd.f32 %v11495, %v11511
  %v11566 = vadd.f32 %v11496, %v11511
  %v11567 = vadd.f32 %v11497, %v11511
  %v11568 = vadd.f32 %v11498, %v11511
  %v11569 = vadd.f32 %v11499, %v11511
  %v11570 = vadd.f32 %v11500, %v11511
  %v11571 = vadd.f32 %v11501, %v11511
  %v11572 = vadd.f32 %v11502, %v11511
  %v11573 = vadd.f32 %v11503, %v11511
  %v11574 = vadd.f32 %v11504, %v11511
  %v11575 = vadd.f32 %v11505, %v11511
  %v11576 = vadd.f32 %v11506, %v11511
  %11577 = vst.msk [vmem:[%s12] sm:$0xff] %vm186, %v11513
  %11578 = vst.msk [vmem:[%s12 + $0x8] sm:$0xff] %vm186, %v11514
  %11579 = vst.msk [vmem:[%s12 + $0x10] sm:$0xff] %vm186, %v11515
  %11580 = vst.msk [vmem:[%s12 + $0x18] sm:$0xff] %vm186, %v11516
  %11581 = vst.msk [vmem:[%s12 + $0x20] sm:$0xff] %vm186, %v11517
  %11582 = vst.msk [vmem:[%s12 + $0x28] sm:$0xff] %vm186, %v11518
  %11583 = vst.msk [vmem:[%s12 + $0x30] sm:$0xff] %vm186, %v11519
  %11584 = vst.msk [vmem:[%s12 + $0x38] sm:$0xff] %vm186, %v11520
  %11585 = vst.msk [vmem:[%s12 + $0x40] sm:$0xff] %vm186, %v11521
  %11586 = vst.msk [vmem:[%s12 + $0x48] sm:$0xff] %vm186, %v11522
  %11587 = vst.msk [vmem:[%s12 + $0x50] sm:$0xff] %vm186, %v11523
  %11588 = vst.msk [vmem:[%s12 + $0x58] sm:$0xff] %vm186, %v11524
  %11589 = vst.msk [vmem:[%s12 + $0x60] sm:$0xff] %vm186, %v11525
  %11590 = vst.msk [vmem:[%s12 + $0x68] sm:$0xff] %vm186, %v11526
  %11591 = vst.msk [vmem:[%s12 + $0x70] sm:$0xff] %vm186, %v11527
  %11592 = vst.msk [vmem:[%s12 + $0x78] sm:$0xff] %vm186, %v11528
  %11593 = vst.msk [vmem:[%s12 + $0x80] sm:$0xff] %vm186, %v11529
  %11594 = vst.msk [vmem:[%s12 + $0x88] sm:$0xff] %vm186, %v11530
  %11595 = vst.msk [vmem:[%s12 + $0x90] sm:$0xff] %vm186, %v11531
  %11596 = vst.msk [vmem:[%s12 + $0x98] sm:$0xff] %vm186, %v11532
  %11597 = vst.msk [vmem:[%s12 + $0xa0] sm:$0xff] %vm186, %v11533
  %11598 = vst.msk [vmem:[%s12 + $0xa8] sm:$0xff] %vm186, %v11534
  %11599 = vst.msk [vmem:[%s12 + $0xb0] sm:$0xff] %vm186, %v11535
  %11600 = vst.msk [vmem:[%s12 + $0xb8] sm:$0xff] %vm186, %v11536
  %11601 = vst.msk [vmem:[%s12 + $0xc0] sm:$0xff] %vm186, %v11537
  %11602 = vst.msk [vmem:[%s12 + $0xc8] sm:$0xff] %vm186, %v11538
  %11603 = vst.msk [vmem:[%s12 + $0xd0] sm:$0xff] %vm186, %v11539
  %11604 = vst.msk [vmem:[%s12 + $0xd8] sm:$0xff] %vm186, %v11540
  %11605 = vst.msk [vmem:[%s12 + $0xe0] sm:$0xff] %vm186, %v11541
  %11606 = vst.msk [vmem:[%s12 + $0xe8] sm:$0xff] %vm186, %v11542
  %11607 = vst.msk [vmem:[%s12 + $0xf0] sm:$0xff] %vm186, %v11543
  %11608 = vst.msk [vmem:[%s12 + $0xf8] sm:$0xff] %vm186, %v11544
  %11609 = vst.msk [vmem:[%s12 + $0x100] sm:$0xff] %vm186, %v11545
  %11610 = vst.msk [vmem:[%s12 + $0x108] sm:$0xff] %vm186, %v11546
  %11611 = vst.msk [vmem:[%s12 + $0x110] sm:$0xff] %vm186, %v11547
  %11612 = vst.msk [vmem:[%s12 + $0x118] sm:$0xff] %vm186, %v11548
  %11613 = vst.msk [vmem:[%s12 + $0x120] sm:$0xff] %vm186, %v11549
  %11614 = vst.msk [vmem:[%s12 + $0x128] sm:$0xff] %vm186, %v11550
  %11615 = vst.msk [vmem:[%s12 + $0x130] sm:$0xff] %vm186, %v11551
  %11616 = vst.msk [vmem:[%s12 + $0x138] sm:$0xff] %vm186, %v11552
  %11617 = vst.msk [vmem:[%s12 + $0x140] sm:$0xff] %vm186, %v11553
  %11618 = vst.msk [vmem:[%s12 + $0x148] sm:$0xff] %vm186, %v11554
  %11619 = vst.msk [vmem:[%s12 + $0x150] sm:$0xff] %vm186, %v11555
  %11620 = vst.msk [vmem:[%s12 + $0x158] sm:$0xff] %vm186, %v11556
  %11621 = vst.msk [vmem:[%s12 + $0x160] sm:$0xff] %vm186, %v11557
  %11622 = vst.msk [vmem:[%s12 + $0x168] sm:$0xff] %vm186, %v11558
  %11623 = vst.msk [vmem:[%s12 + $0x170] sm:$0xff] %vm186, %v11559
  %11624 = vst.msk [vmem:[%s12 + $0x178] sm:$0xff] %vm186, %v11560
  %11625 = vst.msk [vmem:[%s12 + $0x180] sm:$0xff] %vm186, %v11561
  %11626 = vst.msk [vmem:[%s12 + $0x188] sm:$0xff] %vm186, %v11562
  %11627 = vst.msk [vmem:[%s12 + $0x190] sm:$0xff] %vm186, %v11563
  %11628 = vst.msk [vmem:[%s12 + $0x198] sm:$0xff] %vm186, %v11564
  %11629 = vst.msk [vmem:[%s12 + $0x1a0] sm:$0xff] %vm186, %v11565
  %11630 = vst.msk [vmem:[%s12 + $0x1a8] sm:$0xff] %vm186, %v11566
  %11631 = vst.msk [vmem:[%s12 + $0x1b0] sm:$0xff] %vm186, %v11567
  %11632 = vst.msk [vmem:[%s12 + $0x1b8] sm:$0xff] %vm186, %v11568
  %11633 = vst.msk [vmem:[%s12 + $0x1c0] sm:$0xff] %vm186, %v11569
  %11634 = vst.msk [vmem:[%s12 + $0x1c8] sm:$0xff] %vm186, %v11570
  %11635 = vst.msk [vmem:[%s12 + $0x1d0] sm:$0xff] %vm186, %v11571
  %11636 = vst.msk [vmem:[%s12 + $0x1d8] sm:$0xff] %vm186, %v11572
  %11637 = vst.msk [vmem:[%s12 + $0x1e0] sm:$0xff] %vm186, %v11573
  %11638 = vst.msk [vmem:[%s12 + $0x1e8] sm:$0xff] %vm186, %v11574
  %11639 = vst.msk [vmem:[%s12 + $0x1f0] sm:$0xff] %vm186, %v11575
  %11640 = vst.msk [vmem:[%s12 + $0x1f8] sm:$0xff] %vm186, %v11576
  // Predicated region
  $region50: #{tpu_custom_call.1} parent=0 // pred_check
    _
  $region51: #{tpu_custom_call.1} parent=0 // pred_check_branch
    %11642 = sbr.rel (0) target = $region53
  $region52: #{tpu_custom_call.1} parent=0 // pred_region
    _
  $region53: #{tpu_custom_call.1} parent=0 // pred_fallthru
    _
  // Predicated region
  $region54: #{tpu_custom_call.1} parent=0 // pred_check
    _
  $region55: #{tpu_custom_call.1} parent=0 // pred_check_branch
    %11644 = sbr.rel (0) target = $region57
  $region56: #{tpu_custom_call.1} parent=0 // pred_region
    _
  $region57: #{tpu_custom_call.1} parent=0 // pred_fallthru
    _

</llo_original>
